<compile_context>
chip_gen: v7x
topology: tpu7x:2x2x1
jax: 0.10.0
libtpu: 0.0.40
codegen_flags: <defaults>
</compile_context>

<pallas_src>
import functools

import jax
import jax.numpy as jnp
import numpy as np
from jax.experimental import pallas as pl
from jax.experimental.pallas import tpu as pltpu

_HALO = 8  # halo rows fetched past each tile; covers row offsets q <= 6 < 8


def _cdiv(a, b):
    return -(-a // b)


def _tiling(l_out, max_tile):
    """(tile rows TL, number of tiles, input rows the kernel may touch)."""
    tl = max(8, min(max_tile, _cdiv(l_out, 8) * 8))
    n_l = _cdiv(l_out, tl)
    return tl, n_l, n_l * tl + _HALO


# ------------------------------- conv kernel ---------------------------------

def _tapwise_conv_kernel(x_ref, xh_ref, w_ref, b_ref, o_ref, acc_ref, *, Q, TL):
    """One output tile of a (strided / grouped) 1-D conv as Q accumulating matmuls.

    x_ref:   (TL, D)       input rows [l*TL, (l+1)*TL) (stride-collapsed domain)
    xh_ref:  (8,  D)       halo rows [(l+1)*TL, (l+1)*TL + 8)
    w_ref:   (Q, D, C_out) dense per-row-offset tap weights
    b_ref:   (1, C_out)    bias (f32)
    o_ref:   (TL, C_out)   output tile
    acc_ref: (TL, C_out)   f32 accumulator (VMEM scratch)

    Output row t of the tile needs input rows t+q, q in [0, Q); rows that fall
    past the main block come from the halo block.
    """
    c_out = o_ref.shape[-1]
    acc_ref[...] = jnp.broadcast_to(b_ref[...], (TL, c_out))
    for q in range(Q):
        w_q = w_ref[q]                                    # (D, C_out)
        if q == 0:
            acc_ref[...] += jnp.dot(x_ref[...], w_q,
                                    preferred_element_type=jnp.float32)
        else:
            # rows [0, TL-q): tap stays inside this tile's input block
            acc_ref[0:TL - q, :] += jnp.dot(
                x_ref[q:TL, :], w_q, preferred_element_type=jnp.float32)
            # rows [TL-q, TL): tap crosses into the halo block (q <= 6 rows)
            acc_ref[TL - q:TL, :] += jnp.dot(
                xh_ref[0:q, :], w_q, preferred_element_type=jnp.float32)
    o_ref[...] = acc_ref[...].astype(o_ref.dtype)         # single lane-dense store


def _tapwise_conv(x_rows, w_taps, b2, l_out, tl, n_l, *, out_dtype):
    """x_rows: (N, T_rows, D) zero padded so T_rows >= n_l*tl + 8;
    w_taps: (Q, D, C_out); b2: (1, C_out) f32.  Returns (N, l_out, C_out)."""
    n_b, t_rows, d = x_rows.shape
    q_taps, d_w, c_out = w_taps.shape
    assert d_w == d and t_rows >= n_l * tl + _HALO
    assert tl % 8 == 0 and q_taps <= _HALO

    kernel = functools.partial(_tapwise_conv_kernel, Q=q_taps, TL=tl)
    halo_blk = tl // 8  # halo block index units of 8 rows -> start row (l+1)*tl

    return pl.pallas_call(
        kernel,
        out_shape=jax.ShapeDtypeStruct((n_b, l_out, c_out), out_dtype),
        grid=(n_b, n_l),
        in_specs=[
            # per-tile input window (VMEM footprint is O(TL), not O(clip length))
            pl.BlockSpec((None, tl, d), lambda n, l: (n, l, 0)),
            # 8-row halo just past the tile (same array, tiny extra block)
            pl.BlockSpec((None, _HALO, d), lambda n, l: (n, (l + 1) * halo_blk, 0)),
            # grid-invariant weights / bias (fetched once, stay resident)
            pl.BlockSpec((q_taps, d, c_out), lambda n, l: (0, 0, 0)),
            pl.BlockSpec((1, c_out), lambda n, l: (0, 0)),
        ],
        out_specs=pl.BlockSpec((None, tl, c_out), lambda n, l: (n, l, 0)),
        scratch_shapes=[pltpu.VMEM((tl, c_out), jnp.float32)],
        compiler_params=pltpu.CompilerParams(
            dimension_semantics=("parallel", "parallel"),
            vmem_limit_bytes=32 * 1024 * 1024),
    )(x_rows, x_rows, w_taps, b2)


def conv1d_strided(x, w_taps, b2, *, K, S, P, out_dtype=None, max_tile=512):
    """Strided (grouped -> dense block-diagonal weights) 1-D conv.
    x: (N, L_in, C_in) NLC; w_taps: (Q, S*C_in, C_out), Q = ceil(K/S)."""
    n_b, l_in, c_in = x.shape
    q_taps, d, _ = w_taps.shape
    assert d == S * c_in and q_taps == (K - 1) // S + 1
    l_out = (l_in + 2 * P - K) // S + 1
    tl, n_l, t_need = _tiling(l_out, max_tile)
    right = t_need * S - l_in - P
    assert right >= 0
    # single pad: conv zero-padding + tile round-up merged; the following
    # reshape (contiguous) collapses S consecutive samples into one wide row.
    x_pad = jnp.pad(x, ((0, 0), (P, right), (0, 0)))
    x_rows = x_pad.reshape(n_b, t_need, S * c_in)
    return _tapwise_conv(x_rows, w_taps, b2, l_out, tl, n_l,
                         out_dtype=out_dtype or x.dtype)


# ------------------------------- forward pass --------------------------------

def _forward_impl(params, x_ncl, *, config):
    scale = config["scale"]
    max_tile = config["max_tile"]
    k0, p0 = config["conv0"]
    cdt = params["convs"][0]["w"].dtype
    n_b, _, length = x_ncl.shape
    l_pool = length // scale

    # ---- fused AvgPool1d(scale) + conv0 (stride 1): XLA-side im2col ---------
    tl0, n_l0, t0 = _tiling(l_pool, max_tile)
    raw = x_ncl[:, 0, :l_pool * scale].astype(cdt)
    total = (t0 + k0 - 1) * scale
    raw = jnp.pad(raw, ((0, 0), (p0 * scale, total - (p0 + l_pool) * scale)))
    # k0 strided slices + one concat -> lane-dense (N, T0, 41*scale) windows,
    # so the kernel does a single clean matmul (no in-kernel gathers).
    x_rows0 = jnp.concatenate(
        [raw[:, k * scale:(k + t0) * scale].reshape(n_b, t0, scale)
         for k in range(k0)], axis=-1)
    c0 = params["convs"][0]
    x = _tapwise_conv(x_rows0, c0["w"], c0["b"], l_pool, tl0, n_l0, out_dtype=cdt)
    # F.leaky_relu(x, 0.1) in the PyTorch reference is never assigned -> no-op.
    fmap = [jnp.transpose(x, (0, 2, 1))]  # NCW at the module boundary, like torch

    # ---- strided (grouped) conv stack ----------------------------------------
    for prm, (k, s, p, _) in zip(params["convs"][1:], config["convs"][1:]):
        x = conv1d_strided(x, prm["w"], prm["b"], K=k, S=s, P=p, max_tile=max_tile)
        fmap.append(jnp.transpose(x, (0, 2, 1)))

    # ---- post conv (C_out == 1): tiny layer, f32 logits ----------------------
    kp, sp, ppad, _ = config["post"]
    pp = params["post"]
    logit = conv1d_strided(x, pp["w"], pp["b"], K=kp, S=sp, P=ppad,
                           out_dtype=jnp.float32, max_tile=max_tile)
    return jnp.transpose(logit, (0, 2, 1)), fmap


class DiscriminatorS:
    """Pallas/TPU port of the PyTorch DiscriminatorS (weight_norm == identity at init)."""

    def __init__(self, scale, channels=32, num_layers=4, key=None,
                 compute_dtype=jnp.bfloat16, max_tile=512):
        self.scale = scale
        self.compute_dtype = compute_dtype
        self.max_tile = max_tile
        key = jax.random.PRNGKey(0) if key is None else key

        def init_conv(k, c_out, c_in_g, ksz):
            kw, kb = jax.random.split(k)
            return (0.1 * jax.random.normal(kw, (c_out, c_in_g, ksz), jnp.float32),
                    0.1 * jax.random.normal(kb, (c_out,), jnp.float32))

        # Raw PyTorch-layout parameters (also used by the pure-JAX reference).
        self.raw = []
        c, g = channels, 1
        key, k0 = jax.random.split(key)
        w, b = init_conv(k0, c, 1, 41)
        self.raw.append(dict(w=w, b=b, stride=1, padding=20, groups=1))
        for _ in range(num_layers):
            key, kl = jax.random.split(key)
            w, b = init_conv(kl, 2 * c, c // g, 21)
            self.raw.append(dict(w=w, b=b, stride=3, padding=10, groups=g))
            g *= 2
            c *= 2
        key, kp = jax.random.split(key)
        w, b = init_conv(kp, 1, c, 21)
        self.raw_post = dict(w=w, b=b, stride=3, padding=10, groups=1)

        # Kernel-ready parameters: fused conv0, dense block-diagonal tap-wise
        # weights, reshaped biases, compute-dtype casts -- hoisted out of the
        # call path.
        self.params, self.config = self._prepare(compute_dtype)
        self._forward = jax.jit(functools.partial(_forward_impl, config=self.config))

    def _prepare(self, dtype):
        def tapwise(w, groups, stride):
            """torch-layout grouped weight (C_out, C_in//G, K) -> dense
            block-diagonal per-row-offset tap weights (Q, S*C_in, C_out)."""
            c_out, cin_g, ksz = w.shape
            c_in = cin_g * groups
            cout_g = c_out // groups
            dense = jnp.zeros((c_out, c_in, ksz), jnp.float32)
            for g in range(groups):
                dense = dense.at[g * cout_g:(g + 1) * cout_g,
                                 g * cin_g:(g + 1) * cin_g, :].set(
                    w[g * cout_g:(g + 1) * cout_g])
            q = (ksz - 1) // stride + 1
            dense = jnp.pad(dense, ((0, 0), (0, 0), (0, q * stride - ksz)))
            # [qq, s*C_in + ci, co] = dense[co, ci, qq*stride + s]
            wt = (dense.reshape(c_out, c_in, q, stride)
                       .transpose(2, 3, 1, 0)
                       .reshape(q, stride * c_in, c_out))
            return wt.astype(dtype)

        convs_p, convs_cfg = [], []
        # conv0: AvgPool1d(scale) fused in; im2col'd LHS -> weight (1, 41*scale, C).
        p0 = self.raw[0]
        w0 = p0["w"]                                        # (C, 1, 41)
        w0m = jnp.repeat(w0[:, 0, :] / float(self.scale), self.scale, axis=1)
        w0m = jnp.transpose(w0m)[None, :, :]                # (1, 41*scale, C)
        convs_p.append(dict(w=w0m.astype(dtype),
                            b=p0["b"].reshape(1, -1).astype(jnp.float32)))
        convs_cfg.append((41, 1, 20, 1))
        for p in self.raw[1:]:
            convs_p.append(dict(
                w=tapwise(p["w"], p["groups"], p["stride"]),
                b=p["b"].reshape(1, -1).astype(jnp.float32)))
            convs_cfg.append((p["w"].shape[-1], p["stride"], p["padding"],
                              p["groups"]))
        pp = self.raw_post
        post_p = dict(w=tapwise(pp["w"], pp["groups"], pp["stride"]),
                      b=pp["b"].reshape(1, -1).astype(jnp.float32))
        post_cfg = (pp["w"].shape[-1], pp["stride"], pp["padding"], pp["groups"])
        cfg = dict(scale=self.scale, max_tile=self.max_tile, conv0=(41, 20),
                   convs=tuple(convs_cfg), post=post_cfg)
        return dict(convs=convs_p, post=post_p), cfg

    def __call__(self, x_ncl):
        return self._forward(self.params, x_ncl)


# ----------------------------- pure-JAX reference ----------------------------

def ref_forward(raw_convs, raw_post, scale, x_ncl):
    """lax.conv reference implementing the original (pool -> convs -> post) module."""
    def conv(x, w, b, stride, padding, groups):
        y = jax.lax.conv_general_dilated(
            x, w, window_strides=(stride,), padding=[(padding, padding)],
            dimension_numbers=("NCH", "OIH", "NCH"),
            feature_group_count=groups, precision=jax.lax.Precision.HIGHEST)
        return y + b[None, :, None]

    n, _, length = x_ncl.shape
    l_pool = length // scale
    x = x_ncl[:, :, :l_pool * scale].reshape(n, 1, l_pool, scale).mean(-1)
    fmap = []
    for p in raw_convs:
        x = conv(x, p["w"], p["b"], p["stride"], p["padding"], p["groups"])
        fmap.append(x)
    logit = conv(x, raw_post["w"], raw_post["b"], raw_post["stride"],
                 raw_post["padding"], raw_post["groups"])
    return logit, fmap


# ---------------------------------- main --------------------------------------

if __name__ == "__main__":
    key = jax.random.PRNGKey(0)
    k_in, k_par = jax.random.split(key)

    N, L = 2, 288
    scale, channels, num_layers = 2, 8, 2
    x = jax.random.normal(k_in, (N, 1, L), jnp.float32)

    # 1) float32 model: strict numerical check of the kernel math
    #    (fused pool/im2col, tap-wise dense matmuls, halo handling, grouping,
    #    stride/padding, tiling, ragged last blocks).
    model_f32 = DiscriminatorS(scale, channels=channels, num_layers=num_layers,
                               key=k_par, compute_dtype=jnp.float32)
    logit, fmap = model_f32(x)
    jax.block_until_ready((logit, fmap))

    ref_logit, ref_fmap = ref_forward(model_f32.raw, model_f32.raw_post, scale, x)
    np.testing.assert_allclose(np.asarray(logit, np.float32),
                               np.asarray(ref_logit), rtol=1e-2, atol=1e-2)
    for a, r in zip(fmap, ref_fmap):
        assert a.shape == r.shape
        np.testing.assert_allclose(np.asarray(a.astype(jnp.float32)),
                                   np.asarray(r), rtol=1e-2, atol=1e-2)

    # 2) bfloat16 model (default compute dtype): same forward, sanity-checked
    #    against the f32 reference with a bf16-appropriate tolerance.
    model_bf16 = DiscriminatorS(scale, channels=channels, num_layers=num_layers,
                                key=k_par)
    logit16, fmap16 = model_bf16(x)
    jax.block_until_ready((logit16, fmap16))
    assert logit16.shape == ref_logit.shape
    assert all(a.shape == r.shape for a, r in zip(fmap16, ref_fmap))
    np.testing.assert_allclose(np.asarray(logit16, np.float32),
                               np.asarray(ref_logit), rtol=1e-1, atol=2.5e-1)

    print("KERNEL_OK")
</pallas_src>

<mosaic_0001>
module attributes {stable_mosaic.version = 11 : i64} {
  func.func @_tapwise_conv_kernel(%arg0: i32, %arg1: i32, %arg2: memref<1x144x82xf32, #tpu.memory_space<vmem>>, %arg3: memref<1x8x82xf32, #tpu.memory_space<vmem>>, %arg4: memref<1x82x8xf32, #tpu.memory_space<vmem>>, %arg5: memref<1x8xf32, #tpu.memory_space<vmem>>, %arg6: memref<1x144x8xf32, #tpu.memory_space<vmem>>, %arg7: memref<144x8xf32, #tpu.memory_space<vmem>>) attributes {dimension_semantics = [#tpu.dimension_semantics<parallel>, #tpu.dimension_semantics<parallel>], iteration_bounds = array<i64: 2, 1>, scalar_prefetch = 0 : i64, scratch_operands = 1 : i64, tpu.core_type = #tpu.core_type<tc>, window_params = [{transform_indices = @transform_0, window_bounds = array<i64: 1, 144, 82>}, {transform_indices = @transform_1, window_bounds = array<i64: 1, 8, 82>}, {pipeline_mode = #tpu.pipeline_mode<synchronous>, transform_indices = @transform_2, window_bounds = array<i64: 1, 82, 8>}, {pipeline_mode = #tpu.pipeline_mode<synchronous>, transform_indices = @transform_3, window_bounds = array<i64: 1, 8>}, {transform_indices = @transform_4, window_bounds = array<i64: 1, 144, 8>}]} {
    %c0 = arith.constant 0 : index
    %c0_0 = arith.constant 0 : index
    %0 = vector.load %arg5[%c0, %c0_0] : memref<1x8xf32, #tpu.memory_space<vmem>>, vector<1x8xf32>
    %1 = vector.shape_cast %0 : vector<1x8xf32> to vector<1x8xf32>
    %2 = vector.broadcast %1 : vector<1x8xf32> to vector<144x8xf32>
    %c0_1 = arith.constant 0 : index
    %c0_2 = arith.constant 0 : index
    %3 = vector.load %arg7[%c0_1, %c0_2] : memref<144x8xf32, #tpu.memory_space<vmem>>, vector<144x8xf32>
    tpu.vector_store %arg7[%c0_1, %c0_2], %2 {strides = array<i32>} : memref<144x8xf32, #tpu.memory_space<vmem>>, vector<144x8xf32>,
    %c0_3 = arith.constant 0 : index
    %c0_4 = arith.constant 0 : index
    %c0_5 = arith.constant 0 : index
    %4 = vector.load %arg4[%c0_3, %c0_4, %c0_5] : memref<1x82x8xf32, #tpu.memory_space<vmem>>, vector<1x82x8xf32>
    %5 = vector.shape_cast %4 : vector<1x82x8xf32> to vector<82x8xf32>
    %c0_6 = arith.constant 0 : index
    %c0_7 = arith.constant 0 : index
    %6 = vector.load %arg7[%c0_6, %c0_7] : memref<144x8xf32, #tpu.memory_space<vmem>>, vector<144x8xf32>
    %c0_8 = arith.constant 0 : index
    %c0_9 = arith.constant 0 : index
    %c0_10 = arith.constant 0 : index
    %7 = vector.load %arg2[%c0_8, %c0_9, %c0_10] : memref<1x144x82xf32, #tpu.memory_space<vmem>>, vector<1x144x82xf32>
    %8 = vector.shape_cast %7 : vector<1x144x82xf32> to vector<144x82xf32>
    %cst = arith.constant dense<0.000000e+00> : vector<144x8xf32>
    %9 = tpu.matmul %8, %5, %cst {dimension_numbers = #tpu.dot_dimension_numbers<[1], [0], [0], [1], [0, 0, 1, 1], [], []>} : vector<144x82xf32>, vector<82x8xf32>, vector<144x8xf32> -> vector<144x8xf32>
    %10 = arith.addf %6, %9 : vector<144x8xf32>
    %c0_11 = arith.constant 0 : index
    %c0_12 = arith.constant 0 : index
    %11 = vector.load %arg7[%c0_11, %c0_12] : memref<144x8xf32, #tpu.memory_space<vmem>>, vector<144x8xf32>
    tpu.vector_store %arg7[%c0_11, %c0_12], %10 {strides = array<i32>} : memref<144x8xf32, #tpu.memory_space<vmem>>, vector<144x8xf32>,
    %c0_13 = arith.constant 0 : index
    %c0_14 = arith.constant 0 : index
    %12 = vector.load %arg7[%c0_13, %c0_14] : memref<144x8xf32, #tpu.memory_space<vmem>>, vector<144x8xf32>
    %c0_15 = arith.constant 0 : index
    %c0_16 = arith.constant 0 : index
    %c0_17 = arith.constant 0 : index
    %13 = vector.load %arg6[%c0_15, %c0_16, %c0_17] : memref<1x144x8xf32, #tpu.memory_space<vmem>>, vector<1x144x8xf32>
    %14 = vector.shape_cast %13 : vector<1x144x8xf32> to vector<144x8xf32>
    %15 = vector.shape_cast %12 : vector<144x8xf32> to vector<1x144x8xf32>
    tpu.vector_store %arg6[%c0_15, %c0_16, %c0_17], %15 {strides = array<i32>} : memref<1x144x8xf32, #tpu.memory_space<vmem>>, vector<1x144x8xf32>,
    return
  }
  func.func @transform_0(%arg0: i32, %arg1: i32) -> (i32, i32, i32) {
    %c0_i32 = arith.constant 0 : i32
    %c0_i32_0 = arith.constant 0 : i32
    return %arg0, %arg1, %c0_i32 : i32, i32, i32
  }
  func.func @transform_1(%arg0: i32, %arg1: i32) -> (i32, i32, i32) {
    %c1_i32 = arith.constant 1 : i32
    %0 = arith.addi %arg1, %c1_i32 : i32
    %c18_i32 = arith.constant 18 : i32
    %1 = arith.muli %0, %c18_i32 : i32
    %c0_i32 = arith.constant 0 : i32
    %c0_i32_0 = arith.constant 0 : i32
    return %arg0, %1, %c0_i32 : i32, i32, i32
  }
  func.func @transform_2(%arg0: i32, %arg1: i32) -> (i32, i32, i32) {
    %c0_i32 = arith.constant 0 : i32
    %c0_i32_0 = arith.constant 0 : i32
    %c0_i32_1 = arith.constant 0 : i32
    %c0_i32_2 = arith.constant 0 : i32
    return %c0_i32, %c0_i32_0, %c0_i32_1 : i32, i32, i32
  }
  func.func @transform_3(%arg0: i32, %arg1: i32) -> (i32, i32) {
    %c0_i32 = arith.constant 0 : i32
    %c0_i32_0 = arith.constant 0 : i32
    %c0_i32_1 = arith.constant 0 : i32
    return %c0_i32, %c0_i32_0 : i32, i32
  }
  func.func @transform_4(%arg0: i32, %arg1: i32) -> (i32, i32, i32) {
    %c0_i32 = arith.constant 0 : i32
    %c0_i32_0 = arith.constant 0 : i32
    return %arg0, %arg1, %c0_i32 : i32, i32, i32
  }
}

module attributes {stable_mosaic.version = 11 : i64} {
  func.func @_tapwise_conv_kernel(%arg0: i32, %arg1: i32, %arg2: memref<1x48x24xf32, #tpu.memory_space<vmem>>, %arg3: memref<1x8x24xf32, #tpu.memory_space<vmem>>, %arg4: memref<7x24x16xf32, #tpu.memory_space<vmem>>, %arg5: memref<1x16xf32, #tpu.memory_space<vmem>>, %arg6: memref<1x48x16xf32, #tpu.memory_space<vmem>>, %arg7: memref<48x16xf32, #tpu.memory_space<vmem>>) attributes {dimension_semantics = [#tpu.dimension_semantics<parallel>, #tpu.dimension_semantics<parallel>], iteration_bounds = array<i64: 2, 1>, scalar_prefetch = 0 : i64, scratch_operands = 1 : i64, tpu.core_type = #tpu.core_type<tc>, window_params = [{transform_indices = @transform_0, window_bounds = array<i64: 1, 48, 24>}, {transform_indices = @transform_1, window_bounds = array<i64: 1, 8, 24>}, {pipeline_mode = #tpu.pipeline_mode<synchronous>, transform_indices = @transform_2, window_bounds = array<i64: 7, 24, 16>}, {pipeline_mode = #tpu.pipeline_mode<synchronous>, transform_indices = @transform_3, window_bounds = array<i64: 1, 16>}, {transform_indices = @transform_4, window_bounds = array<i64: 1, 48, 16>}]} {
    %c0 = arith.constant 0 : index
    %c0_0 = arith.constant 0 : index
    %0 = vector.load %arg5[%c0, %c0_0] : memref<1x16xf32, #tpu.memory_space<vmem>>, vector<1x16xf32>
    %1 = vector.shape_cast %0 : vector<1x16xf32> to vector<1x16xf32>
    %2 = vector.broadcast %1 : vector<1x16xf32> to vector<48x16xf32>
    %c0_1 = arith.constant 0 : index
    %c0_2 = arith.constant 0 : index
    %3 = vector.load %arg7[%c0_1, %c0_2] : memref<48x16xf32, #tpu.memory_space<vmem>>, vector<48x16xf32>
    tpu.vector_store %arg7[%c0_1, %c0_2], %2 {strides = array<i32>} : memref<48x16xf32, #tpu.memory_space<vmem>>, vector<48x16xf32>,
    %c0_3 = arith.constant 0 : index
    %c0_4 = arith.constant 0 : index
    %c0_5 = arith.constant 0 : index
    %4 = vector.load %arg4[%c0_3, %c0_4, %c0_5] : memref<7x24x16xf32, #tpu.memory_space<vmem>>, vector<1x24x16xf32>
    %5 = vector.shape_cast %4 : vector<1x24x16xf32> to vector<24x16xf32>
    %c0_6 = arith.constant 0 : index
    %c0_7 = arith.constant 0 : index
    %6 = vector.load %arg7[%c0_6, %c0_7] : memref<48x16xf32, #tpu.memory_space<vmem>>, vector<48x16xf32>
    %c0_8 = arith.constant 0 : index
    %c0_9 = arith.constant 0 : index
    %c0_10 = arith.constant 0 : index
    %7 = vector.load %arg2[%c0_8, %c0_9, %c0_10] : memref<1x48x24xf32, #tpu.memory_space<vmem>>, vector<1x48x24xf32>
    %8 = vector.shape_cast %7 : vector<1x48x24xf32> to vector<48x24xf32>
    %cst = arith.constant dense<0.000000e+00> : vector<48x16xf32>
    %9 = tpu.matmul %8, %5, %cst {dimension_numbers = #tpu.dot_dimension_numbers<[1], [0], [0], [1], [0, 0, 1, 1], [], []>} : vector<48x24xf32>, vector<24x16xf32>, vector<48x16xf32> -> vector<48x16xf32>
    %10 = arith.addf %6, %9 : vector<48x16xf32>
    %c0_11 = arith.constant 0 : index
    %c0_12 = arith.constant 0 : index
    %11 = vector.load %arg7[%c0_11, %c0_12] : memref<48x16xf32, #tpu.memory_space<vmem>>, vector<48x16xf32>
    tpu.vector_store %arg7[%c0_11, %c0_12], %10 {strides = array<i32>} : memref<48x16xf32, #tpu.memory_space<vmem>>, vector<48x16xf32>,
    %c1 = arith.constant 1 : index
    %c0_13 = arith.constant 0 : index
    %c0_14 = arith.constant 0 : index
    %12 = vector.load %arg4[%c1, %c0_13, %c0_14] : memref<7x24x16xf32, #tpu.memory_space<vmem>>, vector<1x24x16xf32>
    %13 = vector.shape_cast %12 : vector<1x24x16xf32> to vector<24x16xf32>
    %c0_15 = arith.constant 0 : index
    %c0_16 = arith.constant 0 : index
    %14 = vector.load %arg7[%c0_15, %c0_16] : memref<48x16xf32, #tpu.memory_space<vmem>>, vector<47x16xf32>
    %c0_17 = arith.constant 0 : index
    %c1_18 = arith.constant 1 : index
    %c0_19 = arith.constant 0 : index
    %15 = vector.load %arg2[%c0_17, %c1_18, %c0_19] : memref<1x48x24xf32, #tpu.memory_space<vmem>>, vector<1x47x24xf32>
    %16 = vector.shape_cast %15 : vector<1x47x24xf32> to vector<47x24xf32>
    %cst_20 = arith.constant dense<0.000000e+00> : vector<47x16xf32>
    %17 = tpu.matmul %16, %13, %cst_20 {dimension_numbers = #tpu.dot_dimension_numbers<[1], [0], [0], [1], [0, 0, 1, 1], [], []>} : vector<47x24xf32>, vector<24x16xf32>, vector<47x16xf32> -> vector<47x16xf32>
    %18 = arith.addf %14, %17 : vector<47x16xf32>
    %c0_21 = arith.constant 0 : index
    %c0_22 = arith.constant 0 : index
    %19 = vector.load %arg7[%c0_21, %c0_22] : memref<48x16xf32, #tpu.memory_space<vmem>>, vector<47x16xf32>
    tpu.vector_store %arg7[%c0_21, %c0_22], %18 {strides = array<i32>} : memref<48x16xf32, #tpu.memory_space<vmem>>, vector<47x16xf32>,
    %c47 = arith.constant 47 : index
    %c0_23 = arith.constant 0 : index
    %20 = vector.load %arg7[%c47, %c0_23] : memref<48x16xf32, #tpu.memory_space<vmem>>, vector<1x16xf32>
    %c0_24 = arith.constant 0 : index
    %c0_25 = arith.constant 0 : index
    %c0_26 = arith.constant 0 : index
    %21 = vector.load %arg3[%c0_24, %c0_25, %c0_26] : memref<1x8x24xf32, #tpu.memory_space<vmem>>, vector<1x1x24xf32>
    %22 = vector.shape_cast %21 : vector<1x1x24xf32> to vector<1x24xf32>
    %cst_27 = arith.constant dense<0.000000e+00> : vector<1x16xf32>
    %23 = tpu.matmul %22, %13, %cst_27 {dimension_numbers = #tpu.dot_dimension_numbers<[1], [0], [0], [1], [0, 0, 1, 1], [], []>} : vector<1x24xf32>, vector<24x16xf32>, vector<1x16xf32> -> vector<1x16xf32>
    %24 = arith.addf %20, %23 : vector<1x16xf32>
    %c47_28 = arith.constant 47 : index
    %c0_29 = arith.constant 0 : index
    %25 = vector.load %arg7[%c47_28, %c0_29] : memref<48x16xf32, #tpu.memory_space<vmem>>, vector<1x16xf32>
    tpu.vector_store %arg7[%c47_28, %c0_29], %24 {strides = array<i32>} : memref<48x16xf32, #tpu.memory_space<vmem>>, vector<1x16xf32>,
    %c2 = arith.constant 2 : index
    %c0_30 = arith.constant 0 : index
    %c0_31 = arith.constant 0 : index
    %26 = vector.load %arg4[%c2, %c0_30, %c0_31] : memref<7x24x16xf32, #tpu.memory_space<vmem>>, vector<1x24x16xf32>
    %27 = vector.shape_cast %26 : vector<1x24x16xf32> to vector<24x16xf32>
    %c0_32 = arith.constant 0 : index
    %c0_33 = arith.constant 0 : index
    %28 = vector.load %arg7[%c0_32, %c0_33] : memref<48x16xf32, #tpu.memory_space<vmem>>, vector<46x16xf32>
    %c0_34 = arith.constant 0 : index
    %c2_35 = arith.constant 2 : index
    %c0_36 = arith.constant 0 : index
    %29 = vector.load %arg2[%c0_34, %c2_35, %c0_36] : memref<1x48x24xf32, #tpu.memory_space<vmem>>, vector<1x46x24xf32>
    %30 = vector.shape_cast %29 : vector<1x46x24xf32> to vector<46x24xf32>
    %cst_37 = arith.constant dense<0.000000e+00> : vector<46x16xf32>
    %31 = tpu.matmul %30, %27, %cst_37 {dimension_numbers = #tpu.dot_dimension_numbers<[1], [0], [0], [1], [0, 0, 1, 1], [], []>} : vector<46x24xf32>, vector<24x16xf32>, vector<46x16xf32> -> vector<46x16xf32>
    %32 = arith.addf %28, %31 : vector<46x16xf32>
    %c0_38 = arith.constant 0 : index
    %c0_39 = arith.constant 0 : index
    %33 = vector.load %arg7[%c0_38, %c0_39] : memref<48x16xf32, #tpu.memory_space<vmem>>, vector<46x16xf32>
    tpu.vector_store %arg7[%c0_38, %c0_39], %32 {strides = array<i32>} : memref<48x16xf32, #tpu.memory_space<vmem>>, vector<46x16xf32>,
    %c46 = arith.constant 46 : index
    %c0_40 = arith.constant 0 : index
    %34 = vector.load %arg7[%c46, %c0_40] : memref<48x16xf32, #tpu.memory_space<vmem>>, vector<2x16xf32>
    %c0_41 = arith.constant 0 : index
    %c0_42 = arith.constant 0 : index
    %c0_43 = arith.constant 0 : index
    %35 = vector.load %arg3[%c0_41, %c0_42, %c0_43] : memref<1x8x24xf32, #tpu.memory_space<vmem>>, vector<1x2x24xf32>
    %36 = vector.shape_cast %35 : vector<1x2x24xf32> to vector<2x24xf32>
    %cst_44 = arith.constant dense<0.000000e+00> : vector<2x16xf32>
    %37 = tpu.matmul %36, %27, %cst_44 {dimension_numbers = #tpu.dot_dimension_numbers<[1], [0], [0], [1], [0, 0, 1, 1], [], []>} : vector<2x24xf32>, vector<24x16xf32>, vector<2x16xf32> -> vector<2x16xf32>
    %38 = arith.addf %34, %37 : vector<2x16xf32>
    %c46_45 = arith.constant 46 : index
    %c0_46 = arith.constant 0 : index
    %39 = vector.load %arg7[%c46_45, %c0_46] : memref<48x16xf32, #tpu.memory_space<vmem>>, vector<2x16xf32>
    tpu.vector_store %arg7[%c46_45, %c0_46], %38 {strides = array<i32>} : memref<48x16xf32, #tpu.memory_space<vmem>>, vector<2x16xf32>,
    %c3 = arith.constant 3 : index
    %c0_47 = arith.constant 0 : index
    %c0_48 = arith.constant 0 : index
    %40 = vector.load %arg4[%c3, %c0_47, %c0_48] : memref<7x24x16xf32, #tpu.memory_space<vmem>>, vector<1x24x16xf32>
    %41 = vector.shape_cast %40 : vector<1x24x16xf32> to vector<24x16xf32>
    %c0_49 = arith.constant 0 : index
    %c0_50 = arith.constant 0 : index
    %42 = vector.load %arg7[%c0_49, %c0_50] : memref<48x16xf32, #tpu.memory_space<vmem>>, vector<45x16xf32>
    %c0_51 = arith.constant 0 : index
    %c3_52 = arith.constant 3 : index
    %c0_53 = arith.constant 0 : index
    %43 = vector.load %arg2[%c0_51, %c3_52, %c0_53] : memref<1x48x24xf32, #tpu.memory_space<vmem>>, vector<1x45x24xf32>
    %44 = vector.shape_cast %43 : vector<1x45x24xf32> to vector<45x24xf32>
    %cst_54 = arith.constant dense<0.000000e+00> : vector<45x16xf32>
    %45 = tpu.matmul %44, %41, %cst_54 {dimension_numbers = #tpu.dot_dimension_numbers<[1], [0], [0], [1], [0, 0, 1, 1], [], []>} : vector<45x24xf32>, vector<24x16xf32>, vector<45x16xf32> -> vector<45x16xf32>
    %46 = arith.addf %42, %45 : vector<45x16xf32>
    %c0_55 = arith.constant 0 : index
    %c0_56 = arith.constant 0 : index
    %47 = vector.load %arg7[%c0_55, %c0_56] : memref<48x16xf32, #tpu.memory_space<vmem>>, vector<45x16xf32>
    tpu.vector_store %arg7[%c0_55, %c0_56], %46 {strides = array<i32>} : memref<48x16xf32, #tpu.memory_space<vmem>>, vector<45x16xf32>,
    %c45 = arith.constant 45 : index
    %c0_57 = arith.constant 0 : index
    %48 = vector.load %arg7[%c45, %c0_57] : memref<48x16xf32, #tpu.memory_space<vmem>>, vector<3x16xf32>
    %c0_58 = arith.constant 0 : index
    %c0_59 = arith.constant 0 : index
    %c0_60 = arith.constant 0 : index
    %49 = vector.load %arg3[%c0_58, %c0_59, %c0_60] : memref<1x8x24xf32, #tpu.memory_space<vmem>>, vector<1x3x24xf32>
    %50 = vector.shape_cast %49 : vector<1x3x24xf32> to vector<3x24xf32>
    %cst_61 = arith.constant dense<0.000000e+00> : vector<3x16xf32>
    %51 = tpu.matmul %50, %41, %cst_61 {dimension_numbers = #tpu.dot_dimension_numbers<[1], [0], [0], [1], [0, 0, 1, 1], [], []>} : vector<3x24xf32>, vector<24x16xf32>, vector<3x16xf32> -> vector<3x16xf32>
    %52 = arith.addf %48, %51 : vector<3x16xf32>
    %c45_62 = arith.constant 45 : index
    %c0_63 = arith.constant 0 : index
    %53 = vector.load %arg7[%c45_62, %c0_63] : memref<48x16xf32, #tpu.memory_space<vmem>>, vector<3x16xf32>
    tpu.vector_store %arg7[%c45_62, %c0_63], %52 {strides = array<i32>} : memref<48x16xf32, #tpu.memory_space<vmem>>, vector<3x16xf32>,
    %c4 = arith.constant 4 : index
    %c0_64 = arith.constant 0 : index
    %c0_65 = arith.constant 0 : index
    %54 = vector.load %arg4[%c4, %c0_64, %c0_65] : memref<7x24x16xf32, #tpu.memory_space<vmem>>, vector<1x24x16xf32>
    %55 = vector.shape_cast %54 : vector<1x24x16xf32> to vector<24x16xf32>
    %c0_66 = arith.constant 0 : index
    %c0_67 = arith.constant 0 : index
    %56 = vector.load %arg7[%c0_66, %c0_67] : memref<48x16xf32, #tpu.memory_space<vmem>>, vector<44x16xf32>
    %c0_68 = arith.constant 0 : index
    %c4_69 = arith.constant 4 : index
    %c0_70 = arith.constant 0 : index
    %57 = vector.load %arg2[%c0_68, %c4_69, %c0_70] : memref<1x48x24xf32, #tpu.memory_space<vmem>>, vector<1x44x24xf32>
    %58 = vector.shape_cast %57 : vector<1x44x24xf32> to vector<44x24xf32>
    %cst_71 = arith.constant dense<0.000000e+00> : vector<44x16xf32>
    %59 = tpu.matmul %58, %55, %cst_71 {dimension_numbers = #tpu.dot_dimension_numbers<[1], [0], [0], [1], [0, 0, 1, 1], [], []>} : vector<44x24xf32>, vector<24x16xf32>, vector<44x16xf32> -> vector<44x16xf32>
    %60 = arith.addf %56, %59 : vector<44x16xf32>
    %c0_72 = arith.constant 0 : index
    %c0_73 = arith.constant 0 : index
    %61 = vector.load %arg7[%c0_72, %c0_73] : memref<48x16xf32, #tpu.memory_space<vmem>>, vector<44x16xf32>
    tpu.vector_store %arg7[%c0_72, %c0_73], %60 {strides = array<i32>} : memref<48x16xf32, #tpu.memory_space<vmem>>, vector<44x16xf32>,
    %c44 = arith.constant 44 : index
    %c0_74 = arith.constant 0 : index
    %62 = vector.load %arg7[%c44, %c0_74] : memref<48x16xf32, #tpu.memory_space<vmem>>, vector<4x16xf32>
    %c0_75 = arith.constant 0 : index
    %c0_76 = arith.constant 0 : index
    %c0_77 = arith.constant 0 : index
    %63 = vector.load %arg3[%c0_75, %c0_76, %c0_77] : memref<1x8x24xf32, #tpu.memory_space<vmem>>, vector<1x4x24xf32>
    %64 = vector.shape_cast %63 : vector<1x4x24xf32> to vector<4x24xf32>
    %cst_78 = arith.constant dense<0.000000e+00> : vector<4x16xf32>
    %65 = tpu.matmul %64, %55, %cst_78 {dimension_numbers = #tpu.dot_dimension_numbers<[1], [0], [0], [1], [0, 0, 1, 1], [], []>} : vector<4x24xf32>, vector<24x16xf32>, vector<4x16xf32> -> vector<4x16xf32>
    %66 = arith.addf %62, %65 : vector<4x16xf32>
    %c44_79 = arith.constant 44 : index
    %c0_80 = arith.constant 0 : index
    %67 = vector.load %arg7[%c44_79, %c0_80] : memref<48x16xf32, #tpu.memory_space<vmem>>, vector<4x16xf32>
    tpu.vector_store %arg7[%c44_79, %c0_80], %66 {strides = array<i32>} : memref<48x16xf32, #tpu.memory_space<vmem>>, vector<4x16xf32>,
    %c5 = arith.constant 5 : index
    %c0_81 = arith.constant 0 : index
    %c0_82 = arith.constant 0 : index
    %68 = vector.load %arg4[%c5, %c0_81, %c0_82] : memref<7x24x16xf32, #tpu.memory_space<vmem>>, vector<1x24x16xf32>
    %69 = vector.shape_cast %68 : vector<1x24x16xf32> to vector<24x16xf32>
    %c0_83 = arith.constant 0 : index
    %c0_84 = arith.constant 0 : index
    %70 = vector.load %arg7[%c0_83, %c0_84] : memref<48x16xf32, #tpu.memory_space<vmem>>, vector<43x16xf32>
    %c0_85 = arith.constant 0 : index
    %c5_86 = arith.constant 5 : index
    %c0_87 = arith.constant 0 : index
    %71 = vector.load %arg2[%c0_85, %c5_86, %c0_87] : memref<1x48x24xf32, #tpu.memory_space<vmem>>, vector<1x43x24xf32>
    %72 = vector.shape_cast %71 : vector<1x43x24xf32> to vector<43x24xf32>
    %cst_88 = arith.constant dense<0.000000e+00> : vector<43x16xf32>
    %73 = tpu.matmul %72, %69, %cst_88 {dimension_numbers = #tpu.dot_dimension_numbers<[1], [0], [0], [1], [0, 0, 1, 1], [], []>} : vector<43x24xf32>, vector<24x16xf32>, vector<43x16xf32> -> vector<43x16xf32>
    %74 = arith.addf %70, %73 : vector<43x16xf32>
    %c0_89 = arith.constant 0 : index
    %c0_90 = arith.constant 0 : index
    %75 = vector.load %arg7[%c0_89, %c0_90] : memref<48x16xf32, #tpu.memory_space<vmem>>, vector<43x16xf32>
    tpu.vector_store %arg7[%c0_89, %c0_90], %74 {strides = array<i32>} : memref<48x16xf32, #tpu.memory_space<vmem>>, vector<43x16xf32>,
    %c43 = arith.constant 43 : index
    %c0_91 = arith.constant 0 : index
    %76 = vector.load %arg7[%c43, %c0_91] : memref<48x16xf32, #tpu.memory_space<vmem>>, vector<5x16xf32>
    %c0_92 = arith.constant 0 : index
    %c0_93 = arith.constant 0 : index
    %c0_94 = arith.constant 0 : index
    %77 = vector.load %arg3[%c0_92, %c0_93, %c0_94] : memref<1x8x24xf32, #tpu.memory_space<vmem>>, vector<1x5x24xf32>
    %78 = vector.shape_cast %77 : vector<1x5x24xf32> to vector<5x24xf32>
    %cst_95 = arith.constant dense<0.000000e+00> : vector<5x16xf32>
    %79 = tpu.matmul %78, %69, %cst_95 {dimension_numbers = #tpu.dot_dimension_numbers<[1], [0], [0], [1], [0, 0, 1, 1], [], []>} : vector<5x24xf32>, vector<24x16xf32>, vector<5x16xf32> -> vector<5x16xf32>
    %80 = arith.addf %76, %79 : vector<5x16xf32>
    %c43_96 = arith.constant 43 : index
    %c0_97 = arith.constant 0 : index
    %81 = vector.load %arg7[%c43_96, %c0_97] : memref<48x16xf32, #tpu.memory_space<vmem>>, vector<5x16xf32>
    tpu.vector_store %arg7[%c43_96, %c0_97], %80 {strides = array<i32>} : memref<48x16xf32, #tpu.memory_space<vmem>>, vector<5x16xf32>,
    %c6 = arith.constant 6 : index
    %c0_98 = arith.constant 0 : index
    %c0_99 = arith.constant 0 : index
    %82 = vector.load %arg4[%c6, %c0_98, %c0_99] : memref<7x24x16xf32, #tpu.memory_space<vmem>>, vector<1x24x16xf32>
    %83 = vector.shape_cast %82 : vector<1x24x16xf32> to vector<24x16xf32>
    %c0_100 = arith.constant 0 : index
    %c0_101 = arith.constant 0 : index
    %84 = vector.load %arg7[%c0_100, %c0_101] : memref<48x16xf32, #tpu.memory_space<vmem>>, vector<42x16xf32>
    %c0_102 = arith.constant 0 : index
    %c6_103 = arith.constant 6 : index
    %c0_104 = arith.constant 0 : index
    %85 = vector.load %arg2[%c0_102, %c6_103, %c0_104] : memref<1x48x24xf32, #tpu.memory_space<vmem>>, vector<1x42x24xf32>
    %86 = vector.shape_cast %85 : vector<1x42x24xf32> to vector<42x24xf32>
    %cst_105 = arith.constant dense<0.000000e+00> : vector<42x16xf32>
    %87 = tpu.matmul %86, %83, %cst_105 {dimension_numbers = #tpu.dot_dimension_numbers<[1], [0], [0], [1], [0, 0, 1, 1], [], []>} : vector<42x24xf32>, vector<24x16xf32>, vector<42x16xf32> -> vector<42x16xf32>
    %88 = arith.addf %84, %87 : vector<42x16xf32>
    %c0_106 = arith.constant 0 : index
    %c0_107 = arith.constant 0 : index
    %89 = vector.load %arg7[%c0_106, %c0_107] : memref<48x16xf32, #tpu.memory_space<vmem>>, vector<42x16xf32>
    tpu.vector_store %arg7[%c0_106, %c0_107], %88 {strides = array<i32>} : memref<48x16xf32, #tpu.memory_space<vmem>>, vector<42x16xf32>,
    %c42 = arith.constant 42 : index
    %c0_108 = arith.constant 0 : index
    %90 = vector.load %arg7[%c42, %c0_108] : memref<48x16xf32, #tpu.memory_space<vmem>>, vector<6x16xf32>
    %c0_109 = arith.constant 0 : index
    %c0_110 = arith.constant 0 : index
    %c0_111 = arith.constant 0 : index
    %91 = vector.load %arg3[%c0_109, %c0_110, %c0_111] : memref<1x8x24xf32, #tpu.memory_space<vmem>>, vector<1x6x24xf32>
    %92 = vector.shape_cast %91 : vector<1x6x24xf32> to vector<6x24xf32>
    %cst_112 = arith.constant dense<0.000000e+00> : vector<6x16xf32>
    %93 = tpu.matmul %92, %83, %cst_112 {dimension_numbers = #tpu.dot_dimension_numbers<[1], [0], [0], [1], [0, 0, 1, 1], [], []>} : vector<6x24xf32>, vector<24x16xf32>, vector<6x16xf32> -> vector<6x16xf32>
    %94 = arith.addf %90, %93 : vector<6x16xf32>
    %c42_113 = arith.constant 42 : index
    %c0_114 = arith.constant 0 : index
    %95 = vector.load %arg7[%c42_113, %c0_114] : memref<48x16xf32, #tpu.memory_space<vmem>>, vector<6x16xf32>
    tpu.vector_store %arg7[%c42_113, %c0_114], %94 {strides = array<i32>} : memref<48x16xf32, #tpu.memory_space<vmem>>, vector<6x16xf32>,
    %c0_115 = arith.constant 0 : index
    %c0_116 = arith.constant 0 : index
    %96 = vector.load %arg7[%c0_115, %c0_116] : memref<48x16xf32, #tpu.memory_space<vmem>>, vector<48x16xf32>
    %c0_117 = arith.constant 0 : index
    %c0_118 = arith.constant 0 : index
    %c0_119 = arith.constant 0 : index
    %97 = vector.load %arg6[%c0_117, %c0_118, %c0_119] : memref<1x48x16xf32, #tpu.memory_space<vmem>>, vector<1x48x16xf32>
    %98 = vector.shape_cast %97 : vector<1x48x16xf32> to vector<48x16xf32>
    %99 = vector.shape_cast %96 : vector<48x16xf32> to vector<1x48x16xf32>
    tpu.vector_store %arg6[%c0_117, %c0_118, %c0_119], %99 {strides = array<i32>} : memref<1x48x16xf32, #tpu.memory_space<vmem>>, vector<1x48x16xf32>,
    return
  }
  func.func @transform_0(%arg0: i32, %arg1: i32) -> (i32, i32, i32) {
    %c0_i32 = arith.constant 0 : i32
    %c0_i32_0 = arith.constant 0 : i32
    return %arg0, %arg1, %c0_i32 : i32, i32, i32
  }
  func.func @transform_1(%arg0: i32, %arg1: i32) -> (i32, i32, i32) {
    %c1_i32 = arith.constant 1 : i32
    %0 = arith.addi %arg1, %c1_i32 : i32
    %c6_i32 = arith.constant 6 : i32
    %1 = arith.muli %0, %c6_i32 : i32
    %c0_i32 = arith.constant 0 : i32
    %c0_i32_0 = arith.constant 0 : i32
    return %arg0, %1, %c0_i32 : i32, i32, i32
  }
  func.func @transform_2(%arg0: i32, %arg1: i32) -> (i32, i32, i32) {
    %c0_i32 = arith.constant 0 : i32
    %c0_i32_0 = arith.constant 0 : i32
    %c0_i32_1 = arith.constant 0 : i32
    %c0_i32_2 = arith.constant 0 : i32
    return %c0_i32, %c0_i32_0, %c0_i32_1 : i32, i32, i32
  }
  func.func @transform_3(%arg0: i32, %arg1: i32) -> (i32, i32) {
    %c0_i32 = arith.constant 0 : i32
    %c0_i32_0 = arith.constant 0 : i32
    %c0_i32_1 = arith.constant 0 : i32
    return %c0_i32, %c0_i32_0 : i32, i32
  }
  func.func @transform_4(%arg0: i32, %arg1: i32) -> (i32, i32, i32) {
    %c0_i32 = arith.constant 0 : i32
    %c0_i32_0 = arith.constant 0 : i32
    return %arg0, %arg1, %c0_i32 : i32, i32, i32
  }
}

module attributes {stable_mosaic.version = 11 : i64} {
  func.func @_tapwise_conv_kernel(%arg0: i32, %arg1: i32, %arg2: memref<1x16x48xf32, #tpu.memory_space<vmem>>, %arg3: memref<1x8x48xf32, #tpu.memory_space<vmem>>, %arg4: memref<7x48x32xf32, #tpu.memory_space<vmem>>, %arg5: memref<1x32xf32, #tpu.memory_space<vmem>>, %arg6: memref<1x16x32xf32, #tpu.memory_space<vmem>>, %arg7: memref<16x32xf32, #tpu.memory_space<vmem>>) attributes {dimension_semantics = [#tpu.dimension_semantics<parallel>, #tpu.dimension_semantics<parallel>], iteration_bounds = array<i64: 2, 1>, scalar_prefetch = 0 : i64, scratch_operands = 1 : i64, tpu.core_type = #tpu.core_type<tc>, window_params = [{transform_indices = @transform_0, window_bounds = array<i64: 1, 16, 48>}, {transform_indices = @transform_1, window_bounds = array<i64: 1, 8, 48>}, {pipeline_mode = #tpu.pipeline_mode<synchronous>, transform_indices = @transform_2, window_bounds = array<i64: 7, 48, 32>}, {pipeline_mode = #tpu.pipeline_mode<synchronous>, transform_indices = @transform_3, window_bounds = array<i64: 1, 32>}, {transform_indices = @transform_4, window_bounds = array<i64: 1, 16, 32>}]} {
    %c0 = arith.constant 0 : index
    %c0_0 = arith.constant 0 : index
    %0 = vector.load %arg5[%c0, %c0_0] : memref<1x32xf32, #tpu.memory_space<vmem>>, vector<1x32xf32>
    %1 = vector.shape_cast %0 : vector<1x32xf32> to vector<1x32xf32>
    %2 = vector.broadcast %1 : vector<1x32xf32> to vector<16x32xf32>
    %c0_1 = arith.constant 0 : index
    %c0_2 = arith.constant 0 : index
    %3 = vector.load %arg7[%c0_1, %c0_2] : memref<16x32xf32, #tpu.memory_space<vmem>>, vector<16x32xf32>
    tpu.vector_store %arg7[%c0_1, %c0_2], %2 {strides = array<i32>} : memref<16x32xf32, #tpu.memory_space<vmem>>, vector<16x32xf32>,
    %c0_3 = arith.constant 0 : index
    %c0_4 = arith.constant 0 : index
    %c0_5 = arith.constant 0 : index
    %4 = vector.load %arg4[%c0_3, %c0_4, %c0_5] : memref<7x48x32xf32, #tpu.memory_space<vmem>>, vector<1x48x32xf32>
    %5 = vector.shape_cast %4 : vector<1x48x32xf32> to vector<48x32xf32>
    %c0_6 = arith.constant 0 : index
    %c0_7 = arith.constant 0 : index
    %6 = vector.load %arg7[%c0_6, %c0_7] : memref<16x32xf32, #tpu.memory_space<vmem>>, vector<16x32xf32>
    %c0_8 = arith.constant 0 : index
    %c0_9 = arith.constant 0 : index
    %c0_10 = arith.constant 0 : index
    %7 = vector.load %arg2[%c0_8, %c0_9, %c0_10] : memref<1x16x48xf32, #tpu.memory_space<vmem>>, vector<1x16x48xf32>
    %8 = vector.shape_cast %7 : vector<1x16x48xf32> to vector<16x48xf32>
    %cst = arith.constant dense<0.000000e+00> : vector<16x32xf32>
    %9 = tpu.matmul %8, %5, %cst {dimension_numbers = #tpu.dot_dimension_numbers<[1], [0], [0], [1], [0, 0, 1, 1], [], []>} : vector<16x48xf32>, vector<48x32xf32>, vector<16x32xf32> -> vector<16x32xf32>
    %10 = arith.addf %6, %9 : vector<16x32xf32>
    %c0_11 = arith.constant 0 : index
    %c0_12 = arith.constant 0 : index
    %11 = vector.load %arg7[%c0_11, %c0_12] : memref<16x32xf32, #tpu.memory_space<vmem>>, vector<16x32xf32>
    tpu.vector_store %arg7[%c0_11, %c0_12], %10 {strides = array<i32>} : memref<16x32xf32, #tpu.memory_space<vmem>>, vector<16x32xf32>,
    %c1 = arith.constant 1 : index
    %c0_13 = arith.constant 0 : index
    %c0_14 = arith.constant 0 : index
    %12 = vector.load %arg4[%c1, %c0_13, %c0_14] : memref<7x48x32xf32, #tpu.memory_space<vmem>>, vector<1x48x32xf32>
    %13 = vector.shape_cast %12 : vector<1x48x32xf32> to vector<48x32xf32>
    %c0_15 = arith.constant 0 : index
    %c0_16 = arith.constant 0 : index
    %14 = vector.load %arg7[%c0_15, %c0_16] : memref<16x32xf32, #tpu.memory_space<vmem>>, vector<15x32xf32>
    %c0_17 = arith.constant 0 : index
    %c1_18 = arith.constant 1 : index
    %c0_19 = arith.constant 0 : index
    %15 = vector.load %arg2[%c0_17, %c1_18, %c0_19] : memref<1x16x48xf32, #tpu.memory_space<vmem>>, vector<1x15x48xf32>
    %16 = vector.shape_cast %15 : vector<1x15x48xf32> to vector<15x48xf32>
    %cst_20 = arith.constant dense<0.000000e+00> : vector<15x32xf32>
    %17 = tpu.matmul %16, %13, %cst_20 {dimension_numbers = #tpu.dot_dimension_numbers<[1], [0], [0], [1], [0, 0, 1, 1], [], []>} : vector<15x48xf32>, vector<48x32xf32>, vector<15x32xf32> -> vector<15x32xf32>
    %18 = arith.addf %14, %17 : vector<15x32xf32>
    %c0_21 = arith.constant 0 : index
    %c0_22 = arith.constant 0 : index
    %19 = vector.load %arg7[%c0_21, %c0_22] : memref<16x32xf32, #tpu.memory_space<vmem>>, vector<15x32xf32>
    tpu.vector_store %arg7[%c0_21, %c0_22], %18 {strides = array<i32>} : memref<16x32xf32, #tpu.memory_space<vmem>>, vector<15x32xf32>,
    %c15 = arith.constant 15 : index
    %c0_23 = arith.constant 0 : index
    %20 = vector.load %arg7[%c15, %c0_23] : memref<16x32xf32, #tpu.memory_space<vmem>>, vector<1x32xf32>
    %c0_24 = arith.constant 0 : index
    %c0_25 = arith.constant 0 : index
    %c0_26 = arith.constant 0 : index
    %21 = vector.load %arg3[%c0_24, %c0_25, %c0_26] : memref<1x8x48xf32, #tpu.memory_space<vmem>>, vector<1x1x48xf32>
    %22 = vector.shape_cast %21 : vector<1x1x48xf32> to vector<1x48xf32>
    %cst_27 = arith.constant dense<0.000000e+00> : vector<1x32xf32>
    %23 = tpu.matmul %22, %13, %cst_27 {dimension_numbers = #tpu.dot_dimension_numbers<[1], [0], [0], [1], [0, 0, 1, 1], [], []>} : vector<1x48xf32>, vector<48x32xf32>, vector<1x32xf32> -> vector<1x32xf32>
    %24 = arith.addf %20, %23 : vector<1x32xf32>
    %c15_28 = arith.constant 15 : index
    %c0_29 = arith.constant 0 : index
    %25 = vector.load %arg7[%c15_28, %c0_29] : memref<16x32xf32, #tpu.memory_space<vmem>>, vector<1x32xf32>
    tpu.vector_store %arg7[%c15_28, %c0_29], %24 {strides = array<i32>} : memref<16x32xf32, #tpu.memory_space<vmem>>, vector<1x32xf32>,
    %c2 = arith.constant 2 : index
    %c0_30 = arith.constant 0 : index
    %c0_31 = arith.constant 0 : index
    %26 = vector.load %arg4[%c2, %c0_30, %c0_31] : memref<7x48x32xf32, #tpu.memory_space<vmem>>, vector<1x48x32xf32>
    %27 = vector.shape_cast %26 : vector<1x48x32xf32> to vector<48x32xf32>
    %c0_32 = arith.constant 0 : index
    %c0_33 = arith.constant 0 : index
    %28 = vector.load %arg7[%c0_32, %c0_33] : memref<16x32xf32, #tpu.memory_space<vmem>>, vector<14x32xf32>
    %c0_34 = arith.constant 0 : index
    %c2_35 = arith.constant 2 : index
    %c0_36 = arith.constant 0 : index
    %29 = vector.load %arg2[%c0_34, %c2_35, %c0_36] : memref<1x16x48xf32, #tpu.memory_space<vmem>>, vector<1x14x48xf32>
    %30 = vector.shape_cast %29 : vector<1x14x48xf32> to vector<14x48xf32>
    %cst_37 = arith.constant dense<0.000000e+00> : vector<14x32xf32>
    %31 = tpu.matmul %30, %27, %cst_37 {dimension_numbers = #tpu.dot_dimension_numbers<[1], [0], [0], [1], [0, 0, 1, 1], [], []>} : vector<14x48xf32>, vector<48x32xf32>, vector<14x32xf32> -> vector<14x32xf32>
    %32 = arith.addf %28, %31 : vector<14x32xf32>
    %c0_38 = arith.constant 0 : index
    %c0_39 = arith.constant 0 : index
    %33 = vector.load %arg7[%c0_38, %c0_39] : memref<16x32xf32, #tpu.memory_space<vmem>>, vector<14x32xf32>
    tpu.vector_store %arg7[%c0_38, %c0_39], %32 {strides = array<i32>} : memref<16x32xf32, #tpu.memory_space<vmem>>, vector<14x32xf32>,
    %c14 = arith.constant 14 : index
    %c0_40 = arith.constant 0 : index
    %34 = vector.load %arg7[%c14, %c0_40] : memref<16x32xf32, #tpu.memory_space<vmem>>, vector<2x32xf32>
    %c0_41 = arith.constant 0 : index
    %c0_42 = arith.constant 0 : index
    %c0_43 = arith.constant 0 : index
    %35 = vector.load %arg3[%c0_41, %c0_42, %c0_43] : memref<1x8x48xf32, #tpu.memory_space<vmem>>, vector<1x2x48xf32>
    %36 = vector.shape_cast %35 : vector<1x2x48xf32> to vector<2x48xf32>
    %cst_44 = arith.constant dense<0.000000e+00> : vector<2x32xf32>
    %37 = tpu.matmul %36, %27, %cst_44 {dimension_numbers = #tpu.dot_dimension_numbers<[1], [0], [0], [1], [0, 0, 1, 1], [], []>} : vector<2x48xf32>, vector<48x32xf32>, vector<2x32xf32> -> vector<2x32xf32>
    %38 = arith.addf %34, %37 : vector<2x32xf32>
    %c14_45 = arith.constant 14 : index
    %c0_46 = arith.constant 0 : index
    %39 = vector.load %arg7[%c14_45, %c0_46] : memref<16x32xf32, #tpu.memory_space<vmem>>, vector<2x32xf32>
    tpu.vector_store %arg7[%c14_45, %c0_46], %38 {strides = array<i32>} : memref<16x32xf32, #tpu.memory_space<vmem>>, vector<2x32xf32>,
    %c3 = arith.constant 3 : index
    %c0_47 = arith.constant 0 : index
    %c0_48 = arith.constant 0 : index
    %40 = vector.load %arg4[%c3, %c0_47, %c0_48] : memref<7x48x32xf32, #tpu.memory_space<vmem>>, vector<1x48x32xf32>
    %41 = vector.shape_cast %40 : vector<1x48x32xf32> to vector<48x32xf32>
    %c0_49 = arith.constant 0 : index
    %c0_50 = arith.constant 0 : index
    %42 = vector.load %arg7[%c0_49, %c0_50] : memref<16x32xf32, #tpu.memory_space<vmem>>, vector<13x32xf32>
    %c0_51 = arith.constant 0 : index
    %c3_52 = arith.constant 3 : index
    %c0_53 = arith.constant 0 : index
    %43 = vector.load %arg2[%c0_51, %c3_52, %c0_53] : memref<1x16x48xf32, #tpu.memory_space<vmem>>, vector<1x13x48xf32>
    %44 = vector.shape_cast %43 : vector<1x13x48xf32> to vector<13x48xf32>
    %cst_54 = arith.constant dense<0.000000e+00> : vector<13x32xf32>
    %45 = tpu.matmul %44, %41, %cst_54 {dimension_numbers = #tpu.dot_dimension_numbers<[1], [0], [0], [1], [0, 0, 1, 1], [], []>} : vector<13x48xf32>, vector<48x32xf32>, vector<13x32xf32> -> vector<13x32xf32>
    %46 = arith.addf %42, %45 : vector<13x32xf32>
    %c0_55 = arith.constant 0 : index
    %c0_56 = arith.constant 0 : index
    %47 = vector.load %arg7[%c0_55, %c0_56] : memref<16x32xf32, #tpu.memory_space<vmem>>, vector<13x32xf32>
    tpu.vector_store %arg7[%c0_55, %c0_56], %46 {strides = array<i32>} : memref<16x32xf32, #tpu.memory_space<vmem>>, vector<13x32xf32>,
    %c13 = arith.constant 13 : index
    %c0_57 = arith.constant 0 : index
    %48 = vector.load %arg7[%c13, %c0_57] : memref<16x32xf32, #tpu.memory_space<vmem>>, vector<3x32xf32>
    %c0_58 = arith.constant 0 : index
    %c0_59 = arith.constant 0 : index
    %c0_60 = arith.constant 0 : index
    %49 = vector.load %arg3[%c0_58, %c0_59, %c0_60] : memref<1x8x48xf32, #tpu.memory_space<vmem>>, vector<1x3x48xf32>
    %50 = vector.shape_cast %49 : vector<1x3x48xf32> to vector<3x48xf32>
    %cst_61 = arith.constant dense<0.000000e+00> : vector<3x32xf32>
    %51 = tpu.matmul %50, %41, %cst_61 {dimension_numbers = #tpu.dot_dimension_numbers<[1], [0], [0], [1], [0, 0, 1, 1], [], []>} : vector<3x48xf32>, vector<48x32xf32>, vector<3x32xf32> -> vector<3x32xf32>
    %52 = arith.addf %48, %51 : vector<3x32xf32>
    %c13_62 = arith.constant 13 : index
    %c0_63 = arith.constant 0 : index
    %53 = vector.load %arg7[%c13_62, %c0_63] : memref<16x32xf32, #tpu.memory_space<vmem>>, vector<3x32xf32>
    tpu.vector_store %arg7[%c13_62, %c0_63], %52 {strides = array<i32>} : memref<16x32xf32, #tpu.memory_space<vmem>>, vector<3x32xf32>,
    %c4 = arith.constant 4 : index
    %c0_64 = arith.constant 0 : index
    %c0_65 = arith.constant 0 : index
    %54 = vector.load %arg4[%c4, %c0_64, %c0_65] : memref<7x48x32xf32, #tpu.memory_space<vmem>>, vector<1x48x32xf32>
    %55 = vector.shape_cast %54 : vector<1x48x32xf32> to vector<48x32xf32>
    %c0_66 = arith.constant 0 : index
    %c0_67 = arith.constant 0 : index
    %56 = vector.load %arg7[%c0_66, %c0_67] : memref<16x32xf32, #tpu.memory_space<vmem>>, vector<12x32xf32>
    %c0_68 = arith.constant 0 : index
    %c4_69 = arith.constant 4 : index
    %c0_70 = arith.constant 0 : index
    %57 = vector.load %arg2[%c0_68, %c4_69, %c0_70] : memref<1x16x48xf32, #tpu.memory_space<vmem>>, vector<1x12x48xf32>
    %58 = vector.shape_cast %57 : vector<1x12x48xf32> to vector<12x48xf32>
    %cst_71 = arith.constant dense<0.000000e+00> : vector<12x32xf32>
    %59 = tpu.matmul %58, %55, %cst_71 {dimension_numbers = #tpu.dot_dimension_numbers<[1], [0], [0], [1], [0, 0, 1, 1], [], []>} : vector<12x48xf32>, vector<48x32xf32>, vector<12x32xf32> -> vector<12x32xf32>
    %60 = arith.addf %56, %59 : vector<12x32xf32>
    %c0_72 = arith.constant 0 : index
    %c0_73 = arith.constant 0 : index
    %61 = vector.load %arg7[%c0_72, %c0_73] : memref<16x32xf32, #tpu.memory_space<vmem>>, vector<12x32xf32>
    tpu.vector_store %arg7[%c0_72, %c0_73], %60 {strides = array<i32>} : memref<16x32xf32, #tpu.memory_space<vmem>>, vector<12x32xf32>,
    %c12 = arith.constant 12 : index
    %c0_74 = arith.constant 0 : index
    %62 = vector.load %arg7[%c12, %c0_74] : memref<16x32xf32, #tpu.memory_space<vmem>>, vector<4x32xf32>
    %c0_75 = arith.constant 0 : index
    %c0_76 = arith.constant 0 : index
    %c0_77 = arith.constant 0 : index
    %63 = vector.load %arg3[%c0_75, %c0_76, %c0_77] : memref<1x8x48xf32, #tpu.memory_space<vmem>>, vector<1x4x48xf32>
    %64 = vector.shape_cast %63 : vector<1x4x48xf32> to vector<4x48xf32>
    %cst_78 = arith.constant dense<0.000000e+00> : vector<4x32xf32>
    %65 = tpu.matmul %64, %55, %cst_78 {dimension_numbers = #tpu.dot_dimension_numbers<[1], [0], [0], [1], [0, 0, 1, 1], [], []>} : vector<4x48xf32>, vector<48x32xf32>, vector<4x32xf32> -> vector<4x32xf32>
    %66 = arith.addf %62, %65 : vector<4x32xf32>
    %c12_79 = arith.constant 12 : index
    %c0_80 = arith.constant 0 : index
    %67 = vector.load %arg7[%c12_79, %c0_80] : memref<16x32xf32, #tpu.memory_space<vmem>>, vector<4x32xf32>
    tpu.vector_store %arg7[%c12_79, %c0_80], %66 {strides = array<i32>} : memref<16x32xf32, #tpu.memory_space<vmem>>, vector<4x32xf32>,
    %c5 = arith.constant 5 : index
    %c0_81 = arith.constant 0 : index
    %c0_82 = arith.constant 0 : index
    %68 = vector.load %arg4[%c5, %c0_81, %c0_82] : memref<7x48x32xf32, #tpu.memory_space<vmem>>, vector<1x48x32xf32>
    %69 = vector.shape_cast %68 : vector<1x48x32xf32> to vector<48x32xf32>
    %c0_83 = arith.constant 0 : index
    %c0_84 = arith.constant 0 : index
    %70 = vector.load %arg7[%c0_83, %c0_84] : memref<16x32xf32, #tpu.memory_space<vmem>>, vector<11x32xf32>
    %c0_85 = arith.constant 0 : index
    %c5_86 = arith.constant 5 : index
    %c0_87 = arith.constant 0 : index
    %71 = vector.load %arg2[%c0_85, %c5_86, %c0_87] : memref<1x16x48xf32, #tpu.memory_space<vmem>>, vector<1x11x48xf32>
    %72 = vector.shape_cast %71 : vector<1x11x48xf32> to vector<11x48xf32>
    %cst_88 = arith.constant dense<0.000000e+00> : vector<11x32xf32>
    %73 = tpu.matmul %72, %69, %cst_88 {dimension_numbers = #tpu.dot_dimension_numbers<[1], [0], [0], [1], [0, 0, 1, 1], [], []>} : vector<11x48xf32>, vector<48x32xf32>, vector<11x32xf32> -> vector<11x32xf32>
    %74 = arith.addf %70, %73 : vector<11x32xf32>
    %c0_89 = arith.constant 0 : index
    %c0_90 = arith.constant 0 : index
    %75 = vector.load %arg7[%c0_89, %c0_90] : memref<16x32xf32, #tpu.memory_space<vmem>>, vector<11x32xf32>
    tpu.vector_store %arg7[%c0_89, %c0_90], %74 {strides = array<i32>} : memref<16x32xf32, #tpu.memory_space<vmem>>, vector<11x32xf32>,
    %c11 = arith.constant 11 : index
    %c0_91 = arith.constant 0 : index
    %76 = vector.load %arg7[%c11, %c0_91] : memref<16x32xf32, #tpu.memory_space<vmem>>, vector<5x32xf32>
    %c0_92 = arith.constant 0 : index
    %c0_93 = arith.constant 0 : index
    %c0_94 = arith.constant 0 : index
    %77 = vector.load %arg3[%c0_92, %c0_93, %c0_94] : memref<1x8x48xf32, #tpu.memory_space<vmem>>, vector<1x5x48xf32>
    %78 = vector.shape_cast %77 : vector<1x5x48xf32> to vector<5x48xf32>
    %cst_95 = arith.constant dense<0.000000e+00> : vector<5x32xf32>
    %79 = tpu.matmul %78, %69, %cst_95 {dimension_numbers = #tpu.dot_dimension_numbers<[1], [0], [0], [1], [0, 0, 1, 1], [], []>} : vector<5x48xf32>, vector<48x32xf32>, vector<5x32xf32> -> vector<5x32xf32>
    %80 = arith.addf %76, %79 : vector<5x32xf32>
    %c11_96 = arith.constant 11 : index
    %c0_97 = arith.constant 0 : index
    %81 = vector.load %arg7[%c11_96, %c0_97] : memref<16x32xf32, #tpu.memory_space<vmem>>, vector<5x32xf32>
    tpu.vector_store %arg7[%c11_96, %c0_97], %80 {strides = array<i32>} : memref<16x32xf32, #tpu.memory_space<vmem>>, vector<5x32xf32>,
    %c6 = arith.constant 6 : index
    %c0_98 = arith.constant 0 : index
    %c0_99 = arith.constant 0 : index
    %82 = vector.load %arg4[%c6, %c0_98, %c0_99] : memref<7x48x32xf32, #tpu.memory_space<vmem>>, vector<1x48x32xf32>
    %83 = vector.shape_cast %82 : vector<1x48x32xf32> to vector<48x32xf32>
    %c0_100 = arith.constant 0 : index
    %c0_101 = arith.constant 0 : index
    %84 = vector.load %arg7[%c0_100, %c0_101] : memref<16x32xf32, #tpu.memory_space<vmem>>, vector<10x32xf32>
    %c0_102 = arith.constant 0 : index
    %c6_103 = arith.constant 6 : index
    %c0_104 = arith.constant 0 : index
    %85 = vector.load %arg2[%c0_102, %c6_103, %c0_104] : memref<1x16x48xf32, #tpu.memory_space<vmem>>, vector<1x10x48xf32>
    %86 = vector.shape_cast %85 : vector<1x10x48xf32> to vector<10x48xf32>
    %cst_105 = arith.constant dense<0.000000e+00> : vector<10x32xf32>
    %87 = tpu.matmul %86, %83, %cst_105 {dimension_numbers = #tpu.dot_dimension_numbers<[1], [0], [0], [1], [0, 0, 1, 1], [], []>} : vector<10x48xf32>, vector<48x32xf32>, vector<10x32xf32> -> vector<10x32xf32>
    %88 = arith.addf %84, %87 : vector<10x32xf32>
    %c0_106 = arith.constant 0 : index
    %c0_107 = arith.constant 0 : index
    %89 = vector.load %arg7[%c0_106, %c0_107] : memref<16x32xf32, #tpu.memory_space<vmem>>, vector<10x32xf32>
    tpu.vector_store %arg7[%c0_106, %c0_107], %88 {strides = array<i32>} : memref<16x32xf32, #tpu.memory_space<vmem>>, vector<10x32xf32>,
    %c10 = arith.constant 10 : index
    %c0_108 = arith.constant 0 : index
    %90 = vector.load %arg7[%c10, %c0_108] : memref<16x32xf32, #tpu.memory_space<vmem>>, vector<6x32xf32>
    %c0_109 = arith.constant 0 : index
    %c0_110 = arith.constant 0 : index
    %c0_111 = arith.constant 0 : index
    %91 = vector.load %arg3[%c0_109, %c0_110, %c0_111] : memref<1x8x48xf32, #tpu.memory_space<vmem>>, vector<1x6x48xf32>
    %92 = vector.shape_cast %91 : vector<1x6x48xf32> to vector<6x48xf32>
    %cst_112 = arith.constant dense<0.000000e+00> : vector<6x32xf32>
    %93 = tpu.matmul %92, %83, %cst_112 {dimension_numbers = #tpu.dot_dimension_numbers<[1], [0], [0], [1], [0, 0, 1, 1], [], []>} : vector<6x48xf32>, vector<48x32xf32>, vector<6x32xf32> -> vector<6x32xf32>
    %94 = arith.addf %90, %93 : vector<6x32xf32>
    %c10_113 = arith.constant 10 : index
    %c0_114 = arith.constant 0 : index
    %95 = vector.load %arg7[%c10_113, %c0_114] : memref<16x32xf32, #tpu.memory_space<vmem>>, vector<6x32xf32>
    tpu.vector_store %arg7[%c10_113, %c0_114], %94 {strides = array<i32>} : memref<16x32xf32, #tpu.memory_space<vmem>>, vector<6x32xf32>,
    %c0_115 = arith.constant 0 : index
    %c0_116 = arith.constant 0 : index
    %96 = vector.load %arg7[%c0_115, %c0_116] : memref<16x32xf32, #tpu.memory_space<vmem>>, vector<16x32xf32>
    %c0_117 = arith.constant 0 : index
    %c0_118 = arith.constant 0 : index
    %c0_119 = arith.constant 0 : index
    %97 = vector.load %arg6[%c0_117, %c0_118, %c0_119] : memref<1x16x32xf32, #tpu.memory_space<vmem>>, vector<1x16x32xf32>
    %98 = vector.shape_cast %97 : vector<1x16x32xf32> to vector<16x32xf32>
    %99 = vector.shape_cast %96 : vector<16x32xf32> to vector<1x16x32xf32>
    tpu.vector_store %arg6[%c0_117, %c0_118, %c0_119], %99 {strides = array<i32>} : memref<1x16x32xf32, #tpu.memory_space<vmem>>, vector<1x16x32xf32>,
    return
  }
  func.func @transform_0(%arg0: i32, %arg1: i32) -> (i32, i32, i32) {
    %c0_i32 = arith.constant 0 : i32
    %c0_i32_0 = arith.constant 0 : i32
    return %arg0, %arg1, %c0_i32 : i32, i32, i32
  }
  func.func @transform_1(%arg0: i32, %arg1: i32) -> (i32, i32, i32) {
    %c1_i32 = arith.constant 1 : i32
    %0 = arith.addi %arg1, %c1_i32 : i32
    %c2_i32 = arith.constant 2 : i32
    %1 = arith.muli %0, %c2_i32 : i32
    %c0_i32 = arith.constant 0 : i32
    %c0_i32_0 = arith.constant 0 : i32
    return %arg0, %1, %c0_i32 : i32, i32, i32
  }
  func.func @transform_2(%arg0: i32, %arg1: i32) -> (i32, i32, i32) {
    %c0_i32 = arith.constant 0 : i32
    %c0_i32_0 = arith.constant 0 : i32
    %c0_i32_1 = arith.constant 0 : i32
    %c0_i32_2 = arith.constant 0 : i32
    return %c0_i32, %c0_i32_0, %c0_i32_1 : i32, i32, i32
  }
  func.func @transform_3(%arg0: i32, %arg1: i32) -> (i32, i32) {
    %c0_i32 = arith.constant 0 : i32
    %c0_i32_0 = arith.constant 0 : i32
    %c0_i32_1 = arith.constant 0 : i32
    return %c0_i32, %c0_i32_0 : i32, i32
  }
  func.func @transform_4(%arg0: i32, %arg1: i32) -> (i32, i32, i32) {
    %c0_i32 = arith.constant 0 : i32
    %c0_i32_0 = arith.constant 0 : i32
    return %arg0, %arg1, %c0_i32 : i32, i32, i32
  }
}

module attributes {stable_mosaic.version = 11 : i64} {
  func.func @_tapwise_conv_kernel(%arg0: i32, %arg1: i32, %arg2: memref<1x8x96xf32, #tpu.memory_space<vmem>>, %arg3: memref<1x8x96xf32, #tpu.memory_space<vmem>>, %arg4: memref<7x96x1xf32, #tpu.memory_space<vmem>>, %arg5: memref<1x1xf32, #tpu.memory_space<vmem>>, %arg6: memref<1x8x1xf32, #tpu.memory_space<vmem>>, %arg7: memref<8x1xf32, #tpu.memory_space<vmem>>) attributes {dimension_semantics = [#tpu.dimension_semantics<parallel>, #tpu.dimension_semantics<parallel>], iteration_bounds = array<i64: 2, 1>, scalar_prefetch = 0 : i64, scratch_operands = 1 : i64, tpu.core_type = #tpu.core_type<tc>, window_params = [{transform_indices = @transform_0, window_bounds = array<i64: 1, 8, 96>}, {transform_indices = @transform_1, window_bounds = array<i64: 1, 8, 96>}, {pipeline_mode = #tpu.pipeline_mode<synchronous>, transform_indices = @transform_2, window_bounds = array<i64: 7, 96, 1>}, {pipeline_mode = #tpu.pipeline_mode<synchronous>, transform_indices = @transform_3, window_bounds = array<i64: 1, 1>}, {transform_indices = @transform_4, window_bounds = array<i64: 1, 8, 1>}]} {
    %c0 = arith.constant 0 : index
    %c0_0 = arith.constant 0 : index
    %0 = vector.load %arg5[%c0, %c0_0] : memref<1x1xf32, #tpu.memory_space<vmem>>, vector<1x1xf32>
    %1 = vector.shape_cast %0 : vector<1x1xf32> to vector<1x1xf32>
    %2 = vector.broadcast %1 : vector<1x1xf32> to vector<8x1xf32>
    %c0_1 = arith.constant 0 : index
    %c0_2 = arith.constant 0 : index
    %3 = vector.load %arg7[%c0_1, %c0_2] : memref<8x1xf32, #tpu.memory_space<vmem>>, vector<8x1xf32>
    tpu.vector_store %arg7[%c0_1, %c0_2], %2 {strides = array<i32>} : memref<8x1xf32, #tpu.memory_space<vmem>>, vector<8x1xf32>,
    %c0_3 = arith.constant 0 : index
    %c0_4 = arith.constant 0 : index
    %c0_5 = arith.constant 0 : index
    %4 = vector.load %arg4[%c0_3, %c0_4, %c0_5] : memref<7x96x1xf32, #tpu.memory_space<vmem>>, vector<1x96x1xf32>
    %5 = vector.shape_cast %4 : vector<1x96x1xf32> to vector<96x1xf32>
    %c0_6 = arith.constant 0 : index
    %c0_7 = arith.constant 0 : index
    %6 = vector.load %arg7[%c0_6, %c0_7] : memref<8x1xf32, #tpu.memory_space<vmem>>, vector<8x1xf32>
    %c0_8 = arith.constant 0 : index
    %c0_9 = arith.constant 0 : index
    %c0_10 = arith.constant 0 : index
    %7 = vector.load %arg2[%c0_8, %c0_9, %c0_10] : memref<1x8x96xf32, #tpu.memory_space<vmem>>, vector<1x8x96xf32>
    %8 = vector.shape_cast %7 : vector<1x8x96xf32> to vector<8x96xf32>
    %cst = arith.constant dense<0.000000e+00> : vector<8x1xf32>
    %9 = tpu.matmul %8, %5, %cst {dimension_numbers = #tpu.dot_dimension_numbers<[1], [0], [0], [1], [0, 0, 1, 1], [], []>} : vector<8x96xf32>, vector<96x1xf32>, vector<8x1xf32> -> vector<8x1xf32>
    %10 = arith.addf %6, %9 : vector<8x1xf32>
    %c0_11 = arith.constant 0 : index
    %c0_12 = arith.constant 0 : index
    %11 = vector.load %arg7[%c0_11, %c0_12] : memref<8x1xf32, #tpu.memory_space<vmem>>, vector<8x1xf32>
    tpu.vector_store %arg7[%c0_11, %c0_12], %10 {strides = array<i32>} : memref<8x1xf32, #tpu.memory_space<vmem>>, vector<8x1xf32>,
    %c1 = arith.constant 1 : index
    %c0_13 = arith.constant 0 : index
    %c0_14 = arith.constant 0 : index
    %12 = vector.load %arg4[%c1, %c0_13, %c0_14] : memref<7x96x1xf32, #tpu.memory_space<vmem>>, vector<1x96x1xf32>
    %13 = vector.shape_cast %12 : vector<1x96x1xf32> to vector<96x1xf32>
    %c0_15 = arith.constant 0 : index
    %c0_16 = arith.constant 0 : index
    %14 = vector.load %arg7[%c0_15, %c0_16] : memref<8x1xf32, #tpu.memory_space<vmem>>, vector<7x1xf32>
    %c0_17 = arith.constant 0 : index
    %c1_18 = arith.constant 1 : index
    %c0_19 = arith.constant 0 : index
    %15 = vector.load %arg2[%c0_17, %c1_18, %c0_19] : memref<1x8x96xf32, #tpu.memory_space<vmem>>, vector<1x7x96xf32>
    %16 = vector.shape_cast %15 : vector<1x7x96xf32> to vector<7x96xf32>
    %cst_20 = arith.constant dense<0.000000e+00> : vector<7x1xf32>
    %17 = tpu.matmul %16, %13, %cst_20 {dimension_numbers = #tpu.dot_dimension_numbers<[1], [0], [0], [1], [0, 0, 1, 1], [], []>} : vector<7x96xf32>, vector<96x1xf32>, vector<7x1xf32> -> vector<7x1xf32>
    %18 = arith.addf %14, %17 : vector<7x1xf32>
    %c0_21 = arith.constant 0 : index
    %c0_22 = arith.constant 0 : index
    %19 = vector.load %arg7[%c0_21, %c0_22] : memref<8x1xf32, #tpu.memory_space<vmem>>, vector<7x1xf32>
    tpu.vector_store %arg7[%c0_21, %c0_22], %18 {strides = array<i32>} : memref<8x1xf32, #tpu.memory_space<vmem>>, vector<7x1xf32>,
    %c7 = arith.constant 7 : index
    %c0_23 = arith.constant 0 : index
    %20 = vector.load %arg7[%c7, %c0_23] : memref<8x1xf32, #tpu.memory_space<vmem>>, vector<1x1xf32>
    %c0_24 = arith.constant 0 : index
    %c0_25 = arith.constant 0 : index
    %c0_26 = arith.constant 0 : index
    %21 = vector.load %arg3[%c0_24, %c0_25, %c0_26] : memref<1x8x96xf32, #tpu.memory_space<vmem>>, vector<1x1x96xf32>
    %22 = vector.shape_cast %21 : vector<1x1x96xf32> to vector<1x96xf32>
    %cst_27 = arith.constant dense<0.000000e+00> : vector<1x1xf32>
    %23 = tpu.matmul %22, %13, %cst_27 {dimension_numbers = #tpu.dot_dimension_numbers<[1], [0], [0], [1], [0, 0, 1, 1], [], []>} : vector<1x96xf32>, vector<96x1xf32>, vector<1x1xf32> -> vector<1x1xf32>
    %24 = arith.addf %20, %23 : vector<1x1xf32>
    %c7_28 = arith.constant 7 : index
    %c0_29 = arith.constant 0 : index
    %25 = vector.load %arg7[%c7_28, %c0_29] : memref<8x1xf32, #tpu.memory_space<vmem>>, vector<1x1xf32>
    tpu.vector_store %arg7[%c7_28, %c0_29], %24 {strides = array<i32>} : memref<8x1xf32, #tpu.memory_space<vmem>>, vector<1x1xf32>,
    %c2 = arith.constant 2 : index
    %c0_30 = arith.constant 0 : index
    %c0_31 = arith.constant 0 : index
    %26 = vector.load %arg4[%c2, %c0_30, %c0_31] : memref<7x96x1xf32, #tpu.memory_space<vmem>>, vector<1x96x1xf32>
    %27 = vector.shape_cast %26 : vector<1x96x1xf32> to vector<96x1xf32>
    %c0_32 = arith.constant 0 : index
    %c0_33 = arith.constant 0 : index
    %28 = vector.load %arg7[%c0_32, %c0_33] : memref<8x1xf32, #tpu.memory_space<vmem>>, vector<6x1xf32>
    %c0_34 = arith.constant 0 : index
    %c2_35 = arith.constant 2 : index
    %c0_36 = arith.constant 0 : index
    %29 = vector.load %arg2[%c0_34, %c2_35, %c0_36] : memref<1x8x96xf32, #tpu.memory_space<vmem>>, vector<1x6x96xf32>
    %30 = vector.shape_cast %29 : vector<1x6x96xf32> to vector<6x96xf32>
    %cst_37 = arith.constant dense<0.000000e+00> : vector<6x1xf32>
    %31 = tpu.matmul %30, %27, %cst_37 {dimension_numbers = #tpu.dot_dimension_numbers<[1], [0], [0], [1], [0, 0, 1, 1], [], []>} : vector<6x96xf32>, vector<96x1xf32>, vector<6x1xf32> -> vector<6x1xf32>
    %32 = arith.addf %28, %31 : vector<6x1xf32>
    %c0_38 = arith.constant 0 : index
    %c0_39 = arith.constant 0 : index
    %33 = vector.load %arg7[%c0_38, %c0_39] : memref<8x1xf32, #tpu.memory_space<vmem>>, vector<6x1xf32>
    tpu.vector_store %arg7[%c0_38, %c0_39], %32 {strides = array<i32>} : memref<8x1xf32, #tpu.memory_space<vmem>>, vector<6x1xf32>,
    %c6 = arith.constant 6 : index
    %c0_40 = arith.constant 0 : index
    %34 = vector.load %arg7[%c6, %c0_40] : memref<8x1xf32, #tpu.memory_space<vmem>>, vector<2x1xf32>
    %c0_41 = arith.constant 0 : index
    %c0_42 = arith.constant 0 : index
    %c0_43 = arith.constant 0 : index
    %35 = vector.load %arg3[%c0_41, %c0_42, %c0_43] : memref<1x8x96xf32, #tpu.memory_space<vmem>>, vector<1x2x96xf32>
    %36 = vector.shape_cast %35 : vector<1x2x96xf32> to vector<2x96xf32>
    %cst_44 = arith.constant dense<0.000000e+00> : vector<2x1xf32>
    %37 = tpu.matmul %36, %27, %cst_44 {dimension_numbers = #tpu.dot_dimension_numbers<[1], [0], [0], [1], [0, 0, 1, 1], [], []>} : vector<2x96xf32>, vector<96x1xf32>, vector<2x1xf32> -> vector<2x1xf32>
    %38 = arith.addf %34, %37 : vector<2x1xf32>
    %c6_45 = arith.constant 6 : index
    %c0_46 = arith.constant 0 : index
    %39 = vector.load %arg7[%c6_45, %c0_46] : memref<8x1xf32, #tpu.memory_space<vmem>>, vector<2x1xf32>
    tpu.vector_store %arg7[%c6_45, %c0_46], %38 {strides = array<i32>} : memref<8x1xf32, #tpu.memory_space<vmem>>, vector<2x1xf32>,
    %c3 = arith.constant 3 : index
    %c0_47 = arith.constant 0 : index
    %c0_48 = arith.constant 0 : index
    %40 = vector.load %arg4[%c3, %c0_47, %c0_48] : memref<7x96x1xf32, #tpu.memory_space<vmem>>, vector<1x96x1xf32>
    %41 = vector.shape_cast %40 : vector<1x96x1xf32> to vector<96x1xf32>
    %c0_49 = arith.constant 0 : index
    %c0_50 = arith.constant 0 : index
    %42 = vector.load %arg7[%c0_49, %c0_50] : memref<8x1xf32, #tpu.memory_space<vmem>>, vector<5x1xf32>
    %c0_51 = arith.constant 0 : index
    %c3_52 = arith.constant 3 : index
    %c0_53 = arith.constant 0 : index
    %43 = vector.load %arg2[%c0_51, %c3_52, %c0_53] : memref<1x8x96xf32, #tpu.memory_space<vmem>>, vector<1x5x96xf32>
    %44 = vector.shape_cast %43 : vector<1x5x96xf32> to vector<5x96xf32>
    %cst_54 = arith.constant dense<0.000000e+00> : vector<5x1xf32>
    %45 = tpu.matmul %44, %41, %cst_54 {dimension_numbers = #tpu.dot_dimension_numbers<[1], [0], [0], [1], [0, 0, 1, 1], [], []>} : vector<5x96xf32>, vector<96x1xf32>, vector<5x1xf32> -> vector<5x1xf32>
    %46 = arith.addf %42, %45 : vector<5x1xf32>
    %c0_55 = arith.constant 0 : index
    %c0_56 = arith.constant 0 : index
    %47 = vector.load %arg7[%c0_55, %c0_56] : memref<8x1xf32, #tpu.memory_space<vmem>>, vector<5x1xf32>
    tpu.vector_store %arg7[%c0_55, %c0_56], %46 {strides = array<i32>} : memref<8x1xf32, #tpu.memory_space<vmem>>, vector<5x1xf32>,
    %c5 = arith.constant 5 : index
    %c0_57 = arith.constant 0 : index
    %48 = vector.load %arg7[%c5, %c0_57] : memref<8x1xf32, #tpu.memory_space<vmem>>, vector<3x1xf32>
    %c0_58 = arith.constant 0 : index
    %c0_59 = arith.constant 0 : index
    %c0_60 = arith.constant 0 : index
    %49 = vector.load %arg3[%c0_58, %c0_59, %c0_60] : memref<1x8x96xf32, #tpu.memory_space<vmem>>, vector<1x3x96xf32>
    %50 = vector.shape_cast %49 : vector<1x3x96xf32> to vector<3x96xf32>
    %cst_61 = arith.constant dense<0.000000e+00> : vector<3x1xf32>
    %51 = tpu.matmul %50, %41, %cst_61 {dimension_numbers = #tpu.dot_dimension_numbers<[1], [0], [0], [1], [0, 0, 1, 1], [], []>} : vector<3x96xf32>, vector<96x1xf32>, vector<3x1xf32> -> vector<3x1xf32>
    %52 = arith.addf %48, %51 : vector<3x1xf32>
    %c5_62 = arith.constant 5 : index
    %c0_63 = arith.constant 0 : index
    %53 = vector.load %arg7[%c5_62, %c0_63] : memref<8x1xf32, #tpu.memory_space<vmem>>, vector<3x1xf32>
    tpu.vector_store %arg7[%c5_62, %c0_63], %52 {strides = array<i32>} : memref<8x1xf32, #tpu.memory_space<vmem>>, vector<3x1xf32>,
    %c4 = arith.constant 4 : index
    %c0_64 = arith.constant 0 : index
    %c0_65 = arith.constant 0 : index
    %54 = vector.load %arg4[%c4, %c0_64, %c0_65] : memref<7x96x1xf32, #tpu.memory_space<vmem>>, vector<1x96x1xf32>
    %55 = vector.shape_cast %54 : vector<1x96x1xf32> to vector<96x1xf32>
    %c0_66 = arith.constant 0 : index
    %c0_67 = arith.constant 0 : index
    %56 = vector.load %arg7[%c0_66, %c0_67] : memref<8x1xf32, #tpu.memory_space<vmem>>, vector<4x1xf32>
    %c0_68 = arith.constant 0 : index
    %c4_69 = arith.constant 4 : index
    %c0_70 = arith.constant 0 : index
    %57 = vector.load %arg2[%c0_68, %c4_69, %c0_70] : memref<1x8x96xf32, #tpu.memory_space<vmem>>, vector<1x4x96xf32>
    %58 = vector.shape_cast %57 : vector<1x4x96xf32> to vector<4x96xf32>
    %cst_71 = arith.constant dense<0.000000e+00> : vector<4x1xf32>
    %59 = tpu.matmul %58, %55, %cst_71 {dimension_numbers = #tpu.dot_dimension_numbers<[1], [0], [0], [1], [0, 0, 1, 1], [], []>} : vector<4x96xf32>, vector<96x1xf32>, vector<4x1xf32> -> vector<4x1xf32>
    %60 = arith.addf %56, %59 : vector<4x1xf32>
    %c0_72 = arith.constant 0 : index
    %c0_73 = arith.constant 0 : index
    %61 = vector.load %arg7[%c0_72, %c0_73] : memref<8x1xf32, #tpu.memory_space<vmem>>, vector<4x1xf32>
    tpu.vector_store %arg7[%c0_72, %c0_73], %60 {strides = array<i32>} : memref<8x1xf32, #tpu.memory_space<vmem>>, vector<4x1xf32>,
    %c4_74 = arith.constant 4 : index
    %c0_75 = arith.constant 0 : index
    %62 = vector.load %arg7[%c4_74, %c0_75] : memref<8x1xf32, #tpu.memory_space<vmem>>, vector<4x1xf32>
    %c0_76 = arith.constant 0 : index
    %c0_77 = arith.constant 0 : index
    %c0_78 = arith.constant 0 : index
    %63 = vector.load %arg3[%c0_76, %c0_77, %c0_78] : memref<1x8x96xf32, #tpu.memory_space<vmem>>, vector<1x4x96xf32>
    %64 = vector.shape_cast %63 : vector<1x4x96xf32> to vector<4x96xf32>
    %cst_79 = arith.constant dense<0.000000e+00> : vector<4x1xf32>
    %65 = tpu.matmul %64, %55, %cst_79 {dimension_numbers = #tpu.dot_dimension_numbers<[1], [0], [0], [1], [0, 0, 1, 1], [], []>} : vector<4x96xf32>, vector<96x1xf32>, vector<4x1xf32> -> vector<4x1xf32>
    %66 = arith.addf %62, %65 : vector<4x1xf32>
    %c4_80 = arith.constant 4 : index
    %c0_81 = arith.constant 0 : index
    %67 = vector.load %arg7[%c4_80, %c0_81] : memref<8x1xf32, #tpu.memory_space<vmem>>, vector<4x1xf32>
    tpu.vector_store %arg7[%c4_80, %c0_81], %66 {strides = array<i32>} : memref<8x1xf32, #tpu.memory_space<vmem>>, vector<4x1xf32>,
    %c5_82 = arith.constant 5 : index
    %c0_83 = arith.constant 0 : index
    %c0_84 = arith.constant 0 : index
    %68 = vector.load %arg4[%c5_82, %c0_83, %c0_84] : memref<7x96x1xf32, #tpu.memory_space<vmem>>, vector<1x96x1xf32>
    %69 = vector.shape_cast %68 : vector<1x96x1xf32> to vector<96x1xf32>
    %c0_85 = arith.constant 0 : index
    %c0_86 = arith.constant 0 : index
    %70 = vector.load %arg7[%c0_85, %c0_86] : memref<8x1xf32, #tpu.memory_space<vmem>>, vector<3x1xf32>
    %c0_87 = arith.constant 0 : index
    %c5_88 = arith.constant 5 : index
    %c0_89 = arith.constant 0 : index
    %71 = vector.load %arg2[%c0_87, %c5_88, %c0_89] : memref<1x8x96xf32, #tpu.memory_space<vmem>>, vector<1x3x96xf32>
    %72 = vector.shape_cast %71 : vector<1x3x96xf32> to vector<3x96xf32>
    %cst_90 = arith.constant dense<0.000000e+00> : vector<3x1xf32>
    %73 = tpu.matmul %72, %69, %cst_90 {dimension_numbers = #tpu.dot_dimension_numbers<[1], [0], [0], [1], [0, 0, 1, 1], [], []>} : vector<3x96xf32>, vector<96x1xf32>, vector<3x1xf32> -> vector<3x1xf32>
    %74 = arith.addf %70, %73 : vector<3x1xf32>
    %c0_91 = arith.constant 0 : index
    %c0_92 = arith.constant 0 : index
    %75 = vector.load %arg7[%c0_91, %c0_92] : memref<8x1xf32, #tpu.memory_space<vmem>>, vector<3x1xf32>
    tpu.vector_store %arg7[%c0_91, %c0_92], %74 {strides = array<i32>} : memref<8x1xf32, #tpu.memory_space<vmem>>, vector<3x1xf32>,
    %c3_93 = arith.constant 3 : index
    %c0_94 = arith.constant 0 : index
    %76 = vector.load %arg7[%c3_93, %c0_94] : memref<8x1xf32, #tpu.memory_space<vmem>>, vector<5x1xf32>
    %c0_95 = arith.constant 0 : index
    %c0_96 = arith.constant 0 : index
    %c0_97 = arith.constant 0 : index
    %77 = vector.load %arg3[%c0_95, %c0_96, %c0_97] : memref<1x8x96xf32, #tpu.memory_space<vmem>>, vector<1x5x96xf32>
    %78 = vector.shape_cast %77 : vector<1x5x96xf32> to vector<5x96xf32>
    %cst_98 = arith.constant dense<0.000000e+00> : vector<5x1xf32>
    %79 = tpu.matmul %78, %69, %cst_98 {dimension_numbers = #tpu.dot_dimension_numbers<[1], [0], [0], [1], [0, 0, 1, 1], [], []>} : vector<5x96xf32>, vector<96x1xf32>, vector<5x1xf32> -> vector<5x1xf32>
    %80 = arith.addf %76, %79 : vector<5x1xf32>
    %c3_99 = arith.constant 3 : index
    %c0_100 = arith.constant 0 : index
    %81 = vector.load %arg7[%c3_99, %c0_100] : memref<8x1xf32, #tpu.memory_space<vmem>>, vector<5x1xf32>
    tpu.vector_store %arg7[%c3_99, %c0_100], %80 {strides = array<i32>} : memref<8x1xf32, #tpu.memory_space<vmem>>, vector<5x1xf32>,
    %c6_101 = arith.constant 6 : index
    %c0_102 = arith.constant 0 : index
    %c0_103 = arith.constant 0 : index
    %82 = vector.load %arg4[%c6_101, %c0_102, %c0_103] : memref<7x96x1xf32, #tpu.memory_space<vmem>>, vector<1x96x1xf32>
    %83 = vector.shape_cast %82 : vector<1x96x1xf32> to vector<96x1xf32>
    %c0_104 = arith.constant 0 : index
    %c0_105 = arith.constant 0 : index
    %84 = vector.load %arg7[%c0_104, %c0_105] : memref<8x1xf32, #tpu.memory_space<vmem>>, vector<2x1xf32>
    %c0_106 = arith.constant 0 : index
    %c6_107 = arith.constant 6 : index
    %c0_108 = arith.constant 0 : index
    %85 = vector.load %arg2[%c0_106, %c6_107, %c0_108] : memref<1x8x96xf32, #tpu.memory_space<vmem>>, vector<1x2x96xf32>
    %86 = vector.shape_cast %85 : vector<1x2x96xf32> to vector<2x96xf32>
    %cst_109 = arith.constant dense<0.000000e+00> : vector<2x1xf32>
    %87 = tpu.matmul %86, %83, %cst_109 {dimension_numbers = #tpu.dot_dimension_numbers<[1], [0], [0], [1], [0, 0, 1, 1], [], []>} : vector<2x96xf32>, vector<96x1xf32>, vector<2x1xf32> -> vector<2x1xf32>
    %88 = arith.addf %84, %87 : vector<2x1xf32>
    %c0_110 = arith.constant 0 : index
    %c0_111 = arith.constant 0 : index
    %89 = vector.load %arg7[%c0_110, %c0_111] : memref<8x1xf32, #tpu.memory_space<vmem>>, vector<2x1xf32>
    tpu.vector_store %arg7[%c0_110, %c0_111], %88 {strides = array<i32>} : memref<8x1xf32, #tpu.memory_space<vmem>>, vector<2x1xf32>,
    %c2_112 = arith.constant 2 : index
    %c0_113 = arith.constant 0 : index
    %90 = vector.load %arg7[%c2_112, %c0_113] : memref<8x1xf32, #tpu.memory_space<vmem>>, vector<6x1xf32>
    %c0_114 = arith.constant 0 : index
    %c0_115 = arith.constant 0 : index
    %c0_116 = arith.constant 0 : index
    %91 = vector.load %arg3[%c0_114, %c0_115, %c0_116] : memref<1x8x96xf32, #tpu.memory_space<vmem>>, vector<1x6x96xf32>
    %92 = vector.shape_cast %91 : vector<1x6x96xf32> to vector<6x96xf32>
    %cst_117 = arith.constant dense<0.000000e+00> : vector<6x1xf32>
    %93 = tpu.matmul %92, %83, %cst_117 {dimension_numbers = #tpu.dot_dimension_numbers<[1], [0], [0], [1], [0, 0, 1, 1], [], []>} : vector<6x96xf32>, vector<96x1xf32>, vector<6x1xf32> -> vector<6x1xf32>
    %94 = arith.addf %90, %93 : vector<6x1xf32>
    %c2_118 = arith.constant 2 : index
    %c0_119 = arith.constant 0 : index
    %95 = vector.load %arg7[%c2_118, %c0_119] : memref<8x1xf32, #tpu.memory_space<vmem>>, vector<6x1xf32>
    tpu.vector_store %arg7[%c2_118, %c0_119], %94 {strides = array<i32>} : memref<8x1xf32, #tpu.memory_space<vmem>>, vector<6x1xf32>,
    %c0_120 = arith.constant 0 : index
    %c0_121 = arith.constant 0 : index
    %96 = vector.load %arg7[%c0_120, %c0_121] : memref<8x1xf32, #tpu.memory_space<vmem>>, vector<8x1xf32>
    %c0_122 = arith.constant 0 : index
    %c0_123 = arith.constant 0 : index
    %c0_124 = arith.constant 0 : index
    %97 = vector.load %arg6[%c0_122, %c0_123, %c0_124] : memref<1x8x1xf32, #tpu.memory_space<vmem>>, vector<1x8x1xf32>
    %98 = vector.shape_cast %97 : vector<1x8x1xf32> to vector<8x1xf32>
    %99 = vector.shape_cast %96 : vector<8x1xf32> to vector<1x8x1xf32>
    tpu.vector_store %arg6[%c0_122, %c0_123, %c0_124], %99 {strides = array<i32>} : memref<1x8x1xf32, #tpu.memory_space<vmem>>, vector<1x8x1xf32>,
    return
  }
  func.func @transform_0(%arg0: i32, %arg1: i32) -> (i32, i32, i32) {
    %c0_i32 = arith.constant 0 : i32
    %c0_i32_0 = arith.constant 0 : i32
    return %arg0, %arg1, %c0_i32 : i32, i32, i32
  }
  func.func @transform_1(%arg0: i32, %arg1: i32) -> (i32, i32, i32) {
    %c1_i32 = arith.constant 1 : i32
    %0 = arith.addi %arg1, %c1_i32 : i32
    %c1_i32_0 = arith.constant 1 : i32
    %1 = arith.muli %0, %c1_i32_0 : i32
    %c0_i32 = arith.constant 0 : i32
    %c0_i32_1 = arith.constant 0 : i32
    return %arg0, %1, %c0_i32 : i32, i32, i32
  }
  func.func @transform_2(%arg0: i32, %arg1: i32) -> (i32, i32, i32) {
    %c0_i32 = arith.constant 0 : i32
    %c0_i32_0 = arith.constant 0 : i32
    %c0_i32_1 = arith.constant 0 : i32
    %c0_i32_2 = arith.constant 0 : i32
    return %c0_i32, %c0_i32_0, %c0_i32_1 : i32, i32, i32
  }
  func.func @transform_3(%arg0: i32, %arg1: i32) -> (i32, i32) {
    %c0_i32 = arith.constant 0 : i32
    %c0_i32_0 = arith.constant 0 : i32
    %c0_i32_1 = arith.constant 0 : i32
    return %c0_i32, %c0_i32_0 : i32, i32
  }
  func.func @transform_4(%arg0: i32, %arg1: i32) -> (i32, i32, i32) {
    %c0_i32 = arith.constant 0 : i32
    %c0_i32_0 = arith.constant 0 : i32
    return %arg0, %arg1, %c0_i32 : i32, i32, i32
  }
}

</mosaic_0001>

<llo_original>
// kernel: _forward_impl.4
$region0: #{_forward_impl.4}
  #allocation0 [shape = 'u32[]', space=smem, size = 0x4, offset = 0x4, fixed_abs, tag = 'smem constant byte address 0x4 - core index']
  #allocation1 [shape = 'u32[144,128]{1,0:T(1,128)}', space=vmem, size = 0x12000, scoped, tag = 'internal scratch']
  #allocation2 [shape = 'f32[144,8]{1,0:T(8,128)}', space=vmem, size = 0x12000, scoped, tag = 'scratch operand']
  %s0 = inlined_call_operand.vmem [shape: f32[2,152,82], index: 0, kind: input, shape index: {}, may-alias: {0,1}]
  %s1 = inlined_call_operand.vmem [shape: f32[2,152,82], index: 1, kind: input, shape index: {}, may-alias: {0,1}]
  %s2 = inlined_call_operand.vmem [shape: f32[1,82,8], index: 2, kind: input, shape index: {}]
  %s3 = inlined_call_operand.vmem [shape: f32[1,8], index: 3, kind: input, shape index: {}]
  %s4 = inlined_call_operand.vmem [shape: f32[2,144,8], index: 4, kind: output, shape index: {}]
  %s5 = sld [smem:[#allocation0]]
  $region49: #{_forward_impl.4} parent=0
    _
  %s7 = ssub.s32 1, %s5
  %s8 = scalar_select 0, %s7, %s5
  loop: start=0, step=1, limit=4
  $region2: #{_forward_impl.4} parent=0 // loop_pre_header
    _
  $region3: #{_forward_impl.4} parent=0 // loop_header
    %s10 = sphi 0, %s14
    %p11 = scmp.ge.s32.totalorder %s10, 4
    %s17 = sphi 0, %s29
    %s18 = sphi 0, %s25
    %s19 = sphi 0, %s17
    %s20 = sphi 0, %s18
    %s21 = sphi 0, %s19
    %s22 = sphi 0, %s20
    %s34 = sphi 0, %s36
    %s37 = sphi 0, %s34
    %s38 = sphi 0, %s37
    %s54 = sphi 0, %s38
    %s66 = sphi 0, %s68
    %s69 = sphi 0, %s66
    %s70 = sphi 0, %s69
    %s86 = sphi 0, %s70
    %s90 = sphi 0, %s90
    %s92 = sphi 0, %s90
    %s93 = sphi 0, %s92
    %s107 = sphi 0, %s93
    %s111 = sphi 0, %s111
    %s113 = sphi 0, %s111
    %s114 = sphi 0, %s113
    %s128 = sphi 0, %s114
    %s136 = sphi 0, %s138
    %s139 = sphi 0, %s136
    %s140 = sphi 0, %s139
    %s156 = sphi 0, %s140
  $region4: #{_forward_impl.4} parent=0 // loop_header_branch
    %13 = sbr.rel (%p11) target = $region8
  $region5: #{_forward_impl.4} parent=0 // loop_body
    %s15 = ssub.s32 %s10, 1
    %s16 = ssub.s32 %s10, 2
    %s23 = sadd.s32 1, %s18
    %p24 = scmp.ge.s32.totalorder %s23, 1
    %s25 = scalar_select %p24, 0, %s23
    %s26 = sadd.s32 1, %s17
    %s27 = scalar_select %p24, %s26, %s17
    %p28 = scmp.ge.s32.totalorder %s27, 2
    %s29 = scalar_select %p28, 0, %s27
    %s30 = ssub.s32 %s17, %s29
    %s31 = ssub.s32 %s18, %s25
    %s32 = sor.u32 %s30, %s31
    %p33 = scmp.eq.s32.totalorder %s32, 0
    %s35 = sadd.s32 %s34, 1
    %s36 = scalar_select %p33, %s34, %s35
    %p39 = pneg %p33
    %p40 = scmp.eq.s32.totalorder %s10, 1
    %p41 = por %p39, %p40
    %p42 = scmp.ne.s32.totalorder %s34, %s37
    %p43 = scmp.eq.s32.totalorder %s10, 0
    %p44 = por %p42, %p43
    %p45 = scmp.ne.s32.totalorder %s34, %s37
    %p46 = scmp.eq.s32.totalorder %s15, 1
    %p47 = por %p45, %p46
    %p48 = scmp.ne.s32.totalorder %s37, %s38
    %p49 = scmp.eq.s32.totalorder %s15, 0
    %p50 = por %p48, %p49
    %p51 = scmp.ne.s32.totalorder %s37, %s38
    %p52 = scmp.eq.s32.totalorder %s16, 1
    %p53 = por %p51, %p52
    %p55 = scmp.ne.s32.totalorder %s38, %s54
    %p56 = scmp.eq.s32.totalorder %s16, 0
    %p57 = por %p55, %p56
    %s58 = sadd.s32 %s18, 1
    %s59 = smul.u32 %s58, 18
    %s60 = sadd.s32 %s25, 1
    %s61 = smul.u32 %s60, 18
    %s62 = ssub.s32 %s17, %s29
    %s63 = ssub.s32 %s59, %s61
    %s64 = sor.u32 %s62, %s63
    %p65 = scmp.eq.s32.totalorder %s64, 0
    %s67 = sadd.s32 %s66, 1
    %s68 = scalar_select %p65, %s66, %s67
    %p71 = pneg %p65
    %p72 = scmp.eq.s32.totalorder %s10, 1
    %p73 = por %p71, %p72
    %p74 = scmp.ne.s32.totalorder %s66, %s69
    %p75 = scmp.eq.s32.totalorder %s10, 0
    %p76 = por %p74, %p75
    %p77 = scmp.ne.s32.totalorder %s66, %s69
    %p78 = scmp.eq.s32.totalorder %s15, 1
    %p79 = por %p77, %p78
    %p80 = scmp.ne.s32.totalorder %s69, %s70
    %p81 = scmp.eq.s32.totalorder %s15, 0
    %p82 = por %p80, %p81
    %p83 = scmp.ne.s32.totalorder %s69, %s70
    %p84 = scmp.eq.s32.totalorder %s16, 1
    %p85 = por %p83, %p84
    %p87 = scmp.ne.s32.totalorder %s70, %s86
    %p88 = scmp.eq.s32.totalorder %s16, 0
    %p89 = por %p87, %p88
    %s91 = sadd.s32 %s90, 1
    %p94 = scmp.eq.s32.totalorder %s10, 1
    %p95 = scmp.ne.s32.totalorder %s90, %s92
    %p96 = scmp.eq.s32.totalorder %s10, 0
    %p97 = por %p95, %p96
    %p98 = scmp.ne.s32.totalorder %s90, %s92
    %p99 = scmp.eq.s32.totalorder %s15, 1
    %p100 = por %p98, %p99
    %p101 = scmp.ne.s32.totalorder %s92, %s93
    %p102 = scmp.eq.s32.totalorder %s15, 0
    %p103 = por %p101, %p102
    %p104 = scmp.ne.s32.totalorder %s92, %s93
    %p105 = scmp.eq.s32.totalorder %s16, 1
    %p106 = por %p104, %p105
    %p108 = scmp.ne.s32.totalorder %s93, %s107
    %p109 = scmp.eq.s32.totalorder %s16, 0
    %p110 = por %p108, %p109
    %s112 = sadd.s32 %s111, 1
    %p115 = scmp.eq.s32.totalorder %s10, 1
    %p116 = scmp.ne.s32.totalorder %s111, %s113
    %p117 = scmp.eq.s32.totalorder %s10, 0
    %p118 = por %p116, %p117
    %p119 = scmp.ne.s32.totalorder %s111, %s113
    %p120 = scmp.eq.s32.totalorder %s15, 1
    %p121 = por %p119, %p120
    %p122 = scmp.ne.s32.totalorder %s113, %s114
    %p123 = scmp.eq.s32.totalorder %s15, 0
    %p124 = por %p122, %p123
    %p125 = scmp.ne.s32.totalorder %s113, %s114
    %p126 = scmp.eq.s32.totalorder %s16, 1
    %p127 = por %p125, %p126
    %p129 = scmp.ne.s32.totalorder %s114, %s128
    %p130 = scmp.eq.s32.totalorder %s16, 0
    %p131 = por %p129, %p130
    %s132 = ssub.s32 %s17, %s29
    %s133 = ssub.s32 %s18, %s25
    %s134 = sor.u32 %s132, %s133
    %p135 = scmp.eq.s32.totalorder %s134, 0
    %s137 = sadd.s32 %s136, 1
    %s138 = scalar_select %p135, %s136, %s137
    %p141 = pneg %p135
    %p142 = scmp.eq.s32.totalorder %s10, 1
    %p143 = por %p141, %p142
    %p144 = scmp.ne.s32.totalorder %s136, %s139
    %p145 = scmp.eq.s32.totalorder %s10, 0
    %p146 = por %p144, %p145
    %p147 = scmp.ne.s32.totalorder %s136, %s139
    %p148 = scmp.eq.s32.totalorder %s15, 1
    %p149 = por %p147, %p148
    %p150 = scmp.ne.s32.totalorder %s139, %s140
    %p151 = scmp.eq.s32.totalorder %s15, 0
    %p152 = por %p150, %p151
    %p153 = scmp.ne.s32.totalorder %s139, %s140
    %p154 = scmp.eq.s32.totalorder %s16, 1
    %p155 = por %p153, %p154
    %p157 = scmp.ne.s32.totalorder %s140, %s156
    %p158 = scmp.eq.s32.totalorder %s16, 0
    %p159 = por %p157, %p158
    %p160 = scmp.le.s32.totalorder 1, %s10
    %p161 = scmp.lt.s32.totalorder %s10, 3
    %p162 = pnand %p160, %p161
    %p163 = pneg %p162
    // Predicated region
    $region9: #{_forward_impl.4} parent=5 // pred_check
      _
    $region10: #{_forward_impl.4} parent=5 // pred_check_branch
      %165 = sbr.rel (%p162) target = $region12
    $region11: #{_forward_impl.4} parent=5 // pred_region
      %s166 = ssub.s32 %s10, 1
      // Predicated region
      $region13: #{_forward_impl.4} parent=11 // pred_check
        %p167 = pneg %p103
      $region14: #{_forward_impl.4} parent=11 // pred_check_branch
        %169 = sbr.rel (%p167) target = $region16
      $region15: #{_forward_impl.4} parent=11 // pred_region
        _
      $region16: #{_forward_impl.4} parent=11 // pred_fallthru
        _
      // Predicated region
      $region17: #{_forward_impl.4} parent=11 // pred_check
        %p170 = pneg %p124
      $region18: #{_forward_impl.4} parent=11 // pred_check_branch
        %172 = sbr.rel (%p170) target = $region20
      $region19: #{_forward_impl.4} parent=11 // pred_region
        _
      $region20: #{_forward_impl.4} parent=11 // pred_fallthru
        _
    $region12: #{_forward_impl.4} parent=5 // pred_fallthru
      _
    %p173 = scmp.lt.s32.totalorder %s10, 2
    // Predicated region
    $region21: #{_forward_impl.4} parent=5 // pred_check
      %p174 = pneg %p173
    $region22: #{_forward_impl.4} parent=5 // pred_check_branch
      %176 = sbr.rel (%p174) target = $region24
    $region23: #{_forward_impl.4} parent=5 // pred_region
      // Predicated region
      $region25: #{_forward_impl.4} parent=23 // pred_check
        %p177 = pneg %p44
      $region26: #{_forward_impl.4} parent=23 // pred_check_branch
        %179 = sbr.rel (%p177) target = $region28
      $region27: #{_forward_impl.4} parent=23 // pred_region
        %s180 = smul.u32 18, %s18
        %s181 = ssub.s32 19, %s180
        %p182 = scmp.lt.s32.totalorder %s181, 18
        %s183 = scalar_select %p182, %s181, 18
        %s184 = smul.u32 128, %s183
        %p185 = scmp.lt.s32.totalorder %s17, 1
        %s186 = scalar_select %p185, %s17, 1
        %p187 = scmp.lt.s32.totalorder %s180, 18
        %s188 = scalar_select %p187, %s180, 18
        %s189 = smul.addr %s186, 19
        %s190 = sadd.s32 %s188, %s189
        %s191 = smul.addr %s190, 8
        %s192 = scalar_lea.vmem %s0, %s191
        %s193 = smul.u32 18, %s18
        %s194 = ssub.s32 19, %s193
        %p195 = scmp.lt.s32.totalorder %s194, 18
        %s196 = scalar_select %p195, %s194, 18
        %s197 = smul.u32 128, %s196
      $region28: #{_forward_impl.4} parent=23 // pred_fallthru
        _
      // Predicated region
      $region29: #{_forward_impl.4} parent=23 // pred_check
        %p198 = pneg %p76
      $region30: #{_forward_impl.4} parent=23 // pred_check_branch
        %200 = sbr.rel (%p198) target = $region32
      $region31: #{_forward_impl.4} parent=23 // pred_region
        %s201 = sadd.s32 %s18, 1
        %s202 = smul.u32 %s201, 18
        %p203 = scmp.lt.s32.totalorder %s17, 1
        %s204 = scalar_select %p203, %s17, 1
        %p205 = scmp.lt.s32.totalorder %s202, 18
        %s206 = scalar_select %p205, %s202, 18
        %s207 = smul.addr %s204, 19
        %s208 = sadd.s32 %s206, %s207
        %s209 = smul.addr %s208, 8
        %s210 = scalar_lea.vmem %s1, %s209
        %s211 = sadd.s32 %s18, 1
        %s212 = smul.u32 %s211, 18
      $region32: #{_forward_impl.4} parent=23 // pred_fallthru
        _
    $region24: #{_forward_impl.4} parent=5 // pred_fallthru
      _
    %p213 = scmp.le.s32.totalorder 1, %s10
    %p214 = scmp.lt.s32.totalorder %s10, 3
    %p215 = pnand %p213, %p214
    %p216 = pneg %p215
    // Predicated region
    $region33: #{_forward_impl.4} parent=5 // pred_check
      _
    $region34: #{_forward_impl.4} parent=5 // pred_check_branch
      %218 = sbr.rel (%p215) target = $region36
    $region35: #{_forward_impl.4} parent=5 // pred_region
      %s219 = ssub.s32 %s10, 1
      %s220 = smul.u32 18, %s20
      %s221 = ssub.s32 19, %s220
      %p222 = scmp.lt.s32.totalorder %s221, 18
      %s223 = scalar_select %p222, %s221, 18
      %s224 = smul.u32 128, %s223
      %p225 = scmp.lt.s32.totalorder %s19, 1
      %s226 = scalar_select %p225, %s19, 1
      %p227 = scmp.lt.s32.totalorder %s220, 18
      %s228 = scalar_select %p227, %s220, 18
      %s229 = smul.addr %s226, 19
      %s230 = sadd.s32 %s228, %s229
      %s231 = smul.addr %s230, 8
      %s232 = scalar_lea.vmem %s0, %s231
      %p233 = pneg %p50
      %p234 = pneg %p47
      %s235 = sadd.s32 %s20, 1
      %s236 = smul.u32 %s235, 18
      %p237 = scmp.lt.s32.totalorder %s19, 1
      %s238 = scalar_select %p237, %s19, 1
      %p239 = scmp.lt.s32.totalorder %s236, 18
      %s240 = scalar_select %p239, %s236, 18
      %s241 = smul.addr %s238, 19
      %s242 = sadd.s32 %s240, %s241
      %s243 = smul.addr %s242, 8
      %s244 = scalar_lea.vmem %s1, %s243
      %p245 = pneg %p82
      %p246 = pneg %p79
      %p247 = pneg %p103
      %p248 = pneg %p100
      %p249 = pneg %p124
      %p250 = pneg %p121
      %p251 = pneg %p152
      %p252 = pneg %p149
      %s253 = smul.u32 18, %s20
      %p254 = scmp.lt.s32.totalorder %s19, 1
      %s255 = scalar_select %p254, %s19, 1
      %p256 = scmp.lt.s32.totalorder %s253, 17
      %s257 = scalar_select %p256, %s253, 17
      %s258 = smul.addr %s255, 18
      %s259 = sadd.s32 %s257, %s258
      %s260 = smul.addr %s259, 8
      %s261 = scalar_lea.vmem %s4, %s260
      %s262 = smul.u32 18, %s20
      %s263 = ssub.s32 19, %s262
      %p264 = scmp.lt.s32.totalorder %s263, 18
      %s265 = scalar_select %p264, %s263, 18
      %s266 = smul.u32 128, %s265
      %p267 = scmp.lt.s32.totalorder %s19, 1
      %s268 = scalar_select %p267, %s19, 1
      %p269 = scmp.lt.s32.totalorder %s262, 18
      %s270 = scalar_select %p269, %s262, 18
      %s271 = smul.addr %s268, 19
      %s272 = sadd.s32 %s270, %s271
      %s273 = smul.addr %s272, 8
      %s274 = scalar_lea.vmem %s0, %s273
      %s275 = smul.u32 18, %s20
      %s276 = ssub.s32 19, %s275
      %p277 = scmp.lt.s32.totalorder %s276, 18
      %s278 = scalar_select %p277, %s276, 18
      %s279 = smul.u32 128, %s278
      %s280 = sadd.s32 %s20, 1
      %s281 = smul.u32 %s280, 18
      %p282 = scmp.lt.s32.totalorder %s19, 1
      %s283 = scalar_select %p282, %s19, 1
      %p284 = scmp.lt.s32.totalorder %s281, 18
      %s285 = scalar_select %p284, %s281, 18
      %s286 = smul.addr %s283, 19
      %s287 = sadd.s32 %s285, %s286
      %s288 = smul.addr %s287, 8
      %s289 = scalar_lea.vmem %s1, %s288
      %s290 = sadd.s32 %s20, 1
      %s291 = smul.u32 %s290, 18
      %s292 = smul.u32 18, %s20
      %p293 = scmp.lt.s32.totalorder %s19, 1
      %s294 = scalar_select %p293, %s19, 1
      %p295 = scmp.lt.s32.totalorder %s292, 17
      %s296 = scalar_select %p295, %s292, 17
      %s297 = smul.addr %s294, 18
      %s298 = sadd.s32 %s296, %s297
      %s299 = smul.addr %s298, 8
      %s300 = scalar_lea.vmem %s4, %s299
      %s301 = smul.u32 18, %s20
      %v302 = vld [vmem:[%s3] sm:$0x1]
      %v304 = vlaneseq
      %v305 = vshrl.u32 %v304, 7
      %v306 = vsub.s32 0, %v305
      %v307 = vrot.slane %v302, %v306
      %vm309 = vcmask 64512
      %310 = vst.msk [vmem:[#allocation2] sm:$0xff] %vm309, %v307
      %311 = vst.msk [vmem:[#allocation2 + $0x8] sm:$0xff] %vm309, %v307
      %312 = vst.msk [vmem:[#allocation2 + $0x10] sm:$0xff] %vm309, %v307
      %313 = vst.msk [vmem:[#allocation2 + $0x18] sm:$0xff] %vm309, %v307
      %314 = vst.msk [vmem:[#allocation2 + $0x20] sm:$0xff] %vm309, %v307
      %315 = vst.msk [vmem:[#allocation2 + $0x28] sm:$0xff] %vm309, %v307
      %316 = vst.msk [vmem:[#allocation2 + $0x30] sm:$0xff] %vm309, %v307
      %317 = vst.msk [vmem:[#allocation2 + $0x38] sm:$0xff] %vm309, %v307
      %318 = vst.msk [vmem:[#allocation2 + $0x40] sm:$0xff] %vm309, %v307
      %319 = vst.msk [vmem:[#allocation2 + $0x48] sm:$0xff] %vm309, %v307
      %320 = vst.msk [vmem:[#allocation2 + $0x50] sm:$0xff] %vm309, %v307
      %321 = vst.msk [vmem:[#allocation2 + $0x58] sm:$0xff] %vm309, %v307
      %322 = vst.msk [vmem:[#allocation2 + $0x60] sm:$0xff] %vm309, %v307
      %323 = vst.msk [vmem:[#allocation2 + $0x68] sm:$0xff] %vm309, %v307
      %324 = vst.msk [vmem:[#allocation2 + $0x70] sm:$0xff] %vm309, %v307
      %325 = vst.msk [vmem:[#allocation2 + $0x78] sm:$0xff] %vm309, %v307
      %326 = vst.msk [vmem:[#allocation2 + $0x80] sm:$0xff] %vm309, %v307
      %327 = vst.msk [vmem:[#allocation2 + $0x88] sm:$0xff] %vm309, %v307
      %v328 = vld [vmem:[%s2] sm:$0xff]
      %v329 = vld [vmem:[%s2 + $0x8] sm:$0xff]
      %v330 = vld [vmem:[%s2 + $0x10] sm:$0xff]
      %v331 = vld [vmem:[%s2 + $0x18] sm:$0xff]
      %v332 = vld [vmem:[%s2 + $0x20] sm:$0xff]
      %v333 = vld [vmem:[%s2 + $0x28] sm:$0xff]
      %v334 = vld [vmem:[%s2 + $0x30] sm:$0xff]
      %v335 = vld [vmem:[%s2 + $0x38] sm:$0xff]
      %v336 = vld [vmem:[%s2 + $0x40] sm:$0xff]
      %v337 = vld [vmem:[%s2 + $0x48] sm:$0xff]
      %v338 = vld [vmem:[%s2 + $0x50] sm:$0x3]
      %v339 = vld [vmem:[#allocation2] sm:$0xff]
      %v340 = vld [vmem:[#allocation2 + $0x8] sm:$0xff]
      %v341 = vld [vmem:[#allocation2 + $0x10] sm:$0xff]
      %v342 = vld [vmem:[#allocation2 + $0x18] sm:$0xff]
      %v343 = vld [vmem:[#allocation2 + $0x20] sm:$0xff]
      %v344 = vld [vmem:[#allocation2 + $0x28] sm:$0xff]
      %v345 = vld [vmem:[#allocation2 + $0x30] sm:$0xff]
      %v346 = vld [vmem:[#allocation2 + $0x38] sm:$0xff]
      %v347 = vld [vmem:[#allocation2 + $0x40] sm:$0xff]
      %v348 = vld [vmem:[#allocation2 + $0x48] sm:$0xff]
      %v349 = vld [vmem:[#allocation2 + $0x50] sm:$0xff]
      %v350 = vld [vmem:[#allocation2 + $0x58] sm:$0xff]
      %v351 = vld [vmem:[#allocation2 + $0x60] sm:$0xff]
      %v352 = vld [vmem:[#allocation2 + $0x68] sm:$0xff]
      %v353 = vld [vmem:[#allocation2 + $0x70] sm:$0xff]
      %v354 = vld [vmem:[#allocation2 + $0x78] sm:$0xff]
      %v355 = vld [vmem:[#allocation2 + $0x80] sm:$0xff]
      %v356 = vld [vmem:[#allocation2 + $0x88] sm:$0xff]
      %v357 = vld [vmem:[%s274] sm:$0xff]
      %v358 = vld [vmem:[%s274 + $0x8] sm:$0xff]
      %v359 = vld [vmem:[%s274 + $0x10] sm:$0xff]
      %v360 = vld [vmem:[%s274 + $0x18] sm:$0xff]
      %v361 = vld [vmem:[%s274 + $0x20] sm:$0xff]
      %v362 = vld [vmem:[%s274 + $0x28] sm:$0xff]
      %v363 = vld [vmem:[%s274 + $0x30] sm:$0xff]
      %v364 = vld [vmem:[%s274 + $0x38] sm:$0xff]
      %v365 = vld [vmem:[%s274 + $0x40] sm:$0xff]
      %v366 = vld [vmem:[%s274 + $0x48] sm:$0xff]
      %v367 = vld [vmem:[%s274 + $0x50] sm:$0xff]
      %v368 = vld [vmem:[%s274 + $0x58] sm:$0xff]
      %v369 = vld [vmem:[%s274 + $0x60] sm:$0xff]
      %v370 = vld [vmem:[%s274 + $0x68] sm:$0xff]
      %v371 = vld [vmem:[%s274 + $0x70] sm:$0xff]
      %v372 = vld [vmem:[%s274 + $0x78] sm:$0xff]
      %v373 = vld [vmem:[%s274 + $0x80] sm:$0xff]
      %v374 = vld [vmem:[%s274 + $0x88] sm:$0xff]
      %vm375 = vcmask 670720
      %v377 = vsel %vm375, %v357, 0
      %v380 = vsel %vm375, %v358, 0
      %v383 = vsel %vm375, %v359, 0
      %v386 = vsel %vm375, %v360, 0
      %v389 = vsel %vm375, %v361, 0
      %v392 = vsel %vm375, %v362, 0
      %v395 = vsel %vm375, %v363, 0
      %v398 = vsel %vm375, %v364, 0
      %v401 = vsel %vm375, %v365, 0
      %v404 = vsel %vm375, %v366, 0
      %v407 = vsel %vm375, %v367, 0
      %v410 = vsel %vm375, %v368, 0
      %v413 = vsel %vm375, %v369, 0
      %v416 = vsel %vm375, %v370, 0
      %v419 = vsel %vm375, %v371, 0
      %v422 = vsel %vm375, %v372, 0
      %v425 = vsel %vm375, %v373, 0
      %v428 = vsel %vm375, %v374, 0
      %vm430 = vcmask 1041408
      %v432 = vsel %vm430, %v338, 0
      %434 = vmatprep.subr.mxu0 0.0
      %435 = vmatpush1.msra.mxu0 %v328
      %436 = vmatprep.subr.mxu0 0.0
      %437 = vmatpush1.msra.mxu0 %v329
      %438 = vmatprep.subr.mxu0 0.0
      %439 = vmatpush1.msra.mxu0 %v330
      %440 = vmatprep.subr.mxu0 0.0
      %441 = vmatpush1.msra.mxu0 %v331
      %442 = vmatprep.subr.mxu0 0.0
      %443 = vmatpush1.msra.mxu0 %v332
      %444 = vmatprep.subr.mxu0 0.0
      %445 = vmatpush1.msra.mxu0 %v333
      %446 = vmatprep.subr.mxu0 0.0
      %447 = vmatpush1.msra.mxu0 %v334
      %448 = vmatprep.subr.mxu0 0.0
      %449 = vmatpush1.msra.mxu0 %v335
      %450 = vmatprep.subr.mxu0 0.0
      %451 = vmatpush1.msra.mxu0 %v336
      %452 = vmatprep.subr.mxu0 0.0
      %453 = vmatpush1.msra.mxu0 %v337
      %454 = vmatprep.subr.mxu0 0.0
      %455 = vmatpush1.msra.mxu0 %v432
      %456 = vmatprep.subr.mxu0 0.0
      %457 = vmatpush1.msra.mxu0 0.0
      %458 = vmatprep.subr.mxu0 0.0
      %459 = vmatpush1.msra.mxu0 0.0
      %460 = vmatprep.subr.mxu0 0.0
      %461 = vmatpush1.msra.mxu0 0.0
      %462 = vmatprep.subr.mxu0 0.0
      %463 = vmatpush1.msra.mxu0 0.0
      %464 = vmatprep.subr.mxu0 0.0
      %465 = vmatpush1.msra.mxu0 0.0
      %466 = vmatprep.subr.mxu0 0.0
      %467 = vmatpush1.msra.mxu0 0.0
      %468 = vmatprep.subr.mxu0 0.0
      %469 = vmatpush1.msra.mxu0 0.0
      %470 = vmatprep.subr.mxu0 0.0
      %471 = vmatpush1.msra.mxu0 0.0
      %472 = vmatprep.subr.mxu0 0.0
      %473 = vmatpush1.msra.mxu0 0.0
      %474 = vmatprep.subr.mxu0 0.0
      %475 = vmatpush1.msra.mxu0 0.0
      %476 = vmatprep.subr.mxu0 0.0
      %477 = vmatpush1.msra.mxu0 0.0
      %478 = vmatprep.subr.mxu0 0.0
      %479 = vmatpush1.msra.mxu0 0.0
      %480 = vmatprep.subr.mxu0 0.0
      %481 = vmatpush1.msra.mxu0 0.0
      %482 = vmatprep.subr.mxu0 0.0
      %483 = vmatpush1.msra.mxu0 0.0
      %484 = vmatprep.subr.mxu0 0.0
      %485 = vmatpush1.msra.mxu0 0.0
      %486 = vmatprep.subr.mxu0 0.0
      %487 = vmatpush1.msra.mxu0 0.0
      %488 = vmatprep.subr.mxu0 0.0
      %489 = vmatpush1.msra.mxu0 0.0
      %490 = vmatprep.subr.mxu0 0.0
      %491 = vmatpush1.msra.mxu0 0.0
      %492 = vmatprep.subr.mxu0 0.0
      %493 = vmatpush1.msra.mxu0 0.0
      %494 = vmatprep.subr.mxu0 0.0
      %495 = vmatpush1.msra.mxu0 0.0
      %496 = vmatprep.subr.mxu0 0.0
      %497 = vmatpush1.msra.mxu0 0.0
      %498 = vmatprep.mubr.f32.mxu0 0.0
      %499 = vmatmul.mubr.f32.gmra.mrb[0].mxu0 %v377
      %v500 = vpop.f32.mrb[0].mxu0
      %v501 = vadd.f32 0.0, %v500
      %v502 = vpop.f32.mrb[0].mxu0
      %503 = vmatprep.mubr.f32.mxu0 0.0
      %504 = vmatmul.mubr.f32.gmra.mrb[0].mxu0 %v380
      %v505 = vpop.f32.mrb[0].mxu0
      %v506 = vadd.f32 0.0, %v505
      %v507 = vpop.f32.mrb[0].mxu0
      %508 = vmatprep.mubr.f32.mxu0 0.0
      %509 = vmatmul.mubr.f32.gmra.mrb[0].mxu0 %v383
      %v510 = vpop.f32.mrb[0].mxu0
      %v511 = vadd.f32 0.0, %v510
      %v512 = vpop.f32.mrb[0].mxu0
      %513 = vmatprep.mubr.f32.mxu0 0.0
      %514 = vmatmul.mubr.f32.gmra.mrb[0].mxu0 %v386
      %v515 = vpop.f32.mrb[0].mxu0
      %v516 = vadd.f32 0.0, %v515
      %v517 = vpop.f32.mrb[0].mxu0
      %518 = vmatprep.mubr.f32.mxu0 0.0
      %519 = vmatmul.mubr.f32.gmra.mrb[0].mxu0 %v389
      %v520 = vpop.f32.mrb[0].mxu0
      %v521 = vadd.f32 0.0, %v520
      %v522 = vpop.f32.mrb[0].mxu0
      %523 = vmatprep.mubr.f32.mxu0 0.0
      %524 = vmatmul.mubr.f32.gmra.mrb[0].mxu0 %v392
      %v525 = vpop.f32.mrb[0].mxu0
      %v526 = vadd.f32 0.0, %v525
      %v527 = vpop.f32.mrb[0].mxu0
      %528 = vmatprep.mubr.f32.mxu0 0.0
      %529 = vmatmul.mubr.f32.gmra.mrb[0].mxu0 %v395
      %v530 = vpop.f32.mrb[0].mxu0
      %v531 = vadd.f32 0.0, %v530
      %v532 = vpop.f32.mrb[0].mxu0
      %533 = vmatprep.mubr.f32.mxu0 0.0
      %534 = vmatmul.mubr.f32.gmra.mrb[0].mxu0 %v398
      %v535 = vpop.f32.mrb[0].mxu0
      %v536 = vadd.f32 0.0, %v535
      %v537 = vpop.f32.mrb[0].mxu0
      %538 = vmatprep.mubr.f32.mxu0 0.0
      %539 = vmatmul.mubr.f32.gmra.mrb[0].mxu0 %v401
      %v540 = vpop.f32.mrb[0].mxu0
      %v541 = vadd.f32 0.0, %v540
      %v542 = vpop.f32.mrb[0].mxu0
      %543 = vmatprep.mubr.f32.mxu0 0.0
      %544 = vmatmul.mubr.f32.gmra.mrb[0].mxu0 %v404
      %v545 = vpop.f32.mrb[0].mxu0
      %v546 = vadd.f32 0.0, %v545
      %v547 = vpop.f32.mrb[0].mxu0
      %548 = vmatprep.mubr.f32.mxu0 0.0
      %549 = vmatmul.mubr.f32.gmra.mrb[0].mxu0 %v407
      %v550 = vpop.f32.mrb[0].mxu0
      %v551 = vadd.f32 0.0, %v550
      %v552 = vpop.f32.mrb[0].mxu0
      %553 = vmatprep.mubr.f32.mxu0 0.0
      %554 = vmatmul.mubr.f32.gmra.mrb[0].mxu0 %v410
      %v555 = vpop.f32.mrb[0].mxu0
      %v556 = vadd.f32 0.0, %v555
      %v557 = vpop.f32.mrb[0].mxu0
      %558 = vmatprep.mubr.f32.mxu0 0.0
      %559 = vmatmul.mubr.f32.gmra.mrb[0].mxu0 %v413
      %v560 = vpop.f32.mrb[0].mxu0
      %v561 = vadd.f32 0.0, %v560
      %v562 = vpop.f32.mrb[0].mxu0
      %563 = vmatprep.mubr.f32.mxu0 0.0
      %564 = vmatmul.mubr.f32.gmra.mrb[0].mxu0 %v416
      %v565 = vpop.f32.mrb[0].mxu0
      %v566 = vadd.f32 0.0, %v565
      %v567 = vpop.f32.mrb[0].mxu0
      %568 = vmatprep.mubr.f32.mxu0 0.0
      %569 = vmatmul.mubr.f32.gmra.mrb[0].mxu0 %v419
      %v570 = vpop.f32.mrb[0].mxu0
      %v571 = vadd.f32 0.0, %v570
      %v572 = vpop.f32.mrb[0].mxu0
      %573 = vmatprep.mubr.f32.mxu0 0.0
      %574 = vmatmul.mubr.f32.gmra.mrb[0].mxu0 %v422
      %v575 = vpop.f32.mrb[0].mxu0
      %v576 = vadd.f32 0.0, %v575
      %v577 = vpop.f32.mrb[0].mxu0
      %578 = vmatprep.mubr.f32.mxu0 0.0
      %579 = vmatmul.mubr.f32.gmra.mrb[0].mxu0 %v425
      %v580 = vpop.f32.mrb[0].mxu0
      %v581 = vadd.f32 0.0, %v580
      %v582 = vpop.f32.mrb[0].mxu0
      %583 = vmatprep.mubr.f32.mxu0 0.0
      %584 = vmatmul.mubr.f32.gmra.mrb[0].mxu0 %v428
      %v585 = vpop.f32.mrb[0].mxu0
      %v586 = vadd.f32 0.0, %v585
      %v587 = vpop.f32.mrb[0].mxu0
      %588 = vdwg.mxu0
      %v589 = vadd.f32 %v339, %v501
      %v590 = vadd.f32 %v340, %v506
      %v591 = vadd.f32 %v341, %v511
      %v592 = vadd.f32 %v342, %v516
      %v593 = vadd.f32 %v343, %v521
      %v594 = vadd.f32 %v344, %v526
      %v595 = vadd.f32 %v345, %v531
      %v596 = vadd.f32 %v346, %v536
      %v597 = vadd.f32 %v347, %v541
      %v598 = vadd.f32 %v348, %v546
      %v599 = vadd.f32 %v349, %v551
      %v600 = vadd.f32 %v350, %v556
      %v601 = vadd.f32 %v351, %v561
      %v602 = vadd.f32 %v352, %v566
      %v603 = vadd.f32 %v353, %v571
      %v604 = vadd.f32 %v354, %v576
      %v605 = vadd.f32 %v355, %v581
      %v606 = vadd.f32 %v356, %v586
      %607 = vst.msk [vmem:[#allocation2] sm:$0xff] %vm309, %v589
      %608 = vst.msk [vmem:[#allocation2 + $0x8] sm:$0xff] %vm309, %v590
      %609 = vst.msk [vmem:[#allocation2 + $0x10] sm:$0xff] %vm309, %v591
      %610 = vst.msk [vmem:[#allocation2 + $0x18] sm:$0xff] %vm309, %v592
      %611 = vst.msk [vmem:[#allocation2 + $0x20] sm:$0xff] %vm309, %v593
      %612 = vst.msk [vmem:[#allocation2 + $0x28] sm:$0xff] %vm309, %v594
      %613 = vst.msk [vmem:[#allocation2 + $0x30] sm:$0xff] %vm309, %v595
      %614 = vst.msk [vmem:[#allocation2 + $0x38] sm:$0xff] %vm309, %v596
      %615 = vst.msk [vmem:[#allocation2 + $0x40] sm:$0xff] %vm309, %v597
      %616 = vst.msk [vmem:[#allocation2 + $0x48] sm:$0xff] %vm309, %v598
      %617 = vst.msk [vmem:[#allocation2 + $0x50] sm:$0xff] %vm309, %v599
      %618 = vst.msk [vmem:[#allocation2 + $0x58] sm:$0xff] %vm309, %v600
      %619 = vst.msk [vmem:[#allocation2 + $0x60] sm:$0xff] %vm309, %v601
      %620 = vst.msk [vmem:[#allocation2 + $0x68] sm:$0xff] %vm309, %v602
      %621 = vst.msk [vmem:[#allocation2 + $0x70] sm:$0xff] %vm309, %v603
      %622 = vst.msk [vmem:[#allocation2 + $0x78] sm:$0xff] %vm309, %v604
      %623 = vst.msk [vmem:[#allocation2 + $0x80] sm:$0xff] %vm309, %v605
      %624 = vst.msk [vmem:[#allocation2 + $0x88] sm:$0xff] %vm309, %v606
      %v625 = vld [vmem:[#allocation2] sm:$0xff]
      %v626 = vld [vmem:[#allocation2 + $0x8] sm:$0xff]
      %v627 = vld [vmem:[#allocation2 + $0x10] sm:$0xff]
      %v628 = vld [vmem:[#allocation2 + $0x18] sm:$0xff]
      %v629 = vld [vmem:[#allocation2 + $0x20] sm:$0xff]
      %v630 = vld [vmem:[#allocation2 + $0x28] sm:$0xff]
      %v631 = vld [vmem:[#allocation2 + $0x30] sm:$0xff]
      %v632 = vld [vmem:[#allocation2 + $0x38] sm:$0xff]
      %v633 = vld [vmem:[#allocation2 + $0x40] sm:$0xff]
      %v634 = vld [vmem:[#allocation2 + $0x48] sm:$0xff]
      %v635 = vld [vmem:[#allocation2 + $0x50] sm:$0xff]
      %v636 = vld [vmem:[#allocation2 + $0x58] sm:$0xff]
      %v637 = vld [vmem:[#allocation2 + $0x60] sm:$0xff]
      %v638 = vld [vmem:[#allocation2 + $0x68] sm:$0xff]
      %v639 = vld [vmem:[#allocation2 + $0x70] sm:$0xff]
      %v640 = vld [vmem:[#allocation2 + $0x78] sm:$0xff]
      %v641 = vld [vmem:[#allocation2 + $0x80] sm:$0xff]
      %v642 = vld [vmem:[#allocation2 + $0x88] sm:$0xff]
      %643 = vst.msk [vmem:[%s300] sm:$0xff] %vm309, %v625
      %644 = vst.msk [vmem:[%s300 + $0x8] sm:$0xff] %vm309, %v626
      %645 = vst.msk [vmem:[%s300 + $0x10] sm:$0xff] %vm309, %v627
      %646 = vst.msk [vmem:[%s300 + $0x18] sm:$0xff] %vm309, %v628
      %647 = vst.msk [vmem:[%s300 + $0x20] sm:$0xff] %vm309, %v629
      %648 = vst.msk [vmem:[%s300 + $0x28] sm:$0xff] %vm309, %v630
      %649 = vst.msk [vmem:[%s300 + $0x30] sm:$0xff] %vm309, %v631
      %650 = vst.msk [vmem:[%s300 + $0x38] sm:$0xff] %vm309, %v632
      %651 = vst.msk [vmem:[%s300 + $0x40] sm:$0xff] %vm309, %v633
      %652 = vst.msk [vmem:[%s300 + $0x48] sm:$0xff] %vm309, %v634
      %653 = vst.msk [vmem:[%s300 + $0x50] sm:$0xff] %vm309, %v635
      %654 = vst.msk [vmem:[%s300 + $0x58] sm:$0xff] %vm309, %v636
      %655 = vst.msk [vmem:[%s300 + $0x60] sm:$0xff] %vm309, %v637
      %656 = vst.msk [vmem:[%s300 + $0x68] sm:$0xff] %vm309, %v638
      %657 = vst.msk [vmem:[%s300 + $0x70] sm:$0xff] %vm309, %v639
      %658 = vst.msk [vmem:[%s300 + $0x78] sm:$0xff] %vm309, %v640
      %659 = vst.msk [vmem:[%s300 + $0x80] sm:$0xff] %vm309, %v641
      %660 = vst.msk [vmem:[%s300 + $0x88] sm:$0xff] %vm309, %v642
      %s661 = smul.u32 18, %s20
      %p662 = scmp.lt.s32.totalorder %s19, 1
      %s663 = scalar_select %p662, %s19, 1
      %p664 = scmp.lt.s32.totalorder %s661, 17
      %s665 = scalar_select %p664, %s661, 17
      %s666 = smul.addr %s663, 18
      %s667 = sadd.s32 %s665, %s666
      %s668 = smul.addr %s667, 8
      %s669 = scalar_lea.vmem %s4, %s668
      // Predicated region
      $region37: #{_forward_impl.4} parent=35 // pred_check
        %p670 = pneg %p149
      $region38: #{_forward_impl.4} parent=35 // pred_check_branch
        %672 = sbr.rel (%p670) target = $region40
      $region39: #{_forward_impl.4} parent=35 // pred_region
        %s673 = smul.u32 18, %s20
      $region40: #{_forward_impl.4} parent=35 // pred_fallthru
        _
    $region36: #{_forward_impl.4} parent=5 // pred_fallthru
      _
    %p674 = scmp.le.s32.totalorder 2, %s10
    // Predicated region
    $region41: #{_forward_impl.4} parent=5 // pred_check
      %p675 = pneg %p674
    $region42: #{_forward_impl.4} parent=5 // pred_check_branch
      %677 = sbr.rel (%p675) target = $region44
    $region43: #{_forward_impl.4} parent=5 // pred_region
      %s678 = ssub.s32 %s10, 2
      // Predicated region
      $region45: #{_forward_impl.4} parent=43 // pred_check
        %p679 = pneg %p155
      $region46: #{_forward_impl.4} parent=43 // pred_check_branch
        %681 = sbr.rel (%p679) target = $region48
      $region47: #{_forward_impl.4} parent=43 // pred_region
        %s682 = smul.u32 18, %s22
        %p683 = scmp.lt.s32.totalorder %s21, 1
        %s684 = scalar_select %p683, %s21, 1
        %p685 = scmp.lt.s32.totalorder %s682, 17
        %s686 = scalar_select %p685, %s682, 17
        %s687 = smul.addr %s684, 18
        %s688 = sadd.s32 %s686, %s687
        %s689 = smul.addr %s688, 8
        %s690 = scalar_lea.vmem %s4, %s689
      $region48: #{_forward_impl.4} parent=43 // pred_fallthru
        _
    $region44: #{_forward_impl.4} parent=5 // pred_fallthru
      _
  $region6: #{_forward_impl.4} parent=0 // loop_footer
    %s14 = sadd.s32 1, %s10
  $region7: #{_forward_impl.4} parent=0 // loop_footer_branch
    %9 = sbr.rel target = $region3
  $region8: #{_forward_impl.4} parent=0 // loop_exit
    _

// kernel: _forward_impl.6
$region0: #{_forward_impl.6}
  #allocation0 [shape = 'u32[]', space=smem, size = 0x4, offset = 0x4, fixed_abs, tag = 'smem constant byte address 0x4 - core index']
  #allocation1 [shape = 'u32[144,128]{1,0:T(1,128)}', space=vmem, size = 0x12000, scoped, tag = 'internal scratch']
  #allocation2 [shape = 'f32[16,32]{1,0:T(8,128)}', space=vmem, size = 0x2000, scoped, tag = 'scratch operand']
  %s0 = inlined_call_operand.vmem [shape: f32[2,24,48], index: 0, kind: input, shape index: {}, may-alias: {0,1}]
  %s1 = inlined_call_operand.vmem [shape: f32[2,24,48], index: 1, kind: input, shape index: {}, may-alias: {0,1}]
  %s2 = inlined_call_operand.vmem [shape: f32[7,48,32], index: 2, kind: input, shape index: {}]
  %s3 = inlined_call_operand.vmem [shape: f32[1,32], index: 3, kind: input, shape index: {}]
  %s4 = inlined_call_operand.vmem [shape: f32[2,16,32], index: 4, kind: output, shape index: {}]
  %s5 = sld [smem:[#allocation0]]
  $region49: #{_forward_impl.6} parent=0
    _
  %s7 = ssub.s32 1, %s5
  %s8 = scalar_select 0, %s7, %s5
  loop: start=0, step=1, limit=4
  $region2: #{_forward_impl.6} parent=0 // loop_pre_header
    _
  $region3: #{_forward_impl.6} parent=0 // loop_header
    %s10 = sphi 0, %s14
    %p11 = scmp.ge.s32.totalorder %s10, 4
    %s17 = sphi 0, %s29
    %s18 = sphi 0, %s25
    %s19 = sphi 0, %s17
    %s20 = sphi 0, %s18
    %s21 = sphi 0, %s19
    %s22 = sphi 0, %s20
    %s34 = sphi 0, %s36
    %s37 = sphi 0, %s34
    %s38 = sphi 0, %s37
    %s54 = sphi 0, %s38
    %s66 = sphi 0, %s68
    %s69 = sphi 0, %s66
    %s70 = sphi 0, %s69
    %s86 = sphi 0, %s70
    %s90 = sphi 0, %s90
    %s92 = sphi 0, %s90
    %s93 = sphi 0, %s92
    %s107 = sphi 0, %s93
    %s111 = sphi 0, %s111
    %s113 = sphi 0, %s111
    %s114 = sphi 0, %s113
    %s128 = sphi 0, %s114
    %s136 = sphi 0, %s138
    %s139 = sphi 0, %s136
    %s140 = sphi 0, %s139
    %s156 = sphi 0, %s140
  $region4: #{_forward_impl.6} parent=0 // loop_header_branch
    %13 = sbr.rel (%p11) target = $region8
  $region5: #{_forward_impl.6} parent=0 // loop_body
    %s15 = ssub.s32 %s10, 1
    %s16 = ssub.s32 %s10, 2
    %s23 = sadd.s32 1, %s18
    %p24 = scmp.ge.s32.totalorder %s23, 1
    %s25 = scalar_select %p24, 0, %s23
    %s26 = sadd.s32 1, %s17
    %s27 = scalar_select %p24, %s26, %s17
    %p28 = scmp.ge.s32.totalorder %s27, 2
    %s29 = scalar_select %p28, 0, %s27
    %s30 = ssub.s32 %s17, %s29
    %s31 = ssub.s32 %s18, %s25
    %s32 = sor.u32 %s30, %s31
    %p33 = scmp.eq.s32.totalorder %s32, 0
    %s35 = sadd.s32 %s34, 1
    %s36 = scalar_select %p33, %s34, %s35
    %p39 = pneg %p33
    %p40 = scmp.eq.s32.totalorder %s10, 1
    %p41 = por %p39, %p40
    %p42 = scmp.ne.s32.totalorder %s34, %s37
    %p43 = scmp.eq.s32.totalorder %s10, 0
    %p44 = por %p42, %p43
    %p45 = scmp.ne.s32.totalorder %s34, %s37
    %p46 = scmp.eq.s32.totalorder %s15, 1
    %p47 = por %p45, %p46
    %p48 = scmp.ne.s32.totalorder %s37, %s38
    %p49 = scmp.eq.s32.totalorder %s15, 0
    %p50 = por %p48, %p49
    %p51 = scmp.ne.s32.totalorder %s37, %s38
    %p52 = scmp.eq.s32.totalorder %s16, 1
    %p53 = por %p51, %p52
    %p55 = scmp.ne.s32.totalorder %s38, %s54
    %p56 = scmp.eq.s32.totalorder %s16, 0
    %p57 = por %p55, %p56
    %s58 = sadd.s32 %s18, 1
    %s59 = smul.u32 %s58, 2
    %s60 = sadd.s32 %s25, 1
    %s61 = smul.u32 %s60, 2
    %s62 = ssub.s32 %s17, %s29
    %s63 = ssub.s32 %s59, %s61
    %s64 = sor.u32 %s62, %s63
    %p65 = scmp.eq.s32.totalorder %s64, 0
    %s67 = sadd.s32 %s66, 1
    %s68 = scalar_select %p65, %s66, %s67
    %p71 = pneg %p65
    %p72 = scmp.eq.s32.totalorder %s10, 1
    %p73 = por %p71, %p72
    %p74 = scmp.ne.s32.totalorder %s66, %s69
    %p75 = scmp.eq.s32.totalorder %s10, 0
    %p76 = por %p74, %p75
    %p77 = scmp.ne.s32.totalorder %s66, %s69
    %p78 = scmp.eq.s32.totalorder %s15, 1
    %p79 = por %p77, %p78
    %p80 = scmp.ne.s32.totalorder %s69, %s70
    %p81 = scmp.eq.s32.totalorder %s15, 0
    %p82 = por %p80, %p81
    %p83 = scmp.ne.s32.totalorder %s69, %s70
    %p84 = scmp.eq.s32.totalorder %s16, 1
    %p85 = por %p83, %p84
    %p87 = scmp.ne.s32.totalorder %s70, %s86
    %p88 = scmp.eq.s32.totalorder %s16, 0
    %p89 = por %p87, %p88
    %s91 = sadd.s32 %s90, 1
    %p94 = scmp.eq.s32.totalorder %s10, 1
    %p95 = scmp.ne.s32.totalorder %s90, %s92
    %p96 = scmp.eq.s32.totalorder %s10, 0
    %p97 = por %p95, %p96
    %p98 = scmp.ne.s32.totalorder %s90, %s92
    %p99 = scmp.eq.s32.totalorder %s15, 1
    %p100 = por %p98, %p99
    %p101 = scmp.ne.s32.totalorder %s92, %s93
    %p102 = scmp.eq.s32.totalorder %s15, 0
    %p103 = por %p101, %p102
    %p104 = scmp.ne.s32.totalorder %s92, %s93
    %p105 = scmp.eq.s32.totalorder %s16, 1
    %p106 = por %p104, %p105
    %p108 = scmp.ne.s32.totalorder %s93, %s107
    %p109 = scmp.eq.s32.totalorder %s16, 0
    %p110 = por %p108, %p109
    %s112 = sadd.s32 %s111, 1
    %p115 = scmp.eq.s32.totalorder %s10, 1
    %p116 = scmp.ne.s32.totalorder %s111, %s113
    %p117 = scmp.eq.s32.totalorder %s10, 0
    %p118 = por %p116, %p117
    %p119 = scmp.ne.s32.totalorder %s111, %s113
    %p120 = scmp.eq.s32.totalorder %s15, 1
    %p121 = por %p119, %p120
    %p122 = scmp.ne.s32.totalorder %s113, %s114
    %p123 = scmp.eq.s32.totalorder %s15, 0
    %p124 = por %p122, %p123
    %p125 = scmp.ne.s32.totalorder %s113, %s114
    %p126 = scmp.eq.s32.totalorder %s16, 1
    %p127 = por %p125, %p126
    %p129 = scmp.ne.s32.totalorder %s114, %s128
    %p130 = scmp.eq.s32.totalorder %s16, 0
    %p131 = por %p129, %p130
    %s132 = ssub.s32 %s17, %s29
    %s133 = ssub.s32 %s18, %s25
    %s134 = sor.u32 %s132, %s133
    %p135 = scmp.eq.s32.totalorder %s134, 0
    %s137 = sadd.s32 %s136, 1
    %s138 = scalar_select %p135, %s136, %s137
    %p141 = pneg %p135
    %p142 = scmp.eq.s32.totalorder %s10, 1
    %p143 = por %p141, %p142
    %p144 = scmp.ne.s32.totalorder %s136, %s139
    %p145 = scmp.eq.s32.totalorder %s10, 0
    %p146 = por %p144, %p145
    %p147 = scmp.ne.s32.totalorder %s136, %s139
    %p148 = scmp.eq.s32.totalorder %s15, 1
    %p149 = por %p147, %p148
    %p150 = scmp.ne.s32.totalorder %s139, %s140
    %p151 = scmp.eq.s32.totalorder %s15, 0
    %p152 = por %p150, %p151
    %p153 = scmp.ne.s32.totalorder %s139, %s140
    %p154 = scmp.eq.s32.totalorder %s16, 1
    %p155 = por %p153, %p154
    %p157 = scmp.ne.s32.totalorder %s140, %s156
    %p158 = scmp.eq.s32.totalorder %s16, 0
    %p159 = por %p157, %p158
    %p160 = scmp.le.s32.totalorder 1, %s10
    %p161 = scmp.lt.s32.totalorder %s10, 3
    %p162 = pnand %p160, %p161
    %p163 = pneg %p162
    // Predicated region
    $region9: #{_forward_impl.6} parent=5 // pred_check
      _
    $region10: #{_forward_impl.6} parent=5 // pred_check_branch
      %165 = sbr.rel (%p162) target = $region12
    $region11: #{_forward_impl.6} parent=5 // pred_region
      %s166 = ssub.s32 %s10, 1
      // Predicated region
      $region13: #{_forward_impl.6} parent=11 // pred_check
        %p167 = pneg %p103
      $region14: #{_forward_impl.6} parent=11 // pred_check_branch
        %169 = sbr.rel (%p167) target = $region16
      $region15: #{_forward_impl.6} parent=11 // pred_region
        _
      $region16: #{_forward_impl.6} parent=11 // pred_fallthru
        _
      // Predicated region
      $region17: #{_forward_impl.6} parent=11 // pred_check
        %p170 = pneg %p124
      $region18: #{_forward_impl.6} parent=11 // pred_check_branch
        %172 = sbr.rel (%p170) target = $region20
      $region19: #{_forward_impl.6} parent=11 // pred_region
        _
      $region20: #{_forward_impl.6} parent=11 // pred_fallthru
        _
    $region12: #{_forward_impl.6} parent=5 // pred_fallthru
      _
    %p173 = scmp.lt.s32.totalorder %s10, 2
    // Predicated region
    $region21: #{_forward_impl.6} parent=5 // pred_check
      %p174 = pneg %p173
    $region22: #{_forward_impl.6} parent=5 // pred_check_branch
      %176 = sbr.rel (%p174) target = $region24
    $region23: #{_forward_impl.6} parent=5 // pred_region
      // Predicated region
      $region25: #{_forward_impl.6} parent=23 // pred_check
        %p177 = pneg %p44
      $region26: #{_forward_impl.6} parent=23 // pred_check_branch
        %179 = sbr.rel (%p177) target = $region28
      $region27: #{_forward_impl.6} parent=23 // pred_region
        %s180 = smul.u32 2, %s18
        %s181 = ssub.s32 3, %s180
        %p182 = scmp.lt.s32.totalorder %s181, 2
        %s183 = scalar_select %p182, %s181, 2
        %s184 = smul.u32 128, %s183
        %p185 = scmp.lt.s32.totalorder %s17, 1
        %s186 = scalar_select %p185, %s17, 1
        %p187 = scmp.lt.s32.totalorder %s180, 2
        %s188 = scalar_select %p187, %s180, 2
        %s189 = smul.addr %s186, 3
        %s190 = sadd.s32 %s188, %s189
        %s191 = smul.addr %s190, 8
        %s192 = scalar_lea.vmem %s0, %s191
        %s193 = smul.u32 2, %s18
        %s194 = ssub.s32 3, %s193
        %p195 = scmp.lt.s32.totalorder %s194, 2
        %s196 = scalar_select %p195, %s194, 2
        %s197 = smul.u32 128, %s196
      $region28: #{_forward_impl.6} parent=23 // pred_fallthru
        _
      // Predicated region
      $region29: #{_forward_impl.6} parent=23 // pred_check
        %p198 = pneg %p76
      $region30: #{_forward_impl.6} parent=23 // pred_check_branch
        %200 = sbr.rel (%p198) target = $region32
      $region31: #{_forward_impl.6} parent=23 // pred_region
        %s201 = sadd.s32 %s18, 1
        %s202 = smul.u32 %s201, 2
        %p203 = scmp.lt.s32.totalorder %s17, 1
        %s204 = scalar_select %p203, %s17, 1
        %p205 = scmp.lt.s32.totalorder %s202, 2
        %s206 = scalar_select %p205, %s202, 2
        %s207 = smul.addr %s204, 3
        %s208 = sadd.s32 %s206, %s207
        %s209 = smul.addr %s208, 8
        %s210 = scalar_lea.vmem %s1, %s209
        %s211 = sadd.s32 %s18, 1
        %s212 = smul.u32 %s211, 2
      $region32: #{_forward_impl.6} parent=23 // pred_fallthru
        _
    $region24: #{_forward_impl.6} parent=5 // pred_fallthru
      _
    %p213 = scmp.le.s32.totalorder 1, %s10
    %p214 = scmp.lt.s32.totalorder %s10, 3
    %p215 = pnand %p213, %p214
    %p216 = pneg %p215
    // Predicated region
    $region33: #{_forward_impl.6} parent=5 // pred_check
      _
    $region34: #{_forward_impl.6} parent=5 // pred_check_branch
      %218 = sbr.rel (%p215) target = $region36
    $region35: #{_forward_impl.6} parent=5 // pred_region
      %s219 = ssub.s32 %s10, 1
      %s220 = smul.u32 2, %s20
      %s221 = ssub.s32 3, %s220
      %p222 = scmp.lt.s32.totalorder %s221, 2
      %s223 = scalar_select %p222, %s221, 2
      %s224 = smul.u32 128, %s223
      %p225 = scmp.lt.s32.totalorder %s19, 1
      %s226 = scalar_select %p225, %s19, 1
      %p227 = scmp.lt.s32.totalorder %s220, 2
      %s228 = scalar_select %p227, %s220, 2
      %s229 = smul.addr %s226, 3
      %s230 = sadd.s32 %s228, %s229
      %s231 = smul.addr %s230, 8
      %s232 = scalar_lea.vmem %s0, %s231
      %p233 = pneg %p50
      %p234 = pneg %p47
      %s235 = sadd.s32 %s20, 1
      %s236 = smul.u32 %s235, 2
      %p237 = scmp.lt.s32.totalorder %s19, 1
      %s238 = scalar_select %p237, %s19, 1
      %p239 = scmp.lt.s32.totalorder %s236, 2
      %s240 = scalar_select %p239, %s236, 2
      %s241 = smul.addr %s238, 3
      %s242 = sadd.s32 %s240, %s241
      %s243 = smul.addr %s242, 8
      %s244 = scalar_lea.vmem %s1, %s243
      %p245 = pneg %p82
      %p246 = pneg %p79
      %p247 = pneg %p103
      %p248 = pneg %p100
      %p249 = pneg %p124
      %p250 = pneg %p121
      %p251 = pneg %p152
      %p252 = pneg %p149
      %s253 = smul.u32 2, %s20
      %p254 = scmp.lt.s32.totalorder %s19, 1
      %s255 = scalar_select %p254, %s19, 1
      %p256 = scmp.lt.s32.totalorder %s253, 1
      %s257 = scalar_select %p256, %s253, 1
      %s258 = smul.addr %s255, 2
      %s259 = sadd.s32 %s257, %s258
      %s260 = smul.addr %s259, 8
      %s261 = scalar_lea.vmem %s4, %s260
      %s262 = smul.u32 2, %s20
      %s263 = ssub.s32 3, %s262
      %p264 = scmp.lt.s32.totalorder %s263, 2
      %s265 = scalar_select %p264, %s263, 2
      %s266 = smul.u32 128, %s265
      %p267 = scmp.lt.s32.totalorder %s19, 1
      %s268 = scalar_select %p267, %s19, 1
      %p269 = scmp.lt.s32.totalorder %s262, 2
      %s270 = scalar_select %p269, %s262, 2
      %s271 = smul.addr %s268, 3
      %s272 = sadd.s32 %s270, %s271
      %s273 = smul.addr %s272, 8
      %s274 = scalar_lea.vmem %s0, %s273
      %s275 = smul.u32 2, %s20
      %s276 = ssub.s32 3, %s275
      %p277 = scmp.lt.s32.totalorder %s276, 2
      %s278 = scalar_select %p277, %s276, 2
      %s279 = smul.u32 128, %s278
      %s280 = sadd.s32 %s20, 1
      %s281 = smul.u32 %s280, 2
      %p282 = scmp.lt.s32.totalorder %s19, 1
      %s283 = scalar_select %p282, %s19, 1
      %p284 = scmp.lt.s32.totalorder %s281, 2
      %s285 = scalar_select %p284, %s281, 2
      %s286 = smul.addr %s283, 3
      %s287 = sadd.s32 %s285, %s286
      %s288 = smul.addr %s287, 8
      %s289 = scalar_lea.vmem %s1, %s288
      %s290 = sadd.s32 %s20, 1
      %s291 = smul.u32 %s290, 2
      %s292 = smul.u32 2, %s20
      %p293 = scmp.lt.s32.totalorder %s19, 1
      %s294 = scalar_select %p293, %s19, 1
      %p295 = scmp.lt.s32.totalorder %s292, 1
      %s296 = scalar_select %p295, %s292, 1
      %s297 = smul.addr %s294, 2
      %s298 = sadd.s32 %s296, %s297
      %s299 = smul.addr %s298, 8
      %s300 = scalar_lea.vmem %s4, %s299
      %s301 = smul.u32 2, %s20
      %v302 = vld [vmem:[%s3] sm:$0x1]
      %v304 = vlaneseq
      %v305 = vshrl.u32 %v304, 7
      %v306 = vsub.s32 0, %v305
      %v307 = vrot.slane %v302, %v306
      %vm309 = vcmask 261120
      %310 = vst.msk [vmem:[#allocation2] sm:$0xff] %vm309, %v307
      %311 = vst.msk [vmem:[#allocation2 + $0x8] sm:$0xff] %vm309, %v307
      %v312 = vld [vmem:[%s2] sm:$0xff]
      %v313 = vld [vmem:[%s2 + $0x8] sm:$0xff]
      %v314 = vld [vmem:[%s2 + $0x10] sm:$0xff]
      %v315 = vld [vmem:[%s2 + $0x18] sm:$0xff]
      %v316 = vld [vmem:[%s2 + $0x20] sm:$0xff]
      %v317 = vld [vmem:[%s2 + $0x28] sm:$0xff]
      %v318 = vld [vmem:[#allocation2] sm:$0xff]
      %v319 = vld [vmem:[#allocation2 + $0x8] sm:$0xff]
      %v320 = vld [vmem:[%s274] sm:$0xff]
      %v321 = vld [vmem:[%s274 + $0x8] sm:$0xff]
      %vm322 = vcmask 392192
      %v324 = vsel %vm322, %v320, 0
      %v327 = vsel %vm322, %v321, 0
      %329 = vmatprep.subr.mxu0 0.0
      %330 = vmatpush1.msra.mxu0 %v312
      %331 = vmatprep.subr.mxu0 0.0
      %332 = vmatpush1.msra.mxu0 %v313
      %333 = vmatprep.subr.mxu0 0.0
      %334 = vmatpush1.msra.mxu0 %v314
      %335 = vmatprep.subr.mxu0 0.0
      %336 = vmatpush1.msra.mxu0 %v315
      %337 = vmatprep.subr.mxu0 0.0
      %338 = vmatpush1.msra.mxu0 %v316
      %339 = vmatprep.subr.mxu0 0.0
      %340 = vmatpush1.msra.mxu0 %v317
      %341 = vmatprep.subr.mxu0 0.0
      %342 = vmatpush1.msra.mxu0 0.0
      %343 = vmatprep.subr.mxu0 0.0
      %344 = vmatpush1.msra.mxu0 0.0
      %345 = vmatprep.subr.mxu0 0.0
      %346 = vmatpush1.msra.mxu0 0.0
      %347 = vmatprep.subr.mxu0 0.0
      %348 = vmatpush1.msra.mxu0 0.0
      %349 = vmatprep.subr.mxu0 0.0
      %350 = vmatpush1.msra.mxu0 0.0
      %351 = vmatprep.subr.mxu0 0.0
      %352 = vmatpush1.msra.mxu0 0.0
      %353 = vmatprep.subr.mxu0 0.0
      %354 = vmatpush1.msra.mxu0 0.0
      %355 = vmatprep.subr.mxu0 0.0
      %356 = vmatpush1.msra.mxu0 0.0
      %357 = vmatprep.subr.mxu0 0.0
      %358 = vmatpush1.msra.mxu0 0.0
      %359 = vmatprep.subr.mxu0 0.0
      %360 = vmatpush1.msra.mxu0 0.0
      %361 = vmatprep.subr.mxu0 0.0
      %362 = vmatpush1.msra.mxu0 0.0
      %363 = vmatprep.subr.mxu0 0.0
      %364 = vmatpush1.msra.mxu0 0.0
      %365 = vmatprep.subr.mxu0 0.0
      %366 = vmatpush1.msra.mxu0 0.0
      %367 = vmatprep.subr.mxu0 0.0
      %368 = vmatpush1.msra.mxu0 0.0
      %369 = vmatprep.subr.mxu0 0.0
      %370 = vmatpush1.msra.mxu0 0.0
      %371 = vmatprep.subr.mxu0 0.0
      %372 = vmatpush1.msra.mxu0 0.0
      %373 = vmatprep.subr.mxu0 0.0
      %374 = vmatpush1.msra.mxu0 0.0
      %375 = vmatprep.subr.mxu0 0.0
      %376 = vmatpush1.msra.mxu0 0.0
      %377 = vmatprep.subr.mxu0 0.0
      %378 = vmatpush1.msra.mxu0 0.0
      %379 = vmatprep.subr.mxu0 0.0
      %380 = vmatpush1.msra.mxu0 0.0
      %381 = vmatprep.subr.mxu0 0.0
      %382 = vmatpush1.msra.mxu0 0.0
      %383 = vmatprep.subr.mxu0 0.0
      %384 = vmatpush1.msra.mxu0 0.0
      %385 = vmatprep.subr.mxu0 0.0
      %386 = vmatpush1.msra.mxu0 0.0
      %387 = vmatprep.subr.mxu0 0.0
      %388 = vmatpush1.msra.mxu0 0.0
      %389 = vmatprep.subr.mxu0 0.0
      %390 = vmatpush1.msra.mxu0 0.0
      %391 = vmatprep.subr.mxu0 0.0
      %392 = vmatpush1.msra.mxu0 0.0
      %393 = vmatprep.mubr.f32.mxu0 0.0
      %394 = vmatmul.mubr.f32.gmra.mrb[0].mxu0 %v324
      %v395 = vpop.f32.mrb[0].mxu0
      %v396 = vadd.f32 0.0, %v395
      %v397 = vpop.f32.mrb[0].mxu0
      %398 = vmatprep.mubr.f32.mxu0 0.0
      %399 = vmatmul.mubr.f32.gmra.mrb[0].mxu0 %v327
      %v400 = vpop.f32.mrb[0].mxu0
      %v401 = vadd.f32 0.0, %v400
      %v402 = vpop.f32.mrb[0].mxu0
      %403 = vdwg.mxu0
      %v404 = vadd.f32 %v318, %v396
      %v405 = vadd.f32 %v319, %v401
      %406 = vst.msk [vmem:[#allocation2] sm:$0xff] %vm309, %v404
      %407 = vst.msk [vmem:[#allocation2 + $0x8] sm:$0xff] %vm309, %v405
      %s408 = scalar_lea.vmem %s2, 48
      %v409 = vld [vmem:[%s408] sm:$0xff]
      %v410 = vld [vmem:[%s408 + $0x8] sm:$0xff]
      %v411 = vld [vmem:[%s408 + $0x10] sm:$0xff]
      %v412 = vld [vmem:[%s408 + $0x18] sm:$0xff]
      %v413 = vld [vmem:[%s408 + $0x20] sm:$0xff]
      %v414 = vld [vmem:[%s408 + $0x28] sm:$0xff]
      %v415 = vld [vmem:[#allocation2] sm:$0xff]
      %v416 = vld [vmem:[#allocation2 + $0x8] sm:$0x7f]
      %v417 = vld [vmem:[%s274 + $0x1] sm:$0xff]
      %v418 = vld [vmem:[%s274 + $0x9] sm:$0x7f]
      %v420 = vsel %vm322, %v417, 0
      %v423 = vsel %vm322, %v418, 0
      %425 = vmatprep.subr.mxu0 0.0
      %426 = vmatpush1.msra.mxu0 %v409
      %427 = vmatprep.subr.mxu0 0.0
      %428 = vmatpush1.msra.mxu0 %v410
      %429 = vmatprep.subr.mxu0 0.0
      %430 = vmatpush1.msra.mxu0 %v411
      %431 = vmatprep.subr.mxu0 0.0
      %432 = vmatpush1.msra.mxu0 %v412
      %433 = vmatprep.subr.mxu0 0.0
      %434 = vmatpush1.msra.mxu0 %v413
      %435 = vmatprep.subr.mxu0 0.0
      %436 = vmatpush1.msra.mxu0 %v414
      %437 = vmatprep.subr.mxu0 0.0
      %438 = vmatpush1.msra.mxu0 0.0
      %439 = vmatprep.subr.mxu0 0.0
      %440 = vmatpush1.msra.mxu0 0.0
      %441 = vmatprep.subr.mxu0 0.0
      %442 = vmatpush1.msra.mxu0 0.0
      %443 = vmatprep.subr.mxu0 0.0
      %444 = vmatpush1.msra.mxu0 0.0
      %445 = vmatprep.subr.mxu0 0.0
      %446 = vmatpush1.msra.mxu0 0.0
      %447 = vmatprep.subr.mxu0 0.0
      %448 = vmatpush1.msra.mxu0 0.0
      %449 = vmatprep.subr.mxu0 0.0
      %450 = vmatpush1.msra.mxu0 0.0
      %451 = vmatprep.subr.mxu0 0.0
      %452 = vmatpush1.msra.mxu0 0.0
      %453 = vmatprep.subr.mxu0 0.0
      %454 = vmatpush1.msra.mxu0 0.0
      %455 = vmatprep.subr.mxu0 0.0
      %456 = vmatpush1.msra.mxu0 0.0
      %457 = vmatprep.subr.mxu0 0.0
      %458 = vmatpush1.msra.mxu0 0.0
      %459 = vmatprep.subr.mxu0 0.0
      %460 = vmatpush1.msra.mxu0 0.0
      %461 = vmatprep.subr.mxu0 0.0
      %462 = vmatpush1.msra.mxu0 0.0
      %463 = vmatprep.subr.mxu0 0.0
      %464 = vmatpush1.msra.mxu0 0.0
      %465 = vmatprep.subr.mxu0 0.0
      %466 = vmatpush1.msra.mxu0 0.0
      %467 = vmatprep.subr.mxu0 0.0
      %468 = vmatpush1.msra.mxu0 0.0
      %469 = vmatprep.subr.mxu0 0.0
      %470 = vmatpush1.msra.mxu0 0.0
      %471 = vmatprep.subr.mxu0 0.0
      %472 = vmatpush1.msra.mxu0 0.0
      %473 = vmatprep.subr.mxu0 0.0
      %474 = vmatpush1.msra.mxu0 0.0
      %475 = vmatprep.subr.mxu0 0.0
      %476 = vmatpush1.msra.mxu0 0.0
      %477 = vmatprep.subr.mxu0 0.0
      %478 = vmatpush1.msra.mxu0 0.0
      %479 = vmatprep.subr.mxu0 0.0
      %480 = vmatpush1.msra.mxu0 0.0
      %481 = vmatprep.subr.mxu0 0.0
      %482 = vmatpush1.msra.mxu0 0.0
      %483 = vmatprep.subr.mxu0 0.0
      %484 = vmatpush1.msra.mxu0 0.0
      %485 = vmatprep.subr.mxu0 0.0
      %486 = vmatpush1.msra.mxu0 0.0
      %487 = vmatprep.subr.mxu0 0.0
      %488 = vmatpush1.msra.mxu0 0.0
      %489 = vmatprep.mubr.f32.mxu0 0.0
      %490 = vmatmul.mubr.f32.gmra.mrb[0].mxu0 %v420
      %v491 = vpop.f32.mrb[0].mxu0
      %v492 = vadd.f32 0.0, %v491
      %v493 = vpop.f32.mrb[0].mxu0
      %494 = vmatprep.mubr.f32.mxu0 0.0
      %495 = vmatmul.mubr.f32.gmra.mrb[0].mxu0 %v423
      %v496 = vpop.f32.mrb[0].mxu0
      %v497 = vadd.f32 0.0, %v496
      %v498 = vpop.f32.mrb[0].mxu0
      %499 = vdwg.mxu0
      %v500 = vadd.f32 %v415, %v492
      %v501 = vadd.f32 %v416, %v497
      %502 = vst.msk [vmem:[#allocation2] sm:$0xff] %vm309, %v500
      %vm503 = vcmask 260096
      %504 = vst.msk [vmem:[#allocation2 + $0x8] sm:$0x7f] %vm503, %v501
      %v505 = vld [vmem:[#allocation2 + $0xf] sm:$0x1]
      %v506 = vld [vmem:[%s289] sm:$0x1]
      %v508 = vsel %vm322, %v506, 0
      %510 = vmatprep.subr.mxu0 0.0
      %511 = vmatpush1.msra.mxu0 %v409
      %512 = vmatprep.subr.mxu0 0.0
      %513 = vmatpush1.msra.mxu0 %v410
      %514 = vmatprep.subr.mxu0 0.0
      %515 = vmatpush1.msra.mxu0 %v411
      %516 = vmatprep.subr.mxu0 0.0
      %517 = vmatpush1.msra.mxu0 %v412
      %518 = vmatprep.subr.mxu0 0.0
      %519 = vmatpush1.msra.mxu0 %v413
      %520 = vmatprep.subr.mxu0 0.0
      %521 = vmatpush1.msra.mxu0 %v414
      %522 = vmatprep.subr.mxu0 0.0
      %523 = vmatpush1.msra.mxu0 0.0
      %524 = vmatprep.subr.mxu0 0.0
      %525 = vmatpush1.msra.mxu0 0.0
      %526 = vmatprep.subr.mxu0 0.0
      %527 = vmatpush1.msra.mxu0 0.0
      %528 = vmatprep.subr.mxu0 0.0
      %529 = vmatpush1.msra.mxu0 0.0
      %530 = vmatprep.subr.mxu0 0.0
      %531 = vmatpush1.msra.mxu0 0.0
      %532 = vmatprep.subr.mxu0 0.0
      %533 = vmatpush1.msra.mxu0 0.0
      %534 = vmatprep.subr.mxu0 0.0
      %535 = vmatpush1.msra.mxu0 0.0
      %536 = vmatprep.subr.mxu0 0.0
      %537 = vmatpush1.msra.mxu0 0.0
      %538 = vmatprep.subr.mxu0 0.0
      %539 = vmatpush1.msra.mxu0 0.0
      %540 = vmatprep.subr.mxu0 0.0
      %541 = vmatpush1.msra.mxu0 0.0
      %542 = vmatprep.subr.mxu0 0.0
      %543 = vmatpush1.msra.mxu0 0.0
      %544 = vmatprep.subr.mxu0 0.0
      %545 = vmatpush1.msra.mxu0 0.0
      %546 = vmatprep.subr.mxu0 0.0
      %547 = vmatpush1.msra.mxu0 0.0
      %548 = vmatprep.subr.mxu0 0.0
      %549 = vmatpush1.msra.mxu0 0.0
      %550 = vmatprep.subr.mxu0 0.0
      %551 = vmatpush1.msra.mxu0 0.0
      %552 = vmatprep.subr.mxu0 0.0
      %553 = vmatpush1.msra.mxu0 0.0
      %554 = vmatprep.subr.mxu0 0.0
      %555 = vmatpush1.msra.mxu0 0.0
      %556 = vmatprep.subr.mxu0 0.0
      %557 = vmatpush1.msra.mxu0 0.0
      %558 = vmatprep.subr.mxu0 0.0
      %559 = vmatpush1.msra.mxu0 0.0
      %560 = vmatprep.subr.mxu0 0.0
      %561 = vmatpush1.msra.mxu0 0.0
      %562 = vmatprep.subr.mxu0 0.0
      %563 = vmatpush1.msra.mxu0 0.0
      %564 = vmatprep.subr.mxu0 0.0
      %565 = vmatpush1.msra.mxu0 0.0
      %566 = vmatprep.subr.mxu0 0.0
      %567 = vmatpush1.msra.mxu0 0.0
      %568 = vmatprep.subr.mxu0 0.0
      %569 = vmatpush1.msra.mxu0 0.0
      %570 = vmatprep.subr.mxu0 0.0
      %571 = vmatpush1.msra.mxu0 0.0
      %572 = vmatprep.subr.mxu0 0.0
      %573 = vmatpush1.msra.mxu0 0.0
      %574 = vmatprep.mubr.f32.mxu0 0.0
      %575 = vmatmul.mubr.f32.gmra.mrb[0].mxu0 %v508
      %v576 = vpop.f32.mrb[0].mxu0
      %v577 = vadd.f32 0.0, %v576
      %v578 = vpop.f32.mrb[0].mxu0
      %579 = vdwg.mxu0
      %v580 = vadd.f32 %v505, %v577
      %vm581 = vcmask 253952
      %582 = vst.msk [vmem:[#allocation2 + $0xf] sm:$0x1] %vm581, %v580
      %s583 = scalar_lea.vmem %s2, 96
      %v584 = vld [vmem:[%s583] sm:$0xff]
      %v585 = vld [vmem:[%s583 + $0x8] sm:$0xff]
      %v586 = vld [vmem:[%s583 + $0x10] sm:$0xff]
      %v587 = vld [vmem:[%s583 + $0x18] sm:$0xff]
      %v588 = vld [vmem:[%s583 + $0x20] sm:$0xff]
      %v589 = vld [vmem:[%s583 + $0x28] sm:$0xff]
      %v590 = vld [vmem:[#allocation2] sm:$0xff]
      %v591 = vld [vmem:[#allocation2 + $0x8] sm:$0x3f]
      %v592 = vld [vmem:[%s274 + $0x2] sm:$0xff]
      %v593 = vld [vmem:[%s274 + $0xa] sm:$0x3f]
      %v595 = vsel %vm322, %v592, 0
      %v598 = vsel %vm322, %v593, 0
      %600 = vmatprep.subr.mxu0 0.0
      %601 = vmatpush1.msra.mxu0 %v584
      %602 = vmatprep.subr.mxu0 0.0
      %603 = vmatpush1.msra.mxu0 %v585
      %604 = vmatprep.subr.mxu0 0.0
      %605 = vmatpush1.msra.mxu0 %v586
      %606 = vmatprep.subr.mxu0 0.0
      %607 = vmatpush1.msra.mxu0 %v587
      %608 = vmatprep.subr.mxu0 0.0
      %609 = vmatpush1.msra.mxu0 %v588
      %610 = vmatprep.subr.mxu0 0.0
      %611 = vmatpush1.msra.mxu0 %v589
      %612 = vmatprep.subr.mxu0 0.0
      %613 = vmatpush1.msra.mxu0 0.0
      %614 = vmatprep.subr.mxu0 0.0
      %615 = vmatpush1.msra.mxu0 0.0
      %616 = vmatprep.subr.mxu0 0.0
      %617 = vmatpush1.msra.mxu0 0.0
      %618 = vmatprep.subr.mxu0 0.0
      %619 = vmatpush1.msra.mxu0 0.0
      %620 = vmatprep.subr.mxu0 0.0
      %621 = vmatpush1.msra.mxu0 0.0
      %622 = vmatprep.subr.mxu0 0.0
      %623 = vmatpush1.msra.mxu0 0.0
      %624 = vmatprep.subr.mxu0 0.0
      %625 = vmatpush1.msra.mxu0 0.0
      %626 = vmatprep.subr.mxu0 0.0
      %627 = vmatpush1.msra.mxu0 0.0
      %628 = vmatprep.subr.mxu0 0.0
      %629 = vmatpush1.msra.mxu0 0.0
      %630 = vmatprep.subr.mxu0 0.0
      %631 = vmatpush1.msra.mxu0 0.0
      %632 = vmatprep.subr.mxu0 0.0
      %633 = vmatpush1.msra.mxu0 0.0
      %634 = vmatprep.subr.mxu0 0.0
      %635 = vmatpush1.msra.mxu0 0.0
      %636 = vmatprep.subr.mxu0 0.0
      %637 = vmatpush1.msra.mxu0 0.0
      %638 = vmatprep.subr.mxu0 0.0
      %639 = vmatpush1.msra.mxu0 0.0
      %640 = vmatprep.subr.mxu0 0.0
      %641 = vmatpush1.msra.mxu0 0.0
      %642 = vmatprep.subr.mxu0 0.0
      %643 = vmatpush1.msra.mxu0 0.0
      %644 = vmatprep.subr.mxu0 0.0
      %645 = vmatpush1.msra.mxu0 0.0
      %646 = vmatprep.subr.mxu0 0.0
      %647 = vmatpush1.msra.mxu0 0.0
      %648 = vmatprep.subr.mxu0 0.0
      %649 = vmatpush1.msra.mxu0 0.0
      %650 = vmatprep.subr.mxu0 0.0
      %651 = vmatpush1.msra.mxu0 0.0
      %652 = vmatprep.subr.mxu0 0.0
      %653 = vmatpush1.msra.mxu0 0.0
      %654 = vmatprep.subr.mxu0 0.0
      %655 = vmatpush1.msra.mxu0 0.0
      %656 = vmatprep.subr.mxu0 0.0
      %657 = vmatpush1.msra.mxu0 0.0
      %658 = vmatprep.subr.mxu0 0.0
      %659 = vmatpush1.msra.mxu0 0.0
      %660 = vmatprep.subr.mxu0 0.0
      %661 = vmatpush1.msra.mxu0 0.0
      %662 = vmatprep.subr.mxu0 0.0
      %663 = vmatpush1.msra.mxu0 0.0
      %664 = vmatprep.mubr.f32.mxu0 0.0
      %665 = vmatmul.mubr.f32.gmra.mrb[0].mxu0 %v595
      %v666 = vpop.f32.mrb[0].mxu0
      %v667 = vadd.f32 0.0, %v666
      %v668 = vpop.f32.mrb[0].mxu0
      %669 = vmatprep.mubr.f32.mxu0 0.0
      %670 = vmatmul.mubr.f32.gmra.mrb[0].mxu0 %v598
      %v671 = vpop.f32.mrb[0].mxu0
      %v672 = vadd.f32 0.0, %v671
      %v673 = vpop.f32.mrb[0].mxu0
      %674 = vdwg.mxu0
      %v675 = vadd.f32 %v590, %v667
      %v676 = vadd.f32 %v591, %v672
      %677 = vst.msk [vmem:[#allocation2] sm:$0xff] %vm309, %v675
      %vm678 = vcmask 259072
      %679 = vst.msk [vmem:[#allocation2 + $0x8] sm:$0x3f] %vm678, %v676
      %v680 = vld [vmem:[#allocation2 + $0xe] sm:$0x3]
      %v681 = vld [vmem:[%s289] sm:$0x3]
      %v683 = vsel %vm322, %v681, 0
      %685 = vmatprep.subr.mxu0 0.0
      %686 = vmatpush1.msra.mxu0 %v584
      %687 = vmatprep.subr.mxu0 0.0
      %688 = vmatpush1.msra.mxu0 %v585
      %689 = vmatprep.subr.mxu0 0.0
      %690 = vmatpush1.msra.mxu0 %v586
      %691 = vmatprep.subr.mxu0 0.0
      %692 = vmatpush1.msra.mxu0 %v587
      %693 = vmatprep.subr.mxu0 0.0
      %694 = vmatpush1.msra.mxu0 %v588
      %695 = vmatprep.subr.mxu0 0.0
      %696 = vmatpush1.msra.mxu0 %v589
      %697 = vmatprep.subr.mxu0 0.0
      %698 = vmatpush1.msra.mxu0 0.0
      %699 = vmatprep.subr.mxu0 0.0
      %700 = vmatpush1.msra.mxu0 0.0
      %701 = vmatprep.subr.mxu0 0.0
      %702 = vmatpush1.msra.mxu0 0.0
      %703 = vmatprep.subr.mxu0 0.0
      %704 = vmatpush1.msra.mxu0 0.0
      %705 = vmatprep.subr.mxu0 0.0
      %706 = vmatpush1.msra.mxu0 0.0
      %707 = vmatprep.subr.mxu0 0.0
      %708 = vmatpush1.msra.mxu0 0.0
      %709 = vmatprep.subr.mxu0 0.0
      %710 = vmatpush1.msra.mxu0 0.0
      %711 = vmatprep.subr.mxu0 0.0
      %712 = vmatpush1.msra.mxu0 0.0
      %713 = vmatprep.subr.mxu0 0.0
      %714 = vmatpush1.msra.mxu0 0.0
      %715 = vmatprep.subr.mxu0 0.0
      %716 = vmatpush1.msra.mxu0 0.0
      %717 = vmatprep.subr.mxu0 0.0
      %718 = vmatpush1.msra.mxu0 0.0
      %719 = vmatprep.subr.mxu0 0.0
      %720 = vmatpush1.msra.mxu0 0.0
      %721 = vmatprep.subr.mxu0 0.0
      %722 = vmatpush1.msra.mxu0 0.0
      %723 = vmatprep.subr.mxu0 0.0
      %724 = vmatpush1.msra.mxu0 0.0
      %725 = vmatprep.subr.mxu0 0.0
      %726 = vmatpush1.msra.mxu0 0.0
      %727 = vmatprep.subr.mxu0 0.0
      %728 = vmatpush1.msra.mxu0 0.0
      %729 = vmatprep.subr.mxu0 0.0
      %730 = vmatpush1.msra.mxu0 0.0
      %731 = vmatprep.subr.mxu0 0.0
      %732 = vmatpush1.msra.mxu0 0.0
      %733 = vmatprep.subr.mxu0 0.0
      %734 = vmatpush1.msra.mxu0 0.0
      %735 = vmatprep.subr.mxu0 0.0
      %736 = vmatpush1.msra.mxu0 0.0
      %737 = vmatprep.subr.mxu0 0.0
      %738 = vmatpush1.msra.mxu0 0.0
      %739 = vmatprep.subr.mxu0 0.0
      %740 = vmatpush1.msra.mxu0 0.0
      %741 = vmatprep.subr.mxu0 0.0
      %742 = vmatpush1.msra.mxu0 0.0
      %743 = vmatprep.subr.mxu0 0.0
      %744 = vmatpush1.msra.mxu0 0.0
      %745 = vmatprep.subr.mxu0 0.0
      %746 = vmatpush1.msra.mxu0 0.0
      %747 = vmatprep.subr.mxu0 0.0
      %748 = vmatpush1.msra.mxu0 0.0
      %749 = vmatprep.mubr.f32.mxu0 0.0
      %750 = vmatmul.mubr.f32.gmra.mrb[0].mxu0 %v683
      %v751 = vpop.f32.mrb[0].mxu0
      %v752 = vadd.f32 0.0, %v751
      %v753 = vpop.f32.mrb[0].mxu0
      %754 = vdwg.mxu0
      %v755 = vadd.f32 %v680, %v752
      %vm756 = vcmask 254976
      %757 = vst.msk [vmem:[#allocation2 + $0xe] sm:$0x3] %vm756, %v755
      %s758 = scalar_lea.vmem %s2, 144
      %v759 = vld [vmem:[%s758] sm:$0xff]
      %v760 = vld [vmem:[%s758 + $0x8] sm:$0xff]
      %v761 = vld [vmem:[%s758 + $0x10] sm:$0xff]
      %v762 = vld [vmem:[%s758 + $0x18] sm:$0xff]
      %v763 = vld [vmem:[%s758 + $0x20] sm:$0xff]
      %v764 = vld [vmem:[%s758 + $0x28] sm:$0xff]
      %v765 = vld [vmem:[#allocation2] sm:$0xff]
      %v766 = vld [vmem:[#allocation2 + $0x8] sm:$0x1f]
      %v767 = vld [vmem:[%s274 + $0x3] sm:$0xff]
      %v768 = vld [vmem:[%s274 + $0xb] sm:$0x1f]
      %v770 = vsel %vm322, %v767, 0
      %v773 = vsel %vm322, %v768, 0
      %775 = vmatprep.subr.mxu0 0.0
      %776 = vmatpush1.msra.mxu0 %v759
      %777 = vmatprep.subr.mxu0 0.0
      %778 = vmatpush1.msra.mxu0 %v760
      %779 = vmatprep.subr.mxu0 0.0
      %780 = vmatpush1.msra.mxu0 %v761
      %781 = vmatprep.subr.mxu0 0.0
      %782 = vmatpush1.msra.mxu0 %v762
      %783 = vmatprep.subr.mxu0 0.0
      %784 = vmatpush1.msra.mxu0 %v763
      %785 = vmatprep.subr.mxu0 0.0
      %786 = vmatpush1.msra.mxu0 %v764
      %787 = vmatprep.subr.mxu0 0.0
      %788 = vmatpush1.msra.mxu0 0.0
      %789 = vmatprep.subr.mxu0 0.0
      %790 = vmatpush1.msra.mxu0 0.0
      %791 = vmatprep.subr.mxu0 0.0
      %792 = vmatpush1.msra.mxu0 0.0
      %793 = vmatprep.subr.mxu0 0.0
      %794 = vmatpush1.msra.mxu0 0.0
      %795 = vmatprep.subr.mxu0 0.0
      %796 = vmatpush1.msra.mxu0 0.0
      %797 = vmatprep.subr.mxu0 0.0
      %798 = vmatpush1.msra.mxu0 0.0
      %799 = vmatprep.subr.mxu0 0.0
      %800 = vmatpush1.msra.mxu0 0.0
      %801 = vmatprep.subr.mxu0 0.0
      %802 = vmatpush1.msra.mxu0 0.0
      %803 = vmatprep.subr.mxu0 0.0
      %804 = vmatpush1.msra.mxu0 0.0
      %805 = vmatprep.subr.mxu0 0.0
      %806 = vmatpush1.msra.mxu0 0.0
      %807 = vmatprep.subr.mxu0 0.0
      %808 = vmatpush1.msra.mxu0 0.0
      %809 = vmatprep.subr.mxu0 0.0
      %810 = vmatpush1.msra.mxu0 0.0
      %811 = vmatprep.subr.mxu0 0.0
      %812 = vmatpush1.msra.mxu0 0.0
      %813 = vmatprep.subr.mxu0 0.0
      %814 = vmatpush1.msra.mxu0 0.0
      %815 = vmatprep.subr.mxu0 0.0
      %816 = vmatpush1.msra.mxu0 0.0
      %817 = vmatprep.subr.mxu0 0.0
      %818 = vmatpush1.msra.mxu0 0.0
      %819 = vmatprep.subr.mxu0 0.0
      %820 = vmatpush1.msra.mxu0 0.0
      %821 = vmatprep.subr.mxu0 0.0
      %822 = vmatpush1.msra.mxu0 0.0
      %823 = vmatprep.subr.mxu0 0.0
      %824 = vmatpush1.msra.mxu0 0.0
      %825 = vmatprep.subr.mxu0 0.0
      %826 = vmatpush1.msra.mxu0 0.0
      %827 = vmatprep.subr.mxu0 0.0
      %828 = vmatpush1.msra.mxu0 0.0
      %829 = vmatprep.subr.mxu0 0.0
      %830 = vmatpush1.msra.mxu0 0.0
      %831 = vmatprep.subr.mxu0 0.0
      %832 = vmatpush1.msra.mxu0 0.0
      %833 = vmatprep.subr.mxu0 0.0
      %834 = vmatpush1.msra.mxu0 0.0
      %835 = vmatprep.subr.mxu0 0.0
      %836 = vmatpush1.msra.mxu0 0.0
      %837 = vmatprep.subr.mxu0 0.0
      %838 = vmatpush1.msra.mxu0 0.0
      %839 = vmatprep.mubr.f32.mxu0 0.0
      %840 = vmatmul.mubr.f32.gmra.mrb[0].mxu0 %v770
      %v841 = vpop.f32.mrb[0].mxu0
      %v842 = vadd.f32 0.0, %v841
      %v843 = vpop.f32.mrb[0].mxu0
      %844 = vmatprep.mubr.f32.mxu0 0.0
      %845 = vmatmul.mubr.f32.gmra.mrb[0].mxu0 %v773
      %v846 = vpop.f32.mrb[0].mxu0
      %v847 = vadd.f32 0.0, %v846
      %v848 = vpop.f32.mrb[0].mxu0
      %849 = vdwg.mxu0
      %v850 = vadd.f32 %v765, %v842
      %v851 = vadd.f32 %v766, %v847
      %852 = vst.msk [vmem:[#allocation2] sm:$0xff] %vm309, %v850
      %vm853 = vcmask 258048
      %854 = vst.msk [vmem:[#allocation2 + $0x8] sm:$0x1f] %vm853, %v851
      %v855 = vld [vmem:[#allocation2 + $0xd] sm:$0x7]
      %v856 = vld [vmem:[%s289] sm:$0x7]
      %v858 = vsel %vm322, %v856, 0
      %860 = vmatprep.subr.mxu0 0.0
      %861 = vmatpush1.msra.mxu0 %v759
      %862 = vmatprep.subr.mxu0 0.0
      %863 = vmatpush1.msra.mxu0 %v760
      %864 = vmatprep.subr.mxu0 0.0
      %865 = vmatpush1.msra.mxu0 %v761
      %866 = vmatprep.subr.mxu0 0.0
      %867 = vmatpush1.msra.mxu0 %v762
      %868 = vmatprep.subr.mxu0 0.0
      %869 = vmatpush1.msra.mxu0 %v763
      %870 = vmatprep.subr.mxu0 0.0
      %871 = vmatpush1.msra.mxu0 %v764
      %872 = vmatprep.subr.mxu0 0.0
      %873 = vmatpush1.msra.mxu0 0.0
      %874 = vmatprep.subr.mxu0 0.0
      %875 = vmatpush1.msra.mxu0 0.0
      %876 = vmatprep.subr.mxu0 0.0
      %877 = vmatpush1.msra.mxu0 0.0
      %878 = vmatprep.subr.mxu0 0.0
      %879 = vmatpush1.msra.mxu0 0.0
      %880 = vmatprep.subr.mxu0 0.0
      %881 = vmatpush1.msra.mxu0 0.0
      %882 = vmatprep.subr.mxu0 0.0
      %883 = vmatpush1.msra.mxu0 0.0
      %884 = vmatprep.subr.mxu0 0.0
      %885 = vmatpush1.msra.mxu0 0.0
      %886 = vmatprep.subr.mxu0 0.0
      %887 = vmatpush1.msra.mxu0 0.0
      %888 = vmatprep.subr.mxu0 0.0
      %889 = vmatpush1.msra.mxu0 0.0
      %890 = vmatprep.subr.mxu0 0.0
      %891 = vmatpush1.msra.mxu0 0.0
      %892 = vmatprep.subr.mxu0 0.0
      %893 = vmatpush1.msra.mxu0 0.0
      %894 = vmatprep.subr.mxu0 0.0
      %895 = vmatpush1.msra.mxu0 0.0
      %896 = vmatprep.subr.mxu0 0.0
      %897 = vmatpush1.msra.mxu0 0.0
      %898 = vmatprep.subr.mxu0 0.0
      %899 = vmatpush1.msra.mxu0 0.0
      %900 = vmatprep.subr.mxu0 0.0
      %901 = vmatpush1.msra.mxu0 0.0
      %902 = vmatprep.subr.mxu0 0.0
      %903 = vmatpush1.msra.mxu0 0.0
      %904 = vmatprep.subr.mxu0 0.0
      %905 = vmatpush1.msra.mxu0 0.0
      %906 = vmatprep.subr.mxu0 0.0
      %907 = vmatpush1.msra.mxu0 0.0
      %908 = vmatprep.subr.mxu0 0.0
      %909 = vmatpush1.msra.mxu0 0.0
      %910 = vmatprep.subr.mxu0 0.0
      %911 = vmatpush1.msra.mxu0 0.0
      %912 = vmatprep.subr.mxu0 0.0
      %913 = vmatpush1.msra.mxu0 0.0
      %914 = vmatprep.subr.mxu0 0.0
      %915 = vmatpush1.msra.mxu0 0.0
      %916 = vmatprep.subr.mxu0 0.0
      %917 = vmatpush1.msra.mxu0 0.0
      %918 = vmatprep.subr.mxu0 0.0
      %919 = vmatpush1.msra.mxu0 0.0
      %920 = vmatprep.subr.mxu0 0.0
      %921 = vmatpush1.msra.mxu0 0.0
      %922 = vmatprep.subr.mxu0 0.0
      %923 = vmatpush1.msra.mxu0 0.0
      %924 = vmatprep.mubr.f32.mxu0 0.0
      %925 = vmatmul.mubr.f32.gmra.mrb[0].mxu0 %v858
      %v926 = vpop.f32.mrb[0].mxu0
      %v927 = vadd.f32 0.0, %v926
      %v928 = vpop.f32.mrb[0].mxu0
      %929 = vdwg.mxu0
      %v930 = vadd.f32 %v855, %v927
      %vm931 = vcmask 256000
      %932 = vst.msk [vmem:[#allocation2 + $0xd] sm:$0x7] %vm931, %v930
      %s933 = scalar_lea.vmem %s2, 192
      %v934 = vld [vmem:[%s933] sm:$0xff]
      %v935 = vld [vmem:[%s933 + $0x8] sm:$0xff]
      %v936 = vld [vmem:[%s933 + $0x10] sm:$0xff]
      %v937 = vld [vmem:[%s933 + $0x18] sm:$0xff]
      %v938 = vld [vmem:[%s933 + $0x20] sm:$0xff]
      %v939 = vld [vmem:[%s933 + $0x28] sm:$0xff]
      %v940 = vld [vmem:[#allocation2] sm:$0xff]
      %v941 = vld [vmem:[#allocation2 + $0x8] sm:$0xf]
      %v942 = vld [vmem:[%s274 + $0x4] sm:$0xff]
      %v943 = vld [vmem:[%s274 + $0xc] sm:$0xf]
      %v945 = vsel %vm322, %v942, 0
      %v948 = vsel %vm322, %v943, 0
      %950 = vmatprep.subr.mxu0 0.0
      %951 = vmatpush1.msra.mxu0 %v934
      %952 = vmatprep.subr.mxu0 0.0
      %953 = vmatpush1.msra.mxu0 %v935
      %954 = vmatprep.subr.mxu0 0.0
      %955 = vmatpush1.msra.mxu0 %v936
      %956 = vmatprep.subr.mxu0 0.0
      %957 = vmatpush1.msra.mxu0 %v937
      %958 = vmatprep.subr.mxu0 0.0
      %959 = vmatpush1.msra.mxu0 %v938
      %960 = vmatprep.subr.mxu0 0.0
      %961 = vmatpush1.msra.mxu0 %v939
      %962 = vmatprep.subr.mxu0 0.0
      %963 = vmatpush1.msra.mxu0 0.0
      %964 = vmatprep.subr.mxu0 0.0
      %965 = vmatpush1.msra.mxu0 0.0
      %966 = vmatprep.subr.mxu0 0.0
      %967 = vmatpush1.msra.mxu0 0.0
      %968 = vmatprep.subr.mxu0 0.0
      %969 = vmatpush1.msra.mxu0 0.0
      %970 = vmatprep.subr.mxu0 0.0
      %971 = vmatpush1.msra.mxu0 0.0
      %972 = vmatprep.subr.mxu0 0.0
      %973 = vmatpush1.msra.mxu0 0.0
      %974 = vmatprep.subr.mxu0 0.0
      %975 = vmatpush1.msra.mxu0 0.0
      %976 = vmatprep.subr.mxu0 0.0
      %977 = vmatpush1.msra.mxu0 0.0
      %978 = vmatprep.subr.mxu0 0.0
      %979 = vmatpush1.msra.mxu0 0.0
      %980 = vmatprep.subr.mxu0 0.0
      %981 = vmatpush1.msra.mxu0 0.0
      %982 = vmatprep.subr.mxu0 0.0
      %983 = vmatpush1.msra.mxu0 0.0
      %984 = vmatprep.subr.mxu0 0.0
      %985 = vmatpush1.msra.mxu0 0.0
      %986 = vmatprep.subr.mxu0 0.0
      %987 = vmatpush1.msra.mxu0 0.0
      %988 = vmatprep.subr.mxu0 0.0
      %989 = vmatpush1.msra.mxu0 0.0
      %990 = vmatprep.subr.mxu0 0.0
      %991 = vmatpush1.msra.mxu0 0.0
      %992 = vmatprep.subr.mxu0 0.0
      %993 = vmatpush1.msra.mxu0 0.0
      %994 = vmatprep.subr.mxu0 0.0
      %995 = vmatpush1.msra.mxu0 0.0
      %996 = vmatprep.subr.mxu0 0.0
      %997 = vmatpush1.msra.mxu0 0.0
      %998 = vmatprep.subr.mxu0 0.0
      %999 = vmatpush1.msra.mxu0 0.0
      %1000 = vmatprep.subr.mxu0 0.0
      %1001 = vmatpush1.msra.mxu0 0.0
      %1002 = vmatprep.subr.mxu0 0.0
      %1003 = vmatpush1.msra.mxu0 0.0
      %1004 = vmatprep.subr.mxu0 0.0
      %1005 = vmatpush1.msra.mxu0 0.0
      %1006 = vmatprep.subr.mxu0 0.0
      %1007 = vmatpush1.msra.mxu0 0.0
      %1008 = vmatprep.subr.mxu0 0.0
      %1009 = vmatpush1.msra.mxu0 0.0
      %1010 = vmatprep.subr.mxu0 0.0
      %1011 = vmatpush1.msra.mxu0 0.0
      %1012 = vmatprep.subr.mxu0 0.0
      %1013 = vmatpush1.msra.mxu0 0.0
      %1014 = vmatprep.mubr.f32.mxu0 0.0
      %1015 = vmatmul.mubr.f32.gmra.mrb[0].mxu0 %v945
      %v1016 = vpop.f32.mrb[0].mxu0
      %v1017 = vadd.f32 0.0, %v1016
      %v1018 = vpop.f32.mrb[0].mxu0
      %1019 = vmatprep.mubr.f32.mxu0 0.0
      %1020 = vmatmul.mubr.f32.gmra.mrb[0].mxu0 %v948
      %v1021 = vpop.f32.mrb[0].mxu0
      %v1022 = vadd.f32 0.0, %v1021
      %v1023 = vpop.f32.mrb[0].mxu0
      %1024 = vdwg.mxu0
      %v1025 = vadd.f32 %v940, %v1017
      %v1026 = vadd.f32 %v941, %v1022
      %1027 = vst.msk [vmem:[#allocation2] sm:$0xff] %vm309, %v1025
      %vm1028 = vcmask 257024
      %1029 = vst.msk [vmem:[#allocation2 + $0x8] sm:$0xf] %vm1028, %v1026
      %v1030 = vld [vmem:[#allocation2 + $0xc] sm:$0xf]
      %v1031 = vld [vmem:[%s289] sm:$0xf]
      %v1033 = vsel %vm322, %v1031, 0
      %1035 = vmatprep.subr.mxu0 0.0
      %1036 = vmatpush1.msra.mxu0 %v934
      %1037 = vmatprep.subr.mxu0 0.0
      %1038 = vmatpush1.msra.mxu0 %v935
      %1039 = vmatprep.subr.mxu0 0.0
      %1040 = vmatpush1.msra.mxu0 %v936
      %1041 = vmatprep.subr.mxu0 0.0
      %1042 = vmatpush1.msra.mxu0 %v937
      %1043 = vmatprep.subr.mxu0 0.0
      %1044 = vmatpush1.msra.mxu0 %v938
      %1045 = vmatprep.subr.mxu0 0.0
      %1046 = vmatpush1.msra.mxu0 %v939
      %1047 = vmatprep.subr.mxu0 0.0
      %1048 = vmatpush1.msra.mxu0 0.0
      %1049 = vmatprep.subr.mxu0 0.0
      %1050 = vmatpush1.msra.mxu0 0.0
      %1051 = vmatprep.subr.mxu0 0.0
      %1052 = vmatpush1.msra.mxu0 0.0
      %1053 = vmatprep.subr.mxu0 0.0
      %1054 = vmatpush1.msra.mxu0 0.0
      %1055 = vmatprep.subr.mxu0 0.0
      %1056 = vmatpush1.msra.mxu0 0.0
      %1057 = vmatprep.subr.mxu0 0.0
      %1058 = vmatpush1.msra.mxu0 0.0
      %1059 = vmatprep.subr.mxu0 0.0
      %1060 = vmatpush1.msra.mxu0 0.0
      %1061 = vmatprep.subr.mxu0 0.0
      %1062 = vmatpush1.msra.mxu0 0.0
      %1063 = vmatprep.subr.mxu0 0.0
      %1064 = vmatpush1.msra.mxu0 0.0
      %1065 = vmatprep.subr.mxu0 0.0
      %1066 = vmatpush1.msra.mxu0 0.0
      %1067 = vmatprep.subr.mxu0 0.0
      %1068 = vmatpush1.msra.mxu0 0.0
      %1069 = vmatprep.subr.mxu0 0.0
      %1070 = vmatpush1.msra.mxu0 0.0
      %1071 = vmatprep.subr.mxu0 0.0
      %1072 = vmatpush1.msra.mxu0 0.0
      %1073 = vmatprep.subr.mxu0 0.0
      %1074 = vmatpush1.msra.mxu0 0.0
      %1075 = vmatprep.subr.mxu0 0.0
      %1076 = vmatpush1.msra.mxu0 0.0
      %1077 = vmatprep.subr.mxu0 0.0
      %1078 = vmatpush1.msra.mxu0 0.0
      %1079 = vmatprep.subr.mxu0 0.0
      %1080 = vmatpush1.msra.mxu0 0.0
      %1081 = vmatprep.subr.mxu0 0.0
      %1082 = vmatpush1.msra.mxu0 0.0
      %1083 = vmatprep.subr.mxu0 0.0
      %1084 = vmatpush1.msra.mxu0 0.0
      %1085 = vmatprep.subr.mxu0 0.0
      %1086 = vmatpush1.msra.mxu0 0.0
      %1087 = vmatprep.subr.mxu0 0.0
      %1088 = vmatpush1.msra.mxu0 0.0
      %1089 = vmatprep.subr.mxu0 0.0
      %1090 = vmatpush1.msra.mxu0 0.0
      %1091 = vmatprep.subr.mxu0 0.0
      %1092 = vmatpush1.msra.mxu0 0.0
      %1093 = vmatprep.subr.mxu0 0.0
      %1094 = vmatpush1.msra.mxu0 0.0
      %1095 = vmatprep.subr.mxu0 0.0
      %1096 = vmatpush1.msra.mxu0 0.0
      %1097 = vmatprep.subr.mxu0 0.0
      %1098 = vmatpush1.msra.mxu0 0.0
      %1099 = vmatprep.mubr.f32.mxu0 0.0
      %1100 = vmatmul.mubr.f32.gmra.mrb[0].mxu0 %v1033
      %v1101 = vpop.f32.mrb[0].mxu0
      %v1102 = vadd.f32 0.0, %v1101
      %v1103 = vpop.f32.mrb[0].mxu0
      %1104 = vdwg.mxu0
      %v1105 = vadd.f32 %v1030, %v1102
      %1106 = vst.msk [vmem:[#allocation2 + $0xc] sm:$0xf] %vm1028, %v1105
      %s1107 = scalar_lea.vmem %s2, 240
      %v1108 = vld [vmem:[%s1107] sm:$0xff]
      %v1109 = vld [vmem:[%s1107 + $0x8] sm:$0xff]
      %v1110 = vld [vmem:[%s1107 + $0x10] sm:$0xff]
      %v1111 = vld [vmem:[%s1107 + $0x18] sm:$0xff]
      %v1112 = vld [vmem:[%s1107 + $0x20] sm:$0xff]
      %v1113 = vld [vmem:[%s1107 + $0x28] sm:$0xff]
      %v1114 = vld [vmem:[#allocation2] sm:$0xff]
      %v1115 = vld [vmem:[#allocation2 + $0x8] sm:$0x7]
      %v1116 = vld [vmem:[%s274 + $0x5] sm:$0xff]
      %v1117 = vld [vmem:[%s274 + $0xd] sm:$0x7]
      %v1119 = vsel %vm322, %v1116, 0
      %v1122 = vsel %vm322, %v1117, 0
      %1124 = vmatprep.subr.mxu0 0.0
      %1125 = vmatpush1.msra.mxu0 %v1108
      %1126 = vmatprep.subr.mxu0 0.0
      %1127 = vmatpush1.msra.mxu0 %v1109
      %1128 = vmatprep.subr.mxu0 0.0
      %1129 = vmatpush1.msra.mxu0 %v1110
      %1130 = vmatprep.subr.mxu0 0.0
      %1131 = vmatpush1.msra.mxu0 %v1111
      %1132 = vmatprep.subr.mxu0 0.0
      %1133 = vmatpush1.msra.mxu0 %v1112
      %1134 = vmatprep.subr.mxu0 0.0
      %1135 = vmatpush1.msra.mxu0 %v1113
      %1136 = vmatprep.subr.mxu0 0.0
      %1137 = vmatpush1.msra.mxu0 0.0
      %1138 = vmatprep.subr.mxu0 0.0
      %1139 = vmatpush1.msra.mxu0 0.0
      %1140 = vmatprep.subr.mxu0 0.0
      %1141 = vmatpush1.msra.mxu0 0.0
      %1142 = vmatprep.subr.mxu0 0.0
      %1143 = vmatpush1.msra.mxu0 0.0
      %1144 = vmatprep.subr.mxu0 0.0
      %1145 = vmatpush1.msra.mxu0 0.0
      %1146 = vmatprep.subr.mxu0 0.0
      %1147 = vmatpush1.msra.mxu0 0.0
      %1148 = vmatprep.subr.mxu0 0.0
      %1149 = vmatpush1.msra.mxu0 0.0
      %1150 = vmatprep.subr.mxu0 0.0
      %1151 = vmatpush1.msra.mxu0 0.0
      %1152 = vmatprep.subr.mxu0 0.0
      %1153 = vmatpush1.msra.mxu0 0.0
      %1154 = vmatprep.subr.mxu0 0.0
      %1155 = vmatpush1.msra.mxu0 0.0
      %1156 = vmatprep.subr.mxu0 0.0
      %1157 = vmatpush1.msra.mxu0 0.0
      %1158 = vmatprep.subr.mxu0 0.0
      %1159 = vmatpush1.msra.mxu0 0.0
      %1160 = vmatprep.subr.mxu0 0.0
      %1161 = vmatpush1.msra.mxu0 0.0
      %1162 = vmatprep.subr.mxu0 0.0
      %1163 = vmatpush1.msra.mxu0 0.0
      %1164 = vmatprep.subr.mxu0 0.0
      %1165 = vmatpush1.msra.mxu0 0.0
      %1166 = vmatprep.subr.mxu0 0.0
      %1167 = vmatpush1.msra.mxu0 0.0
      %1168 = vmatprep.subr.mxu0 0.0
      %1169 = vmatpush1.msra.mxu0 0.0
      %1170 = vmatprep.subr.mxu0 0.0
      %1171 = vmatpush1.msra.mxu0 0.0
      %1172 = vmatprep.subr.mxu0 0.0
      %1173 = vmatpush1.msra.mxu0 0.0
      %1174 = vmatprep.subr.mxu0 0.0
      %1175 = vmatpush1.msra.mxu0 0.0
      %1176 = vmatprep.subr.mxu0 0.0
      %1177 = vmatpush1.msra.mxu0 0.0
      %1178 = vmatprep.subr.mxu0 0.0
      %1179 = vmatpush1.msra.mxu0 0.0
      %1180 = vmatprep.subr.mxu0 0.0
      %1181 = vmatpush1.msra.mxu0 0.0
      %1182 = vmatprep.subr.mxu0 0.0
      %1183 = vmatpush1.msra.mxu0 0.0
      %1184 = vmatprep.subr.mxu0 0.0
      %1185 = vmatpush1.msra.mxu0 0.0
      %1186 = vmatprep.subr.mxu0 0.0
      %1187 = vmatpush1.msra.mxu0 0.0
      %1188 = vmatprep.mubr.f32.mxu0 0.0
      %1189 = vmatmul.mubr.f32.gmra.mrb[0].mxu0 %v1119
      %v1190 = vpop.f32.mrb[0].mxu0
      %v1191 = vadd.f32 0.0, %v1190
      %v1192 = vpop.f32.mrb[0].mxu0
      %1193 = vmatprep.mubr.f32.mxu0 0.0
      %1194 = vmatmul.mubr.f32.gmra.mrb[0].mxu0 %v1122
      %v1195 = vpop.f32.mrb[0].mxu0
      %v1196 = vadd.f32 0.0, %v1195
      %v1197 = vpop.f32.mrb[0].mxu0
      %1198 = vdwg.mxu0
      %v1199 = vadd.f32 %v1114, %v1191
      %v1200 = vadd.f32 %v1115, %v1196
      %1201 = vst.msk [vmem:[#allocation2] sm:$0xff] %vm309, %v1199
      %1202 = vst.msk [vmem:[#allocation2 + $0x8] sm:$0x7] %vm931, %v1200
      %v1203 = vld [vmem:[#allocation2 + $0xb] sm:$0x1f]
      %v1204 = vld [vmem:[%s289] sm:$0x1f]
      %v1206 = vsel %vm322, %v1204, 0
      %1208 = vmatprep.subr.mxu0 0.0
      %1209 = vmatpush1.msra.mxu0 %v1108
      %1210 = vmatprep.subr.mxu0 0.0
      %1211 = vmatpush1.msra.mxu0 %v1109
      %1212 = vmatprep.subr.mxu0 0.0
      %1213 = vmatpush1.msra.mxu0 %v1110
      %1214 = vmatprep.subr.mxu0 0.0
      %1215 = vmatpush1.msra.mxu0 %v1111
      %1216 = vmatprep.subr.mxu0 0.0
      %1217 = vmatpush1.msra.mxu0 %v1112
      %1218 = vmatprep.subr.mxu0 0.0
      %1219 = vmatpush1.msra.mxu0 %v1113
      %1220 = vmatprep.subr.mxu0 0.0
      %1221 = vmatpush1.msra.mxu0 0.0
      %1222 = vmatprep.subr.mxu0 0.0
      %1223 = vmatpush1.msra.mxu0 0.0
      %1224 = vmatprep.subr.mxu0 0.0
      %1225 = vmatpush1.msra.mxu0 0.0
      %1226 = vmatprep.subr.mxu0 0.0
      %1227 = vmatpush1.msra.mxu0 0.0
      %1228 = vmatprep.subr.mxu0 0.0
      %1229 = vmatpush1.msra.mxu0 0.0
      %1230 = vmatprep.subr.mxu0 0.0
      %1231 = vmatpush1.msra.mxu0 0.0
      %1232 = vmatprep.subr.mxu0 0.0
      %1233 = vmatpush1.msra.mxu0 0.0
      %1234 = vmatprep.subr.mxu0 0.0
      %1235 = vmatpush1.msra.mxu0 0.0
      %1236 = vmatprep.subr.mxu0 0.0
      %1237 = vmatpush1.msra.mxu0 0.0
      %1238 = vmatprep.subr.mxu0 0.0
      %1239 = vmatpush1.msra.mxu0 0.0
      %1240 = vmatprep.subr.mxu0 0.0
      %1241 = vmatpush1.msra.mxu0 0.0
      %1242 = vmatprep.subr.mxu0 0.0
      %1243 = vmatpush1.msra.mxu0 0.0
      %1244 = vmatprep.subr.mxu0 0.0
      %1245 = vmatpush1.msra.mxu0 0.0
      %1246 = vmatprep.subr.mxu0 0.0
      %1247 = vmatpush1.msra.mxu0 0.0
      %1248 = vmatprep.subr.mxu0 0.0
      %1249 = vmatpush1.msra.mxu0 0.0
      %1250 = vmatprep.subr.mxu0 0.0
      %1251 = vmatpush1.msra.mxu0 0.0
      %1252 = vmatprep.subr.mxu0 0.0
      %1253 = vmatpush1.msra.mxu0 0.0
      %1254 = vmatprep.subr.mxu0 0.0
      %1255 = vmatpush1.msra.mxu0 0.0
      %1256 = vmatprep.subr.mxu0 0.0
      %1257 = vmatpush1.msra.mxu0 0.0
      %1258 = vmatprep.subr.mxu0 0.0
      %1259 = vmatpush1.msra.mxu0 0.0
      %1260 = vmatprep.subr.mxu0 0.0
      %1261 = vmatpush1.msra.mxu0 0.0
      %1262 = vmatprep.subr.mxu0 0.0
      %1263 = vmatpush1.msra.mxu0 0.0
      %1264 = vmatprep.subr.mxu0 0.0
      %1265 = vmatpush1.msra.mxu0 0.0
      %1266 = vmatprep.subr.mxu0 0.0
      %1267 = vmatpush1.msra.mxu0 0.0
      %1268 = vmatprep.subr.mxu0 0.0
      %1269 = vmatpush1.msra.mxu0 0.0
      %1270 = vmatprep.subr.mxu0 0.0
      %1271 = vmatpush1.msra.mxu0 0.0
      %1272 = vmatprep.mubr.f32.mxu0 0.0
      %1273 = vmatmul.mubr.f32.gmra.mrb[0].mxu0 %v1206
      %v1274 = vpop.f32.mrb[0].mxu0
      %v1275 = vadd.f32 0.0, %v1274
      %v1276 = vpop.f32.mrb[0].mxu0
      %1277 = vdwg.mxu0
      %v1278 = vadd.f32 %v1203, %v1275
      %1279 = vst.msk [vmem:[#allocation2 + $0xb] sm:$0x1f] %vm853, %v1278
      %s1280 = scalar_lea.vmem %s2, 288
      %v1281 = vld [vmem:[%s1280] sm:$0xff]
      %v1282 = vld [vmem:[%s1280 + $0x8] sm:$0xff]
      %v1283 = vld [vmem:[%s1280 + $0x10] sm:$0xff]
      %v1284 = vld [vmem:[%s1280 + $0x18] sm:$0xff]
      %v1285 = vld [vmem:[%s1280 + $0x20] sm:$0xff]
      %v1286 = vld [vmem:[%s1280 + $0x28] sm:$0xff]
      %v1287 = vld [vmem:[#allocation2] sm:$0xff]
      %v1288 = vld [vmem:[#allocation2 + $0x8] sm:$0x3]
      %v1289 = vld [vmem:[%s274 + $0x6] sm:$0xff]
      %v1290 = vld [vmem:[%s274 + $0xe] sm:$0x3]
      %v1292 = vsel %vm322, %v1289, 0
      %v1295 = vsel %vm322, %v1290, 0
      %1297 = vmatprep.subr.mxu0 0.0
      %1298 = vmatpush1.msra.mxu0 %v1281
      %1299 = vmatprep.subr.mxu0 0.0
      %1300 = vmatpush1.msra.mxu0 %v1282
      %1301 = vmatprep.subr.mxu0 0.0
      %1302 = vmatpush1.msra.mxu0 %v1283
      %1303 = vmatprep.subr.mxu0 0.0
      %1304 = vmatpush1.msra.mxu0 %v1284
      %1305 = vmatprep.subr.mxu0 0.0
      %1306 = vmatpush1.msra.mxu0 %v1285
      %1307 = vmatprep.subr.mxu0 0.0
      %1308 = vmatpush1.msra.mxu0 %v1286
      %1309 = vmatprep.subr.mxu0 0.0
      %1310 = vmatpush1.msra.mxu0 0.0
      %1311 = vmatprep.subr.mxu0 0.0
      %1312 = vmatpush1.msra.mxu0 0.0
      %1313 = vmatprep.subr.mxu0 0.0
      %1314 = vmatpush1.msra.mxu0 0.0
      %1315 = vmatprep.subr.mxu0 0.0
      %1316 = vmatpush1.msra.mxu0 0.0
      %1317 = vmatprep.subr.mxu0 0.0
      %1318 = vmatpush1.msra.mxu0 0.0
      %1319 = vmatprep.subr.mxu0 0.0
      %1320 = vmatpush1.msra.mxu0 0.0
      %1321 = vmatprep.subr.mxu0 0.0
      %1322 = vmatpush1.msra.mxu0 0.0
      %1323 = vmatprep.subr.mxu0 0.0
      %1324 = vmatpush1.msra.mxu0 0.0
      %1325 = vmatprep.subr.mxu0 0.0
      %1326 = vmatpush1.msra.mxu0 0.0
      %1327 = vmatprep.subr.mxu0 0.0
      %1328 = vmatpush1.msra.mxu0 0.0
      %1329 = vmatprep.subr.mxu0 0.0
      %1330 = vmatpush1.msra.mxu0 0.0
      %1331 = vmatprep.subr.mxu0 0.0
      %1332 = vmatpush1.msra.mxu0 0.0
      %1333 = vmatprep.subr.mxu0 0.0
      %1334 = vmatpush1.msra.mxu0 0.0
      %1335 = vmatprep.subr.mxu0 0.0
      %1336 = vmatpush1.msra.mxu0 0.0
      %1337 = vmatprep.subr.mxu0 0.0
      %1338 = vmatpush1.msra.mxu0 0.0
      %1339 = vmatprep.subr.mxu0 0.0
      %1340 = vmatpush1.msra.mxu0 0.0
      %1341 = vmatprep.subr.mxu0 0.0
      %1342 = vmatpush1.msra.mxu0 0.0
      %1343 = vmatprep.subr.mxu0 0.0
      %1344 = vmatpush1.msra.mxu0 0.0
      %1345 = vmatprep.subr.mxu0 0.0
      %1346 = vmatpush1.msra.mxu0 0.0
      %1347 = vmatprep.subr.mxu0 0.0
      %1348 = vmatpush1.msra.mxu0 0.0
      %1349 = vmatprep.subr.mxu0 0.0
      %1350 = vmatpush1.msra.mxu0 0.0
      %1351 = vmatprep.subr.mxu0 0.0
      %1352 = vmatpush1.msra.mxu0 0.0
      %1353 = vmatprep.subr.mxu0 0.0
      %1354 = vmatpush1.msra.mxu0 0.0
      %1355 = vmatprep.subr.mxu0 0.0
      %1356 = vmatpush1.msra.mxu0 0.0
      %1357 = vmatprep.subr.mxu0 0.0
      %1358 = vmatpush1.msra.mxu0 0.0
      %1359 = vmatprep.subr.mxu0 0.0
      %1360 = vmatpush1.msra.mxu0 0.0
      %1361 = vmatprep.mubr.f32.mxu0 0.0
      %1362 = vmatmul.mubr.f32.gmra.mrb[0].mxu0 %v1292
      %v1363 = vpop.f32.mrb[0].mxu0
      %v1364 = vadd.f32 0.0, %v1363
      %v1365 = vpop.f32.mrb[0].mxu0
      %1366 = vmatprep.mubr.f32.mxu0 0.0
      %1367 = vmatmul.mubr.f32.gmra.mrb[0].mxu0 %v1295
      %v1368 = vpop.f32.mrb[0].mxu0
      %v1369 = vadd.f32 0.0, %v1368
      %v1370 = vpop.f32.mrb[0].mxu0
      %1371 = vdwg.mxu0
      %v1372 = vadd.f32 %v1287, %v1364
      %v1373 = vadd.f32 %v1288, %v1369
      %1374 = vst.msk [vmem:[#allocation2] sm:$0xff] %vm309, %v1372
      %1375 = vst.msk [vmem:[#allocation2 + $0x8] sm:$0x3] %vm756, %v1373
      %v1376 = vld [vmem:[#allocation2 + $0xa] sm:$0x3f]
      %v1377 = vld [vmem:[%s289] sm:$0x3f]
      %v1379 = vsel %vm322, %v1377, 0
      %1381 = vmatprep.subr.mxu0 0.0
      %1382 = vmatpush1.msra.mxu0 %v1281
      %1383 = vmatprep.subr.mxu0 0.0
      %1384 = vmatpush1.msra.mxu0 %v1282
      %1385 = vmatprep.subr.mxu0 0.0
      %1386 = vmatpush1.msra.mxu0 %v1283
      %1387 = vmatprep.subr.mxu0 0.0
      %1388 = vmatpush1.msra.mxu0 %v1284
      %1389 = vmatprep.subr.mxu0 0.0
      %1390 = vmatpush1.msra.mxu0 %v1285
      %1391 = vmatprep.subr.mxu0 0.0
      %1392 = vmatpush1.msra.mxu0 %v1286
      %1393 = vmatprep.subr.mxu0 0.0
      %1394 = vmatpush1.msra.mxu0 0.0
      %1395 = vmatprep.subr.mxu0 0.0
      %1396 = vmatpush1.msra.mxu0 0.0
      %1397 = vmatprep.subr.mxu0 0.0
      %1398 = vmatpush1.msra.mxu0 0.0
      %1399 = vmatprep.subr.mxu0 0.0
      %1400 = vmatpush1.msra.mxu0 0.0
      %1401 = vmatprep.subr.mxu0 0.0
      %1402 = vmatpush1.msra.mxu0 0.0
      %1403 = vmatprep.subr.mxu0 0.0
      %1404 = vmatpush1.msra.mxu0 0.0
      %1405 = vmatprep.subr.mxu0 0.0
      %1406 = vmatpush1.msra.mxu0 0.0
      %1407 = vmatprep.subr.mxu0 0.0
      %1408 = vmatpush1.msra.mxu0 0.0
      %1409 = vmatprep.subr.mxu0 0.0
      %1410 = vmatpush1.msra.mxu0 0.0
      %1411 = vmatprep.subr.mxu0 0.0
      %1412 = vmatpush1.msra.mxu0 0.0
      %1413 = vmatprep.subr.mxu0 0.0
      %1414 = vmatpush1.msra.mxu0 0.0
      %1415 = vmatprep.subr.mxu0 0.0
      %1416 = vmatpush1.msra.mxu0 0.0
      %1417 = vmatprep.subr.mxu0 0.0
      %1418 = vmatpush1.msra.mxu0 0.0
      %1419 = vmatprep.subr.mxu0 0.0
      %1420 = vmatpush1.msra.mxu0 0.0
      %1421 = vmatprep.subr.mxu0 0.0
      %1422 = vmatpush1.msra.mxu0 0.0
      %1423 = vmatprep.subr.mxu0 0.0
      %1424 = vmatpush1.msra.mxu0 0.0
      %1425 = vmatprep.subr.mxu0 0.0
      %1426 = vmatpush1.msra.mxu0 0.0
      %1427 = vmatprep.subr.mxu0 0.0
      %1428 = vmatpush1.msra.mxu0 0.0
      %1429 = vmatprep.subr.mxu0 0.0
      %1430 = vmatpush1.msra.mxu0 0.0
      %1431 = vmatprep.subr.mxu0 0.0
      %1432 = vmatpush1.msra.mxu0 0.0
      %1433 = vmatprep.subr.mxu0 0.0
      %1434 = vmatpush1.msra.mxu0 0.0
      %1435 = vmatprep.subr.mxu0 0.0
      %1436 = vmatpush1.msra.mxu0 0.0
      %1437 = vmatprep.subr.mxu0 0.0
      %1438 = vmatpush1.msra.mxu0 0.0
      %1439 = vmatprep.subr.mxu0 0.0
      %1440 = vmatpush1.msra.mxu0 0.0
      %1441 = vmatprep.subr.mxu0 0.0
      %1442 = vmatpush1.msra.mxu0 0.0
      %1443 = vmatprep.subr.mxu0 0.0
      %1444 = vmatpush1.msra.mxu0 0.0
      %1445 = vmatprep.mubr.f32.mxu0 0.0
      %1446 = vmatmul.mubr.f32.gmra.mrb[0].mxu0 %v1379
      %v1447 = vpop.f32.mrb[0].mxu0
      %v1448 = vadd.f32 0.0, %v1447
      %v1449 = vpop.f32.mrb[0].mxu0
      %1450 = vdwg.mxu0
      %v1451 = vadd.f32 %v1376, %v1448
      %1452 = vst.msk [vmem:[#allocation2 + $0xa] sm:$0x3f] %vm678, %v1451
      %v1453 = vld [vmem:[#allocation2] sm:$0xff]
      %v1454 = vld [vmem:[#allocation2 + $0x8] sm:$0xff]
      %1455 = vst.msk [vmem:[%s300] sm:$0xff] %vm309, %v1453
      %1456 = vst.msk [vmem:[%s300 + $0x8] sm:$0xff] %vm309, %v1454
      %s1457 = smul.u32 2, %s20
      %p1458 = scmp.lt.s32.totalorder %s19, 1
      %s1459 = scalar_select %p1458, %s19, 1
      %p1460 = scmp.lt.s32.totalorder %s1457, 1
      %s1461 = scalar_select %p1460, %s1457, 1
      %s1462 = smul.addr %s1459, 2
      %s1463 = sadd.s32 %s1461, %s1462
      %s1464 = smul.addr %s1463, 8
      %s1465 = scalar_lea.vmem %s4, %s1464
      // Predicated region
      $region37: #{_forward_impl.6} parent=35 // pred_check
        %p1466 = pneg %p149
      $region38: #{_forward_impl.6} parent=35 // pred_check_branch
        %1468 = sbr.rel (%p1466) target = $region40
      $region39: #{_forward_impl.6} parent=35 // pred_region
        %s1469 = smul.u32 2, %s20
      $region40: #{_forward_impl.6} parent=35 // pred_fallthru
        _
    $region36: #{_forward_impl.6} parent=5 // pred_fallthru
      _
    %p1470 = scmp.le.s32.totalorder 2, %s10
    // Predicated region
    $region41: #{_forward_impl.6} parent=5 // pred_check
      %p1471 = pneg %p1470
    $region42: #{_forward_impl.6} parent=5 // pred_check_branch
      %1473 = sbr.rel (%p1471) target = $region44
    $region43: #{_forward_impl.6} parent=5 // pred_region
      %s1474 = ssub.s32 %s10, 2
      // Predicated region
      $region45: #{_forward_impl.6} parent=43 // pred_check
        %p1475 = pneg %p155
      $region46: #{_forward_impl.6} parent=43 // pred_check_branch
        %1477 = sbr.rel (%p1475) target = $region48
      $region47: #{_forward_impl.6} parent=43 // pred_region
        %s1478 = smul.u32 2, %s22
        %p1479 = scmp.lt.s32.totalorder %s21, 1
        %s1480 = scalar_select %p1479, %s21, 1
        %p1481 = scmp.lt.s32.totalorder %s1478, 1
        %s1482 = scalar_select %p1481, %s1478, 1
        %s1483 = smul.addr %s1480, 2
        %s1484 = sadd.s32 %s1482, %s1483
        %s1485 = smul.addr %s1484, 8
        %s1486 = scalar_lea.vmem %s4, %s1485
      $region48: #{_forward_impl.6} parent=43 // pred_fallthru
        _
    $region44: #{_forward_impl.6} parent=5 // pred_fallthru
      _
  $region6: #{_forward_impl.6} parent=0 // loop_footer
    %s14 = sadd.s32 1, %s10
  $region7: #{_forward_impl.6} parent=0 // loop_footer_branch
    %9 = sbr.rel target = $region3
  $region8: #{_forward_impl.6} parent=0 // loop_exit
    _

// kernel: _forward_impl.5
$region0: #{_forward_impl.5}
  #allocation0 [shape = 'u32[]', space=smem, size = 0x4, offset = 0x4, fixed_abs, tag = 'smem constant byte address 0x4 - core index']
  #allocation1 [shape = 'u32[144,128]{1,0:T(1,128)}', space=vmem, size = 0x12000, scoped, tag = 'internal scratch']
  #allocation2 [shape = 'f32[48,16]{1,0:T(8,128)}', space=vmem, size = 0x6000, scoped, tag = 'scratch operand']
  %s0 = inlined_call_operand.vmem [shape: f32[2,56,24], index: 0, kind: input, shape index: {}, may-alias: {0,1}]
  %s1 = inlined_call_operand.vmem [shape: f32[2,56,24], index: 1, kind: input, shape index: {}, may-alias: {0,1}]
  %s2 = inlined_call_operand.vmem [shape: f32[7,24,16], index: 2, kind: input, shape index: {}]
  %s3 = inlined_call_operand.vmem [shape: f32[1,16], index: 3, kind: input, shape index: {}]
  %s4 = inlined_call_operand.vmem [shape: f32[2,48,16], index: 4, kind: output, shape index: {}]
  %s5 = sld [smem:[#allocation0]]
  $region49: #{_forward_impl.5} parent=0
    _
  %s7 = ssub.s32 1, %s5
  %s8 = scalar_select 0, %s7, %s5
  loop: start=0, step=1, limit=4
  $region2: #{_forward_impl.5} parent=0 // loop_pre_header
    _
  $region3: #{_forward_impl.5} parent=0 // loop_header
    %s10 = sphi 0, %s14
    %p11 = scmp.ge.s32.totalorder %s10, 4
    %s17 = sphi 0, %s29
    %s18 = sphi 0, %s25
    %s19 = sphi 0, %s17
    %s20 = sphi 0, %s18
    %s21 = sphi 0, %s19
    %s22 = sphi 0, %s20
    %s34 = sphi 0, %s36
    %s37 = sphi 0, %s34
    %s38 = sphi 0, %s37
    %s54 = sphi 0, %s38
    %s66 = sphi 0, %s68
    %s69 = sphi 0, %s66
    %s70 = sphi 0, %s69
    %s86 = sphi 0, %s70
    %s90 = sphi 0, %s90
    %s92 = sphi 0, %s90
    %s93 = sphi 0, %s92
    %s107 = sphi 0, %s93
    %s111 = sphi 0, %s111
    %s113 = sphi 0, %s111
    %s114 = sphi 0, %s113
    %s128 = sphi 0, %s114
    %s136 = sphi 0, %s138
    %s139 = sphi 0, %s136
    %s140 = sphi 0, %s139
    %s156 = sphi 0, %s140
  $region4: #{_forward_impl.5} parent=0 // loop_header_branch
    %13 = sbr.rel (%p11) target = $region8
  $region5: #{_forward_impl.5} parent=0 // loop_body
    %s15 = ssub.s32 %s10, 1
    %s16 = ssub.s32 %s10, 2
    %s23 = sadd.s32 1, %s18
    %p24 = scmp.ge.s32.totalorder %s23, 1
    %s25 = scalar_select %p24, 0, %s23
    %s26 = sadd.s32 1, %s17
    %s27 = scalar_select %p24, %s26, %s17
    %p28 = scmp.ge.s32.totalorder %s27, 2
    %s29 = scalar_select %p28, 0, %s27
    %s30 = ssub.s32 %s17, %s29
    %s31 = ssub.s32 %s18, %s25
    %s32 = sor.u32 %s30, %s31
    %p33 = scmp.eq.s32.totalorder %s32, 0
    %s35 = sadd.s32 %s34, 1
    %s36 = scalar_select %p33, %s34, %s35
    %p39 = pneg %p33
    %p40 = scmp.eq.s32.totalorder %s10, 1
    %p41 = por %p39, %p40
    %p42 = scmp.ne.s32.totalorder %s34, %s37
    %p43 = scmp.eq.s32.totalorder %s10, 0
    %p44 = por %p42, %p43
    %p45 = scmp.ne.s32.totalorder %s34, %s37
    %p46 = scmp.eq.s32.totalorder %s15, 1
    %p47 = por %p45, %p46
    %p48 = scmp.ne.s32.totalorder %s37, %s38
    %p49 = scmp.eq.s32.totalorder %s15, 0
    %p50 = por %p48, %p49
    %p51 = scmp.ne.s32.totalorder %s37, %s38
    %p52 = scmp.eq.s32.totalorder %s16, 1
    %p53 = por %p51, %p52
    %p55 = scmp.ne.s32.totalorder %s38, %s54
    %p56 = scmp.eq.s32.totalorder %s16, 0
    %p57 = por %p55, %p56
    %s58 = sadd.s32 %s18, 1
    %s59 = smul.u32 %s58, 6
    %s60 = sadd.s32 %s25, 1
    %s61 = smul.u32 %s60, 6
    %s62 = ssub.s32 %s17, %s29
    %s63 = ssub.s32 %s59, %s61
    %s64 = sor.u32 %s62, %s63
    %p65 = scmp.eq.s32.totalorder %s64, 0
    %s67 = sadd.s32 %s66, 1
    %s68 = scalar_select %p65, %s66, %s67
    %p71 = pneg %p65
    %p72 = scmp.eq.s32.totalorder %s10, 1
    %p73 = por %p71, %p72
    %p74 = scmp.ne.s32.totalorder %s66, %s69
    %p75 = scmp.eq.s32.totalorder %s10, 0
    %p76 = por %p74, %p75
    %p77 = scmp.ne.s32.totalorder %s66, %s69
    %p78 = scmp.eq.s32.totalorder %s15, 1
    %p79 = por %p77, %p78
    %p80 = scmp.ne.s32.totalorder %s69, %s70
    %p81 = scmp.eq.s32.totalorder %s15, 0
    %p82 = por %p80, %p81
    %p83 = scmp.ne.s32.totalorder %s69, %s70
    %p84 = scmp.eq.s32.totalorder %s16, 1
    %p85 = por %p83, %p84
    %p87 = scmp.ne.s32.totalorder %s70, %s86
    %p88 = scmp.eq.s32.totalorder %s16, 0
    %p89 = por %p87, %p88
    %s91 = sadd.s32 %s90, 1
    %p94 = scmp.eq.s32.totalorder %s10, 1
    %p95 = scmp.ne.s32.totalorder %s90, %s92
    %p96 = scmp.eq.s32.totalorder %s10, 0
    %p97 = por %p95, %p96
    %p98 = scmp.ne.s32.totalorder %s90, %s92
    %p99 = scmp.eq.s32.totalorder %s15, 1
    %p100 = por %p98, %p99
    %p101 = scmp.ne.s32.totalorder %s92, %s93
    %p102 = scmp.eq.s32.totalorder %s15, 0
    %p103 = por %p101, %p102
    %p104 = scmp.ne.s32.totalorder %s92, %s93
    %p105 = scmp.eq.s32.totalorder %s16, 1
    %p106 = por %p104, %p105
    %p108 = scmp.ne.s32.totalorder %s93, %s107
    %p109 = scmp.eq.s32.totalorder %s16, 0
    %p110 = por %p108, %p109
    %s112 = sadd.s32 %s111, 1
    %p115 = scmp.eq.s32.totalorder %s10, 1
    %p116 = scmp.ne.s32.totalorder %s111, %s113
    %p117 = scmp.eq.s32.totalorder %s10, 0
    %p118 = por %p116, %p117
    %p119 = scmp.ne.s32.totalorder %s111, %s113
    %p120 = scmp.eq.s32.totalorder %s15, 1
    %p121 = por %p119, %p120
    %p122 = scmp.ne.s32.totalorder %s113, %s114
    %p123 = scmp.eq.s32.totalorder %s15, 0
    %p124 = por %p122, %p123
    %p125 = scmp.ne.s32.totalorder %s113, %s114
    %p126 = scmp.eq.s32.totalorder %s16, 1
    %p127 = por %p125, %p126
    %p129 = scmp.ne.s32.totalorder %s114, %s128
    %p130 = scmp.eq.s32.totalorder %s16, 0
    %p131 = por %p129, %p130
    %s132 = ssub.s32 %s17, %s29
    %s133 = ssub.s32 %s18, %s25
    %s134 = sor.u32 %s132, %s133
    %p135 = scmp.eq.s32.totalorder %s134, 0
    %s137 = sadd.s32 %s136, 1
    %s138 = scalar_select %p135, %s136, %s137
    %p141 = pneg %p135
    %p142 = scmp.eq.s32.totalorder %s10, 1
    %p143 = por %p141, %p142
    %p144 = scmp.ne.s32.totalorder %s136, %s139
    %p145 = scmp.eq.s32.totalorder %s10, 0
    %p146 = por %p144, %p145
    %p147 = scmp.ne.s32.totalorder %s136, %s139
    %p148 = scmp.eq.s32.totalorder %s15, 1
    %p149 = por %p147, %p148
    %p150 = scmp.ne.s32.totalorder %s139, %s140
    %p151 = scmp.eq.s32.totalorder %s15, 0
    %p152 = por %p150, %p151
    %p153 = scmp.ne.s32.totalorder %s139, %s140
    %p154 = scmp.eq.s32.totalorder %s16, 1
    %p155 = por %p153, %p154
    %p157 = scmp.ne.s32.totalorder %s140, %s156
    %p158 = scmp.eq.s32.totalorder %s16, 0
    %p159 = por %p157, %p158
    %p160 = scmp.le.s32.totalorder 1, %s10
    %p161 = scmp.lt.s32.totalorder %s10, 3
    %p162 = pnand %p160, %p161
    %p163 = pneg %p162
    // Predicated region
    $region9: #{_forward_impl.5} parent=5 // pred_check
      _
    $region10: #{_forward_impl.5} parent=5 // pred_check_branch
      %165 = sbr.rel (%p162) target = $region12
    $region11: #{_forward_impl.5} parent=5 // pred_region
      %s166 = ssub.s32 %s10, 1
      // Predicated region
      $region13: #{_forward_impl.5} parent=11 // pred_check
        %p167 = pneg %p103
      $region14: #{_forward_impl.5} parent=11 // pred_check_branch
        %169 = sbr.rel (%p167) target = $region16
      $region15: #{_forward_impl.5} parent=11 // pred_region
        _
      $region16: #{_forward_impl.5} parent=11 // pred_fallthru
        _
      // Predicated region
      $region17: #{_forward_impl.5} parent=11 // pred_check
        %p170 = pneg %p124
      $region18: #{_forward_impl.5} parent=11 // pred_check_branch
        %172 = sbr.rel (%p170) target = $region20
      $region19: #{_forward_impl.5} parent=11 // pred_region
        _
      $region20: #{_forward_impl.5} parent=11 // pred_fallthru
        _
    $region12: #{_forward_impl.5} parent=5 // pred_fallthru
      _
    %p173 = scmp.lt.s32.totalorder %s10, 2
    // Predicated region
    $region21: #{_forward_impl.5} parent=5 // pred_check
      %p174 = pneg %p173
    $region22: #{_forward_impl.5} parent=5 // pred_check_branch
      %176 = sbr.rel (%p174) target = $region24
    $region23: #{_forward_impl.5} parent=5 // pred_region
      // Predicated region
      $region25: #{_forward_impl.5} parent=23 // pred_check
        %p177 = pneg %p44
      $region26: #{_forward_impl.5} parent=23 // pred_check_branch
        %179 = sbr.rel (%p177) target = $region28
      $region27: #{_forward_impl.5} parent=23 // pred_region
        %s180 = smul.u32 6, %s18
        %s181 = ssub.s32 7, %s180
        %p182 = scmp.lt.s32.totalorder %s181, 6
        %s183 = scalar_select %p182, %s181, 6
        %s184 = smul.u32 128, %s183
        %p185 = scmp.lt.s32.totalorder %s17, 1
        %s186 = scalar_select %p185, %s17, 1
        %p187 = scmp.lt.s32.totalorder %s180, 6
        %s188 = scalar_select %p187, %s180, 6
        %s189 = smul.addr %s186, 7
        %s190 = sadd.s32 %s188, %s189
        %s191 = smul.addr %s190, 8
        %s192 = scalar_lea.vmem %s0, %s191
        %s193 = smul.u32 6, %s18
        %s194 = ssub.s32 7, %s193
        %p195 = scmp.lt.s32.totalorder %s194, 6
        %s196 = scalar_select %p195, %s194, 6
        %s197 = smul.u32 128, %s196
      $region28: #{_forward_impl.5} parent=23 // pred_fallthru
        _
      // Predicated region
      $region29: #{_forward_impl.5} parent=23 // pred_check
        %p198 = pneg %p76
      $region30: #{_forward_impl.5} parent=23 // pred_check_branch
        %200 = sbr.rel (%p198) target = $region32
      $region31: #{_forward_impl.5} parent=23 // pred_region
        %s201 = sadd.s32 %s18, 1
        %s202 = smul.u32 %s201, 6
        %p203 = scmp.lt.s32.totalorder %s17, 1
        %s204 = scalar_select %p203, %s17, 1
        %p205 = scmp.lt.s32.totalorder %s202, 6
        %s206 = scalar_select %p205, %s202, 6
        %s207 = smul.addr %s204, 7
        %s208 = sadd.s32 %s206, %s207
        %s209 = smul.addr %s208, 8
        %s210 = scalar_lea.vmem %s1, %s209
        %s211 = sadd.s32 %s18, 1
        %s212 = smul.u32 %s211, 6
      $region32: #{_forward_impl.5} parent=23 // pred_fallthru
        _
    $region24: #{_forward_impl.5} parent=5 // pred_fallthru
      _
    %p213 = scmp.le.s32.totalorder 1, %s10
    %p214 = scmp.lt.s32.totalorder %s10, 3
    %p215 = pnand %p213, %p214
    %p216 = pneg %p215
    // Predicated region
    $region33: #{_forward_impl.5} parent=5 // pred_check
      _
    $region34: #{_forward_impl.5} parent=5 // pred_check_branch
      %218 = sbr.rel (%p215) target = $region36
    $region35: #{_forward_impl.5} parent=5 // pred_region
      %s219 = ssub.s32 %s10, 1
      %s220 = smul.u32 6, %s20
      %s221 = ssub.s32 7, %s220
      %p222 = scmp.lt.s32.totalorder %s221, 6
      %s223 = scalar_select %p222, %s221, 6
      %s224 = smul.u32 128, %s223
      %p225 = scmp.lt.s32.totalorder %s19, 1
      %s226 = scalar_select %p225, %s19, 1
      %p227 = scmp.lt.s32.totalorder %s220, 6
      %s228 = scalar_select %p227, %s220, 6
      %s229 = smul.addr %s226, 7
      %s230 = sadd.s32 %s228, %s229
      %s231 = smul.addr %s230, 8
      %s232 = scalar_lea.vmem %s0, %s231
      %p233 = pneg %p50
      %p234 = pneg %p47
      %s235 = sadd.s32 %s20, 1
      %s236 = smul.u32 %s235, 6
      %p237 = scmp.lt.s32.totalorder %s19, 1
      %s238 = scalar_select %p237, %s19, 1
      %p239 = scmp.lt.s32.totalorder %s236, 6
      %s240 = scalar_select %p239, %s236, 6
      %s241 = smul.addr %s238, 7
      %s242 = sadd.s32 %s240, %s241
      %s243 = smul.addr %s242, 8
      %s244 = scalar_lea.vmem %s1, %s243
      %p245 = pneg %p82
      %p246 = pneg %p79
      %p247 = pneg %p103
      %p248 = pneg %p100
      %p249 = pneg %p124
      %p250 = pneg %p121
      %p251 = pneg %p152
      %p252 = pneg %p149
      %s253 = smul.u32 6, %s20
      %p254 = scmp.lt.s32.totalorder %s19, 1
      %s255 = scalar_select %p254, %s19, 1
      %p256 = scmp.lt.s32.totalorder %s253, 5
      %s257 = scalar_select %p256, %s253, 5
      %s258 = smul.addr %s255, 6
      %s259 = sadd.s32 %s257, %s258
      %s260 = smul.addr %s259, 8
      %s261 = scalar_lea.vmem %s4, %s260
      %s262 = smul.u32 6, %s20
      %s263 = ssub.s32 7, %s262
      %p264 = scmp.lt.s32.totalorder %s263, 6
      %s265 = scalar_select %p264, %s263, 6
      %s266 = smul.u32 128, %s265
      %p267 = scmp.lt.s32.totalorder %s19, 1
      %s268 = scalar_select %p267, %s19, 1
      %p269 = scmp.lt.s32.totalorder %s262, 6
      %s270 = scalar_select %p269, %s262, 6
      %s271 = smul.addr %s268, 7
      %s272 = sadd.s32 %s270, %s271
      %s273 = smul.addr %s272, 8
      %s274 = scalar_lea.vmem %s0, %s273
      %s275 = smul.u32 6, %s20
      %s276 = ssub.s32 7, %s275
      %p277 = scmp.lt.s32.totalorder %s276, 6
      %s278 = scalar_select %p277, %s276, 6
      %s279 = smul.u32 128, %s278
      %s280 = sadd.s32 %s20, 1
      %s281 = smul.u32 %s280, 6
      %p282 = scmp.lt.s32.totalorder %s19, 1
      %s283 = scalar_select %p282, %s19, 1
      %p284 = scmp.lt.s32.totalorder %s281, 6
      %s285 = scalar_select %p284, %s281, 6
      %s286 = smul.addr %s283, 7
      %s287 = sadd.s32 %s285, %s286
      %s288 = smul.addr %s287, 8
      %s289 = scalar_lea.vmem %s1, %s288
      %s290 = sadd.s32 %s20, 1
      %s291 = smul.u32 %s290, 6
      %s292 = smul.u32 6, %s20
      %p293 = scmp.lt.s32.totalorder %s19, 1
      %s294 = scalar_select %p293, %s19, 1
      %p295 = scmp.lt.s32.totalorder %s292, 5
      %s296 = scalar_select %p295, %s292, 5
      %s297 = smul.addr %s294, 6
      %s298 = sadd.s32 %s296, %s297
      %s299 = smul.addr %s298, 8
      %s300 = scalar_lea.vmem %s4, %s299
      %s301 = smul.u32 6, %s20
      %v302 = vld [vmem:[%s3] sm:$0x1]
      %v304 = vlaneseq
      %v305 = vshrl.u32 %v304, 7
      %v306 = vsub.s32 0, %v305
      %v307 = vrot.slane %v302, %v306
      %vm309 = vcmask 130048
      %310 = vst.msk [vmem:[#allocation2] sm:$0xff] %vm309, %v307
      %311 = vst.msk [vmem:[#allocation2 + $0x8] sm:$0xff] %vm309, %v307
      %312 = vst.msk [vmem:[#allocation2 + $0x10] sm:$0xff] %vm309, %v307
      %313 = vst.msk [vmem:[#allocation2 + $0x18] sm:$0xff] %vm309, %v307
      %314 = vst.msk [vmem:[#allocation2 + $0x20] sm:$0xff] %vm309, %v307
      %315 = vst.msk [vmem:[#allocation2 + $0x28] sm:$0xff] %vm309, %v307
      %v316 = vld [vmem:[%s2] sm:$0xff]
      %v317 = vld [vmem:[%s2 + $0x8] sm:$0xff]
      %v318 = vld [vmem:[%s2 + $0x10] sm:$0xff]
      %v319 = vld [vmem:[#allocation2] sm:$0xff]
      %v320 = vld [vmem:[#allocation2 + $0x8] sm:$0xff]
      %v321 = vld [vmem:[#allocation2 + $0x10] sm:$0xff]
      %v322 = vld [vmem:[#allocation2 + $0x18] sm:$0xff]
      %v323 = vld [vmem:[#allocation2 + $0x20] sm:$0xff]
      %v324 = vld [vmem:[#allocation2 + $0x28] sm:$0xff]
      %v325 = vld [vmem:[%s274] sm:$0xff]
      %v326 = vld [vmem:[%s274 + $0x8] sm:$0xff]
      %v327 = vld [vmem:[%s274 + $0x10] sm:$0xff]
      %v328 = vld [vmem:[%s274 + $0x18] sm:$0xff]
      %v329 = vld [vmem:[%s274 + $0x20] sm:$0xff]
      %v330 = vld [vmem:[%s274 + $0x28] sm:$0xff]
      %vm331 = vcmask 195584
      %v333 = vsel %vm331, %v325, 0
      %v336 = vsel %vm331, %v326, 0
      %v339 = vsel %vm331, %v327, 0
      %v342 = vsel %vm331, %v328, 0
      %v345 = vsel %vm331, %v329, 0
      %v348 = vsel %vm331, %v330, 0
      %350 = vmatprep.subr.mxu0 0.0
      %351 = vmatpush1.msra.mxu0 %v316
      %352 = vmatprep.subr.mxu0 0.0
      %353 = vmatpush1.msra.mxu0 %v317
      %354 = vmatprep.subr.mxu0 0.0
      %355 = vmatpush1.msra.mxu0 %v318
      %356 = vmatprep.subr.mxu0 0.0
      %357 = vmatpush1.msra.mxu0 0.0
      %358 = vmatprep.subr.mxu0 0.0
      %359 = vmatpush1.msra.mxu0 0.0
      %360 = vmatprep.subr.mxu0 0.0
      %361 = vmatpush1.msra.mxu0 0.0
      %362 = vmatprep.subr.mxu0 0.0
      %363 = vmatpush1.msra.mxu0 0.0
      %364 = vmatprep.subr.mxu0 0.0
      %365 = vmatpush1.msra.mxu0 0.0
      %366 = vmatprep.subr.mxu0 0.0
      %367 = vmatpush1.msra.mxu0 0.0
      %368 = vmatprep.subr.mxu0 0.0
      %369 = vmatpush1.msra.mxu0 0.0
      %370 = vmatprep.subr.mxu0 0.0
      %371 = vmatpush1.msra.mxu0 0.0
      %372 = vmatprep.subr.mxu0 0.0
      %373 = vmatpush1.msra.mxu0 0.0
      %374 = vmatprep.subr.mxu0 0.0
      %375 = vmatpush1.msra.mxu0 0.0
      %376 = vmatprep.subr.mxu0 0.0
      %377 = vmatpush1.msra.mxu0 0.0
      %378 = vmatprep.subr.mxu0 0.0
      %379 = vmatpush1.msra.mxu0 0.0
      %380 = vmatprep.subr.mxu0 0.0
      %381 = vmatpush1.msra.mxu0 0.0
      %382 = vmatprep.subr.mxu0 0.0
      %383 = vmatpush1.msra.mxu0 0.0
      %384 = vmatprep.subr.mxu0 0.0
      %385 = vmatpush1.msra.mxu0 0.0
      %386 = vmatprep.subr.mxu0 0.0
      %387 = vmatpush1.msra.mxu0 0.0
      %388 = vmatprep.subr.mxu0 0.0
      %389 = vmatpush1.msra.mxu0 0.0
      %390 = vmatprep.subr.mxu0 0.0
      %391 = vmatpush1.msra.mxu0 0.0
      %392 = vmatprep.subr.mxu0 0.0
      %393 = vmatpush1.msra.mxu0 0.0
      %394 = vmatprep.subr.mxu0 0.0
      %395 = vmatpush1.msra.mxu0 0.0
      %396 = vmatprep.subr.mxu0 0.0
      %397 = vmatpush1.msra.mxu0 0.0
      %398 = vmatprep.subr.mxu0 0.0
      %399 = vmatpush1.msra.mxu0 0.0
      %400 = vmatprep.subr.mxu0 0.0
      %401 = vmatpush1.msra.mxu0 0.0
      %402 = vmatprep.subr.mxu0 0.0
      %403 = vmatpush1.msra.mxu0 0.0
      %404 = vmatprep.subr.mxu0 0.0
      %405 = vmatpush1.msra.mxu0 0.0
      %406 = vmatprep.subr.mxu0 0.0
      %407 = vmatpush1.msra.mxu0 0.0
      %408 = vmatprep.subr.mxu0 0.0
      %409 = vmatpush1.msra.mxu0 0.0
      %410 = vmatprep.subr.mxu0 0.0
      %411 = vmatpush1.msra.mxu0 0.0
      %412 = vmatprep.subr.mxu0 0.0
      %413 = vmatpush1.msra.mxu0 0.0
      %414 = vmatprep.mubr.f32.mxu0 0.0
      %415 = vmatmul.mubr.f32.gmra.mrb[0].mxu0 %v333
      %v416 = vpop.f32.mrb[0].mxu0
      %v417 = vadd.f32 0.0, %v416
      %v418 = vpop.f32.mrb[0].mxu0
      %419 = vmatprep.mubr.f32.mxu0 0.0
      %420 = vmatmul.mubr.f32.gmra.mrb[0].mxu0 %v336
      %v421 = vpop.f32.mrb[0].mxu0
      %v422 = vadd.f32 0.0, %v421
      %v423 = vpop.f32.mrb[0].mxu0
      %424 = vmatprep.mubr.f32.mxu0 0.0
      %425 = vmatmul.mubr.f32.gmra.mrb[0].mxu0 %v339
      %v426 = vpop.f32.mrb[0].mxu0
      %v427 = vadd.f32 0.0, %v426
      %v428 = vpop.f32.mrb[0].mxu0
      %429 = vmatprep.mubr.f32.mxu0 0.0
      %430 = vmatmul.mubr.f32.gmra.mrb[0].mxu0 %v342
      %v431 = vpop.f32.mrb[0].mxu0
      %v432 = vadd.f32 0.0, %v431
      %v433 = vpop.f32.mrb[0].mxu0
      %434 = vmatprep.mubr.f32.mxu0 0.0
      %435 = vmatmul.mubr.f32.gmra.mrb[0].mxu0 %v345
      %v436 = vpop.f32.mrb[0].mxu0
      %v437 = vadd.f32 0.0, %v436
      %v438 = vpop.f32.mrb[0].mxu0
      %439 = vmatprep.mubr.f32.mxu0 0.0
      %440 = vmatmul.mubr.f32.gmra.mrb[0].mxu0 %v348
      %v441 = vpop.f32.mrb[0].mxu0
      %v442 = vadd.f32 0.0, %v441
      %v443 = vpop.f32.mrb[0].mxu0
      %444 = vdwg.mxu0
      %v445 = vadd.f32 %v319, %v417
      %v446 = vadd.f32 %v320, %v422
      %v447 = vadd.f32 %v321, %v427
      %v448 = vadd.f32 %v322, %v432
      %v449 = vadd.f32 %v323, %v437
      %v450 = vadd.f32 %v324, %v442
      %451 = vst.msk [vmem:[#allocation2] sm:$0xff] %vm309, %v445
      %452 = vst.msk [vmem:[#allocation2 + $0x8] sm:$0xff] %vm309, %v446
      %453 = vst.msk [vmem:[#allocation2 + $0x10] sm:$0xff] %vm309, %v447
      %454 = vst.msk [vmem:[#allocation2 + $0x18] sm:$0xff] %vm309, %v448
      %455 = vst.msk [vmem:[#allocation2 + $0x20] sm:$0xff] %vm309, %v449
      %456 = vst.msk [vmem:[#allocation2 + $0x28] sm:$0xff] %vm309, %v450
      %s457 = scalar_lea.vmem %s2, 24
      %v458 = vld [vmem:[%s457] sm:$0xff]
      %v459 = vld [vmem:[%s457 + $0x8] sm:$0xff]
      %v460 = vld [vmem:[%s457 + $0x10] sm:$0xff]
      %v461 = vld [vmem:[#allocation2] sm:$0xff]
      %v462 = vld [vmem:[#allocation2 + $0x8] sm:$0xff]
      %v463 = vld [vmem:[#allocation2 + $0x10] sm:$0xff]
      %v464 = vld [vmem:[#allocation2 + $0x18] sm:$0xff]
      %v465 = vld [vmem:[#allocation2 + $0x20] sm:$0xff]
      %v466 = vld [vmem:[#allocation2 + $0x28] sm:$0x7f]
      %v467 = vld [vmem:[%s274 + $0x1] sm:$0xff]
      %v468 = vld [vmem:[%s274 + $0x9] sm:$0xff]
      %v469 = vld [vmem:[%s274 + $0x11] sm:$0xff]
      %v470 = vld [vmem:[%s274 + $0x19] sm:$0xff]
      %v471 = vld [vmem:[%s274 + $0x21] sm:$0xff]
      %v472 = vld [vmem:[%s274 + $0x29] sm:$0x7f]
      %v474 = vsel %vm331, %v467, 0
      %v477 = vsel %vm331, %v468, 0
      %v480 = vsel %vm331, %v469, 0
      %v483 = vsel %vm331, %v470, 0
      %v486 = vsel %vm331, %v471, 0
      %v489 = vsel %vm331, %v472, 0
      %491 = vmatprep.subr.mxu0 0.0
      %492 = vmatpush1.msra.mxu0 %v458
      %493 = vmatprep.subr.mxu0 0.0
      %494 = vmatpush1.msra.mxu0 %v459
      %495 = vmatprep.subr.mxu0 0.0
      %496 = vmatpush1.msra.mxu0 %v460
      %497 = vmatprep.subr.mxu0 0.0
      %498 = vmatpush1.msra.mxu0 0.0
      %499 = vmatprep.subr.mxu0 0.0
      %500 = vmatpush1.msra.mxu0 0.0
      %501 = vmatprep.subr.mxu0 0.0
      %502 = vmatpush1.msra.mxu0 0.0
      %503 = vmatprep.subr.mxu0 0.0
      %504 = vmatpush1.msra.mxu0 0.0
      %505 = vmatprep.subr.mxu0 0.0
      %506 = vmatpush1.msra.mxu0 0.0
      %507 = vmatprep.subr.mxu0 0.0
      %508 = vmatpush1.msra.mxu0 0.0
      %509 = vmatprep.subr.mxu0 0.0
      %510 = vmatpush1.msra.mxu0 0.0
      %511 = vmatprep.subr.mxu0 0.0
      %512 = vmatpush1.msra.mxu0 0.0
      %513 = vmatprep.subr.mxu0 0.0
      %514 = vmatpush1.msra.mxu0 0.0
      %515 = vmatprep.subr.mxu0 0.0
      %516 = vmatpush1.msra.mxu0 0.0
      %517 = vmatprep.subr.mxu0 0.0
      %518 = vmatpush1.msra.mxu0 0.0
      %519 = vmatprep.subr.mxu0 0.0
      %520 = vmatpush1.msra.mxu0 0.0
      %521 = vmatprep.subr.mxu0 0.0
      %522 = vmatpush1.msra.mxu0 0.0
      %523 = vmatprep.subr.mxu0 0.0
      %524 = vmatpush1.msra.mxu0 0.0
      %525 = vmatprep.subr.mxu0 0.0
      %526 = vmatpush1.msra.mxu0 0.0
      %527 = vmatprep.subr.mxu0 0.0
      %528 = vmatpush1.msra.mxu0 0.0
      %529 = vmatprep.subr.mxu0 0.0
      %530 = vmatpush1.msra.mxu0 0.0
      %531 = vmatprep.subr.mxu0 0.0
      %532 = vmatpush1.msra.mxu0 0.0
      %533 = vmatprep.subr.mxu0 0.0
      %534 = vmatpush1.msra.mxu0 0.0
      %535 = vmatprep.subr.mxu0 0.0
      %536 = vmatpush1.msra.mxu0 0.0
      %537 = vmatprep.subr.mxu0 0.0
      %538 = vmatpush1.msra.mxu0 0.0
      %539 = vmatprep.subr.mxu0 0.0
      %540 = vmatpush1.msra.mxu0 0.0
      %541 = vmatprep.subr.mxu0 0.0
      %542 = vmatpush1.msra.mxu0 0.0
      %543 = vmatprep.subr.mxu0 0.0
      %544 = vmatpush1.msra.mxu0 0.0
      %545 = vmatprep.subr.mxu0 0.0
      %546 = vmatpush1.msra.mxu0 0.0
      %547 = vmatprep.subr.mxu0 0.0
      %548 = vmatpush1.msra.mxu0 0.0
      %549 = vmatprep.subr.mxu0 0.0
      %550 = vmatpush1.msra.mxu0 0.0
      %551 = vmatprep.subr.mxu0 0.0
      %552 = vmatpush1.msra.mxu0 0.0
      %553 = vmatprep.subr.mxu0 0.0
      %554 = vmatpush1.msra.mxu0 0.0
      %555 = vmatprep.mubr.f32.mxu0 0.0
      %556 = vmatmul.mubr.f32.gmra.mrb[0].mxu0 %v474
      %v557 = vpop.f32.mrb[0].mxu0
      %v558 = vadd.f32 0.0, %v557
      %v559 = vpop.f32.mrb[0].mxu0
      %560 = vmatprep.mubr.f32.mxu0 0.0
      %561 = vmatmul.mubr.f32.gmra.mrb[0].mxu0 %v477
      %v562 = vpop.f32.mrb[0].mxu0
      %v563 = vadd.f32 0.0, %v562
      %v564 = vpop.f32.mrb[0].mxu0
      %565 = vmatprep.mubr.f32.mxu0 0.0
      %566 = vmatmul.mubr.f32.gmra.mrb[0].mxu0 %v480
      %v567 = vpop.f32.mrb[0].mxu0
      %v568 = vadd.f32 0.0, %v567
      %v569 = vpop.f32.mrb[0].mxu0
      %570 = vmatprep.mubr.f32.mxu0 0.0
      %571 = vmatmul.mubr.f32.gmra.mrb[0].mxu0 %v483
      %v572 = vpop.f32.mrb[0].mxu0
      %v573 = vadd.f32 0.0, %v572
      %v574 = vpop.f32.mrb[0].mxu0
      %575 = vmatprep.mubr.f32.mxu0 0.0
      %576 = vmatmul.mubr.f32.gmra.mrb[0].mxu0 %v486
      %v577 = vpop.f32.mrb[0].mxu0
      %v578 = vadd.f32 0.0, %v577
      %v579 = vpop.f32.mrb[0].mxu0
      %580 = vmatprep.mubr.f32.mxu0 0.0
      %581 = vmatmul.mubr.f32.gmra.mrb[0].mxu0 %v489
      %v582 = vpop.f32.mrb[0].mxu0
      %v583 = vadd.f32 0.0, %v582
      %v584 = vpop.f32.mrb[0].mxu0
      %585 = vdwg.mxu0
      %v586 = vadd.f32 %v461, %v558
      %v587 = vadd.f32 %v462, %v563
      %v588 = vadd.f32 %v463, %v568
      %v589 = vadd.f32 %v464, %v573
      %v590 = vadd.f32 %v465, %v578
      %v591 = vadd.f32 %v466, %v583
      %592 = vst.msk [vmem:[#allocation2] sm:$0xff] %vm309, %v586
      %593 = vst.msk [vmem:[#allocation2 + $0x8] sm:$0xff] %vm309, %v587
      %594 = vst.msk [vmem:[#allocation2 + $0x10] sm:$0xff] %vm309, %v588
      %595 = vst.msk [vmem:[#allocation2 + $0x18] sm:$0xff] %vm309, %v589
      %596 = vst.msk [vmem:[#allocation2 + $0x20] sm:$0xff] %vm309, %v590
      %vm597 = vcmask 129024
      %598 = vst.msk [vmem:[#allocation2 + $0x28] sm:$0x7f] %vm597, %v591
      %v599 = vld [vmem:[#allocation2 + $0x2f] sm:$0x1]
      %v600 = vld [vmem:[%s289] sm:$0x1]
      %v602 = vsel %vm331, %v600, 0
      %604 = vmatprep.subr.mxu0 0.0
      %605 = vmatpush1.msra.mxu0 %v458
      %606 = vmatprep.subr.mxu0 0.0
      %607 = vmatpush1.msra.mxu0 %v459
      %608 = vmatprep.subr.mxu0 0.0
      %609 = vmatpush1.msra.mxu0 %v460
      %610 = vmatprep.subr.mxu0 0.0
      %611 = vmatpush1.msra.mxu0 0.0
      %612 = vmatprep.subr.mxu0 0.0
      %613 = vmatpush1.msra.mxu0 0.0
      %614 = vmatprep.subr.mxu0 0.0
      %615 = vmatpush1.msra.mxu0 0.0
      %616 = vmatprep.subr.mxu0 0.0
      %617 = vmatpush1.msra.mxu0 0.0
      %618 = vmatprep.subr.mxu0 0.0
      %619 = vmatpush1.msra.mxu0 0.0
      %620 = vmatprep.subr.mxu0 0.0
      %621 = vmatpush1.msra.mxu0 0.0
      %622 = vmatprep.subr.mxu0 0.0
      %623 = vmatpush1.msra.mxu0 0.0
      %624 = vmatprep.subr.mxu0 0.0
      %625 = vmatpush1.msra.mxu0 0.0
      %626 = vmatprep.subr.mxu0 0.0
      %627 = vmatpush1.msra.mxu0 0.0
      %628 = vmatprep.subr.mxu0 0.0
      %629 = vmatpush1.msra.mxu0 0.0
      %630 = vmatprep.subr.mxu0 0.0
      %631 = vmatpush1.msra.mxu0 0.0
      %632 = vmatprep.subr.mxu0 0.0
      %633 = vmatpush1.msra.mxu0 0.0
      %634 = vmatprep.subr.mxu0 0.0
      %635 = vmatpush1.msra.mxu0 0.0
      %636 = vmatprep.subr.mxu0 0.0
      %637 = vmatpush1.msra.mxu0 0.0
      %638 = vmatprep.subr.mxu0 0.0
      %639 = vmatpush1.msra.mxu0 0.0
      %640 = vmatprep.subr.mxu0 0.0
      %641 = vmatpush1.msra.mxu0 0.0
      %642 = vmatprep.subr.mxu0 0.0
      %643 = vmatpush1.msra.mxu0 0.0
      %644 = vmatprep.subr.mxu0 0.0
      %645 = vmatpush1.msra.mxu0 0.0
      %646 = vmatprep.subr.mxu0 0.0
      %647 = vmatpush1.msra.mxu0 0.0
      %648 = vmatprep.subr.mxu0 0.0
      %649 = vmatpush1.msra.mxu0 0.0
      %650 = vmatprep.subr.mxu0 0.0
      %651 = vmatpush1.msra.mxu0 0.0
      %652 = vmatprep.subr.mxu0 0.0
      %653 = vmatpush1.msra.mxu0 0.0
      %654 = vmatprep.subr.mxu0 0.0
      %655 = vmatpush1.msra.mxu0 0.0
      %656 = vmatprep.subr.mxu0 0.0
      %657 = vmatpush1.msra.mxu0 0.0
      %658 = vmatprep.subr.mxu0 0.0
      %659 = vmatpush1.msra.mxu0 0.0
      %660 = vmatprep.subr.mxu0 0.0
      %661 = vmatpush1.msra.mxu0 0.0
      %662 = vmatprep.subr.mxu0 0.0
      %663 = vmatpush1.msra.mxu0 0.0
      %664 = vmatprep.subr.mxu0 0.0
      %665 = vmatpush1.msra.mxu0 0.0
      %666 = vmatprep.subr.mxu0 0.0
      %667 = vmatpush1.msra.mxu0 0.0
      %668 = vmatprep.mubr.f32.mxu0 0.0
      %669 = vmatmul.mubr.f32.gmra.mrb[0].mxu0 %v602
      %v670 = vpop.f32.mrb[0].mxu0
      %v671 = vadd.f32 0.0, %v670
      %v672 = vpop.f32.mrb[0].mxu0
      %673 = vdwg.mxu0
      %v674 = vadd.f32 %v599, %v671
      %vm675 = vcmask 122880
      %676 = vst.msk [vmem:[#allocation2 + $0x2f] sm:$0x1] %vm675, %v674
      %s677 = scalar_lea.vmem %s2, 48
      %v678 = vld [vmem:[%s677] sm:$0xff]
      %v679 = vld [vmem:[%s677 + $0x8] sm:$0xff]
      %v680 = vld [vmem:[%s677 + $0x10] sm:$0xff]
      %v681 = vld [vmem:[#allocation2] sm:$0xff]
      %v682 = vld [vmem:[#allocation2 + $0x8] sm:$0xff]
      %v683 = vld [vmem:[#allocation2 + $0x10] sm:$0xff]
      %v684 = vld [vmem:[#allocation2 + $0x18] sm:$0xff]
      %v685 = vld [vmem:[#allocation2 + $0x20] sm:$0xff]
      %v686 = vld [vmem:[#allocation2 + $0x28] sm:$0x3f]
      %v687 = vld [vmem:[%s274 + $0x2] sm:$0xff]
      %v688 = vld [vmem:[%s274 + $0xa] sm:$0xff]
      %v689 = vld [vmem:[%s274 + $0x12] sm:$0xff]
      %v690 = vld [vmem:[%s274 + $0x1a] sm:$0xff]
      %v691 = vld [vmem:[%s274 + $0x22] sm:$0xff]
      %v692 = vld [vmem:[%s274 + $0x2a] sm:$0x3f]
      %v694 = vsel %vm331, %v687, 0
      %v697 = vsel %vm331, %v688, 0
      %v700 = vsel %vm331, %v689, 0
      %v703 = vsel %vm331, %v690, 0
      %v706 = vsel %vm331, %v691, 0
      %v709 = vsel %vm331, %v692, 0
      %711 = vmatprep.subr.mxu0 0.0
      %712 = vmatpush1.msra.mxu0 %v678
      %713 = vmatprep.subr.mxu0 0.0
      %714 = vmatpush1.msra.mxu0 %v679
      %715 = vmatprep.subr.mxu0 0.0
      %716 = vmatpush1.msra.mxu0 %v680
      %717 = vmatprep.subr.mxu0 0.0
      %718 = vmatpush1.msra.mxu0 0.0
      %719 = vmatprep.subr.mxu0 0.0
      %720 = vmatpush1.msra.mxu0 0.0
      %721 = vmatprep.subr.mxu0 0.0
      %722 = vmatpush1.msra.mxu0 0.0
      %723 = vmatprep.subr.mxu0 0.0
      %724 = vmatpush1.msra.mxu0 0.0
      %725 = vmatprep.subr.mxu0 0.0
      %726 = vmatpush1.msra.mxu0 0.0
      %727 = vmatprep.subr.mxu0 0.0
      %728 = vmatpush1.msra.mxu0 0.0
      %729 = vmatprep.subr.mxu0 0.0
      %730 = vmatpush1.msra.mxu0 0.0
      %731 = vmatprep.subr.mxu0 0.0
      %732 = vmatpush1.msra.mxu0 0.0
      %733 = vmatprep.subr.mxu0 0.0
      %734 = vmatpush1.msra.mxu0 0.0
      %735 = vmatprep.subr.mxu0 0.0
      %736 = vmatpush1.msra.mxu0 0.0
      %737 = vmatprep.subr.mxu0 0.0
      %738 = vmatpush1.msra.mxu0 0.0
      %739 = vmatprep.subr.mxu0 0.0
      %740 = vmatpush1.msra.mxu0 0.0
      %741 = vmatprep.subr.mxu0 0.0
      %742 = vmatpush1.msra.mxu0 0.0
      %743 = vmatprep.subr.mxu0 0.0
      %744 = vmatpush1.msra.mxu0 0.0
      %745 = vmatprep.subr.mxu0 0.0
      %746 = vmatpush1.msra.mxu0 0.0
      %747 = vmatprep.subr.mxu0 0.0
      %748 = vmatpush1.msra.mxu0 0.0
      %749 = vmatprep.subr.mxu0 0.0
      %750 = vmatpush1.msra.mxu0 0.0
      %751 = vmatprep.subr.mxu0 0.0
      %752 = vmatpush1.msra.mxu0 0.0
      %753 = vmatprep.subr.mxu0 0.0
      %754 = vmatpush1.msra.mxu0 0.0
      %755 = vmatprep.subr.mxu0 0.0
      %756 = vmatpush1.msra.mxu0 0.0
      %757 = vmatprep.subr.mxu0 0.0
      %758 = vmatpush1.msra.mxu0 0.0
      %759 = vmatprep.subr.mxu0 0.0
      %760 = vmatpush1.msra.mxu0 0.0
      %761 = vmatprep.subr.mxu0 0.0
      %762 = vmatpush1.msra.mxu0 0.0
      %763 = vmatprep.subr.mxu0 0.0
      %764 = vmatpush1.msra.mxu0 0.0
      %765 = vmatprep.subr.mxu0 0.0
      %766 = vmatpush1.msra.mxu0 0.0
      %767 = vmatprep.subr.mxu0 0.0
      %768 = vmatpush1.msra.mxu0 0.0
      %769 = vmatprep.subr.mxu0 0.0
      %770 = vmatpush1.msra.mxu0 0.0
      %771 = vmatprep.subr.mxu0 0.0
      %772 = vmatpush1.msra.mxu0 0.0
      %773 = vmatprep.subr.mxu0 0.0
      %774 = vmatpush1.msra.mxu0 0.0
      %775 = vmatprep.mubr.f32.mxu0 0.0
      %776 = vmatmul.mubr.f32.gmra.mrb[0].mxu0 %v694
      %v777 = vpop.f32.mrb[0].mxu0
      %v778 = vadd.f32 0.0, %v777
      %v779 = vpop.f32.mrb[0].mxu0
      %780 = vmatprep.mubr.f32.mxu0 0.0
      %781 = vmatmul.mubr.f32.gmra.mrb[0].mxu0 %v697
      %v782 = vpop.f32.mrb[0].mxu0
      %v783 = vadd.f32 0.0, %v782
      %v784 = vpop.f32.mrb[0].mxu0
      %785 = vmatprep.mubr.f32.mxu0 0.0
      %786 = vmatmul.mubr.f32.gmra.mrb[0].mxu0 %v700
      %v787 = vpop.f32.mrb[0].mxu0
      %v788 = vadd.f32 0.0, %v787
      %v789 = vpop.f32.mrb[0].mxu0
      %790 = vmatprep.mubr.f32.mxu0 0.0
      %791 = vmatmul.mubr.f32.gmra.mrb[0].mxu0 %v703
      %v792 = vpop.f32.mrb[0].mxu0
      %v793 = vadd.f32 0.0, %v792
      %v794 = vpop.f32.mrb[0].mxu0
      %795 = vmatprep.mubr.f32.mxu0 0.0
      %796 = vmatmul.mubr.f32.gmra.mrb[0].mxu0 %v706
      %v797 = vpop.f32.mrb[0].mxu0
      %v798 = vadd.f32 0.0, %v797
      %v799 = vpop.f32.mrb[0].mxu0
      %800 = vmatprep.mubr.f32.mxu0 0.0
      %801 = vmatmul.mubr.f32.gmra.mrb[0].mxu0 %v709
      %v802 = vpop.f32.mrb[0].mxu0
      %v803 = vadd.f32 0.0, %v802
      %v804 = vpop.f32.mrb[0].mxu0
      %805 = vdwg.mxu0
      %v806 = vadd.f32 %v681, %v778
      %v807 = vadd.f32 %v682, %v783
      %v808 = vadd.f32 %v683, %v788
      %v809 = vadd.f32 %v684, %v793
      %v810 = vadd.f32 %v685, %v798
      %v811 = vadd.f32 %v686, %v803
      %812 = vst.msk [vmem:[#allocation2] sm:$0xff] %vm309, %v806
      %813 = vst.msk [vmem:[#allocation2 + $0x8] sm:$0xff] %vm309, %v807
      %814 = vst.msk [vmem:[#allocation2 + $0x10] sm:$0xff] %vm309, %v808
      %815 = vst.msk [vmem:[#allocation2 + $0x18] sm:$0xff] %vm309, %v809
      %816 = vst.msk [vmem:[#allocation2 + $0x20] sm:$0xff] %vm309, %v810
      %vm817 = vcmask 128000
      %818 = vst.msk [vmem:[#allocation2 + $0x28] sm:$0x3f] %vm817, %v811
      %v819 = vld [vmem:[#allocation2 + $0x2e] sm:$0x3]
      %v820 = vld [vmem:[%s289] sm:$0x3]
      %v822 = vsel %vm331, %v820, 0
      %824 = vmatprep.subr.mxu0 0.0
      %825 = vmatpush1.msra.mxu0 %v678
      %826 = vmatprep.subr.mxu0 0.0
      %827 = vmatpush1.msra.mxu0 %v679
      %828 = vmatprep.subr.mxu0 0.0
      %829 = vmatpush1.msra.mxu0 %v680
      %830 = vmatprep.subr.mxu0 0.0
      %831 = vmatpush1.msra.mxu0 0.0
      %832 = vmatprep.subr.mxu0 0.0
      %833 = vmatpush1.msra.mxu0 0.0
      %834 = vmatprep.subr.mxu0 0.0
      %835 = vmatpush1.msra.mxu0 0.0
      %836 = vmatprep.subr.mxu0 0.0
      %837 = vmatpush1.msra.mxu0 0.0
      %838 = vmatprep.subr.mxu0 0.0
      %839 = vmatpush1.msra.mxu0 0.0
      %840 = vmatprep.subr.mxu0 0.0
      %841 = vmatpush1.msra.mxu0 0.0
      %842 = vmatprep.subr.mxu0 0.0
      %843 = vmatpush1.msra.mxu0 0.0
      %844 = vmatprep.subr.mxu0 0.0
      %845 = vmatpush1.msra.mxu0 0.0
      %846 = vmatprep.subr.mxu0 0.0
      %847 = vmatpush1.msra.mxu0 0.0
      %848 = vmatprep.subr.mxu0 0.0
      %849 = vmatpush1.msra.mxu0 0.0
      %850 = vmatprep.subr.mxu0 0.0
      %851 = vmatpush1.msra.mxu0 0.0
      %852 = vmatprep.subr.mxu0 0.0
      %853 = vmatpush1.msra.mxu0 0.0
      %854 = vmatprep.subr.mxu0 0.0
      %855 = vmatpush1.msra.mxu0 0.0
      %856 = vmatprep.subr.mxu0 0.0
      %857 = vmatpush1.msra.mxu0 0.0
      %858 = vmatprep.subr.mxu0 0.0
      %859 = vmatpush1.msra.mxu0 0.0
      %860 = vmatprep.subr.mxu0 0.0
      %861 = vmatpush1.msra.mxu0 0.0
      %862 = vmatprep.subr.mxu0 0.0
      %863 = vmatpush1.msra.mxu0 0.0
      %864 = vmatprep.subr.mxu0 0.0
      %865 = vmatpush1.msra.mxu0 0.0
      %866 = vmatprep.subr.mxu0 0.0
      %867 = vmatpush1.msra.mxu0 0.0
      %868 = vmatprep.subr.mxu0 0.0
      %869 = vmatpush1.msra.mxu0 0.0
      %870 = vmatprep.subr.mxu0 0.0
      %871 = vmatpush1.msra.mxu0 0.0
      %872 = vmatprep.subr.mxu0 0.0
      %873 = vmatpush1.msra.mxu0 0.0
      %874 = vmatprep.subr.mxu0 0.0
      %875 = vmatpush1.msra.mxu0 0.0
      %876 = vmatprep.subr.mxu0 0.0
      %877 = vmatpush1.msra.mxu0 0.0
      %878 = vmatprep.subr.mxu0 0.0
      %879 = vmatpush1.msra.mxu0 0.0
      %880 = vmatprep.subr.mxu0 0.0
      %881 = vmatpush1.msra.mxu0 0.0
      %882 = vmatprep.subr.mxu0 0.0
      %883 = vmatpush1.msra.mxu0 0.0
      %884 = vmatprep.subr.mxu0 0.0
      %885 = vmatpush1.msra.mxu0 0.0
      %886 = vmatprep.subr.mxu0 0.0
      %887 = vmatpush1.msra.mxu0 0.0
      %888 = vmatprep.mubr.f32.mxu0 0.0
      %889 = vmatmul.mubr.f32.gmra.mrb[0].mxu0 %v822
      %v890 = vpop.f32.mrb[0].mxu0
      %v891 = vadd.f32 0.0, %v890
      %v892 = vpop.f32.mrb[0].mxu0
      %893 = vdwg.mxu0
      %v894 = vadd.f32 %v819, %v891
      %vm895 = vcmask 123904
      %896 = vst.msk [vmem:[#allocation2 + $0x2e] sm:$0x3] %vm895, %v894
      %s897 = scalar_lea.vmem %s2, 72
      %v898 = vld [vmem:[%s897] sm:$0xff]
      %v899 = vld [vmem:[%s897 + $0x8] sm:$0xff]
      %v900 = vld [vmem:[%s897 + $0x10] sm:$0xff]
      %v901 = vld [vmem:[#allocation2] sm:$0xff]
      %v902 = vld [vmem:[#allocation2 + $0x8] sm:$0xff]
      %v903 = vld [vmem:[#allocation2 + $0x10] sm:$0xff]
      %v904 = vld [vmem:[#allocation2 + $0x18] sm:$0xff]
      %v905 = vld [vmem:[#allocation2 + $0x20] sm:$0xff]
      %v906 = vld [vmem:[#allocation2 + $0x28] sm:$0x1f]
      %v907 = vld [vmem:[%s274 + $0x3] sm:$0xff]
      %v908 = vld [vmem:[%s274 + $0xb] sm:$0xff]
      %v909 = vld [vmem:[%s274 + $0x13] sm:$0xff]
      %v910 = vld [vmem:[%s274 + $0x1b] sm:$0xff]
      %v911 = vld [vmem:[%s274 + $0x23] sm:$0xff]
      %v912 = vld [vmem:[%s274 + $0x2b] sm:$0x1f]
      %v914 = vsel %vm331, %v907, 0
      %v917 = vsel %vm331, %v908, 0
      %v920 = vsel %vm331, %v909, 0
      %v923 = vsel %vm331, %v910, 0
      %v926 = vsel %vm331, %v911, 0
      %v929 = vsel %vm331, %v912, 0
      %931 = vmatprep.subr.mxu0 0.0
      %932 = vmatpush1.msra.mxu0 %v898
      %933 = vmatprep.subr.mxu0 0.0
      %934 = vmatpush1.msra.mxu0 %v899
      %935 = vmatprep.subr.mxu0 0.0
      %936 = vmatpush1.msra.mxu0 %v900
      %937 = vmatprep.subr.mxu0 0.0
      %938 = vmatpush1.msra.mxu0 0.0
      %939 = vmatprep.subr.mxu0 0.0
      %940 = vmatpush1.msra.mxu0 0.0
      %941 = vmatprep.subr.mxu0 0.0
      %942 = vmatpush1.msra.mxu0 0.0
      %943 = vmatprep.subr.mxu0 0.0
      %944 = vmatpush1.msra.mxu0 0.0
      %945 = vmatprep.subr.mxu0 0.0
      %946 = vmatpush1.msra.mxu0 0.0
      %947 = vmatprep.subr.mxu0 0.0
      %948 = vmatpush1.msra.mxu0 0.0
      %949 = vmatprep.subr.mxu0 0.0
      %950 = vmatpush1.msra.mxu0 0.0
      %951 = vmatprep.subr.mxu0 0.0
      %952 = vmatpush1.msra.mxu0 0.0
      %953 = vmatprep.subr.mxu0 0.0
      %954 = vmatpush1.msra.mxu0 0.0
      %955 = vmatprep.subr.mxu0 0.0
      %956 = vmatpush1.msra.mxu0 0.0
      %957 = vmatprep.subr.mxu0 0.0
      %958 = vmatpush1.msra.mxu0 0.0
      %959 = vmatprep.subr.mxu0 0.0
      %960 = vmatpush1.msra.mxu0 0.0
      %961 = vmatprep.subr.mxu0 0.0
      %962 = vmatpush1.msra.mxu0 0.0
      %963 = vmatprep.subr.mxu0 0.0
      %964 = vmatpush1.msra.mxu0 0.0
      %965 = vmatprep.subr.mxu0 0.0
      %966 = vmatpush1.msra.mxu0 0.0
      %967 = vmatprep.subr.mxu0 0.0
      %968 = vmatpush1.msra.mxu0 0.0
      %969 = vmatprep.subr.mxu0 0.0
      %970 = vmatpush1.msra.mxu0 0.0
      %971 = vmatprep.subr.mxu0 0.0
      %972 = vmatpush1.msra.mxu0 0.0
      %973 = vmatprep.subr.mxu0 0.0
      %974 = vmatpush1.msra.mxu0 0.0
      %975 = vmatprep.subr.mxu0 0.0
      %976 = vmatpush1.msra.mxu0 0.0
      %977 = vmatprep.subr.mxu0 0.0
      %978 = vmatpush1.msra.mxu0 0.0
      %979 = vmatprep.subr.mxu0 0.0
      %980 = vmatpush1.msra.mxu0 0.0
      %981 = vmatprep.subr.mxu0 0.0
      %982 = vmatpush1.msra.mxu0 0.0
      %983 = vmatprep.subr.mxu0 0.0
      %984 = vmatpush1.msra.mxu0 0.0
      %985 = vmatprep.subr.mxu0 0.0
      %986 = vmatpush1.msra.mxu0 0.0
      %987 = vmatprep.subr.mxu0 0.0
      %988 = vmatpush1.msra.mxu0 0.0
      %989 = vmatprep.subr.mxu0 0.0
      %990 = vmatpush1.msra.mxu0 0.0
      %991 = vmatprep.subr.mxu0 0.0
      %992 = vmatpush1.msra.mxu0 0.0
      %993 = vmatprep.subr.mxu0 0.0
      %994 = vmatpush1.msra.mxu0 0.0
      %995 = vmatprep.mubr.f32.mxu0 0.0
      %996 = vmatmul.mubr.f32.gmra.mrb[0].mxu0 %v914
      %v997 = vpop.f32.mrb[0].mxu0
      %v998 = vadd.f32 0.0, %v997
      %v999 = vpop.f32.mrb[0].mxu0
      %1000 = vmatprep.mubr.f32.mxu0 0.0
      %1001 = vmatmul.mubr.f32.gmra.mrb[0].mxu0 %v917
      %v1002 = vpop.f32.mrb[0].mxu0
      %v1003 = vadd.f32 0.0, %v1002
      %v1004 = vpop.f32.mrb[0].mxu0
      %1005 = vmatprep.mubr.f32.mxu0 0.0
      %1006 = vmatmul.mubr.f32.gmra.mrb[0].mxu0 %v920
      %v1007 = vpop.f32.mrb[0].mxu0
      %v1008 = vadd.f32 0.0, %v1007
      %v1009 = vpop.f32.mrb[0].mxu0
      %1010 = vmatprep.mubr.f32.mxu0 0.0
      %1011 = vmatmul.mubr.f32.gmra.mrb[0].mxu0 %v923
      %v1012 = vpop.f32.mrb[0].mxu0
      %v1013 = vadd.f32 0.0, %v1012
      %v1014 = vpop.f32.mrb[0].mxu0
      %1015 = vmatprep.mubr.f32.mxu0 0.0
      %1016 = vmatmul.mubr.f32.gmra.mrb[0].mxu0 %v926
      %v1017 = vpop.f32.mrb[0].mxu0
      %v1018 = vadd.f32 0.0, %v1017
      %v1019 = vpop.f32.mrb[0].mxu0
      %1020 = vmatprep.mubr.f32.mxu0 0.0
      %1021 = vmatmul.mubr.f32.gmra.mrb[0].mxu0 %v929
      %v1022 = vpop.f32.mrb[0].mxu0
      %v1023 = vadd.f32 0.0, %v1022
      %v1024 = vpop.f32.mrb[0].mxu0
      %1025 = vdwg.mxu0
      %v1026 = vadd.f32 %v901, %v998
      %v1027 = vadd.f32 %v902, %v1003
      %v1028 = vadd.f32 %v903, %v1008
      %v1029 = vadd.f32 %v904, %v1013
      %v1030 = vadd.f32 %v905, %v1018
      %v1031 = vadd.f32 %v906, %v1023
      %1032 = vst.msk [vmem:[#allocation2] sm:$0xff] %vm309, %v1026
      %1033 = vst.msk [vmem:[#allocation2 + $0x8] sm:$0xff] %vm309, %v1027
      %1034 = vst.msk [vmem:[#allocation2 + $0x10] sm:$0xff] %vm309, %v1028
      %1035 = vst.msk [vmem:[#allocation2 + $0x18] sm:$0xff] %vm309, %v1029
      %1036 = vst.msk [vmem:[#allocation2 + $0x20] sm:$0xff] %vm309, %v1030
      %vm1037 = vcmask 126976
      %1038 = vst.msk [vmem:[#allocation2 + $0x28] sm:$0x1f] %vm1037, %v1031
      %v1039 = vld [vmem:[#allocation2 + $0x2d] sm:$0x7]
      %v1040 = vld [vmem:[%s289] sm:$0x7]
      %v1042 = vsel %vm331, %v1040, 0
      %1044 = vmatprep.subr.mxu0 0.0
      %1045 = vmatpush1.msra.mxu0 %v898
      %1046 = vmatprep.subr.mxu0 0.0
      %1047 = vmatpush1.msra.mxu0 %v899
      %1048 = vmatprep.subr.mxu0 0.0
      %1049 = vmatpush1.msra.mxu0 %v900
      %1050 = vmatprep.subr.mxu0 0.0
      %1051 = vmatpush1.msra.mxu0 0.0
      %1052 = vmatprep.subr.mxu0 0.0
      %1053 = vmatpush1.msra.mxu0 0.0
      %1054 = vmatprep.subr.mxu0 0.0
      %1055 = vmatpush1.msra.mxu0 0.0
      %1056 = vmatprep.subr.mxu0 0.0
      %1057 = vmatpush1.msra.mxu0 0.0
      %1058 = vmatprep.subr.mxu0 0.0
      %1059 = vmatpush1.msra.mxu0 0.0
      %1060 = vmatprep.subr.mxu0 0.0
      %1061 = vmatpush1.msra.mxu0 0.0
      %1062 = vmatprep.subr.mxu0 0.0
      %1063 = vmatpush1.msra.mxu0 0.0
      %1064 = vmatprep.subr.mxu0 0.0
      %1065 = vmatpush1.msra.mxu0 0.0
      %1066 = vmatprep.subr.mxu0 0.0
      %1067 = vmatpush1.msra.mxu0 0.0
      %1068 = vmatprep.subr.mxu0 0.0
      %1069 = vmatpush1.msra.mxu0 0.0
      %1070 = vmatprep.subr.mxu0 0.0
      %1071 = vmatpush1.msra.mxu0 0.0
      %1072 = vmatprep.subr.mxu0 0.0
      %1073 = vmatpush1.msra.mxu0 0.0
      %1074 = vmatprep.subr.mxu0 0.0
      %1075 = vmatpush1.msra.mxu0 0.0
      %1076 = vmatprep.subr.mxu0 0.0
      %1077 = vmatpush1.msra.mxu0 0.0
      %1078 = vmatprep.subr.mxu0 0.0
      %1079 = vmatpush1.msra.mxu0 0.0
      %1080 = vmatprep.subr.mxu0 0.0
      %1081 = vmatpush1.msra.mxu0 0.0
      %1082 = vmatprep.subr.mxu0 0.0
      %1083 = vmatpush1.msra.mxu0 0.0
      %1084 = vmatprep.subr.mxu0 0.0
      %1085 = vmatpush1.msra.mxu0 0.0
      %1086 = vmatprep.subr.mxu0 0.0
      %1087 = vmatpush1.msra.mxu0 0.0
      %1088 = vmatprep.subr.mxu0 0.0
      %1089 = vmatpush1.msra.mxu0 0.0
      %1090 = vmatprep.subr.mxu0 0.0
      %1091 = vmatpush1.msra.mxu0 0.0
      %1092 = vmatprep.subr.mxu0 0.0
      %1093 = vmatpush1.msra.mxu0 0.0
      %1094 = vmatprep.subr.mxu0 0.0
      %1095 = vmatpush1.msra.mxu0 0.0
      %1096 = vmatprep.subr.mxu0 0.0
      %1097 = vmatpush1.msra.mxu0 0.0
      %1098 = vmatprep.subr.mxu0 0.0
      %1099 = vmatpush1.msra.mxu0 0.0
      %1100 = vmatprep.subr.mxu0 0.0
      %1101 = vmatpush1.msra.mxu0 0.0
      %1102 = vmatprep.subr.mxu0 0.0
      %1103 = vmatpush1.msra.mxu0 0.0
      %1104 = vmatprep.subr.mxu0 0.0
      %1105 = vmatpush1.msra.mxu0 0.0
      %1106 = vmatprep.subr.mxu0 0.0
      %1107 = vmatpush1.msra.mxu0 0.0
      %1108 = vmatprep.mubr.f32.mxu0 0.0
      %1109 = vmatmul.mubr.f32.gmra.mrb[0].mxu0 %v1042
      %v1110 = vpop.f32.mrb[0].mxu0
      %v1111 = vadd.f32 0.0, %v1110
      %v1112 = vpop.f32.mrb[0].mxu0
      %1113 = vdwg.mxu0
      %v1114 = vadd.f32 %v1039, %v1111
      %vm1115 = vcmask 124928
      %1116 = vst.msk [vmem:[#allocation2 + $0x2d] sm:$0x7] %vm1115, %v1114
      %s1117 = scalar_lea.vmem %s2, 96
      %v1118 = vld [vmem:[%s1117] sm:$0xff]
      %v1119 = vld [vmem:[%s1117 + $0x8] sm:$0xff]
      %v1120 = vld [vmem:[%s1117 + $0x10] sm:$0xff]
      %v1121 = vld [vmem:[#allocation2] sm:$0xff]
      %v1122 = vld [vmem:[#allocation2 + $0x8] sm:$0xff]
      %v1123 = vld [vmem:[#allocation2 + $0x10] sm:$0xff]
      %v1124 = vld [vmem:[#allocation2 + $0x18] sm:$0xff]
      %v1125 = vld [vmem:[#allocation2 + $0x20] sm:$0xff]
      %v1126 = vld [vmem:[#allocation2 + $0x28] sm:$0xf]
      %v1127 = vld [vmem:[%s274 + $0x4] sm:$0xff]
      %v1128 = vld [vmem:[%s274 + $0xc] sm:$0xff]
      %v1129 = vld [vmem:[%s274 + $0x14] sm:$0xff]
      %v1130 = vld [vmem:[%s274 + $0x1c] sm:$0xff]
      %v1131 = vld [vmem:[%s274 + $0x24] sm:$0xff]
      %v1132 = vld [vmem:[%s274 + $0x2c] sm:$0xf]
      %v1134 = vsel %vm331, %v1127, 0
      %v1137 = vsel %vm331, %v1128, 0
      %v1140 = vsel %vm331, %v1129, 0
      %v1143 = vsel %vm331, %v1130, 0
      %v1146 = vsel %vm331, %v1131, 0
      %v1149 = vsel %vm331, %v1132, 0
      %1151 = vmatprep.subr.mxu0 0.0
      %1152 = vmatpush1.msra.mxu0 %v1118
      %1153 = vmatprep.subr.mxu0 0.0
      %1154 = vmatpush1.msra.mxu0 %v1119
      %1155 = vmatprep.subr.mxu0 0.0
      %1156 = vmatpush1.msra.mxu0 %v1120
      %1157 = vmatprep.subr.mxu0 0.0
      %1158 = vmatpush1.msra.mxu0 0.0
      %1159 = vmatprep.subr.mxu0 0.0
      %1160 = vmatpush1.msra.mxu0 0.0
      %1161 = vmatprep.subr.mxu0 0.0
      %1162 = vmatpush1.msra.mxu0 0.0
      %1163 = vmatprep.subr.mxu0 0.0
      %1164 = vmatpush1.msra.mxu0 0.0
      %1165 = vmatprep.subr.mxu0 0.0
      %1166 = vmatpush1.msra.mxu0 0.0
      %1167 = vmatprep.subr.mxu0 0.0
      %1168 = vmatpush1.msra.mxu0 0.0
      %1169 = vmatprep.subr.mxu0 0.0
      %1170 = vmatpush1.msra.mxu0 0.0
      %1171 = vmatprep.subr.mxu0 0.0
      %1172 = vmatpush1.msra.mxu0 0.0
      %1173 = vmatprep.subr.mxu0 0.0
      %1174 = vmatpush1.msra.mxu0 0.0
      %1175 = vmatprep.subr.mxu0 0.0
      %1176 = vmatpush1.msra.mxu0 0.0
      %1177 = vmatprep.subr.mxu0 0.0
      %1178 = vmatpush1.msra.mxu0 0.0
      %1179 = vmatprep.subr.mxu0 0.0
      %1180 = vmatpush1.msra.mxu0 0.0
      %1181 = vmatprep.subr.mxu0 0.0
      %1182 = vmatpush1.msra.mxu0 0.0
      %1183 = vmatprep.subr.mxu0 0.0
      %1184 = vmatpush1.msra.mxu0 0.0
      %1185 = vmatprep.subr.mxu0 0.0
      %1186 = vmatpush1.msra.mxu0 0.0
      %1187 = vmatprep.subr.mxu0 0.0
      %1188 = vmatpush1.msra.mxu0 0.0
      %1189 = vmatprep.subr.mxu0 0.0
      %1190 = vmatpush1.msra.mxu0 0.0
      %1191 = vmatprep.subr.mxu0 0.0
      %1192 = vmatpush1.msra.mxu0 0.0
      %1193 = vmatprep.subr.mxu0 0.0
      %1194 = vmatpush1.msra.mxu0 0.0
      %1195 = vmatprep.subr.mxu0 0.0
      %1196 = vmatpush1.msra.mxu0 0.0
      %1197 = vmatprep.subr.mxu0 0.0
      %1198 = vmatpush1.msra.mxu0 0.0
      %1199 = vmatprep.subr.mxu0 0.0
      %1200 = vmatpush1.msra.mxu0 0.0
      %1201 = vmatprep.subr.mxu0 0.0
      %1202 = vmatpush1.msra.mxu0 0.0
      %1203 = vmatprep.subr.mxu0 0.0
      %1204 = vmatpush1.msra.mxu0 0.0
      %1205 = vmatprep.subr.mxu0 0.0
      %1206 = vmatpush1.msra.mxu0 0.0
      %1207 = vmatprep.subr.mxu0 0.0
      %1208 = vmatpush1.msra.mxu0 0.0
      %1209 = vmatprep.subr.mxu0 0.0
      %1210 = vmatpush1.msra.mxu0 0.0
      %1211 = vmatprep.subr.mxu0 0.0
      %1212 = vmatpush1.msra.mxu0 0.0
      %1213 = vmatprep.subr.mxu0 0.0
      %1214 = vmatpush1.msra.mxu0 0.0
      %1215 = vmatprep.mubr.f32.mxu0 0.0
      %1216 = vmatmul.mubr.f32.gmra.mrb[0].mxu0 %v1134
      %v1217 = vpop.f32.mrb[0].mxu0
      %v1218 = vadd.f32 0.0, %v1217
      %v1219 = vpop.f32.mrb[0].mxu0
      %1220 = vmatprep.mubr.f32.mxu0 0.0
      %1221 = vmatmul.mubr.f32.gmra.mrb[0].mxu0 %v1137
      %v1222 = vpop.f32.mrb[0].mxu0
      %v1223 = vadd.f32 0.0, %v1222
      %v1224 = vpop.f32.mrb[0].mxu0
      %1225 = vmatprep.mubr.f32.mxu0 0.0
      %1226 = vmatmul.mubr.f32.gmra.mrb[0].mxu0 %v1140
      %v1227 = vpop.f32.mrb[0].mxu0
      %v1228 = vadd.f32 0.0, %v1227
      %v1229 = vpop.f32.mrb[0].mxu0
      %1230 = vmatprep.mubr.f32.mxu0 0.0
      %1231 = vmatmul.mubr.f32.gmra.mrb[0].mxu0 %v1143
      %v1232 = vpop.f32.mrb[0].mxu0
      %v1233 = vadd.f32 0.0, %v1232
      %v1234 = vpop.f32.mrb[0].mxu0
      %1235 = vmatprep.mubr.f32.mxu0 0.0
      %1236 = vmatmul.mubr.f32.gmra.mrb[0].mxu0 %v1146
      %v1237 = vpop.f32.mrb[0].mxu0
      %v1238 = vadd.f32 0.0, %v1237
      %v1239 = vpop.f32.mrb[0].mxu0
      %1240 = vmatprep.mubr.f32.mxu0 0.0
      %1241 = vmatmul.mubr.f32.gmra.mrb[0].mxu0 %v1149
      %v1242 = vpop.f32.mrb[0].mxu0
      %v1243 = vadd.f32 0.0, %v1242
      %v1244 = vpop.f32.mrb[0].mxu0
      %1245 = vdwg.mxu0
      %v1246 = vadd.f32 %v1121, %v1218
      %v1247 = vadd.f32 %v1122, %v1223
      %v1248 = vadd.f32 %v1123, %v1228
      %v1249 = vadd.f32 %v1124, %v1233
      %v1250 = vadd.f32 %v1125, %v1238
      %v1251 = vadd.f32 %v1126, %v1243
      %1252 = vst.msk [vmem:[#allocation2] sm:$0xff] %vm309, %v1246
      %1253 = vst.msk [vmem:[#allocation2 + $0x8] sm:$0xff] %vm309, %v1247
      %1254 = vst.msk [vmem:[#allocation2 + $0x10] sm:$0xff] %vm309, %v1248
      %1255 = vst.msk [vmem:[#allocation2 + $0x18] sm:$0xff] %vm309, %v1249
      %1256 = vst.msk [vmem:[#allocation2 + $0x20] sm:$0xff] %vm309, %v1250
      %vm1257 = vcmask 125952
      %1258 = vst.msk [vmem:[#allocation2 + $0x28] sm:$0xf] %vm1257, %v1251
      %v1259 = vld [vmem:[#allocation2 + $0x2c] sm:$0xf]
      %v1260 = vld [vmem:[%s289] sm:$0xf]
      %v1262 = vsel %vm331, %v1260, 0
      %1264 = vmatprep.subr.mxu0 0.0
      %1265 = vmatpush1.msra.mxu0 %v1118
      %1266 = vmatprep.subr.mxu0 0.0
      %1267 = vmatpush1.msra.mxu0 %v1119
      %1268 = vmatprep.subr.mxu0 0.0
      %1269 = vmatpush1.msra.mxu0 %v1120
      %1270 = vmatprep.subr.mxu0 0.0
      %1271 = vmatpush1.msra.mxu0 0.0
      %1272 = vmatprep.subr.mxu0 0.0
      %1273 = vmatpush1.msra.mxu0 0.0
      %1274 = vmatprep.subr.mxu0 0.0
      %1275 = vmatpush1.msra.mxu0 0.0
      %1276 = vmatprep.subr.mxu0 0.0
      %1277 = vmatpush1.msra.mxu0 0.0
      %1278 = vmatprep.subr.mxu0 0.0
      %1279 = vmatpush1.msra.mxu0 0.0
      %1280 = vmatprep.subr.mxu0 0.0
      %1281 = vmatpush1.msra.mxu0 0.0
      %1282 = vmatprep.subr.mxu0 0.0
      %1283 = vmatpush1.msra.mxu0 0.0
      %1284 = vmatprep.subr.mxu0 0.0
      %1285 = vmatpush1.msra.mxu0 0.0
      %1286 = vmatprep.subr.mxu0 0.0
      %1287 = vmatpush1.msra.mxu0 0.0
      %1288 = vmatprep.subr.mxu0 0.0
      %1289 = vmatpush1.msra.mxu0 0.0
      %1290 = vmatprep.subr.mxu0 0.0
      %1291 = vmatpush1.msra.mxu0 0.0
      %1292 = vmatprep.subr.mxu0 0.0
      %1293 = vmatpush1.msra.mxu0 0.0
      %1294 = vmatprep.subr.mxu0 0.0
      %1295 = vmatpush1.msra.mxu0 0.0
      %1296 = vmatprep.subr.mxu0 0.0
      %1297 = vmatpush1.msra.mxu0 0.0
      %1298 = vmatprep.subr.mxu0 0.0
      %1299 = vmatpush1.msra.mxu0 0.0
      %1300 = vmatprep.subr.mxu0 0.0
      %1301 = vmatpush1.msra.mxu0 0.0
      %1302 = vmatprep.subr.mxu0 0.0
      %1303 = vmatpush1.msra.mxu0 0.0
      %1304 = vmatprep.subr.mxu0 0.0
      %1305 = vmatpush1.msra.mxu0 0.0
      %1306 = vmatprep.subr.mxu0 0.0
      %1307 = vmatpush1.msra.mxu0 0.0
      %1308 = vmatprep.subr.mxu0 0.0
      %1309 = vmatpush1.msra.mxu0 0.0
      %1310 = vmatprep.subr.mxu0 0.0
      %1311 = vmatpush1.msra.mxu0 0.0
      %1312 = vmatprep.subr.mxu0 0.0
      %1313 = vmatpush1.msra.mxu0 0.0
      %1314 = vmatprep.subr.mxu0 0.0
      %1315 = vmatpush1.msra.mxu0 0.0
      %1316 = vmatprep.subr.mxu0 0.0
      %1317 = vmatpush1.msra.mxu0 0.0
      %1318 = vmatprep.subr.mxu0 0.0
      %1319 = vmatpush1.msra.mxu0 0.0
      %1320 = vmatprep.subr.mxu0 0.0
      %1321 = vmatpush1.msra.mxu0 0.0
      %1322 = vmatprep.subr.mxu0 0.0
      %1323 = vmatpush1.msra.mxu0 0.0
      %1324 = vmatprep.subr.mxu0 0.0
      %1325 = vmatpush1.msra.mxu0 0.0
      %1326 = vmatprep.subr.mxu0 0.0
      %1327 = vmatpush1.msra.mxu0 0.0
      %1328 = vmatprep.mubr.f32.mxu0 0.0
      %1329 = vmatmul.mubr.f32.gmra.mrb[0].mxu0 %v1262
      %v1330 = vpop.f32.mrb[0].mxu0
      %v1331 = vadd.f32 0.0, %v1330
      %v1332 = vpop.f32.mrb[0].mxu0
      %1333 = vdwg.mxu0
      %v1334 = vadd.f32 %v1259, %v1331
      %1335 = vst.msk [vmem:[#allocation2 + $0x2c] sm:$0xf] %vm1257, %v1334
      %s1336 = scalar_lea.vmem %s2, 120
      %v1337 = vld [vmem:[%s1336] sm:$0xff]
      %v1338 = vld [vmem:[%s1336 + $0x8] sm:$0xff]
      %v1339 = vld [vmem:[%s1336 + $0x10] sm:$0xff]
      %v1340 = vld [vmem:[#allocation2] sm:$0xff]
      %v1341 = vld [vmem:[#allocation2 + $0x8] sm:$0xff]
      %v1342 = vld [vmem:[#allocation2 + $0x10] sm:$0xff]
      %v1343 = vld [vmem:[#allocation2 + $0x18] sm:$0xff]
      %v1344 = vld [vmem:[#allocation2 + $0x20] sm:$0xff]
      %v1345 = vld [vmem:[#allocation2 + $0x28] sm:$0x7]
      %v1346 = vld [vmem:[%s274 + $0x5] sm:$0xff]
      %v1347 = vld [vmem:[%s274 + $0xd] sm:$0xff]
      %v1348 = vld [vmem:[%s274 + $0x15] sm:$0xff]
      %v1349 = vld [vmem:[%s274 + $0x1d] sm:$0xff]
      %v1350 = vld [vmem:[%s274 + $0x25] sm:$0xff]
      %v1351 = vld [vmem:[%s274 + $0x2d] sm:$0x7]
      %v1353 = vsel %vm331, %v1346, 0
      %v1356 = vsel %vm331, %v1347, 0
      %v1359 = vsel %vm331, %v1348, 0
      %v1362 = vsel %vm331, %v1349, 0
      %v1365 = vsel %vm331, %v1350, 0
      %v1368 = vsel %vm331, %v1351, 0
      %1370 = vmatprep.subr.mxu0 0.0
      %1371 = vmatpush1.msra.mxu0 %v1337
      %1372 = vmatprep.subr.mxu0 0.0
      %1373 = vmatpush1.msra.mxu0 %v1338
      %1374 = vmatprep.subr.mxu0 0.0
      %1375 = vmatpush1.msra.mxu0 %v1339
      %1376 = vmatprep.subr.mxu0 0.0
      %1377 = vmatpush1.msra.mxu0 0.0
      %1378 = vmatprep.subr.mxu0 0.0
      %1379 = vmatpush1.msra.mxu0 0.0
      %1380 = vmatprep.subr.mxu0 0.0
      %1381 = vmatpush1.msra.mxu0 0.0
      %1382 = vmatprep.subr.mxu0 0.0
      %1383 = vmatpush1.msra.mxu0 0.0
      %1384 = vmatprep.subr.mxu0 0.0
      %1385 = vmatpush1.msra.mxu0 0.0
      %1386 = vmatprep.subr.mxu0 0.0
      %1387 = vmatpush1.msra.mxu0 0.0
      %1388 = vmatprep.subr.mxu0 0.0
      %1389 = vmatpush1.msra.mxu0 0.0
      %1390 = vmatprep.subr.mxu0 0.0
      %1391 = vmatpush1.msra.mxu0 0.0
      %1392 = vmatprep.subr.mxu0 0.0
      %1393 = vmatpush1.msra.mxu0 0.0
      %1394 = vmatprep.subr.mxu0 0.0
      %1395 = vmatpush1.msra.mxu0 0.0
      %1396 = vmatprep.subr.mxu0 0.0
      %1397 = vmatpush1.msra.mxu0 0.0
      %1398 = vmatprep.subr.mxu0 0.0
      %1399 = vmatpush1.msra.mxu0 0.0
      %1400 = vmatprep.subr.mxu0 0.0
      %1401 = vmatpush1.msra.mxu0 0.0
      %1402 = vmatprep.subr.mxu0 0.0
      %1403 = vmatpush1.msra.mxu0 0.0
      %1404 = vmatprep.subr.mxu0 0.0
      %1405 = vmatpush1.msra.mxu0 0.0
      %1406 = vmatprep.subr.mxu0 0.0
      %1407 = vmatpush1.msra.mxu0 0.0
      %1408 = vmatprep.subr.mxu0 0.0
      %1409 = vmatpush1.msra.mxu0 0.0
      %1410 = vmatprep.subr.mxu0 0.0
      %1411 = vmatpush1.msra.mxu0 0.0
      %1412 = vmatprep.subr.mxu0 0.0
      %1413 = vmatpush1.msra.mxu0 0.0
      %1414 = vmatprep.subr.mxu0 0.0
      %1415 = vmatpush1.msra.mxu0 0.0
      %1416 = vmatprep.subr.mxu0 0.0
      %1417 = vmatpush1.msra.mxu0 0.0
      %1418 = vmatprep.subr.mxu0 0.0
      %1419 = vmatpush1.msra.mxu0 0.0
      %1420 = vmatprep.subr.mxu0 0.0
      %1421 = vmatpush1.msra.mxu0 0.0
      %1422 = vmatprep.subr.mxu0 0.0
      %1423 = vmatpush1.msra.mxu0 0.0
      %1424 = vmatprep.subr.mxu0 0.0
      %1425 = vmatpush1.msra.mxu0 0.0
      %1426 = vmatprep.subr.mxu0 0.0
      %1427 = vmatpush1.msra.mxu0 0.0
      %1428 = vmatprep.subr.mxu0 0.0
      %1429 = vmatpush1.msra.mxu0 0.0
      %1430 = vmatprep.subr.mxu0 0.0
      %1431 = vmatpush1.msra.mxu0 0.0
      %1432 = vmatprep.subr.mxu0 0.0
      %1433 = vmatpush1.msra.mxu0 0.0
      %1434 = vmatprep.mubr.f32.mxu0 0.0
      %1435 = vmatmul.mubr.f32.gmra.mrb[0].mxu0 %v1353
      %v1436 = vpop.f32.mrb[0].mxu0
      %v1437 = vadd.f32 0.0, %v1436
      %v1438 = vpop.f32.mrb[0].mxu0
      %1439 = vmatprep.mubr.f32.mxu0 0.0
      %1440 = vmatmul.mubr.f32.gmra.mrb[0].mxu0 %v1356
      %v1441 = vpop.f32.mrb[0].mxu0
      %v1442 = vadd.f32 0.0, %v1441
      %v1443 = vpop.f32.mrb[0].mxu0
      %1444 = vmatprep.mubr.f32.mxu0 0.0
      %1445 = vmatmul.mubr.f32.gmra.mrb[0].mxu0 %v1359
      %v1446 = vpop.f32.mrb[0].mxu0
      %v1447 = vadd.f32 0.0, %v1446
      %v1448 = vpop.f32.mrb[0].mxu0
      %1449 = vmatprep.mubr.f32.mxu0 0.0
      %1450 = vmatmul.mubr.f32.gmra.mrb[0].mxu0 %v1362
      %v1451 = vpop.f32.mrb[0].mxu0
      %v1452 = vadd.f32 0.0, %v1451
      %v1453 = vpop.f32.mrb[0].mxu0
      %1454 = vmatprep.mubr.f32.mxu0 0.0
      %1455 = vmatmul.mubr.f32.gmra.mrb[0].mxu0 %v1365
      %v1456 = vpop.f32.mrb[0].mxu0
      %v1457 = vadd.f32 0.0, %v1456
      %v1458 = vpop.f32.mrb[0].mxu0
      %1459 = vmatprep.mubr.f32.mxu0 0.0
      %1460 = vmatmul.mubr.f32.gmra.mrb[0].mxu0 %v1368
      %v1461 = vpop.f32.mrb[0].mxu0
      %v1462 = vadd.f32 0.0, %v1461
      %v1463 = vpop.f32.mrb[0].mxu0
      %1464 = vdwg.mxu0
      %v1465 = vadd.f32 %v1340, %v1437
      %v1466 = vadd.f32 %v1341, %v1442
      %v1467 = vadd.f32 %v1342, %v1447
      %v1468 = vadd.f32 %v1343, %v1452
      %v1469 = vadd.f32 %v1344, %v1457
      %v1470 = vadd.f32 %v1345, %v1462
      %1471 = vst.msk [vmem:[#allocation2] sm:$0xff] %vm309, %v1465
      %1472 = vst.msk [vmem:[#allocation2 + $0x8] sm:$0xff] %vm309, %v1466
      %1473 = vst.msk [vmem:[#allocation2 + $0x10] sm:$0xff] %vm309, %v1467
      %1474 = vst.msk [vmem:[#allocation2 + $0x18] sm:$0xff] %vm309, %v1468
      %1475 = vst.msk [vmem:[#allocation2 + $0x20] sm:$0xff] %vm309, %v1469
      %1476 = vst.msk [vmem:[#allocation2 + $0x28] sm:$0x7] %vm1115, %v1470
      %v1477 = vld [vmem:[#allocation2 + $0x2b] sm:$0x1f]
      %v1478 = vld [vmem:[%s289] sm:$0x1f]
      %v1480 = vsel %vm331, %v1478, 0
      %1482 = vmatprep.subr.mxu0 0.0
      %1483 = vmatpush1.msra.mxu0 %v1337
      %1484 = vmatprep.subr.mxu0 0.0
      %1485 = vmatpush1.msra.mxu0 %v1338
      %1486 = vmatprep.subr.mxu0 0.0
      %1487 = vmatpush1.msra.mxu0 %v1339
      %1488 = vmatprep.subr.mxu0 0.0
      %1489 = vmatpush1.msra.mxu0 0.0
      %1490 = vmatprep.subr.mxu0 0.0
      %1491 = vmatpush1.msra.mxu0 0.0
      %1492 = vmatprep.subr.mxu0 0.0
      %1493 = vmatpush1.msra.mxu0 0.0
      %1494 = vmatprep.subr.mxu0 0.0
      %1495 = vmatpush1.msra.mxu0 0.0
      %1496 = vmatprep.subr.mxu0 0.0
      %1497 = vmatpush1.msra.mxu0 0.0
      %1498 = vmatprep.subr.mxu0 0.0
      %1499 = vmatpush1.msra.mxu0 0.0
      %1500 = vmatprep.subr.mxu0 0.0
      %1501 = vmatpush1.msra.mxu0 0.0
      %1502 = vmatprep.subr.mxu0 0.0
      %1503 = vmatpush1.msra.mxu0 0.0
      %1504 = vmatprep.subr.mxu0 0.0
      %1505 = vmatpush1.msra.mxu0 0.0
      %1506 = vmatprep.subr.mxu0 0.0
      %1507 = vmatpush1.msra.mxu0 0.0
      %1508 = vmatprep.subr.mxu0 0.0
      %1509 = vmatpush1.msra.mxu0 0.0
      %1510 = vmatprep.subr.mxu0 0.0
      %1511 = vmatpush1.msra.mxu0 0.0
      %1512 = vmatprep.subr.mxu0 0.0
      %1513 = vmatpush1.msra.mxu0 0.0
      %1514 = vmatprep.subr.mxu0 0.0
      %1515 = vmatpush1.msra.mxu0 0.0
      %1516 = vmatprep.subr.mxu0 0.0
      %1517 = vmatpush1.msra.mxu0 0.0
      %1518 = vmatprep.subr.mxu0 0.0
      %1519 = vmatpush1.msra.mxu0 0.0
      %1520 = vmatprep.subr.mxu0 0.0
      %1521 = vmatpush1.msra.mxu0 0.0
      %1522 = vmatprep.subr.mxu0 0.0
      %1523 = vmatpush1.msra.mxu0 0.0
      %1524 = vmatprep.subr.mxu0 0.0
      %1525 = vmatpush1.msra.mxu0 0.0
      %1526 = vmatprep.subr.mxu0 0.0
      %1527 = vmatpush1.msra.mxu0 0.0
      %1528 = vmatprep.subr.mxu0 0.0
      %1529 = vmatpush1.msra.mxu0 0.0
      %1530 = vmatprep.subr.mxu0 0.0
      %1531 = vmatpush1.msra.mxu0 0.0
      %1532 = vmatprep.subr.mxu0 0.0
      %1533 = vmatpush1.msra.mxu0 0.0
      %1534 = vmatprep.subr.mxu0 0.0
      %1535 = vmatpush1.msra.mxu0 0.0
      %1536 = vmatprep.subr.mxu0 0.0
      %1537 = vmatpush1.msra.mxu0 0.0
      %1538 = vmatprep.subr.mxu0 0.0
      %1539 = vmatpush1.msra.mxu0 0.0
      %1540 = vmatprep.subr.mxu0 0.0
      %1541 = vmatpush1.msra.mxu0 0.0
      %1542 = vmatprep.subr.mxu0 0.0
      %1543 = vmatpush1.msra.mxu0 0.0
      %1544 = vmatprep.subr.mxu0 0.0
      %1545 = vmatpush1.msra.mxu0 0.0
      %1546 = vmatprep.mubr.f32.mxu0 0.0
      %1547 = vmatmul.mubr.f32.gmra.mrb[0].mxu0 %v1480
      %v1548 = vpop.f32.mrb[0].mxu0
      %v1549 = vadd.f32 0.0, %v1548
      %v1550 = vpop.f32.mrb[0].mxu0
      %1551 = vdwg.mxu0
      %v1552 = vadd.f32 %v1477, %v1549
      %1553 = vst.msk [vmem:[#allocation2 + $0x2b] sm:$0x1f] %vm1037, %v1552
      %s1554 = scalar_lea.vmem %s2, 144
      %v1555 = vld [vmem:[%s1554] sm:$0xff]
      %v1556 = vld [vmem:[%s1554 + $0x8] sm:$0xff]
      %v1557 = vld [vmem:[%s1554 + $0x10] sm:$0xff]
      %v1558 = vld [vmem:[#allocation2] sm:$0xff]
      %v1559 = vld [vmem:[#allocation2 + $0x8] sm:$0xff]
      %v1560 = vld [vmem:[#allocation2 + $0x10] sm:$0xff]
      %v1561 = vld [vmem:[#allocation2 + $0x18] sm:$0xff]
      %v1562 = vld [vmem:[#allocation2 + $0x20] sm:$0xff]
      %v1563 = vld [vmem:[#allocation2 + $0x28] sm:$0x3]
      %v1564 = vld [vmem:[%s274 + $0x6] sm:$0xff]
      %v1565 = vld [vmem:[%s274 + $0xe] sm:$0xff]
      %v1566 = vld [vmem:[%s274 + $0x16] sm:$0xff]
      %v1567 = vld [vmem:[%s274 + $0x1e] sm:$0xff]
      %v1568 = vld [vmem:[%s274 + $0x26] sm:$0xff]
      %v1569 = vld [vmem:[%s274 + $0x2e] sm:$0x3]
      %v1571 = vsel %vm331, %v1564, 0
      %v1574 = vsel %vm331, %v1565, 0
      %v1577 = vsel %vm331, %v1566, 0
      %v1580 = vsel %vm331, %v1567, 0
      %v1583 = vsel %vm331, %v1568, 0
      %v1586 = vsel %vm331, %v1569, 0
      %1588 = vmatprep.subr.mxu0 0.0
      %1589 = vmatpush1.msra.mxu0 %v1555
      %1590 = vmatprep.subr.mxu0 0.0
      %1591 = vmatpush1.msra.mxu0 %v1556
      %1592 = vmatprep.subr.mxu0 0.0
      %1593 = vmatpush1.msra.mxu0 %v1557
      %1594 = vmatprep.subr.mxu0 0.0
      %1595 = vmatpush1.msra.mxu0 0.0
      %1596 = vmatprep.subr.mxu0 0.0
      %1597 = vmatpush1.msra.mxu0 0.0
      %1598 = vmatprep.subr.mxu0 0.0
      %1599 = vmatpush1.msra.mxu0 0.0
      %1600 = vmatprep.subr.mxu0 0.0
      %1601 = vmatpush1.msra.mxu0 0.0
      %1602 = vmatprep.subr.mxu0 0.0
      %1603 = vmatpush1.msra.mxu0 0.0
      %1604 = vmatprep.subr.mxu0 0.0
      %1605 = vmatpush1.msra.mxu0 0.0
      %1606 = vmatprep.subr.mxu0 0.0
      %1607 = vmatpush1.msra.mxu0 0.0
      %1608 = vmatprep.subr.mxu0 0.0
      %1609 = vmatpush1.msra.mxu0 0.0
      %1610 = vmatprep.subr.mxu0 0.0
      %1611 = vmatpush1.msra.mxu0 0.0
      %1612 = vmatprep.subr.mxu0 0.0
      %1613 = vmatpush1.msra.mxu0 0.0
      %1614 = vmatprep.subr.mxu0 0.0
      %1615 = vmatpush1.msra.mxu0 0.0
      %1616 = vmatprep.subr.mxu0 0.0
      %1617 = vmatpush1.msra.mxu0 0.0
      %1618 = vmatprep.subr.mxu0 0.0
      %1619 = vmatpush1.msra.mxu0 0.0
      %1620 = vmatprep.subr.mxu0 0.0
      %1621 = vmatpush1.msra.mxu0 0.0
      %1622 = vmatprep.subr.mxu0 0.0
      %1623 = vmatpush1.msra.mxu0 0.0
      %1624 = vmatprep.subr.mxu0 0.0
      %1625 = vmatpush1.msra.mxu0 0.0
      %1626 = vmatprep.subr.mxu0 0.0
      %1627 = vmatpush1.msra.mxu0 0.0
      %1628 = vmatprep.subr.mxu0 0.0
      %1629 = vmatpush1.msra.mxu0 0.0
      %1630 = vmatprep.subr.mxu0 0.0
      %1631 = vmatpush1.msra.mxu0 0.0
      %1632 = vmatprep.subr.mxu0 0.0
      %1633 = vmatpush1.msra.mxu0 0.0
      %1634 = vmatprep.subr.mxu0 0.0
      %1635 = vmatpush1.msra.mxu0 0.0
      %1636 = vmatprep.subr.mxu0 0.0
      %1637 = vmatpush1.msra.mxu0 0.0
      %1638 = vmatprep.subr.mxu0 0.0
      %1639 = vmatpush1.msra.mxu0 0.0
      %1640 = vmatprep.subr.mxu0 0.0
      %1641 = vmatpush1.msra.mxu0 0.0
      %1642 = vmatprep.subr.mxu0 0.0
      %1643 = vmatpush1.msra.mxu0 0.0
      %1644 = vmatprep.subr.mxu0 0.0
      %1645 = vmatpush1.msra.mxu0 0.0
      %1646 = vmatprep.subr.mxu0 0.0
      %1647 = vmatpush1.msra.mxu0 0.0
      %1648 = vmatprep.subr.mxu0 0.0
      %1649 = vmatpush1.msra.mxu0 0.0
      %1650 = vmatprep.subr.mxu0 0.0
      %1651 = vmatpush1.msra.mxu0 0.0
      %1652 = vmatprep.mubr.f32.mxu0 0.0
      %1653 = vmatmul.mubr.f32.gmra.mrb[0].mxu0 %v1571
      %v1654 = vpop.f32.mrb[0].mxu0
      %v1655 = vadd.f32 0.0, %v1654
      %v1656 = vpop.f32.mrb[0].mxu0
      %1657 = vmatprep.mubr.f32.mxu0 0.0
      %1658 = vmatmul.mubr.f32.gmra.mrb[0].mxu0 %v1574
      %v1659 = vpop.f32.mrb[0].mxu0
      %v1660 = vadd.f32 0.0, %v1659
      %v1661 = vpop.f32.mrb[0].mxu0
      %1662 = vmatprep.mubr.f32.mxu0 0.0
      %1663 = vmatmul.mubr.f32.gmra.mrb[0].mxu0 %v1577
      %v1664 = vpop.f32.mrb[0].mxu0
      %v1665 = vadd.f32 0.0, %v1664
      %v1666 = vpop.f32.mrb[0].mxu0
      %1667 = vmatprep.mubr.f32.mxu0 0.0
      %1668 = vmatmul.mubr.f32.gmra.mrb[0].mxu0 %v1580
      %v1669 = vpop.f32.mrb[0].mxu0
      %v1670 = vadd.f32 0.0, %v1669
      %v1671 = vpop.f32.mrb[0].mxu0
      %1672 = vmatprep.mubr.f32.mxu0 0.0
      %1673 = vmatmul.mubr.f32.gmra.mrb[0].mxu0 %v1583
      %v1674 = vpop.f32.mrb[0].mxu0
      %v1675 = vadd.f32 0.0, %v1674
      %v1676 = vpop.f32.mrb[0].mxu0
      %1677 = vmatprep.mubr.f32.mxu0 0.0
      %1678 = vmatmul.mubr.f32.gmra.mrb[0].mxu0 %v1586
      %v1679 = vpop.f32.mrb[0].mxu0
      %v1680 = vadd.f32 0.0, %v1679
      %v1681 = vpop.f32.mrb[0].mxu0
      %1682 = vdwg.mxu0
      %v1683 = vadd.f32 %v1558, %v1655
      %v1684 = vadd.f32 %v1559, %v1660
      %v1685 = vadd.f32 %v1560, %v1665
      %v1686 = vadd.f32 %v1561, %v1670
      %v1687 = vadd.f32 %v1562, %v1675
      %v1688 = vadd.f32 %v1563, %v1680
      %1689 = vst.msk [vmem:[#allocation2] sm:$0xff] %vm309, %v1683
      %1690 = vst.msk [vmem:[#allocation2 + $0x8] sm:$0xff] %vm309, %v1684
      %1691 = vst.msk [vmem:[#allocation2 + $0x10] sm:$0xff] %vm309, %v1685
      %1692 = vst.msk [vmem:[#allocation2 + $0x18] sm:$0xff] %vm309, %v1686
      %1693 = vst.msk [vmem:[#allocation2 + $0x20] sm:$0xff] %vm309, %v1687
      %1694 = vst.msk [vmem:[#allocation2 + $0x28] sm:$0x3] %vm895, %v1688
      %v1695 = vld [vmem:[#allocation2 + $0x2a] sm:$0x3f]
      %v1696 = vld [vmem:[%s289] sm:$0x3f]
      %v1698 = vsel %vm331, %v1696, 0
      %1700 = vmatprep.subr.mxu0 0.0
      %1701 = vmatpush1.msra.mxu0 %v1555
      %1702 = vmatprep.subr.mxu0 0.0
      %1703 = vmatpush1.msra.mxu0 %v1556
      %1704 = vmatprep.subr.mxu0 0.0
      %1705 = vmatpush1.msra.mxu0 %v1557
      %1706 = vmatprep.subr.mxu0 0.0
      %1707 = vmatpush1.msra.mxu0 0.0
      %1708 = vmatprep.subr.mxu0 0.0
      %1709 = vmatpush1.msra.mxu0 0.0
      %1710 = vmatprep.subr.mxu0 0.0
      %1711 = vmatpush1.msra.mxu0 0.0
      %1712 = vmatprep.subr.mxu0 0.0
      %1713 = vmatpush1.msra.mxu0 0.0
      %1714 = vmatprep.subr.mxu0 0.0
      %1715 = vmatpush1.msra.mxu0 0.0
      %1716 = vmatprep.subr.mxu0 0.0
      %1717 = vmatpush1.msra.mxu0 0.0
      %1718 = vmatprep.subr.mxu0 0.0
      %1719 = vmatpush1.msra.mxu0 0.0
      %1720 = vmatprep.subr.mxu0 0.0
      %1721 = vmatpush1.msra.mxu0 0.0
      %1722 = vmatprep.subr.mxu0 0.0
      %1723 = vmatpush1.msra.mxu0 0.0
      %1724 = vmatprep.subr.mxu0 0.0
      %1725 = vmatpush1.msra.mxu0 0.0
      %1726 = vmatprep.subr.mxu0 0.0
      %1727 = vmatpush1.msra.mxu0 0.0
      %1728 = vmatprep.subr.mxu0 0.0
      %1729 = vmatpush1.msra.mxu0 0.0
      %1730 = vmatprep.subr.mxu0 0.0
      %1731 = vmatpush1.msra.mxu0 0.0
      %1732 = vmatprep.subr.mxu0 0.0
      %1733 = vmatpush1.msra.mxu0 0.0
      %1734 = vmatprep.subr.mxu0 0.0
      %1735 = vmatpush1.msra.mxu0 0.0
      %1736 = vmatprep.subr.mxu0 0.0
      %1737 = vmatpush1.msra.mxu0 0.0
      %1738 = vmatprep.subr.mxu0 0.0
      %1739 = vmatpush1.msra.mxu0 0.0
      %1740 = vmatprep.subr.mxu0 0.0
      %1741 = vmatpush1.msra.mxu0 0.0
      %1742 = vmatprep.subr.mxu0 0.0
      %1743 = vmatpush1.msra.mxu0 0.0
      %1744 = vmatprep.subr.mxu0 0.0
      %1745 = vmatpush1.msra.mxu0 0.0
      %1746 = vmatprep.subr.mxu0 0.0
      %1747 = vmatpush1.msra.mxu0 0.0
      %1748 = vmatprep.subr.mxu0 0.0
      %1749 = vmatpush1.msra.mxu0 0.0
      %1750 = vmatprep.subr.mxu0 0.0
      %1751 = vmatpush1.msra.mxu0 0.0
      %1752 = vmatprep.subr.mxu0 0.0
      %1753 = vmatpush1.msra.mxu0 0.0
      %1754 = vmatprep.subr.mxu0 0.0
      %1755 = vmatpush1.msra.mxu0 0.0
      %1756 = vmatprep.subr.mxu0 0.0
      %1757 = vmatpush1.msra.mxu0 0.0
      %1758 = vmatprep.subr.mxu0 0.0
      %1759 = vmatpush1.msra.mxu0 0.0
      %1760 = vmatprep.subr.mxu0 0.0
      %1761 = vmatpush1.msra.mxu0 0.0
      %1762 = vmatprep.subr.mxu0 0.0
      %1763 = vmatpush1.msra.mxu0 0.0
      %1764 = vmatprep.mubr.f32.mxu0 0.0
      %1765 = vmatmul.mubr.f32.gmra.mrb[0].mxu0 %v1698
      %v1766 = vpop.f32.mrb[0].mxu0
      %v1767 = vadd.f32 0.0, %v1766
      %v1768 = vpop.f32.mrb[0].mxu0
      %1769 = vdwg.mxu0
      %v1770 = vadd.f32 %v1695, %v1767
      %1771 = vst.msk [vmem:[#allocation2 + $0x2a] sm:$0x3f] %vm817, %v1770
      %v1772 = vld [vmem:[#allocation2] sm:$0xff]
      %v1773 = vld [vmem:[#allocation2 + $0x8] sm:$0xff]
      %v1774 = vld [vmem:[#allocation2 + $0x10] sm:$0xff]
      %v1775 = vld [vmem:[#allocation2 + $0x18] sm:$0xff]
      %v1776 = vld [vmem:[#allocation2 + $0x20] sm:$0xff]
      %v1777 = vld [vmem:[#allocation2 + $0x28] sm:$0xff]
      %1778 = vst.msk [vmem:[%s300] sm:$0xff] %vm309, %v1772
      %1779 = vst.msk [vmem:[%s300 + $0x8] sm:$0xff] %vm309, %v1773
      %1780 = vst.msk [vmem:[%s300 + $0x10] sm:$0xff] %vm309, %v1774
      %1781 = vst.msk [vmem:[%s300 + $0x18] sm:$0xff] %vm309, %v1775
      %1782 = vst.msk [vmem:[%s300 + $0x20] sm:$0xff] %vm309, %v1776
      %1783 = vst.msk [vmem:[%s300 + $0x28] sm:$0xff] %vm309, %v1777
      %s1784 = smul.u32 6, %s20
      %p1785 = scmp.lt.s32.totalorder %s19, 1
      %s1786 = scalar_select %p1785, %s19, 1
      %p1787 = scmp.lt.s32.totalorder %s1784, 5
      %s1788 = scalar_select %p1787, %s1784, 5
      %s1789 = smul.addr %s1786, 6
      %s1790 = sadd.s32 %s1788, %s1789
      %s1791 = smul.addr %s1790, 8
      %s1792 = scalar_lea.vmem %s4, %s1791
      // Predicated region
      $region37: #{_forward_impl.5} parent=35 // pred_check
        %p1793 = pneg %p149
      $region38: #{_forward_impl.5} parent=35 // pred_check_branch
        %1795 = sbr.rel (%p1793) target = $region40
      $region39: #{_forward_impl.5} parent=35 // pred_region
        %s1796 = smul.u32 6, %s20
      $region40: #{_forward_impl.5} parent=35 // pred_fallthru
        _
    $region36: #{_forward_impl.5} parent=5 // pred_fallthru
      _
    %p1797 = scmp.le.s32.totalorder 2, %s10
    // Predicated region
    $region41: #{_forward_impl.5} parent=5 // pred_check
      %p1798 = pneg %p1797
    $region42: #{_forward_impl.5} parent=5 // pred_check_branch
      %1800 = sbr.rel (%p1798) target = $region44
    $region43: #{_forward_impl.5} parent=5 // pred_region
      %s1801 = ssub.s32 %s10, 2
      // Predicated region
      $region45: #{_forward_impl.5} parent=43 // pred_check
        %p1802 = pneg %p155
      $region46: #{_forward_impl.5} parent=43 // pred_check_branch
        %1804 = sbr.rel (%p1802) target = $region48
      $region47: #{_forward_impl.5} parent=43 // pred_region
        %s1805 = smul.u32 6, %s22
        %p1806 = scmp.lt.s32.totalorder %s21, 1
        %s1807 = scalar_select %p1806, %s21, 1
        %p1808 = scmp.lt.s32.totalorder %s1805, 5
        %s1809 = scalar_select %p1808, %s1805, 5
        %s1810 = smul.addr %s1807, 6
        %s1811 = sadd.s32 %s1809, %s1810
        %s1812 = smul.addr %s1811, 8
        %s1813 = scalar_lea.vmem %s4, %s1812
      $region48: #{_forward_impl.5} parent=43 // pred_fallthru
        _
    $region44: #{_forward_impl.5} parent=5 // pred_fallthru
      _
  $region6: #{_forward_impl.5} parent=0 // loop_footer
    %s14 = sadd.s32 1, %s10
  $region7: #{_forward_impl.5} parent=0 // loop_footer_branch
    %9 = sbr.rel target = $region3
  $region8: #{_forward_impl.5} parent=0 // loop_exit
    _

// kernel: _forward_impl.7
$region0: #{_forward_impl.7}
  #allocation0 [shape = 'u32[]', space=smem, size = 0x4, offset = 0x4, fixed_abs, tag = 'smem constant byte address 0x4 - core index']
  #allocation1 [shape = 'u32[144,128]{1,0:T(1,128)}', space=vmem, size = 0x12000, scoped, tag = 'internal scratch']
  #allocation2 [shape = 'f32[8,1]{1,0:T(8,128)}', space=vmem, size = 0x1000, scoped, tag = 'scratch operand']
  #allocation3 [shape = 'f32[1,1]{1,0:T(1,128)S(1)}', space=vmem, size = 0x200, scoped, tag = 'scoped memory for _forward_impl.7']
  %s0 = inlined_call_operand.vmem [shape: f32[2,16,96], index: 0, kind: input, shape index: {}, may-alias: {0,1}]
  %s1 = inlined_call_operand.vmem [shape: f32[2,16,96], index: 1, kind: input, shape index: {}, may-alias: {0,1}]
  %s2 = inlined_call_operand.vmem [shape: f32[7,96,1], index: 2, kind: input, shape index: {}]
  %s3 = inlined_call_operand.<no memory space> [shape: f32[1,1], index: 3, kind: input, shape index: {}]
  %s4 = inlined_call_operand.vmem [shape: f32[2,6,1], index: 4, kind: output, shape index: {}]
  %s5 = sld [smem:[#allocation0]]
  $region49: #{_forward_impl.7} parent=0
    _
  %s7 = ssub.s32 1, %s5
  %s8 = scalar_select 0, %s7, %s5
  %v9 = vstv %s3
  %10 = vst [vmem:[#allocation3] sm:$0x1] %v9
  loop: start=0, step=1, limit=4
  $region2: #{_forward_impl.7} parent=0 // loop_pre_header
    _
  $region3: #{_forward_impl.7} parent=0 // loop_header
    %s12 = sphi 0, %s16
    %p13 = scmp.ge.s32.totalorder %s12, 4
    %s19 = sphi 0, %s31
    %s20 = sphi 0, %s27
    %s21 = sphi 0, %s19
    %s22 = sphi 0, %s20
    %s23 = sphi 0, %s21
    %s24 = sphi 0, %s22
    %s36 = sphi 0, %s38
    %s39 = sphi 0, %s36
    %s40 = sphi 0, %s39
    %s56 = sphi 0, %s40
    %s66 = sphi 0, %s68
    %s69 = sphi 0, %s66
    %s70 = sphi 0, %s69
    %s86 = sphi 0, %s70
    %s90 = sphi 0, %s90
    %s92 = sphi 0, %s90
    %s93 = sphi 0, %s92
    %s107 = sphi 0, %s93
    %s111 = sphi 0, %s111
    %s113 = sphi 0, %s111
    %s114 = sphi 0, %s113
    %s128 = sphi 0, %s114
    %s136 = sphi 0, %s138
    %s139 = sphi 0, %s136
    %s140 = sphi 0, %s139
    %s156 = sphi 0, %s140
  $region4: #{_forward_impl.7} parent=0 // loop_header_branch
    %15 = sbr.rel (%p13) target = $region8
  $region5: #{_forward_impl.7} parent=0 // loop_body
    %s17 = ssub.s32 %s12, 1
    %s18 = ssub.s32 %s12, 2
    %s25 = sadd.s32 1, %s20
    %p26 = scmp.ge.s32.totalorder %s25, 1
    %s27 = scalar_select %p26, 0, %s25
    %s28 = sadd.s32 1, %s19
    %s29 = scalar_select %p26, %s28, %s19
    %p30 = scmp.ge.s32.totalorder %s29, 2
    %s31 = scalar_select %p30, 0, %s29
    %s32 = ssub.s32 %s19, %s31
    %s33 = ssub.s32 %s20, %s27
    %s34 = sor.u32 %s32, %s33
    %p35 = scmp.eq.s32.totalorder %s34, 0
    %s37 = sadd.s32 %s36, 1
    %s38 = scalar_select %p35, %s36, %s37
    %p41 = pneg %p35
    %p42 = scmp.eq.s32.totalorder %s12, 1
    %p43 = por %p41, %p42
    %p44 = scmp.ne.s32.totalorder %s36, %s39
    %p45 = scmp.eq.s32.totalorder %s12, 0
    %p46 = por %p44, %p45
    %p47 = scmp.ne.s32.totalorder %s36, %s39
    %p48 = scmp.eq.s32.totalorder %s17, 1
    %p49 = por %p47, %p48
    %p50 = scmp.ne.s32.totalorder %s39, %s40
    %p51 = scmp.eq.s32.totalorder %s17, 0
    %p52 = por %p50, %p51
    %p53 = scmp.ne.s32.totalorder %s39, %s40
    %p54 = scmp.eq.s32.totalorder %s18, 1
    %p55 = por %p53, %p54
    %p57 = scmp.ne.s32.totalorder %s40, %s56
    %p58 = scmp.eq.s32.totalorder %s18, 0
    %p59 = por %p57, %p58
    %s60 = sadd.s32 %s20, 1
    %s61 = sadd.s32 %s27, 1
    %s62 = ssub.s32 %s19, %s31
    %s63 = ssub.s32 %s60, %s61
    %s64 = sor.u32 %s62, %s63
    %p65 = scmp.eq.s32.totalorder %s64, 0
    %s67 = sadd.s32 %s66, 1
    %s68 = scalar_select %p65, %s66, %s67
    %p71 = pneg %p65
    %p72 = scmp.eq.s32.totalorder %s12, 1
    %p73 = por %p71, %p72
    %p74 = scmp.ne.s32.totalorder %s66, %s69
    %p75 = scmp.eq.s32.totalorder %s12, 0
    %p76 = por %p74, %p75
    %p77 = scmp.ne.s32.totalorder %s66, %s69
    %p78 = scmp.eq.s32.totalorder %s17, 1
    %p79 = por %p77, %p78
    %p80 = scmp.ne.s32.totalorder %s69, %s70
    %p81 = scmp.eq.s32.totalorder %s17, 0
    %p82 = por %p80, %p81
    %p83 = scmp.ne.s32.totalorder %s69, %s70
    %p84 = scmp.eq.s32.totalorder %s18, 1
    %p85 = por %p83, %p84
    %p87 = scmp.ne.s32.totalorder %s70, %s86
    %p88 = scmp.eq.s32.totalorder %s18, 0
    %p89 = por %p87, %p88
    %s91 = sadd.s32 %s90, 1
    %p94 = scmp.eq.s32.totalorder %s12, 1
    %p95 = scmp.ne.s32.totalorder %s90, %s92
    %p96 = scmp.eq.s32.totalorder %s12, 0
    %p97 = por %p95, %p96
    %p98 = scmp.ne.s32.totalorder %s90, %s92
    %p99 = scmp.eq.s32.totalorder %s17, 1
    %p100 = por %p98, %p99
    %p101 = scmp.ne.s32.totalorder %s92, %s93
    %p102 = scmp.eq.s32.totalorder %s17, 0
    %p103 = por %p101, %p102
    %p104 = scmp.ne.s32.totalorder %s92, %s93
    %p105 = scmp.eq.s32.totalorder %s18, 1
    %p106 = por %p104, %p105
    %p108 = scmp.ne.s32.totalorder %s93, %s107
    %p109 = scmp.eq.s32.totalorder %s18, 0
    %p110 = por %p108, %p109
    %s112 = sadd.s32 %s111, 1
    %p115 = scmp.eq.s32.totalorder %s12, 1
    %p116 = scmp.ne.s32.totalorder %s111, %s113
    %p117 = scmp.eq.s32.totalorder %s12, 0
    %p118 = por %p116, %p117
    %p119 = scmp.ne.s32.totalorder %s111, %s113
    %p120 = scmp.eq.s32.totalorder %s17, 1
    %p121 = por %p119, %p120
    %p122 = scmp.ne.s32.totalorder %s113, %s114
    %p123 = scmp.eq.s32.totalorder %s17, 0
    %p124 = por %p122, %p123
    %p125 = scmp.ne.s32.totalorder %s113, %s114
    %p126 = scmp.eq.s32.totalorder %s18, 1
    %p127 = por %p125, %p126
    %p129 = scmp.ne.s32.totalorder %s114, %s128
    %p130 = scmp.eq.s32.totalorder %s18, 0
    %p131 = por %p129, %p130
    %s132 = ssub.s32 %s19, %s31
    %s133 = ssub.s32 %s20, %s27
    %s134 = sor.u32 %s132, %s133
    %p135 = scmp.eq.s32.totalorder %s134, 0
    %s137 = sadd.s32 %s136, 1
    %s138 = scalar_select %p135, %s136, %s137
    %p141 = pneg %p135
    %p142 = scmp.eq.s32.totalorder %s12, 1
    %p143 = por %p141, %p142
    %p144 = scmp.ne.s32.totalorder %s136, %s139
    %p145 = scmp.eq.s32.totalorder %s12, 0
    %p146 = por %p144, %p145
    %p147 = scmp.ne.s32.totalorder %s136, %s139
    %p148 = scmp.eq.s32.totalorder %s17, 1
    %p149 = por %p147, %p148
    %p150 = scmp.ne.s32.totalorder %s139, %s140
    %p151 = scmp.eq.s32.totalorder %s17, 0
    %p152 = por %p150, %p151
    %p153 = scmp.ne.s32.totalorder %s139, %s140
    %p154 = scmp.eq.s32.totalorder %s18, 1
    %p155 = por %p153, %p154
    %p157 = scmp.ne.s32.totalorder %s140, %s156
    %p158 = scmp.eq.s32.totalorder %s18, 0
    %p159 = por %p157, %p158
    %p160 = scmp.le.s32.totalorder 1, %s12
    %p161 = scmp.lt.s32.totalorder %s12, 3
    %p162 = pnand %p160, %p161
    %p163 = pneg %p162
    // Predicated region
    $region9: #{_forward_impl.7} parent=5 // pred_check
      _
    $region10: #{_forward_impl.7} parent=5 // pred_check_branch
      %165 = sbr.rel (%p162) target = $region12
    $region11: #{_forward_impl.7} parent=5 // pred_region
      %s166 = ssub.s32 %s12, 1
      // Predicated region
      $region13: #{_forward_impl.7} parent=11 // pred_check
        %p167 = pneg %p103
      $region14: #{_forward_impl.7} parent=11 // pred_check_branch
        %169 = sbr.rel (%p167) target = $region16
      $region15: #{_forward_impl.7} parent=11 // pred_region
        _
      $region16: #{_forward_impl.7} parent=11 // pred_fallthru
        _
      // Predicated region
      $region17: #{_forward_impl.7} parent=11 // pred_check
        %p170 = pneg %p124
      $region18: #{_forward_impl.7} parent=11 // pred_check_branch
        %172 = sbr.rel (%p170) target = $region20
      $region19: #{_forward_impl.7} parent=11 // pred_region
        _
      $region20: #{_forward_impl.7} parent=11 // pred_fallthru
        _
    $region12: #{_forward_impl.7} parent=5 // pred_fallthru
      _
    %p173 = scmp.lt.s32.totalorder %s12, 2
    // Predicated region
    $region21: #{_forward_impl.7} parent=5 // pred_check
      %p174 = pneg %p173
    $region22: #{_forward_impl.7} parent=5 // pred_check_branch
      %176 = sbr.rel (%p174) target = $region24
    $region23: #{_forward_impl.7} parent=5 // pred_region
      // Predicated region
      $region25: #{_forward_impl.7} parent=23 // pred_check
        %p177 = pneg %p46
      $region26: #{_forward_impl.7} parent=23 // pred_check_branch
        %179 = sbr.rel (%p177) target = $region28
      $region27: #{_forward_impl.7} parent=23 // pred_region
        %p180 = scmp.lt.s32.totalorder %s19, 1
        %s181 = scalar_select %p180, %s19, 1
        %p182 = scmp.lt.s32.totalorder %s20, 1
        %s183 = scalar_select %p182, %s20, 1
        %s184 = smul.addr %s181, 2
        %s185 = sadd.s32 %s183, %s184
        %s186 = smul.addr %s185, 8
        %s187 = scalar_lea.vmem %s0, %s186
      $region28: #{_forward_impl.7} parent=23 // pred_fallthru
        _
      // Predicated region
      $region29: #{_forward_impl.7} parent=23 // pred_check
        %p188 = pneg %p76
      $region30: #{_forward_impl.7} parent=23 // pred_check_branch
        %190 = sbr.rel (%p188) target = $region32
      $region31: #{_forward_impl.7} parent=23 // pred_region
        %s191 = sadd.s32 %s20, 1
        %p192 = scmp.lt.s32.totalorder %s19, 1
        %s193 = scalar_select %p192, %s19, 1
        %p194 = scmp.lt.s32.totalorder %s191, 1
        %s195 = scalar_select %p194, %s191, 1
        %s196 = smul.addr %s193, 2
        %s197 = sadd.s32 %s195, %s196
        %s198 = smul.addr %s197, 8
        %s199 = scalar_lea.vmem %s1, %s198
        %s200 = sadd.s32 %s20, 1
      $region32: #{_forward_impl.7} parent=23 // pred_fallthru
        _
    $region24: #{_forward_impl.7} parent=5 // pred_fallthru
      _
    %p201 = scmp.le.s32.totalorder 1, %s12
    %p202 = scmp.lt.s32.totalorder %s12, 3
    %p203 = pnand %p201, %p202
    %p204 = pneg %p203
    // Predicated region
    $region33: #{_forward_impl.7} parent=5 // pred_check
      _
    $region34: #{_forward_impl.7} parent=5 // pred_check_branch
      %206 = sbr.rel (%p203) target = $region36
    $region35: #{_forward_impl.7} parent=5 // pred_region
      %s207 = ssub.s32 %s12, 1
      %p208 = scmp.lt.s32.totalorder %s21, 1
      %s209 = scalar_select %p208, %s21, 1
      %p210 = scmp.lt.s32.totalorder %s22, 1
      %s211 = scalar_select %p210, %s22, 1
      %s212 = smul.addr %s209, 2
      %s213 = sadd.s32 %s211, %s212
      %s214 = smul.addr %s213, 8
      %s215 = scalar_lea.vmem %s0, %s214
      %p216 = pneg %p52
      %p217 = pneg %p49
      %s218 = sadd.s32 %s22, 1
      %p219 = scmp.lt.s32.totalorder %s21, 1
      %s220 = scalar_select %p219, %s21, 1
      %p221 = scmp.lt.s32.totalorder %s218, 1
      %s222 = scalar_select %p221, %s218, 1
      %s223 = smul.addr %s220, 2
      %s224 = sadd.s32 %s222, %s223
      %s225 = smul.addr %s224, 8
      %s226 = scalar_lea.vmem %s1, %s225
      %p227 = pneg %p82
      %p228 = pneg %p79
      %p229 = pneg %p103
      %p230 = pneg %p100
      %p231 = pneg %p124
      %p232 = pneg %p121
      %p233 = pneg %p152
      %p234 = pneg %p149
      %p235 = scmp.lt.s32.totalorder %s21, 1
      %s236 = scalar_select %p235, %s21, 1
      %p237 = scmp.lt.s32.totalorder %s22, 0
      %s238 = scalar_select %p237, %s22, 0
      %s239 = sadd.s32 %s238, %s236
      %s240 = smul.addr %s239, 8
      %s241 = scalar_lea.vmem %s4, %s240
      %p242 = scmp.lt.s32.totalorder %s21, 1
      %s243 = scalar_select %p242, %s21, 1
      %p244 = scmp.lt.s32.totalorder %s22, 1
      %s245 = scalar_select %p244, %s22, 1
      %s246 = smul.addr %s243, 2
      %s247 = sadd.s32 %s245, %s246
      %s248 = smul.addr %s247, 8
      %s249 = scalar_lea.vmem %s0, %s248
      %s250 = sadd.s32 %s22, 1
      %p251 = scmp.lt.s32.totalorder %s21, 1
      %s252 = scalar_select %p251, %s21, 1
      %p253 = scmp.lt.s32.totalorder %s250, 1
      %s254 = scalar_select %p253, %s250, 1
      %s255 = smul.addr %s252, 2
      %s256 = sadd.s32 %s254, %s255
      %s257 = smul.addr %s256, 8
      %s258 = scalar_lea.vmem %s1, %s257
      %s259 = sadd.s32 %s22, 1
      %p260 = scmp.lt.s32.totalorder %s21, 1
      %s261 = scalar_select %p260, %s21, 1
      %p262 = scmp.lt.s32.totalorder %s22, 0
      %s263 = scalar_select %p262, %s22, 0
      %s264 = sadd.s32 %s263, %s261
      %s265 = smul.addr %s264, 8
      %s266 = scalar_lea.vmem %s4, %s265
      %v267 = vld [vmem:[#allocation3] sm:$0x1]
      %v269 = vlaneseq
      %v270 = vshrl.u32 %v269, 7
      %v271 = vsub.s32 0, %v270
      %v272 = vrot.slane %v267, %v271
      %vm274 = vcmask 7168
      %275 = vst.msk [vmem:[#allocation2] sm:$0xff] %vm274, %v272
      %v276 = vld [vmem:[%s2] sm:$0xff]
      %v277 = vld [vmem:[%s2 + $0x8] sm:$0xff]
      %v278 = vld [vmem:[%s2 + $0x10] sm:$0xff]
      %v279 = vld [vmem:[%s2 + $0x18] sm:$0xff]
      %v280 = vld [vmem:[%s2 + $0x20] sm:$0xff]
      %v281 = vld [vmem:[%s2 + $0x28] sm:$0xff]
      %v282 = vld [vmem:[%s2 + $0x30] sm:$0xff]
      %v283 = vld [vmem:[%s2 + $0x38] sm:$0xff]
      %v284 = vld [vmem:[%s2 + $0x40] sm:$0xff]
      %v285 = vld [vmem:[%s2 + $0x48] sm:$0xff]
      %v286 = vld [vmem:[%s2 + $0x50] sm:$0xff]
      %v287 = vld [vmem:[%s2 + $0x58] sm:$0xff]
      %v288 = vld [vmem:[#allocation2] sm:$0xff]
      %v289 = vld [vmem:[%s249] sm:$0xff]
      %vm290 = vcmask 785408
      %v292 = vsel %vm290, %v289, 0
      %294 = vmatprep.subr.mxu0 0.0
      %295 = vmatpush1.msra.mxu0 %v276
      %296 = vmatprep.subr.mxu0 0.0
      %297 = vmatpush1.msra.mxu0 %v277
      %298 = vmatprep.subr.mxu0 0.0
      %299 = vmatpush1.msra.mxu0 %v278
      %300 = vmatprep.subr.mxu0 0.0
      %301 = vmatpush1.msra.mxu0 %v279
      %302 = vmatprep.subr.mxu0 0.0
      %303 = vmatpush1.msra.mxu0 %v280
      %304 = vmatprep.subr.mxu0 0.0
      %305 = vmatpush1.msra.mxu0 %v281
      %306 = vmatprep.subr.mxu0 0.0
      %307 = vmatpush1.msra.mxu0 %v282
      %308 = vmatprep.subr.mxu0 0.0
      %309 = vmatpush1.msra.mxu0 %v283
      %310 = vmatprep.subr.mxu0 0.0
      %311 = vmatpush1.msra.mxu0 %v284
      %312 = vmatprep.subr.mxu0 0.0
      %313 = vmatpush1.msra.mxu0 %v285
      %314 = vmatprep.subr.mxu0 0.0
      %315 = vmatpush1.msra.mxu0 %v286
      %316 = vmatprep.subr.mxu0 0.0
      %317 = vmatpush1.msra.mxu0 %v287
      %318 = vmatprep.subr.mxu0 0.0
      %319 = vmatpush1.msra.mxu0 0.0
      %320 = vmatprep.subr.mxu0 0.0
      %321 = vmatpush1.msra.mxu0 0.0
      %322 = vmatprep.subr.mxu0 0.0
      %323 = vmatpush1.msra.mxu0 0.0
      %324 = vmatprep.subr.mxu0 0.0
      %325 = vmatpush1.msra.mxu0 0.0
      %326 = vmatprep.subr.mxu0 0.0
      %327 = vmatpush1.msra.mxu0 0.0
      %328 = vmatprep.subr.mxu0 0.0
      %329 = vmatpush1.msra.mxu0 0.0
      %330 = vmatprep.subr.mxu0 0.0
      %331 = vmatpush1.msra.mxu0 0.0
      %332 = vmatprep.subr.mxu0 0.0
      %333 = vmatpush1.msra.mxu0 0.0
      %334 = vmatprep.subr.mxu0 0.0
      %335 = vmatpush1.msra.mxu0 0.0
      %336 = vmatprep.subr.mxu0 0.0
      %337 = vmatpush1.msra.mxu0 0.0
      %338 = vmatprep.subr.mxu0 0.0
      %339 = vmatpush1.msra.mxu0 0.0
      %340 = vmatprep.subr.mxu0 0.0
      %341 = vmatpush1.msra.mxu0 0.0
      %342 = vmatprep.subr.mxu0 0.0
      %343 = vmatpush1.msra.mxu0 0.0
      %344 = vmatprep.subr.mxu0 0.0
      %345 = vmatpush1.msra.mxu0 0.0
      %346 = vmatprep.subr.mxu0 0.0
      %347 = vmatpush1.msra.mxu0 0.0
      %348 = vmatprep.subr.mxu0 0.0
      %349 = vmatpush1.msra.mxu0 0.0
      %350 = vmatprep.subr.mxu0 0.0
      %351 = vmatpush1.msra.mxu0 0.0
      %352 = vmatprep.subr.mxu0 0.0
      %353 = vmatpush1.msra.mxu0 0.0
      %354 = vmatprep.subr.mxu0 0.0
      %355 = vmatpush1.msra.mxu0 0.0
      %356 = vmatprep.subr.mxu0 0.0
      %357 = vmatpush1.msra.mxu0 0.0
      %358 = vmatprep.mubr.f32.mxu0 0.0
      %359 = vmatmul.mubr.f32.gmra.mrb[0].mxu0 %v292
      %v360 = vpop.f32.mrb[0].mxu0
      %v361 = vadd.f32 0.0, %v360
      %v362 = vpop.f32.mrb[0].mxu0
      %363 = vdwg.mxu0
      %v364 = vadd.f32 %v288, %v361
      %365 = vst.msk [vmem:[#allocation2] sm:$0xff] %vm274, %v364
      %s366 = scalar_lea.vmem %s2, 96
      %v367 = vld [vmem:[%s366] sm:$0xff]
      %v368 = vld [vmem:[%s366 + $0x8] sm:$0xff]
      %v369 = vld [vmem:[%s366 + $0x10] sm:$0xff]
      %v370 = vld [vmem:[%s366 + $0x18] sm:$0xff]
      %v371 = vld [vmem:[%s366 + $0x20] sm:$0xff]
      %v372 = vld [vmem:[%s366 + $0x28] sm:$0xff]
      %v373 = vld [vmem:[%s366 + $0x30] sm:$0xff]
      %v374 = vld [vmem:[%s366 + $0x38] sm:$0xff]
      %v375 = vld [vmem:[%s366 + $0x40] sm:$0xff]
      %v376 = vld [vmem:[%s366 + $0x48] sm:$0xff]
      %v377 = vld [vmem:[%s366 + $0x50] sm:$0xff]
      %v378 = vld [vmem:[%s366 + $0x58] sm:$0xff]
      %v379 = vld [vmem:[#allocation2] sm:$0x7f]
      %v380 = vld [vmem:[%s249 + $0x1] sm:$0x7f]
      %v382 = vsel %vm290, %v380, 0
      %384 = vmatprep.subr.mxu0 0.0
      %385 = vmatpush1.msra.mxu0 %v367
      %386 = vmatprep.subr.mxu0 0.0
      %387 = vmatpush1.msra.mxu0 %v368
      %388 = vmatprep.subr.mxu0 0.0
      %389 = vmatpush1.msra.mxu0 %v369
      %390 = vmatprep.subr.mxu0 0.0
      %391 = vmatpush1.msra.mxu0 %v370
      %392 = vmatprep.subr.mxu0 0.0
      %393 = vmatpush1.msra.mxu0 %v371
      %394 = vmatprep.subr.mxu0 0.0
      %395 = vmatpush1.msra.mxu0 %v372
      %396 = vmatprep.subr.mxu0 0.0
      %397 = vmatpush1.msra.mxu0 %v373
      %398 = vmatprep.subr.mxu0 0.0
      %399 = vmatpush1.msra.mxu0 %v374
      %400 = vmatprep.subr.mxu0 0.0
      %401 = vmatpush1.msra.mxu0 %v375
      %402 = vmatprep.subr.mxu0 0.0
      %403 = vmatpush1.msra.mxu0 %v376
      %404 = vmatprep.subr.mxu0 0.0
      %405 = vmatpush1.msra.mxu0 %v377
      %406 = vmatprep.subr.mxu0 0.0
      %407 = vmatpush1.msra.mxu0 %v378
      %408 = vmatprep.subr.mxu0 0.0
      %409 = vmatpush1.msra.mxu0 0.0
      %410 = vmatprep.subr.mxu0 0.0
      %411 = vmatpush1.msra.mxu0 0.0
      %412 = vmatprep.subr.mxu0 0.0
      %413 = vmatpush1.msra.mxu0 0.0
      %414 = vmatprep.subr.mxu0 0.0
      %415 = vmatpush1.msra.mxu0 0.0
      %416 = vmatprep.subr.mxu0 0.0
      %417 = vmatpush1.msra.mxu0 0.0
      %418 = vmatprep.subr.mxu0 0.0
      %419 = vmatpush1.msra.mxu0 0.0
      %420 = vmatprep.subr.mxu0 0.0
      %421 = vmatpush1.msra.mxu0 0.0
      %422 = vmatprep.subr.mxu0 0.0
      %423 = vmatpush1.msra.mxu0 0.0
      %424 = vmatprep.subr.mxu0 0.0
      %425 = vmatpush1.msra.mxu0 0.0
      %426 = vmatprep.subr.mxu0 0.0
      %427 = vmatpush1.msra.mxu0 0.0
      %428 = vmatprep.subr.mxu0 0.0
      %429 = vmatpush1.msra.mxu0 0.0
      %430 = vmatprep.subr.mxu0 0.0
      %431 = vmatpush1.msra.mxu0 0.0
      %432 = vmatprep.subr.mxu0 0.0
      %433 = vmatpush1.msra.mxu0 0.0
      %434 = vmatprep.subr.mxu0 0.0
      %435 = vmatpush1.msra.mxu0 0.0
      %436 = vmatprep.subr.mxu0 0.0
      %437 = vmatpush1.msra.mxu0 0.0
      %438 = vmatprep.subr.mxu0 0.0
      %439 = vmatpush1.msra.mxu0 0.0
      %440 = vmatprep.subr.mxu0 0.0
      %441 = vmatpush1.msra.mxu0 0.0
      %442 = vmatprep.subr.mxu0 0.0
      %443 = vmatpush1.msra.mxu0 0.0
      %444 = vmatprep.subr.mxu0 0.0
      %445 = vmatpush1.msra.mxu0 0.0
      %446 = vmatprep.subr.mxu0 0.0
      %447 = vmatpush1.msra.mxu0 0.0
      %448 = vmatprep.mubr.f32.mxu0 0.0
      %449 = vmatmul.mubr.f32.gmra.mrb[0].mxu0 %v382
      %v450 = vpop.f32.mrb[0].mxu0
      %v451 = vadd.f32 0.0, %v450
      %v452 = vpop.f32.mrb[0].mxu0
      %453 = vdwg.mxu0
      %v454 = vadd.f32 %v379, %v451
      %vm455 = vcmask 6144
      %456 = vst.msk [vmem:[#allocation2] sm:$0x7f] %vm455, %v454
      %v457 = vld [vmem:[#allocation2 + $0x7] sm:$0x1]
      %v458 = vld [vmem:[%s258] sm:$0x1]
      %v460 = vsel %vm290, %v458, 0
      %462 = vmatprep.subr.mxu0 0.0
      %463 = vmatpush1.msra.mxu0 %v367
      %464 = vmatprep.subr.mxu0 0.0
      %465 = vmatpush1.msra.mxu0 %v368
      %466 = vmatprep.subr.mxu0 0.0
      %467 = vmatpush1.msra.mxu0 %v369
      %468 = vmatprep.subr.mxu0 0.0
      %469 = vmatpush1.msra.mxu0 %v370
      %470 = vmatprep.subr.mxu0 0.0
      %471 = vmatpush1.msra.mxu0 %v371
      %472 = vmatprep.subr.mxu0 0.0
      %473 = vmatpush1.msra.mxu0 %v372
      %474 = vmatprep.subr.mxu0 0.0
      %475 = vmatpush1.msra.mxu0 %v373
      %476 = vmatprep.subr.mxu0 0.0
      %477 = vmatpush1.msra.mxu0 %v374
      %478 = vmatprep.subr.mxu0 0.0
      %479 = vmatpush1.msra.mxu0 %v375
      %480 = vmatprep.subr.mxu0 0.0
      %481 = vmatpush1.msra.mxu0 %v376
      %482 = vmatprep.subr.mxu0 0.0
      %483 = vmatpush1.msra.mxu0 %v377
      %484 = vmatprep.subr.mxu0 0.0
      %485 = vmatpush1.msra.mxu0 %v378
      %486 = vmatprep.subr.mxu0 0.0
      %487 = vmatpush1.msra.mxu0 0.0
      %488 = vmatprep.subr.mxu0 0.0
      %489 = vmatpush1.msra.mxu0 0.0
      %490 = vmatprep.subr.mxu0 0.0
      %491 = vmatpush1.msra.mxu0 0.0
      %492 = vmatprep.subr.mxu0 0.0
      %493 = vmatpush1.msra.mxu0 0.0
      %494 = vmatprep.subr.mxu0 0.0
      %495 = vmatpush1.msra.mxu0 0.0
      %496 = vmatprep.subr.mxu0 0.0
      %497 = vmatpush1.msra.mxu0 0.0
      %498 = vmatprep.subr.mxu0 0.0
      %499 = vmatpush1.msra.mxu0 0.0
      %500 = vmatprep.subr.mxu0 0.0
      %501 = vmatpush1.msra.mxu0 0.0
      %502 = vmatprep.subr.mxu0 0.0
      %503 = vmatpush1.msra.mxu0 0.0
      %504 = vmatprep.subr.mxu0 0.0
      %505 = vmatpush1.msra.mxu0 0.0
      %506 = vmatprep.subr.mxu0 0.0
      %507 = vmatpush1.msra.mxu0 0.0
      %508 = vmatprep.subr.mxu0 0.0
      %509 = vmatpush1.msra.mxu0 0.0
      %510 = vmatprep.subr.mxu0 0.0
      %511 = vmatpush1.msra.mxu0 0.0
      %512 = vmatprep.subr.mxu0 0.0
      %513 = vmatpush1.msra.mxu0 0.0
      %514 = vmatprep.subr.mxu0 0.0
      %515 = vmatpush1.msra.mxu0 0.0
      %516 = vmatprep.subr.mxu0 0.0
      %517 = vmatpush1.msra.mxu0 0.0
      %518 = vmatprep.subr.mxu0 0.0
      %519 = vmatpush1.msra.mxu0 0.0
      %520 = vmatprep.subr.mxu0 0.0
      %521 = vmatpush1.msra.mxu0 0.0
      %522 = vmatprep.subr.mxu0 0.0
      %523 = vmatpush1.msra.mxu0 0.0
      %524 = vmatprep.subr.mxu0 0.0
      %525 = vmatpush1.msra.mxu0 0.0
      %526 = vmatprep.mubr.f32.mxu0 0.0
      %527 = vmatmul.mubr.f32.gmra.mrb[0].mxu0 %v460
      %v528 = vpop.f32.mrb[0].mxu0
      %v529 = vadd.f32 0.0, %v528
      %v530 = vpop.f32.mrb[0].mxu0
      %531 = vdwg.mxu0
      %v532 = vadd.f32 %v457, %v529
      %vm533 = vcmask 0
      %534 = vst.msk [vmem:[#allocation2 + $0x7] sm:$0x1] %vm533, %v532
      %s535 = scalar_lea.vmem %s2, 192
      %v536 = vld [vmem:[%s535] sm:$0xff]
      %v537 = vld [vmem:[%s535 + $0x8] sm:$0xff]
      %v538 = vld [vmem:[%s535 + $0x10] sm:$0xff]
      %v539 = vld [vmem:[%s535 + $0x18] sm:$0xff]
      %v540 = vld [vmem:[%s535 + $0x20] sm:$0xff]
      %v541 = vld [vmem:[%s535 + $0x28] sm:$0xff]
      %v542 = vld [vmem:[%s535 + $0x30] sm:$0xff]
      %v543 = vld [vmem:[%s535 + $0x38] sm:$0xff]
      %v544 = vld [vmem:[%s535 + $0x40] sm:$0xff]
      %v545 = vld [vmem:[%s535 + $0x48] sm:$0xff]
      %v546 = vld [vmem:[%s535 + $0x50] sm:$0xff]
      %v547 = vld [vmem:[%s535 + $0x58] sm:$0xff]
      %v548 = vld [vmem:[#allocation2] sm:$0x3f]
      %v549 = vld [vmem:[%s249 + $0x2] sm:$0x3f]
      %v551 = vsel %vm290, %v549, 0
      %553 = vmatprep.subr.mxu0 0.0
      %554 = vmatpush1.msra.mxu0 %v536
      %555 = vmatprep.subr.mxu0 0.0
      %556 = vmatpush1.msra.mxu0 %v537
      %557 = vmatprep.subr.mxu0 0.0
      %558 = vmatpush1.msra.mxu0 %v538
      %559 = vmatprep.subr.mxu0 0.0
      %560 = vmatpush1.msra.mxu0 %v539
      %561 = vmatprep.subr.mxu0 0.0
      %562 = vmatpush1.msra.mxu0 %v540
      %563 = vmatprep.subr.mxu0 0.0
      %564 = vmatpush1.msra.mxu0 %v541
      %565 = vmatprep.subr.mxu0 0.0
      %566 = vmatpush1.msra.mxu0 %v542
      %567 = vmatprep.subr.mxu0 0.0
      %568 = vmatpush1.msra.mxu0 %v543
      %569 = vmatprep.subr.mxu0 0.0
      %570 = vmatpush1.msra.mxu0 %v544
      %571 = vmatprep.subr.mxu0 0.0
      %572 = vmatpush1.msra.mxu0 %v545
      %573 = vmatprep.subr.mxu0 0.0
      %574 = vmatpush1.msra.mxu0 %v546
      %575 = vmatprep.subr.mxu0 0.0
      %576 = vmatpush1.msra.mxu0 %v547
      %577 = vmatprep.subr.mxu0 0.0
      %578 = vmatpush1.msra.mxu0 0.0
      %579 = vmatprep.subr.mxu0 0.0
      %580 = vmatpush1.msra.mxu0 0.0
      %581 = vmatprep.subr.mxu0 0.0
      %582 = vmatpush1.msra.mxu0 0.0
      %583 = vmatprep.subr.mxu0 0.0
      %584 = vmatpush1.msra.mxu0 0.0
      %585 = vmatprep.subr.mxu0 0.0
      %586 = vmatpush1.msra.mxu0 0.0
      %587 = vmatprep.subr.mxu0 0.0
      %588 = vmatpush1.msra.mxu0 0.0
      %589 = vmatprep.subr.mxu0 0.0
      %590 = vmatpush1.msra.mxu0 0.0
      %591 = vmatprep.subr.mxu0 0.0
      %592 = vmatpush1.msra.mxu0 0.0
      %593 = vmatprep.subr.mxu0 0.0
      %594 = vmatpush1.msra.mxu0 0.0
      %595 = vmatprep.subr.mxu0 0.0
      %596 = vmatpush1.msra.mxu0 0.0
      %597 = vmatprep.subr.mxu0 0.0
      %598 = vmatpush1.msra.mxu0 0.0
      %599 = vmatprep.subr.mxu0 0.0
      %600 = vmatpush1.msra.mxu0 0.0
      %601 = vmatprep.subr.mxu0 0.0
      %602 = vmatpush1.msra.mxu0 0.0
      %603 = vmatprep.subr.mxu0 0.0
      %604 = vmatpush1.msra.mxu0 0.0
      %605 = vmatprep.subr.mxu0 0.0
      %606 = vmatpush1.msra.mxu0 0.0
      %607 = vmatprep.subr.mxu0 0.0
      %608 = vmatpush1.msra.mxu0 0.0
      %609 = vmatprep.subr.mxu0 0.0
      %610 = vmatpush1.msra.mxu0 0.0
      %611 = vmatprep.subr.mxu0 0.0
      %612 = vmatpush1.msra.mxu0 0.0
      %613 = vmatprep.subr.mxu0 0.0
      %614 = vmatpush1.msra.mxu0 0.0
      %615 = vmatprep.subr.mxu0 0.0
      %616 = vmatpush1.msra.mxu0 0.0
      %617 = vmatprep.mubr.f32.mxu0 0.0
      %618 = vmatmul.mubr.f32.gmra.mrb[0].mxu0 %v551
      %v619 = vpop.f32.mrb[0].mxu0
      %v620 = vadd.f32 0.0, %v619
      %v621 = vpop.f32.mrb[0].mxu0
      %622 = vdwg.mxu0
      %v623 = vadd.f32 %v548, %v620
      %vm624 = vcmask 5120
      %625 = vst.msk [vmem:[#allocation2] sm:$0x3f] %vm624, %v623
      %v626 = vld [vmem:[#allocation2 + $0x6] sm:$0x3]
      %v627 = vld [vmem:[%s258] sm:$0x3]
      %v629 = vsel %vm290, %v627, 0
      %631 = vmatprep.subr.mxu0 0.0
      %632 = vmatpush1.msra.mxu0 %v536
      %633 = vmatprep.subr.mxu0 0.0
      %634 = vmatpush1.msra.mxu0 %v537
      %635 = vmatprep.subr.mxu0 0.0
      %636 = vmatpush1.msra.mxu0 %v538
      %637 = vmatprep.subr.mxu0 0.0
      %638 = vmatpush1.msra.mxu0 %v539
      %639 = vmatprep.subr.mxu0 0.0
      %640 = vmatpush1.msra.mxu0 %v540
      %641 = vmatprep.subr.mxu0 0.0
      %642 = vmatpush1.msra.mxu0 %v541
      %643 = vmatprep.subr.mxu0 0.0
      %644 = vmatpush1.msra.mxu0 %v542
      %645 = vmatprep.subr.mxu0 0.0
      %646 = vmatpush1.msra.mxu0 %v543
      %647 = vmatprep.subr.mxu0 0.0
      %648 = vmatpush1.msra.mxu0 %v544
      %649 = vmatprep.subr.mxu0 0.0
      %650 = vmatpush1.msra.mxu0 %v545
      %651 = vmatprep.subr.mxu0 0.0
      %652 = vmatpush1.msra.mxu0 %v546
      %653 = vmatprep.subr.mxu0 0.0
      %654 = vmatpush1.msra.mxu0 %v547
      %655 = vmatprep.subr.mxu0 0.0
      %656 = vmatpush1.msra.mxu0 0.0
      %657 = vmatprep.subr.mxu0 0.0
      %658 = vmatpush1.msra.mxu0 0.0
      %659 = vmatprep.subr.mxu0 0.0
      %660 = vmatpush1.msra.mxu0 0.0
      %661 = vmatprep.subr.mxu0 0.0
      %662 = vmatpush1.msra.mxu0 0.0
      %663 = vmatprep.subr.mxu0 0.0
      %664 = vmatpush1.msra.mxu0 0.0
      %665 = vmatprep.subr.mxu0 0.0
      %666 = vmatpush1.msra.mxu0 0.0
      %667 = vmatprep.subr.mxu0 0.0
      %668 = vmatpush1.msra.mxu0 0.0
      %669 = vmatprep.subr.mxu0 0.0
      %670 = vmatpush1.msra.mxu0 0.0
      %671 = vmatprep.subr.mxu0 0.0
      %672 = vmatpush1.msra.mxu0 0.0
      %673 = vmatprep.subr.mxu0 0.0
      %674 = vmatpush1.msra.mxu0 0.0
      %675 = vmatprep.subr.mxu0 0.0
      %676 = vmatpush1.msra.mxu0 0.0
      %677 = vmatprep.subr.mxu0 0.0
      %678 = vmatpush1.msra.mxu0 0.0
      %679 = vmatprep.subr.mxu0 0.0
      %680 = vmatpush1.msra.mxu0 0.0
      %681 = vmatprep.subr.mxu0 0.0
      %682 = vmatpush1.msra.mxu0 0.0
      %683 = vmatprep.subr.mxu0 0.0
      %684 = vmatpush1.msra.mxu0 0.0
      %685 = vmatprep.subr.mxu0 0.0
      %686 = vmatpush1.msra.mxu0 0.0
      %687 = vmatprep.subr.mxu0 0.0
      %688 = vmatpush1.msra.mxu0 0.0
      %689 = vmatprep.subr.mxu0 0.0
      %690 = vmatpush1.msra.mxu0 0.0
      %691 = vmatprep.subr.mxu0 0.0
      %692 = vmatpush1.msra.mxu0 0.0
      %693 = vmatprep.subr.mxu0 0.0
      %694 = vmatpush1.msra.mxu0 0.0
      %695 = vmatprep.mubr.f32.mxu0 0.0
      %696 = vmatmul.mubr.f32.gmra.mrb[0].mxu0 %v629
      %v697 = vpop.f32.mrb[0].mxu0
      %v698 = vadd.f32 0.0, %v697
      %v699 = vpop.f32.mrb[0].mxu0
      %700 = vdwg.mxu0
      %v701 = vadd.f32 %v626, %v698
      %vm702 = vcmask 1024
      %703 = vst.msk [vmem:[#allocation2 + $0x6] sm:$0x3] %vm702, %v701
      %s704 = scalar_lea.vmem %s2, 288
      %v705 = vld [vmem:[%s704] sm:$0xff]
      %v706 = vld [vmem:[%s704 + $0x8] sm:$0xff]
      %v707 = vld [vmem:[%s704 + $0x10] sm:$0xff]
      %v708 = vld [vmem:[%s704 + $0x18] sm:$0xff]
      %v709 = vld [vmem:[%s704 + $0x20] sm:$0xff]
      %v710 = vld [vmem:[%s704 + $0x28] sm:$0xff]
      %v711 = vld [vmem:[%s704 + $0x30] sm:$0xff]
      %v712 = vld [vmem:[%s704 + $0x38] sm:$0xff]
      %v713 = vld [vmem:[%s704 + $0x40] sm:$0xff]
      %v714 = vld [vmem:[%s704 + $0x48] sm:$0xff]
      %v715 = vld [vmem:[%s704 + $0x50] sm:$0xff]
      %v716 = vld [vmem:[%s704 + $0x58] sm:$0xff]
      %v717 = vld [vmem:[#allocation2] sm:$0x1f]
      %v718 = vld [vmem:[%s249 + $0x3] sm:$0x1f]
      %v720 = vsel %vm290, %v718, 0
      %722 = vmatprep.subr.mxu0 0.0
      %723 = vmatpush1.msra.mxu0 %v705
      %724 = vmatprep.subr.mxu0 0.0
      %725 = vmatpush1.msra.mxu0 %v706
      %726 = vmatprep.subr.mxu0 0.0
      %727 = vmatpush1.msra.mxu0 %v707
      %728 = vmatprep.subr.mxu0 0.0
      %729 = vmatpush1.msra.mxu0 %v708
      %730 = vmatprep.subr.mxu0 0.0
      %731 = vmatpush1.msra.mxu0 %v709
      %732 = vmatprep.subr.mxu0 0.0
      %733 = vmatpush1.msra.mxu0 %v710
      %734 = vmatprep.subr.mxu0 0.0
      %735 = vmatpush1.msra.mxu0 %v711
      %736 = vmatprep.subr.mxu0 0.0
      %737 = vmatpush1.msra.mxu0 %v712
      %738 = vmatprep.subr.mxu0 0.0
      %739 = vmatpush1.msra.mxu0 %v713
      %740 = vmatprep.subr.mxu0 0.0
      %741 = vmatpush1.msra.mxu0 %v714
      %742 = vmatprep.subr.mxu0 0.0
      %743 = vmatpush1.msra.mxu0 %v715
      %744 = vmatprep.subr.mxu0 0.0
      %745 = vmatpush1.msra.mxu0 %v716
      %746 = vmatprep.subr.mxu0 0.0
      %747 = vmatpush1.msra.mxu0 0.0
      %748 = vmatprep.subr.mxu0 0.0
      %749 = vmatpush1.msra.mxu0 0.0
      %750 = vmatprep.subr.mxu0 0.0
      %751 = vmatpush1.msra.mxu0 0.0
      %752 = vmatprep.subr.mxu0 0.0
      %753 = vmatpush1.msra.mxu0 0.0
      %754 = vmatprep.subr.mxu0 0.0
      %755 = vmatpush1.msra.mxu0 0.0
      %756 = vmatprep.subr.mxu0 0.0
      %757 = vmatpush1.msra.mxu0 0.0
      %758 = vmatprep.subr.mxu0 0.0
      %759 = vmatpush1.msra.mxu0 0.0
      %760 = vmatprep.subr.mxu0 0.0
      %761 = vmatpush1.msra.mxu0 0.0
      %762 = vmatprep.subr.mxu0 0.0
      %763 = vmatpush1.msra.mxu0 0.0
      %764 = vmatprep.subr.mxu0 0.0
      %765 = vmatpush1.msra.mxu0 0.0
      %766 = vmatprep.subr.mxu0 0.0
      %767 = vmatpush1.msra.mxu0 0.0
      %768 = vmatprep.subr.mxu0 0.0
      %769 = vmatpush1.msra.mxu0 0.0
      %770 = vmatprep.subr.mxu0 0.0
      %771 = vmatpush1.msra.mxu0 0.0
      %772 = vmatprep.subr.mxu0 0.0
      %773 = vmatpush1.msra.mxu0 0.0
      %774 = vmatprep.subr.mxu0 0.0
      %775 = vmatpush1.msra.mxu0 0.0
      %776 = vmatprep.subr.mxu0 0.0
      %777 = vmatpush1.msra.mxu0 0.0
      %778 = vmatprep.subr.mxu0 0.0
      %779 = vmatpush1.msra.mxu0 0.0
      %780 = vmatprep.subr.mxu0 0.0
      %781 = vmatpush1.msra.mxu0 0.0
      %782 = vmatprep.subr.mxu0 0.0
      %783 = vmatpush1.msra.mxu0 0.0
      %784 = vmatprep.subr.mxu0 0.0
      %785 = vmatpush1.msra.mxu0 0.0
      %786 = vmatprep.mubr.f32.mxu0 0.0
      %787 = vmatmul.mubr.f32.gmra.mrb[0].mxu0 %v720
      %v788 = vpop.f32.mrb[0].mxu0
      %v789 = vadd.f32 0.0, %v788
      %v790 = vpop.f32.mrb[0].mxu0
      %791 = vdwg.mxu0
      %v792 = vadd.f32 %v717, %v789
      %vm793 = vcmask 4096
      %794 = vst.msk [vmem:[#allocation2] sm:$0x1f] %vm793, %v792
      %v795 = vld [vmem:[#allocation2 + $0x5] sm:$0x7]
      %v796 = vld [vmem:[%s258] sm:$0x7]
      %v798 = vsel %vm290, %v796, 0
      %800 = vmatprep.subr.mxu0 0.0
      %801 = vmatpush1.msra.mxu0 %v705
      %802 = vmatprep.subr.mxu0 0.0
      %803 = vmatpush1.msra.mxu0 %v706
      %804 = vmatprep.subr.mxu0 0.0
      %805 = vmatpush1.msra.mxu0 %v707
      %806 = vmatprep.subr.mxu0 0.0
      %807 = vmatpush1.msra.mxu0 %v708
      %808 = vmatprep.subr.mxu0 0.0
      %809 = vmatpush1.msra.mxu0 %v709
      %810 = vmatprep.subr.mxu0 0.0
      %811 = vmatpush1.msra.mxu0 %v710
      %812 = vmatprep.subr.mxu0 0.0
      %813 = vmatpush1.msra.mxu0 %v711
      %814 = vmatprep.subr.mxu0 0.0
      %815 = vmatpush1.msra.mxu0 %v712
      %816 = vmatprep.subr.mxu0 0.0
      %817 = vmatpush1.msra.mxu0 %v713
      %818 = vmatprep.subr.mxu0 0.0
      %819 = vmatpush1.msra.mxu0 %v714
      %820 = vmatprep.subr.mxu0 0.0
      %821 = vmatpush1.msra.mxu0 %v715
      %822 = vmatprep.subr.mxu0 0.0
      %823 = vmatpush1.msra.mxu0 %v716
      %824 = vmatprep.subr.mxu0 0.0
      %825 = vmatpush1.msra.mxu0 0.0
      %826 = vmatprep.subr.mxu0 0.0
      %827 = vmatpush1.msra.mxu0 0.0
      %828 = vmatprep.subr.mxu0 0.0
      %829 = vmatpush1.msra.mxu0 0.0
      %830 = vmatprep.subr.mxu0 0.0
      %831 = vmatpush1.msra.mxu0 0.0
      %832 = vmatprep.subr.mxu0 0.0
      %833 = vmatpush1.msra.mxu0 0.0
      %834 = vmatprep.subr.mxu0 0.0
      %835 = vmatpush1.msra.mxu0 0.0
      %836 = vmatprep.subr.mxu0 0.0
      %837 = vmatpush1.msra.mxu0 0.0
      %838 = vmatprep.subr.mxu0 0.0
      %839 = vmatpush1.msra.mxu0 0.0
      %840 = vmatprep.subr.mxu0 0.0
      %841 = vmatpush1.msra.mxu0 0.0
      %842 = vmatprep.subr.mxu0 0.0
      %843 = vmatpush1.msra.mxu0 0.0
      %844 = vmatprep.subr.mxu0 0.0
      %845 = vmatpush1.msra.mxu0 0.0
      %846 = vmatprep.subr.mxu0 0.0
      %847 = vmatpush1.msra.mxu0 0.0
      %848 = vmatprep.subr.mxu0 0.0
      %849 = vmatpush1.msra.mxu0 0.0
      %850 = vmatprep.subr.mxu0 0.0
      %851 = vmatpush1.msra.mxu0 0.0
      %852 = vmatprep.subr.mxu0 0.0
      %853 = vmatpush1.msra.mxu0 0.0
      %854 = vmatprep.subr.mxu0 0.0
      %855 = vmatpush1.msra.mxu0 0.0
      %856 = vmatprep.subr.mxu0 0.0
      %857 = vmatpush1.msra.mxu0 0.0
      %858 = vmatprep.subr.mxu0 0.0
      %859 = vmatpush1.msra.mxu0 0.0
      %860 = vmatprep.subr.mxu0 0.0
      %861 = vmatpush1.msra.mxu0 0.0
      %862 = vmatprep.subr.mxu0 0.0
      %863 = vmatpush1.msra.mxu0 0.0
      %864 = vmatprep.mubr.f32.mxu0 0.0
      %865 = vmatmul.mubr.f32.gmra.mrb[0].mxu0 %v798
      %v866 = vpop.f32.mrb[0].mxu0
      %v867 = vadd.f32 0.0, %v866
      %v868 = vpop.f32.mrb[0].mxu0
      %869 = vdwg.mxu0
      %v870 = vadd.f32 %v795, %v867
      %vm871 = vcmask 2048
      %872 = vst.msk [vmem:[#allocation2 + $0x5] sm:$0x7] %vm871, %v870
      %s873 = scalar_lea.vmem %s2, 384
      %v874 = vld [vmem:[%s873] sm:$0xff]
      %v875 = vld [vmem:[%s873 + $0x8] sm:$0xff]
      %v876 = vld [vmem:[%s873 + $0x10] sm:$0xff]
      %v877 = vld [vmem:[%s873 + $0x18] sm:$0xff]
      %v878 = vld [vmem:[%s873 + $0x20] sm:$0xff]
      %v879 = vld [vmem:[%s873 + $0x28] sm:$0xff]
      %v880 = vld [vmem:[%s873 + $0x30] sm:$0xff]
      %v881 = vld [vmem:[%s873 + $0x38] sm:$0xff]
      %v882 = vld [vmem:[%s873 + $0x40] sm:$0xff]
      %v883 = vld [vmem:[%s873 + $0x48] sm:$0xff]
      %v884 = vld [vmem:[%s873 + $0x50] sm:$0xff]
      %v885 = vld [vmem:[%s873 + $0x58] sm:$0xff]
      %v886 = vld [vmem:[#allocation2] sm:$0xf]
      %v887 = vld [vmem:[%s249 + $0x4] sm:$0xf]
      %v889 = vsel %vm290, %v887, 0
      %891 = vmatprep.subr.mxu0 0.0
      %892 = vmatpush1.msra.mxu0 %v874
      %893 = vmatprep.subr.mxu0 0.0
      %894 = vmatpush1.msra.mxu0 %v875
      %895 = vmatprep.subr.mxu0 0.0
      %896 = vmatpush1.msra.mxu0 %v876
      %897 = vmatprep.subr.mxu0 0.0
      %898 = vmatpush1.msra.mxu0 %v877
      %899 = vmatprep.subr.mxu0 0.0
      %900 = vmatpush1.msra.mxu0 %v878
      %901 = vmatprep.subr.mxu0 0.0
      %902 = vmatpush1.msra.mxu0 %v879
      %903 = vmatprep.subr.mxu0 0.0
      %904 = vmatpush1.msra.mxu0 %v880
      %905 = vmatprep.subr.mxu0 0.0
      %906 = vmatpush1.msra.mxu0 %v881
      %907 = vmatprep.subr.mxu0 0.0
      %908 = vmatpush1.msra.mxu0 %v882
      %909 = vmatprep.subr.mxu0 0.0
      %910 = vmatpush1.msra.mxu0 %v883
      %911 = vmatprep.subr.mxu0 0.0
      %912 = vmatpush1.msra.mxu0 %v884
      %913 = vmatprep.subr.mxu0 0.0
      %914 = vmatpush1.msra.mxu0 %v885
      %915 = vmatprep.subr.mxu0 0.0
      %916 = vmatpush1.msra.mxu0 0.0
      %917 = vmatprep.subr.mxu0 0.0
      %918 = vmatpush1.msra.mxu0 0.0
      %919 = vmatprep.subr.mxu0 0.0
      %920 = vmatpush1.msra.mxu0 0.0
      %921 = vmatprep.subr.mxu0 0.0
      %922 = vmatpush1.msra.mxu0 0.0
      %923 = vmatprep.subr.mxu0 0.0
      %924 = vmatpush1.msra.mxu0 0.0
      %925 = vmatprep.subr.mxu0 0.0
      %926 = vmatpush1.msra.mxu0 0.0
      %927 = vmatprep.subr.mxu0 0.0
      %928 = vmatpush1.msra.mxu0 0.0
      %929 = vmatprep.subr.mxu0 0.0
      %930 = vmatpush1.msra.mxu0 0.0
      %931 = vmatprep.subr.mxu0 0.0
      %932 = vmatpush1.msra.mxu0 0.0
      %933 = vmatprep.subr.mxu0 0.0
      %934 = vmatpush1.msra.mxu0 0.0
      %935 = vmatprep.subr.mxu0 0.0
      %936 = vmatpush1.msra.mxu0 0.0
      %937 = vmatprep.subr.mxu0 0.0
      %938 = vmatpush1.msra.mxu0 0.0
      %939 = vmatprep.subr.mxu0 0.0
      %940 = vmatpush1.msra.mxu0 0.0
      %941 = vmatprep.subr.mxu0 0.0
      %942 = vmatpush1.msra.mxu0 0.0
      %943 = vmatprep.subr.mxu0 0.0
      %944 = vmatpush1.msra.mxu0 0.0
      %945 = vmatprep.subr.mxu0 0.0
      %946 = vmatpush1.msra.mxu0 0.0
      %947 = vmatprep.subr.mxu0 0.0
      %948 = vmatpush1.msra.mxu0 0.0
      %949 = vmatprep.subr.mxu0 0.0
      %950 = vmatpush1.msra.mxu0 0.0
      %951 = vmatprep.subr.mxu0 0.0
      %952 = vmatpush1.msra.mxu0 0.0
      %953 = vmatprep.subr.mxu0 0.0
      %954 = vmatpush1.msra.mxu0 0.0
      %955 = vmatprep.mubr.f32.mxu0 0.0
      %956 = vmatmul.mubr.f32.gmra.mrb[0].mxu0 %v889
      %v957 = vpop.f32.mrb[0].mxu0
      %v958 = vadd.f32 0.0, %v957
      %v959 = vpop.f32.mrb[0].mxu0
      %960 = vdwg.mxu0
      %v961 = vadd.f32 %v886, %v958
      %vm962 = vcmask 3072
      %963 = vst.msk [vmem:[#allocation2] sm:$0xf] %vm962, %v961
      %v964 = vld [vmem:[#allocation2 + $0x4] sm:$0xf]
      %v965 = vld [vmem:[%s258] sm:$0xf]
      %v967 = vsel %vm290, %v965, 0
      %969 = vmatprep.subr.mxu0 0.0
      %970 = vmatpush1.msra.mxu0 %v874
      %971 = vmatprep.subr.mxu0 0.0
      %972 = vmatpush1.msra.mxu0 %v875
      %973 = vmatprep.subr.mxu0 0.0
      %974 = vmatpush1.msra.mxu0 %v876
      %975 = vmatprep.subr.mxu0 0.0
      %976 = vmatpush1.msra.mxu0 %v877
      %977 = vmatprep.subr.mxu0 0.0
      %978 = vmatpush1.msra.mxu0 %v878
      %979 = vmatprep.subr.mxu0 0.0
      %980 = vmatpush1.msra.mxu0 %v879
      %981 = vmatprep.subr.mxu0 0.0
      %982 = vmatpush1.msra.mxu0 %v880
      %983 = vmatprep.subr.mxu0 0.0
      %984 = vmatpush1.msra.mxu0 %v881
      %985 = vmatprep.subr.mxu0 0.0
      %986 = vmatpush1.msra.mxu0 %v882
      %987 = vmatprep.subr.mxu0 0.0
      %988 = vmatpush1.msra.mxu0 %v883
      %989 = vmatprep.subr.mxu0 0.0
      %990 = vmatpush1.msra.mxu0 %v884
      %991 = vmatprep.subr.mxu0 0.0
      %992 = vmatpush1.msra.mxu0 %v885
      %993 = vmatprep.subr.mxu0 0.0
      %994 = vmatpush1.msra.mxu0 0.0
      %995 = vmatprep.subr.mxu0 0.0
      %996 = vmatpush1.msra.mxu0 0.0
      %997 = vmatprep.subr.mxu0 0.0
      %998 = vmatpush1.msra.mxu0 0.0
      %999 = vmatprep.subr.mxu0 0.0
      %1000 = vmatpush1.msra.mxu0 0.0
      %1001 = vmatprep.subr.mxu0 0.0
      %1002 = vmatpush1.msra.mxu0 0.0
      %1003 = vmatprep.subr.mxu0 0.0
      %1004 = vmatpush1.msra.mxu0 0.0
      %1005 = vmatprep.subr.mxu0 0.0
      %1006 = vmatpush1.msra.mxu0 0.0
      %1007 = vmatprep.subr.mxu0 0.0
      %1008 = vmatpush1.msra.mxu0 0.0
      %1009 = vmatprep.subr.mxu0 0.0
      %1010 = vmatpush1.msra.mxu0 0.0
      %1011 = vmatprep.subr.mxu0 0.0
      %1012 = vmatpush1.msra.mxu0 0.0
      %1013 = vmatprep.subr.mxu0 0.0
      %1014 = vmatpush1.msra.mxu0 0.0
      %1015 = vmatprep.subr.mxu0 0.0
      %1016 = vmatpush1.msra.mxu0 0.0
      %1017 = vmatprep.subr.mxu0 0.0
      %1018 = vmatpush1.msra.mxu0 0.0
      %1019 = vmatprep.subr.mxu0 0.0
      %1020 = vmatpush1.msra.mxu0 0.0
      %1021 = vmatprep.subr.mxu0 0.0
      %1022 = vmatpush1.msra.mxu0 0.0
      %1023 = vmatprep.subr.mxu0 0.0
      %1024 = vmatpush1.msra.mxu0 0.0
      %1025 = vmatprep.subr.mxu0 0.0
      %1026 = vmatpush1.msra.mxu0 0.0
      %1027 = vmatprep.subr.mxu0 0.0
      %1028 = vmatpush1.msra.mxu0 0.0
      %1029 = vmatprep.subr.mxu0 0.0
      %1030 = vmatpush1.msra.mxu0 0.0
      %1031 = vmatprep.subr.mxu0 0.0
      %1032 = vmatpush1.msra.mxu0 0.0
      %1033 = vmatprep.mubr.f32.mxu0 0.0
      %1034 = vmatmul.mubr.f32.gmra.mrb[0].mxu0 %v967
      %v1035 = vpop.f32.mrb[0].mxu0
      %v1036 = vadd.f32 0.0, %v1035
      %v1037 = vpop.f32.mrb[0].mxu0
      %1038 = vdwg.mxu0
      %v1039 = vadd.f32 %v964, %v1036
      %1040 = vst.msk [vmem:[#allocation2 + $0x4] sm:$0xf] %vm962, %v1039
      %s1041 = scalar_lea.vmem %s2, 480
      %v1042 = vld [vmem:[%s1041] sm:$0xff]
      %v1043 = vld [vmem:[%s1041 + $0x8] sm:$0xff]
      %v1044 = vld [vmem:[%s1041 + $0x10] sm:$0xff]
      %v1045 = vld [vmem:[%s1041 + $0x18] sm:$0xff]
      %v1046 = vld [vmem:[%s1041 + $0x20] sm:$0xff]
      %v1047 = vld [vmem:[%s1041 + $0x28] sm:$0xff]
      %v1048 = vld [vmem:[%s1041 + $0x30] sm:$0xff]
      %v1049 = vld [vmem:[%s1041 + $0x38] sm:$0xff]
      %v1050 = vld [vmem:[%s1041 + $0x40] sm:$0xff]
      %v1051 = vld [vmem:[%s1041 + $0x48] sm:$0xff]
      %v1052 = vld [vmem:[%s1041 + $0x50] sm:$0xff]
      %v1053 = vld [vmem:[%s1041 + $0x58] sm:$0xff]
      %v1054 = vld [vmem:[#allocation2] sm:$0x7]
      %v1055 = vld [vmem:[%s249 + $0x5] sm:$0x7]
      %v1057 = vsel %vm290, %v1055, 0
      %1059 = vmatprep.subr.mxu0 0.0
      %1060 = vmatpush1.msra.mxu0 %v1042
      %1061 = vmatprep.subr.mxu0 0.0
      %1062 = vmatpush1.msra.mxu0 %v1043
      %1063 = vmatprep.subr.mxu0 0.0
      %1064 = vmatpush1.msra.mxu0 %v1044
      %1065 = vmatprep.subr.mxu0 0.0
      %1066 = vmatpush1.msra.mxu0 %v1045
      %1067 = vmatprep.subr.mxu0 0.0
      %1068 = vmatpush1.msra.mxu0 %v1046
      %1069 = vmatprep.subr.mxu0 0.0
      %1070 = vmatpush1.msra.mxu0 %v1047
      %1071 = vmatprep.subr.mxu0 0.0
      %1072 = vmatpush1.msra.mxu0 %v1048
      %1073 = vmatprep.subr.mxu0 0.0
      %1074 = vmatpush1.msra.mxu0 %v1049
      %1075 = vmatprep.subr.mxu0 0.0
      %1076 = vmatpush1.msra.mxu0 %v1050
      %1077 = vmatprep.subr.mxu0 0.0
      %1078 = vmatpush1.msra.mxu0 %v1051
      %1079 = vmatprep.subr.mxu0 0.0
      %1080 = vmatpush1.msra.mxu0 %v1052
      %1081 = vmatprep.subr.mxu0 0.0
      %1082 = vmatpush1.msra.mxu0 %v1053
      %1083 = vmatprep.subr.mxu0 0.0
      %1084 = vmatpush1.msra.mxu0 0.0
      %1085 = vmatprep.subr.mxu0 0.0
      %1086 = vmatpush1.msra.mxu0 0.0
      %1087 = vmatprep.subr.mxu0 0.0
      %1088 = vmatpush1.msra.mxu0 0.0
      %1089 = vmatprep.subr.mxu0 0.0
      %1090 = vmatpush1.msra.mxu0 0.0
      %1091 = vmatprep.subr.mxu0 0.0
      %1092 = vmatpush1.msra.mxu0 0.0
      %1093 = vmatprep.subr.mxu0 0.0
      %1094 = vmatpush1.msra.mxu0 0.0
      %1095 = vmatprep.subr.mxu0 0.0
      %1096 = vmatpush1.msra.mxu0 0.0
      %1097 = vmatprep.subr.mxu0 0.0
      %1098 = vmatpush1.msra.mxu0 0.0
      %1099 = vmatprep.subr.mxu0 0.0
      %1100 = vmatpush1.msra.mxu0 0.0
      %1101 = vmatprep.subr.mxu0 0.0
      %1102 = vmatpush1.msra.mxu0 0.0
      %1103 = vmatprep.subr.mxu0 0.0
      %1104 = vmatpush1.msra.mxu0 0.0
      %1105 = vmatprep.subr.mxu0 0.0
      %1106 = vmatpush1.msra.mxu0 0.0
      %1107 = vmatprep.subr.mxu0 0.0
      %1108 = vmatpush1.msra.mxu0 0.0
      %1109 = vmatprep.subr.mxu0 0.0
      %1110 = vmatpush1.msra.mxu0 0.0
      %1111 = vmatprep.subr.mxu0 0.0
      %1112 = vmatpush1.msra.mxu0 0.0
      %1113 = vmatprep.subr.mxu0 0.0
      %1114 = vmatpush1.msra.mxu0 0.0
      %1115 = vmatprep.subr.mxu0 0.0
      %1116 = vmatpush1.msra.mxu0 0.0
      %1117 = vmatprep.subr.mxu0 0.0
      %1118 = vmatpush1.msra.mxu0 0.0
      %1119 = vmatprep.subr.mxu0 0.0
      %1120 = vmatpush1.msra.mxu0 0.0
      %1121 = vmatprep.subr.mxu0 0.0
      %1122 = vmatpush1.msra.mxu0 0.0
      %1123 = vmatprep.mubr.f32.mxu0 0.0
      %1124 = vmatmul.mubr.f32.gmra.mrb[0].mxu0 %v1057
      %v1125 = vpop.f32.mrb[0].mxu0
      %v1126 = vadd.f32 0.0, %v1125
      %v1127 = vpop.f32.mrb[0].mxu0
      %1128 = vdwg.mxu0
      %v1129 = vadd.f32 %v1054, %v1126
      %1130 = vst.msk [vmem:[#allocation2] sm:$0x7] %vm871, %v1129
      %v1131 = vld [vmem:[#allocation2 + $0x3] sm:$0x1f]
      %v1132 = vld [vmem:[%s258] sm:$0x1f]
      %v1134 = vsel %vm290, %v1132, 0
      %1136 = vmatprep.subr.mxu0 0.0
      %1137 = vmatpush1.msra.mxu0 %v1042
      %1138 = vmatprep.subr.mxu0 0.0
      %1139 = vmatpush1.msra.mxu0 %v1043
      %1140 = vmatprep.subr.mxu0 0.0
      %1141 = vmatpush1.msra.mxu0 %v1044
      %1142 = vmatprep.subr.mxu0 0.0
      %1143 = vmatpush1.msra.mxu0 %v1045
      %1144 = vmatprep.subr.mxu0 0.0
      %1145 = vmatpush1.msra.mxu0 %v1046
      %1146 = vmatprep.subr.mxu0 0.0
      %1147 = vmatpush1.msra.mxu0 %v1047
      %1148 = vmatprep.subr.mxu0 0.0
      %1149 = vmatpush1.msra.mxu0 %v1048
      %1150 = vmatprep.subr.mxu0 0.0
      %1151 = vmatpush1.msra.mxu0 %v1049
      %1152 = vmatprep.subr.mxu0 0.0
      %1153 = vmatpush1.msra.mxu0 %v1050
      %1154 = vmatprep.subr.mxu0 0.0
      %1155 = vmatpush1.msra.mxu0 %v1051
      %1156 = vmatprep.subr.mxu0 0.0
      %1157 = vmatpush1.msra.mxu0 %v1052
      %1158 = vmatprep.subr.mxu0 0.0
      %1159 = vmatpush1.msra.mxu0 %v1053
      %1160 = vmatprep.subr.mxu0 0.0
      %1161 = vmatpush1.msra.mxu0 0.0
      %1162 = vmatprep.subr.mxu0 0.0
      %1163 = vmatpush1.msra.mxu0 0.0
      %1164 = vmatprep.subr.mxu0 0.0
      %1165 = vmatpush1.msra.mxu0 0.0
      %1166 = vmatprep.subr.mxu0 0.0
      %1167 = vmatpush1.msra.mxu0 0.0
      %1168 = vmatprep.subr.mxu0 0.0
      %1169 = vmatpush1.msra.mxu0 0.0
      %1170 = vmatprep.subr.mxu0 0.0
      %1171 = vmatpush1.msra.mxu0 0.0
      %1172 = vmatprep.subr.mxu0 0.0
      %1173 = vmatpush1.msra.mxu0 0.0
      %1174 = vmatprep.subr.mxu0 0.0
      %1175 = vmatpush1.msra.mxu0 0.0
      %1176 = vmatprep.subr.mxu0 0.0
      %1177 = vmatpush1.msra.mxu0 0.0
      %1178 = vmatprep.subr.mxu0 0.0
      %1179 = vmatpush1.msra.mxu0 0.0
      %1180 = vmatprep.subr.mxu0 0.0
      %1181 = vmatpush1.msra.mxu0 0.0
      %1182 = vmatprep.subr.mxu0 0.0
      %1183 = vmatpush1.msra.mxu0 0.0
      %1184 = vmatprep.subr.mxu0 0.0
      %1185 = vmatpush1.msra.mxu0 0.0
      %1186 = vmatprep.subr.mxu0 0.0
      %1187 = vmatpush1.msra.mxu0 0.0
      %1188 = vmatprep.subr.mxu0 0.0
      %1189 = vmatpush1.msra.mxu0 0.0
      %1190 = vmatprep.subr.mxu0 0.0
      %1191 = vmatpush1.msra.mxu0 0.0
      %1192 = vmatprep.subr.mxu0 0.0
      %1193 = vmatpush1.msra.mxu0 0.0
      %1194 = vmatprep.subr.mxu0 0.0
      %1195 = vmatpush1.msra.mxu0 0.0
      %1196 = vmatprep.subr.mxu0 0.0
      %1197 = vmatpush1.msra.mxu0 0.0
      %1198 = vmatprep.subr.mxu0 0.0
      %1199 = vmatpush1.msra.mxu0 0.0
      %1200 = vmatprep.mubr.f32.mxu0 0.0
      %1201 = vmatmul.mubr.f32.gmra.mrb[0].mxu0 %v1134
      %v1202 = vpop.f32.mrb[0].mxu0
      %v1203 = vadd.f32 0.0, %v1202
      %v1204 = vpop.f32.mrb[0].mxu0
      %1205 = vdwg.mxu0
      %v1206 = vadd.f32 %v1131, %v1203
      %1207 = vst.msk [vmem:[#allocation2 + $0x3] sm:$0x1f] %vm793, %v1206
      %s1208 = scalar_lea.vmem %s2, 576
      %v1209 = vld [vmem:[%s1208] sm:$0xff]
      %v1210 = vld [vmem:[%s1208 + $0x8] sm:$0xff]
      %v1211 = vld [vmem:[%s1208 + $0x10] sm:$0xff]
      %v1212 = vld [vmem:[%s1208 + $0x18] sm:$0xff]
      %v1213 = vld [vmem:[%s1208 + $0x20] sm:$0xff]
      %v1214 = vld [vmem:[%s1208 + $0x28] sm:$0xff]
      %v1215 = vld [vmem:[%s1208 + $0x30] sm:$0xff]
      %v1216 = vld [vmem:[%s1208 + $0x38] sm:$0xff]
      %v1217 = vld [vmem:[%s1208 + $0x40] sm:$0xff]
      %v1218 = vld [vmem:[%s1208 + $0x48] sm:$0xff]
      %v1219 = vld [vmem:[%s1208 + $0x50] sm:$0xff]
      %v1220 = vld [vmem:[%s1208 + $0x58] sm:$0xff]
      %v1221 = vld [vmem:[#allocation2] sm:$0x3]
      %v1222 = vld [vmem:[%s249 + $0x6] sm:$0x3]
      %v1224 = vsel %vm290, %v1222, 0
      %1226 = vmatprep.subr.mxu0 0.0
      %1227 = vmatpush1.msra.mxu0 %v1209
      %1228 = vmatprep.subr.mxu0 0.0
      %1229 = vmatpush1.msra.mxu0 %v1210
      %1230 = vmatprep.subr.mxu0 0.0
      %1231 = vmatpush1.msra.mxu0 %v1211
      %1232 = vmatprep.subr.mxu0 0.0
      %1233 = vmatpush1.msra.mxu0 %v1212
      %1234 = vmatprep.subr.mxu0 0.0
      %1235 = vmatpush1.msra.mxu0 %v1213
      %1236 = vmatprep.subr.mxu0 0.0
      %1237 = vmatpush1.msra.mxu0 %v1214
      %1238 = vmatprep.subr.mxu0 0.0
      %1239 = vmatpush1.msra.mxu0 %v1215
      %1240 = vmatprep.subr.mxu0 0.0
      %1241 = vmatpush1.msra.mxu0 %v1216
      %1242 = vmatprep.subr.mxu0 0.0
      %1243 = vmatpush1.msra.mxu0 %v1217
      %1244 = vmatprep.subr.mxu0 0.0
      %1245 = vmatpush1.msra.mxu0 %v1218
      %1246 = vmatprep.subr.mxu0 0.0
      %1247 = vmatpush1.msra.mxu0 %v1219
      %1248 = vmatprep.subr.mxu0 0.0
      %1249 = vmatpush1.msra.mxu0 %v1220
      %1250 = vmatprep.subr.mxu0 0.0
      %1251 = vmatpush1.msra.mxu0 0.0
      %1252 = vmatprep.subr.mxu0 0.0
      %1253 = vmatpush1.msra.mxu0 0.0
      %1254 = vmatprep.subr.mxu0 0.0
      %1255 = vmatpush1.msra.mxu0 0.0
      %1256 = vmatprep.subr.mxu0 0.0
      %1257 = vmatpush1.msra.mxu0 0.0
      %1258 = vmatprep.subr.mxu0 0.0
      %1259 = vmatpush1.msra.mxu0 0.0
      %1260 = vmatprep.subr.mxu0 0.0
      %1261 = vmatpush1.msra.mxu0 0.0
      %1262 = vmatprep.subr.mxu0 0.0
      %1263 = vmatpush1.msra.mxu0 0.0
      %1264 = vmatprep.subr.mxu0 0.0
      %1265 = vmatpush1.msra.mxu0 0.0
      %1266 = vmatprep.subr.mxu0 0.0
      %1267 = vmatpush1.msra.mxu0 0.0
      %1268 = vmatprep.subr.mxu0 0.0
      %1269 = vmatpush1.msra.mxu0 0.0
      %1270 = vmatprep.subr.mxu0 0.0
      %1271 = vmatpush1.msra.mxu0 0.0
      %1272 = vmatprep.subr.mxu0 0.0
      %1273 = vmatpush1.msra.mxu0 0.0
      %1274 = vmatprep.subr.mxu0 0.0
      %1275 = vmatpush1.msra.mxu0 0.0
      %1276 = vmatprep.subr.mxu0 0.0
      %1277 = vmatpush1.msra.mxu0 0.0
      %1278 = vmatprep.subr.mxu0 0.0
      %1279 = vmatpush1.msra.mxu0 0.0
      %1280 = vmatprep.subr.mxu0 0.0
      %1281 = vmatpush1.msra.mxu0 0.0
      %1282 = vmatprep.subr.mxu0 0.0
      %1283 = vmatpush1.msra.mxu0 0.0
      %1284 = vmatprep.subr.mxu0 0.0
      %1285 = vmatpush1.msra.mxu0 0.0
      %1286 = vmatprep.subr.mxu0 0.0
      %1287 = vmatpush1.msra.mxu0 0.0
      %1288 = vmatprep.subr.mxu0 0.0
      %1289 = vmatpush1.msra.mxu0 0.0
      %1290 = vmatprep.mubr.f32.mxu0 0.0
      %1291 = vmatmul.mubr.f32.gmra.mrb[0].mxu0 %v1224
      %v1292 = vpop.f32.mrb[0].mxu0
      %v1293 = vadd.f32 0.0, %v1292
      %v1294 = vpop.f32.mrb[0].mxu0
      %1295 = vdwg.mxu0
      %v1296 = vadd.f32 %v1221, %v1293
      %1297 = vst.msk [vmem:[#allocation2] sm:$0x3] %vm702, %v1296
      %v1298 = vld [vmem:[#allocation2 + $0x2] sm:$0x3f]
      %v1299 = vld [vmem:[%s258] sm:$0x3f]
      %v1301 = vsel %vm290, %v1299, 0
      %1303 = vmatprep.subr.mxu0 0.0
      %1304 = vmatpush1.msra.mxu0 %v1209
      %1305 = vmatprep.subr.mxu0 0.0
      %1306 = vmatpush1.msra.mxu0 %v1210
      %1307 = vmatprep.subr.mxu0 0.0
      %1308 = vmatpush1.msra.mxu0 %v1211
      %1309 = vmatprep.subr.mxu0 0.0
      %1310 = vmatpush1.msra.mxu0 %v1212
      %1311 = vmatprep.subr.mxu0 0.0
      %1312 = vmatpush1.msra.mxu0 %v1213
      %1313 = vmatprep.subr.mxu0 0.0
      %1314 = vmatpush1.msra.mxu0 %v1214
      %1315 = vmatprep.subr.mxu0 0.0
      %1316 = vmatpush1.msra.mxu0 %v1215
      %1317 = vmatprep.subr.mxu0 0.0
      %1318 = vmatpush1.msra.mxu0 %v1216
      %1319 = vmatprep.subr.mxu0 0.0
      %1320 = vmatpush1.msra.mxu0 %v1217
      %1321 = vmatprep.subr.mxu0 0.0
      %1322 = vmatpush1.msra.mxu0 %v1218
      %1323 = vmatprep.subr.mxu0 0.0
      %1324 = vmatpush1.msra.mxu0 %v1219
      %1325 = vmatprep.subr.mxu0 0.0
      %1326 = vmatpush1.msra.mxu0 %v1220
      %1327 = vmatprep.subr.mxu0 0.0
      %1328 = vmatpush1.msra.mxu0 0.0
      %1329 = vmatprep.subr.mxu0 0.0
      %1330 = vmatpush1.msra.mxu0 0.0
      %1331 = vmatprep.subr.mxu0 0.0
      %1332 = vmatpush1.msra.mxu0 0.0
      %1333 = vmatprep.subr.mxu0 0.0
      %1334 = vmatpush1.msra.mxu0 0.0
      %1335 = vmatprep.subr.mxu0 0.0
      %1336 = vmatpush1.msra.mxu0 0.0
      %1337 = vmatprep.subr.mxu0 0.0
      %1338 = vmatpush1.msra.mxu0 0.0
      %1339 = vmatprep.subr.mxu0 0.0
      %1340 = vmatpush1.msra.mxu0 0.0
      %1341 = vmatprep.subr.mxu0 0.0
      %1342 = vmatpush1.msra.mxu0 0.0
      %1343 = vmatprep.subr.mxu0 0.0
      %1344 = vmatpush1.msra.mxu0 0.0
      %1345 = vmatprep.subr.mxu0 0.0
      %1346 = vmatpush1.msra.mxu0 0.0
      %1347 = vmatprep.subr.mxu0 0.0
      %1348 = vmatpush1.msra.mxu0 0.0
      %1349 = vmatprep.subr.mxu0 0.0
      %1350 = vmatpush1.msra.mxu0 0.0
      %1351 = vmatprep.subr.mxu0 0.0
      %1352 = vmatpush1.msra.mxu0 0.0
      %1353 = vmatprep.subr.mxu0 0.0
      %1354 = vmatpush1.msra.mxu0 0.0
      %1355 = vmatprep.subr.mxu0 0.0
      %1356 = vmatpush1.msra.mxu0 0.0
      %1357 = vmatprep.subr.mxu0 0.0
      %1358 = vmatpush1.msra.mxu0 0.0
      %1359 = vmatprep.subr.mxu0 0.0
      %1360 = vmatpush1.msra.mxu0 0.0
      %1361 = vmatprep.subr.mxu0 0.0
      %1362 = vmatpush1.msra.mxu0 0.0
      %1363 = vmatprep.subr.mxu0 0.0
      %1364 = vmatpush1.msra.mxu0 0.0
      %1365 = vmatprep.subr.mxu0 0.0
      %1366 = vmatpush1.msra.mxu0 0.0
      %1367 = vmatprep.mubr.f32.mxu0 0.0
      %1368 = vmatmul.mubr.f32.gmra.mrb[0].mxu0 %v1301
      %v1369 = vpop.f32.mrb[0].mxu0
      %v1370 = vadd.f32 0.0, %v1369
      %v1371 = vpop.f32.mrb[0].mxu0
      %1372 = vdwg.mxu0
      %v1373 = vadd.f32 %v1298, %v1370
      %1374 = vst.msk [vmem:[#allocation2 + $0x2] sm:$0x3f] %vm624, %v1373
      %v1375 = vld [vmem:[#allocation2] sm:$0xff]
      %1376 = vst.msk [vmem:[%s266] sm:$0xff] %vm274, %v1375
      %p1377 = scmp.lt.s32.totalorder %s21, 1
      %s1378 = scalar_select %p1377, %s21, 1
      %p1379 = scmp.lt.s32.totalorder %s22, 0
      %s1380 = scalar_select %p1379, %s22, 0
      %s1381 = sadd.s32 %s1380, %s1378
      %s1382 = smul.addr %s1381, 8
      %s1383 = scalar_lea.vmem %s4, %s1382
      // Predicated region
      $region37: #{_forward_impl.7} parent=35 // pred_check
        %p1384 = pneg %p149
      $region38: #{_forward_impl.7} parent=35 // pred_check_branch
        %1386 = sbr.rel (%p1384) target = $region40
      $region39: #{_forward_impl.7} parent=35 // pred_region
        _
      $region40: #{_forward_impl.7} parent=35 // pred_fallthru
        _
    $region36: #{_forward_impl.7} parent=5 // pred_fallthru
      _
    %p1387 = scmp.le.s32.totalorder 2, %s12
    // Predicated region
    $region41: #{_forward_impl.7} parent=5 // pred_check
      %p1388 = pneg %p1387
    $region42: #{_forward_impl.7} parent=5 // pred_check_branch
      %1390 = sbr.rel (%p1388) target = $region44
    $region43: #{_forward_impl.7} parent=5 // pred_region
      %s1391 = ssub.s32 %s12, 2
      // Predicated region
      $region45: #{_forward_impl.7} parent=43 // pred_check
        %p1392 = pneg %p155
      $region46: #{_forward_impl.7} parent=43 // pred_check_branch
        %1394 = sbr.rel (%p1392) target = $region48
      $region47: #{_forward_impl.7} parent=43 // pred_region
        %p1395 = scmp.lt.s32.totalorder %s23, 1
        %s1396 = scalar_select %p1395, %s23, 1
        %p1397 = scmp.lt.s32.totalorder %s24, 0
        %s1398 = scalar_select %p1397, %s24, 0
        %s1399 = sadd.s32 %s1398, %s1396
        %s1400 = smul.addr %s1399, 8
        %s1401 = scalar_lea.vmem %s4, %s1400
      $region48: #{_forward_impl.7} parent=43 // pred_fallthru
        _
    $region44: #{_forward_impl.7} parent=5 // pred_fallthru
      _
  $region6: #{_forward_impl.7} parent=0 // loop_footer
    %s16 = sadd.s32 1, %s12
  $region7: #{_forward_impl.7} parent=0 // loop_footer_branch
    %11 = sbr.rel target = $region3
  $region8: #{_forward_impl.7} parent=0 // loop_exit
    _

</llo_original>
